<compile_context>
chip_gen: v7x
topology: tpu7x:2x2x1
jax: 0.10.0
libtpu: 0.0.40
codegen_flags: <defaults>
</compile_context>

<pallas_src>
import jax
import jax.numpy as jnp
from jax import lax
from jax.experimental import pallas as pl
from jax.experimental.pallas import tpu as pltpu

# Force full-f32 matmuls on both the XLA reference and the kernel so the
# correctness check can be tight.
jax.config.update("jax_default_matmul_precision", "highest")

# ----------------------------- problem sizes -------------------------------
B = 2          # batch
N = 8          # doc_length (sequence length)
V = 32         # embed_dim
H = 32         # hidden_size
C = 32         # compare_dim
FH = 32        # fc_hiddim
VOCAB = 50     # vocab_size
VOCAB_PAD = 64 # one-hot width (>= VOCAB, lane friendly)

# ------------------------ packed weight-slab layout -------------------------
# Slab A: (SLAB_A_ROWS, 4H=128) f32
A_WIH, A_WHH, A_BIAS = 0, V, V + H          # rows 0:32, 32:64, 64
SLAB_A_ROWS = 72
# Slab B: (SLAB_B_ROWS, 32) f32
B_EMB, B_WCLO, B_WCHI, B_W1 = 0, 64, 96, 128
B_BC, B_B1, B_W2, B_B2 = 256, 257, 258, 259
SLAB_B_ROWS = 264


# ------------------------- fused forward kernel ----------------------------
def da_fused_kernel(ids_ref, wa_ref, wb_ref, out_ref):
    # ids_ref: (2B*N,) int32 in SMEM, row-major (batch, doc, time) order.
    # wa_ref:  (72, 128) f32 packed slab: W_ih^T | W_hh^T | (b_ih+b_hh),
    #          with the g-gate column block pre-scaled by 2.
    # wb_ref:  (264, 32) f32 packed slab: embed(64) | wc_lo | wc_hi | w1^T |
    #          bc | b1 | w2 | b2.
    # out_ref: (B, 1) sigmoid probabilities.
    nb2 = 2 * B

    # --- static views into the two packed weight slabs ---
    wih = wa_ref[A_WIH:A_WIH + V, :]              # (V, 4H)
    whh = wa_ref[A_WHH:A_WHH + H, :]              # (H, 4H)
    bias = wa_ref[A_BIAS:A_BIAS + 1, :]           # (1, 4H)
    embed = wb_ref[B_EMB:B_EMB + VOCAB_PAD, :]    # (64, V)
    wc_lo = wb_ref[B_WCLO:B_WCLO + H, :]          # (H, C)
    wc_hi = wb_ref[B_WCHI:B_WCHI + H, :]          # (H, C)
    w1 = wb_ref[B_W1:B_W1 + 4 * C, :]             # (4C, FH)
    bc = wb_ref[B_BC:B_BC + 1, :]                 # (1, C)
    b1 = wb_ref[B_B1:B_B1 + 1, :]                 # (1, FH)
    w2r = wb_ref[B_W2:B_W2 + 1, :]                # (1, FH)
    b2 = wb_ref[B_B2:B_B2 + 1, :]                 # (1, C), every lane = b2

    # --- in-kernel embedding lookup: exact one-hot gather via one matmul ---
    lane = lax.broadcasted_iota(jnp.int32, (1, VOCAB_PAD), 1)
    rows = []
    for r in range(N * nb2):                      # dest row = t*2B + d*B + b
        t, rem = r // nb2, r % nb2
        d, b = rem // B, rem % B
        tok = ids_ref[b * 2 * N + d * N + t]      # ids stored (b, d, t) row-major
        rows.append((lane == tok).astype(jnp.float32))
    onehot = jnp.concatenate(rows, axis=0)        # (2B*N, 64)
    x2d = jnp.dot(onehot, embed,
                  preferred_element_type=jnp.float32)           # (2B*N, V)

    # --- LSTM over both documents stacked along the batch axis (2B rows) ---
    # Hoisted input projection: one matmul off the serial recurrence path.
    gates_x = jnp.dot(x2d, wih,
                      preferred_element_type=jnp.float32) + bias  # (2B*N, 4H)
    h = jnp.zeros((nb2, H), jnp.float32)
    c = jnp.zeros((nb2, H), jnp.float32)
    hs = []
    for t in range(N):                            # static unroll, N = 8
        g = gates_x[t * nb2:(t + 1) * nb2, :] + jnp.dot(
            h, whh, preferred_element_type=jnp.float32)           # (2B, 4H)
        sig = jax.nn.sigmoid(g)                   # single EUP pass per step
        i_g = sig[:, 0 * H:1 * H]
        f_g = sig[:, 1 * H:2 * H]
        g_g = 2.0 * sig[:, 2 * H:3 * H] - 1.0     # tanh(x) = 2*sigmoid(2x) - 1
        o_g = sig[:, 3 * H:4 * H]
        c = f_g * c + i_g * g_g
        h = o_g * jnp.tanh(c)
        hs.append(h)                              # stays register-resident
    o_all = jnp.stack(hs, axis=1)                 # (2B, N, H)
    o1, o2 = o_all[:B], o_all[B:]                 # doc1 (o2a), doc2 (o2b)

    # --- attention: one score matmul, two softmaxes, two context matmuls ---
    s = jnp.einsum('bnh,bmh->bnm', o1, o2,
                   preferred_element_type=jnp.float32)            # o3 (B,N,N)
    e_b = jnp.exp(s - jnp.max(s, axis=-1, keepdims=True))
    p_b = e_b / jnp.sum(e_b, axis=-1, keepdims=True)              # softmax dim=2
    s_t = jnp.stack([s[i].T for i in range(B)], axis=0)           # per-batch XLU transpose
    e_a = jnp.exp(s_t - jnp.max(s_t, axis=-1, keepdims=True))
    p_a = e_a / jnp.sum(e_a, axis=-1, keepdims=True)              # softmax dim=1, transposed
    o5c = jnp.einsum('bnm,bmh->bnh', p_b, o2,
                     preferred_element_type=jnp.float32)          # (B,N,H)
    o5d = jnp.einsum('bnm,bmh->bnh', p_a, o1,
                     preferred_element_type=jnp.float32)          # (B,N,H)

    # --- compare: both docs fused into ONE pair of (2B*N,H) matmuls + ReLU ---
    o_flat = o_all.reshape(nb2 * N, H)
    o5_flat = jnp.concatenate([o5c, o5d], axis=0).reshape(nb2 * N, H)
    comp = jnp.maximum(
        jnp.dot(o_flat, wc_lo, preferred_element_type=jnp.float32)
        + jnp.dot(o5_flat, wc_hi, preferred_element_type=jnp.float32)
        + bc, 0.0)                                                # (2B*N, C)
    comp_a = comp[:B * N].reshape(B, N, C)
    comp_b = comp[B * N:].reshape(B, N, C)

    # --- avg / max pooling over the sequence axis ---
    inv_n = 1.0 / N
    avg_a = jnp.sum(comp_a, axis=1) * inv_n
    max_a = jnp.max(comp_a, axis=1)
    avg_b = jnp.sum(comp_b, axis=1) * inv_n
    max_b = jnp.max(comp_b, axis=1)

    # --- fc: one (B,4C)@(4C,FH) matmul, final (FH,1) dot as a lane reduce ---
    feat = jnp.concatenate(
        [jnp.abs(avg_a - avg_b), jnp.abs(max_a - max_b),
         avg_a * avg_b, max_a * max_b], axis=1)                   # (B, 4C)
    hidden = jnp.maximum(
        jnp.dot(feat, w1, preferred_element_type=jnp.float32) + b1, 0.0)
    logit = jnp.sum(hidden * w2r, axis=1, keepdims=True) + b2[:, 0:1]  # (B, 1)
    out_ref[...] = jax.nn.sigmoid(logit)


# --------------------------- one-time weight prep ---------------------------
def prepare_params(params):
    """Fold everything into two packed f32 slabs (one DMA each)."""
    # Embedding max_norm=5 renorm, applied functionally to the whole table.
    # TODO(synk): PyTorch renorms only the looked-up rows in place at lookup
    # time; forward outputs match, but persisted embedding state would differ
    # if this were used for training.
    embed_w = params['embed']
    norms = jnp.sqrt(jnp.sum(embed_w * embed_w, axis=1, keepdims=True))
    embed_w = embed_w * jnp.where(norms > 5.0, 5.0 / (norms + 1e-7), 1.0)

    # Pre-scale the g-gate column block by 2 so tanh(x) = 2*sigmoid(2x) - 1
    # lets the kernel run one sigmoid over the whole (2B,4H) gate tile.
    gate_scale = jnp.concatenate(
        [jnp.ones((2 * H,), jnp.float32),
         jnp.full((H,), 2.0, jnp.float32),
         jnp.ones((H,), jnp.float32)])                  # (4H,)  i f g o
    wih_t = jnp.transpose(params['w_ih']) * gate_scale[None, :]   # (V, 4H)
    whh_t = jnp.transpose(params['w_hh']) * gate_scale[None, :]   # (H, 4H)
    bias = (params['b_ih'] + params['b_hh']) * gate_scale          # (4H,)

    slab_a = jnp.zeros((SLAB_A_ROWS, 4 * H), jnp.float32)
    slab_a = slab_a.at[A_WIH:A_WIH + V].set(wih_t)
    slab_a = slab_a.at[A_WHH:A_WHH + H].set(whh_t)
    slab_a = slab_a.at[A_BIAS].set(bias)

    wc_t = jnp.transpose(params['wc'])                  # (2H, C)
    slab_b = jnp.zeros((SLAB_B_ROWS, C), jnp.float32)
    slab_b = slab_b.at[B_EMB:B_EMB + VOCAB].set(embed_w)
    slab_b = slab_b.at[B_WCLO:B_WCLO + H].set(wc_t[:H])
    slab_b = slab_b.at[B_WCHI:B_WCHI + H].set(wc_t[H:])
    slab_b = slab_b.at[B_W1:B_W1 + 4 * C].set(jnp.transpose(params['w1']))
    slab_b = slab_b.at[B_BC].set(params['bc'])
    slab_b = slab_b.at[B_B1].set(params['b1'])
    slab_b = slab_b.at[B_W2].set(params['w2'][0])
    slab_b = slab_b.at[B_B2].set(jnp.full((C,), params['b2'][0]))
    return {'slab_a': slab_a, 'slab_b': slab_b}


# ------------------------------- full forward -------------------------------
@jax.jit
def da_forward(x_ids, prep):
    # x_ids: (B, 2, N) int32 token ids. Flatten (free, row-major) and let the
    # kernel do the reorder + embedding gather itself.
    ids_flat = x_ids.reshape(-1).astype(jnp.int32)      # (B*2*N,)
    out = pl.pallas_call(
        da_fused_kernel,
        out_shape=jax.ShapeDtypeStruct((B, 1), jnp.float32),
        in_specs=[
            pl.BlockSpec(memory_space=pltpu.MemorySpace.SMEM),   # token ids
            pl.BlockSpec(memory_space=pltpu.MemorySpace.VMEM),   # slab A (128-wide)
            pl.BlockSpec(memory_space=pltpu.MemorySpace.VMEM),   # slab B (32-wide)
        ],
        out_specs=pl.BlockSpec(memory_space=pltpu.MemorySpace.VMEM),
    )(ids_flat, prep['slab_a'], prep['slab_b'])
    return out[:, 0]                                    # (B,)


# ------------------------------ pure-JAX check ------------------------------
def _reference_forward(x_ids, params):
    """Pure-JAX mirror of PyTorch DA.forward (eval mode, sta_feat=None)."""
    embed_w = params['embed']
    norms = jnp.sqrt(jnp.sum(embed_w * embed_w, axis=1, keepdims=True))
    embed_w = embed_w * jnp.where(norms > 5.0, 5.0 / (norms + 1e-7), 1.0)
    emb = embed_w[x_ids]                  # (B, 2, N, V)
    x1, x2 = emb[:, 0], emb[:, 1]

    wih, whh = params['w_ih'], params['w_hh']
    bias = params['b_ih'] + params['b_hh']

    def lstm(xs):                         # (B, N, V) -> (B, N, H)
        def step(carry, x_t):
            h, c = carry
            g = x_t @ wih.T + h @ whh.T + bias
            i = jax.nn.sigmoid(g[:, :H])
            f = jax.nn.sigmoid(g[:, H:2 * H])
            gg = jnp.tanh(g[:, 2 * H:3 * H])
            o = jax.nn.sigmoid(g[:, 3 * H:])
            c = f * c + i * gg
            h = o * jnp.tanh(c)
            return (h, c), h
        h0 = jnp.zeros((xs.shape[0], H), jnp.float32)
        _, hs = lax.scan(step, (h0, h0), jnp.swapaxes(xs, 0, 1))
        return jnp.swapaxes(hs, 0, 1)

    o2a, o2b = lstm(x1), lstm(x2)
    o3 = jnp.einsum('bnh,bmh->bnm', o2a, o2b)
    o4b = jax.nn.softmax(o3, axis=2)
    o4a = jnp.swapaxes(jax.nn.softmax(o3, axis=1), 1, 2)
    o5c = o4b @ o2b
    o5d = o4a @ o2a
    comp = lambda z: jnp.maximum(z @ params['wc'].T + params['bc'], 0.0)
    o5a = comp(jnp.concatenate([o2a, o5c], axis=2))
    o5b = comp(jnp.concatenate([o2b, o5d], axis=2))
    o8a = jnp.concatenate([o5a.mean(axis=1), o5a.max(axis=1)], axis=1)
    o8b = jnp.concatenate([o5b.mean(axis=1), o5b.max(axis=1)], axis=1)
    feat = jnp.concatenate([jnp.abs(o8a - o8b), o8a * o8b], axis=1)
    hid = jnp.maximum(feat @ params['w1'].T + params['b1'], 0.0)
    logit = hid @ params['w2'].T + params['b2']
    return jax.nn.sigmoid(logit).reshape(-1)


def init_params(key):
    ks = jax.random.split(key, 12)
    p = {
        'embed': 0.1 * jax.random.normal(ks[0], (VOCAB, V), jnp.float32),
        'w_ih': 0.1 * jax.random.normal(ks[1], (4 * H, V), jnp.float32),
        'w_hh': 0.1 * jax.random.normal(ks[2], (4 * H, H), jnp.float32),
        'b_ih': 0.1 * jax.random.normal(ks[3], (4 * H,), jnp.float32),
        'b_hh': 0.1 * jax.random.normal(ks[4], (4 * H,), jnp.float32),
        'wc': 0.1 * jax.random.normal(ks[5], (C, 2 * H), jnp.float32),
        'bc': 0.1 * jax.random.normal(ks[6], (C,), jnp.float32),
        'w1': 0.1 * jax.random.normal(ks[7], (FH, 4 * C), jnp.float32),
        'b1': 0.1 * jax.random.normal(ks[8], (FH,), jnp.float32),
        'w2': 0.1 * jax.random.normal(ks[9], (1, FH), jnp.float32),
        'b2': 0.1 * jax.random.normal(ks[10], (1,), jnp.float32),
    }
    return p, ks[11]


if __name__ == "__main__":
    key = jax.random.PRNGKey(0)
    params, data_key = init_params(key)
    x_ids = jax.random.randint(data_key, (B, 2, N), 0, VOCAB, dtype=jnp.int32)

    prep = prepare_params(params)
    out = jax.block_until_ready(da_forward(x_ids, prep))
    assert out.shape == (B,)
    assert bool(jnp.all(jnp.isfinite(out)))

    ref = _reference_forward(x_ids, params)
    assert bool(jnp.allclose(out, ref, atol=2e-4, rtol=2e-4)), (out, ref)
    print("KERNEL_OK")
</pallas_src>

<mosaic_0001>
module attributes {stable_mosaic.version = 11 : i64} {
  func.func @da_fused_kernel(%arg0: memref<32xi32, #tpu.memory_space<smem>>, %arg1: memref<72x128xf32, #tpu.memory_space<vmem>>, %arg2: memref<264x32xf32, #tpu.memory_space<vmem>>, %arg3: memref<2x1xf32, #tpu.memory_space<vmem>>) attributes {dimension_semantics = [], scalar_prefetch = 0 : i64, scratch_operands = 0 : i64, tpu.core_type = #tpu.core_type<tc>} {
    %c0 = arith.constant 0 : index
    %c0_0 = arith.constant 0 : index
    %0 = vector.load %arg1[%c0, %c0_0] : memref<72x128xf32, #tpu.memory_space<vmem>>, vector<32x128xf32>
    %c32 = arith.constant 32 : index
    %c0_1 = arith.constant 0 : index
    %1 = vector.load %arg1[%c32, %c0_1] : memref<72x128xf32, #tpu.memory_space<vmem>>, vector<32x128xf32>
    %c64 = arith.constant 64 : index
    %c0_2 = arith.constant 0 : index
    %2 = vector.load %arg1[%c64, %c0_2] : memref<72x128xf32, #tpu.memory_space<vmem>>, vector<1x128xf32>
    %c0_3 = arith.constant 0 : index
    %c0_4 = arith.constant 0 : index
    %3 = vector.load %arg2[%c0_3, %c0_4] : memref<264x32xf32, #tpu.memory_space<vmem>>, vector<64x32xf32>
    %c64_5 = arith.constant 64 : index
    %c0_6 = arith.constant 0 : index
    %4 = vector.load %arg2[%c64_5, %c0_6] : memref<264x32xf32, #tpu.memory_space<vmem>>, vector<32x32xf32>
    %c96 = arith.constant 96 : index
    %c0_7 = arith.constant 0 : index
    %5 = vector.load %arg2[%c96, %c0_7] : memref<264x32xf32, #tpu.memory_space<vmem>>, vector<32x32xf32>
    %c128 = arith.constant 128 : index
    %c0_8 = arith.constant 0 : index
    %6 = vector.load %arg2[%c128, %c0_8] : memref<264x32xf32, #tpu.memory_space<vmem>>, vector<128x32xf32>
    %c256 = arith.constant 256 : index
    %c0_9 = arith.constant 0 : index
    %7 = vector.load %arg2[%c256, %c0_9] : memref<264x32xf32, #tpu.memory_space<vmem>>, vector<1x32xf32>
    %c257 = arith.constant 257 : index
    %c0_10 = arith.constant 0 : index
    %8 = vector.load %arg2[%c257, %c0_10] : memref<264x32xf32, #tpu.memory_space<vmem>>, vector<1x32xf32>
    %c258 = arith.constant 258 : index
    %c0_11 = arith.constant 0 : index
    %9 = vector.load %arg2[%c258, %c0_11] : memref<264x32xf32, #tpu.memory_space<vmem>>, vector<1x32xf32>
    %c259 = arith.constant 259 : index
    %c0_12 = arith.constant 0 : index
    %10 = vector.load %arg2[%c259, %c0_12] : memref<264x32xf32, #tpu.memory_space<vmem>>, vector<1x32xf32>
    %11 = tpu.iota {dimensions = array<i32: 1>} : vector<1x64xi32>
    %c0_13 = arith.constant 0 : index
    %12 = memref.load %arg0[%c0_13] : memref<32xi32, #tpu.memory_space<smem>>
    %13 = vector.broadcast %12 : i32 to vector<1x64xi32>
    %14 = arith.cmpi eq, %11, %13 : vector<1x64xi32>
    %15 = arith.extui %14 : vector<1x64xi1> to vector<1x64xi32>
    %16 = arith.sitofp %15 : vector<1x64xi32> to vector<1x64xf32>
    %c16 = arith.constant 16 : index
    %17 = memref.load %arg0[%c16] : memref<32xi32, #tpu.memory_space<smem>>
    %18 = vector.broadcast %17 : i32 to vector<1x64xi32>
    %19 = arith.cmpi eq, %11, %18 : vector<1x64xi32>
    %20 = arith.extui %19 : vector<1x64xi1> to vector<1x64xi32>
    %21 = arith.sitofp %20 : vector<1x64xi32> to vector<1x64xf32>
    %c8 = arith.constant 8 : index
    %22 = memref.load %arg0[%c8] : memref<32xi32, #tpu.memory_space<smem>>
    %23 = vector.broadcast %22 : i32 to vector<1x64xi32>
    %24 = arith.cmpi eq, %11, %23 : vector<1x64xi32>
    %25 = arith.extui %24 : vector<1x64xi1> to vector<1x64xi32>
    %26 = arith.sitofp %25 : vector<1x64xi32> to vector<1x64xf32>
    %c24 = arith.constant 24 : index
    %27 = memref.load %arg0[%c24] : memref<32xi32, #tpu.memory_space<smem>>
    %28 = vector.broadcast %27 : i32 to vector<1x64xi32>
    %29 = arith.cmpi eq, %11, %28 : vector<1x64xi32>
    %30 = arith.extui %29 : vector<1x64xi1> to vector<1x64xi32>
    %31 = arith.sitofp %30 : vector<1x64xi32> to vector<1x64xf32>
    %c1 = arith.constant 1 : index
    %32 = memref.load %arg0[%c1] : memref<32xi32, #tpu.memory_space<smem>>
    %33 = vector.broadcast %32 : i32 to vector<1x64xi32>
    %34 = arith.cmpi eq, %11, %33 : vector<1x64xi32>
    %35 = arith.extui %34 : vector<1x64xi1> to vector<1x64xi32>
    %36 = arith.sitofp %35 : vector<1x64xi32> to vector<1x64xf32>
    %c17 = arith.constant 17 : index
    %37 = memref.load %arg0[%c17] : memref<32xi32, #tpu.memory_space<smem>>
    %38 = vector.broadcast %37 : i32 to vector<1x64xi32>
    %39 = arith.cmpi eq, %11, %38 : vector<1x64xi32>
    %40 = arith.extui %39 : vector<1x64xi1> to vector<1x64xi32>
    %41 = arith.sitofp %40 : vector<1x64xi32> to vector<1x64xf32>
    %c9 = arith.constant 9 : index
    %42 = memref.load %arg0[%c9] : memref<32xi32, #tpu.memory_space<smem>>
    %43 = vector.broadcast %42 : i32 to vector<1x64xi32>
    %44 = arith.cmpi eq, %11, %43 : vector<1x64xi32>
    %45 = arith.extui %44 : vector<1x64xi1> to vector<1x64xi32>
    %46 = arith.sitofp %45 : vector<1x64xi32> to vector<1x64xf32>
    %c25 = arith.constant 25 : index
    %47 = memref.load %arg0[%c25] : memref<32xi32, #tpu.memory_space<smem>>
    %48 = vector.broadcast %47 : i32 to vector<1x64xi32>
    %49 = arith.cmpi eq, %11, %48 : vector<1x64xi32>
    %50 = arith.extui %49 : vector<1x64xi1> to vector<1x64xi32>
    %51 = arith.sitofp %50 : vector<1x64xi32> to vector<1x64xf32>
    %c2 = arith.constant 2 : index
    %52 = memref.load %arg0[%c2] : memref<32xi32, #tpu.memory_space<smem>>
    %53 = vector.broadcast %52 : i32 to vector<1x64xi32>
    %54 = arith.cmpi eq, %11, %53 : vector<1x64xi32>
    %55 = arith.extui %54 : vector<1x64xi1> to vector<1x64xi32>
    %56 = arith.sitofp %55 : vector<1x64xi32> to vector<1x64xf32>
    %c18 = arith.constant 18 : index
    %57 = memref.load %arg0[%c18] : memref<32xi32, #tpu.memory_space<smem>>
    %58 = vector.broadcast %57 : i32 to vector<1x64xi32>
    %59 = arith.cmpi eq, %11, %58 : vector<1x64xi32>
    %60 = arith.extui %59 : vector<1x64xi1> to vector<1x64xi32>
    %61 = arith.sitofp %60 : vector<1x64xi32> to vector<1x64xf32>
    %c10 = arith.constant 10 : index
    %62 = memref.load %arg0[%c10] : memref<32xi32, #tpu.memory_space<smem>>
    %63 = vector.broadcast %62 : i32 to vector<1x64xi32>
    %64 = arith.cmpi eq, %11, %63 : vector<1x64xi32>
    %65 = arith.extui %64 : vector<1x64xi1> to vector<1x64xi32>
    %66 = arith.sitofp %65 : vector<1x64xi32> to vector<1x64xf32>
    %c26 = arith.constant 26 : index
    %67 = memref.load %arg0[%c26] : memref<32xi32, #tpu.memory_space<smem>>
    %68 = vector.broadcast %67 : i32 to vector<1x64xi32>
    %69 = arith.cmpi eq, %11, %68 : vector<1x64xi32>
    %70 = arith.extui %69 : vector<1x64xi1> to vector<1x64xi32>
    %71 = arith.sitofp %70 : vector<1x64xi32> to vector<1x64xf32>
    %c3 = arith.constant 3 : index
    %72 = memref.load %arg0[%c3] : memref<32xi32, #tpu.memory_space<smem>>
    %73 = vector.broadcast %72 : i32 to vector<1x64xi32>
    %74 = arith.cmpi eq, %11, %73 : vector<1x64xi32>
    %75 = arith.extui %74 : vector<1x64xi1> to vector<1x64xi32>
    %76 = arith.sitofp %75 : vector<1x64xi32> to vector<1x64xf32>
    %c19 = arith.constant 19 : index
    %77 = memref.load %arg0[%c19] : memref<32xi32, #tpu.memory_space<smem>>
    %78 = vector.broadcast %77 : i32 to vector<1x64xi32>
    %79 = arith.cmpi eq, %11, %78 : vector<1x64xi32>
    %80 = arith.extui %79 : vector<1x64xi1> to vector<1x64xi32>
    %81 = arith.sitofp %80 : vector<1x64xi32> to vector<1x64xf32>
    %c11 = arith.constant 11 : index
    %82 = memref.load %arg0[%c11] : memref<32xi32, #tpu.memory_space<smem>>
    %83 = vector.broadcast %82 : i32 to vector<1x64xi32>
    %84 = arith.cmpi eq, %11, %83 : vector<1x64xi32>
    %85 = arith.extui %84 : vector<1x64xi1> to vector<1x64xi32>
    %86 = arith.sitofp %85 : vector<1x64xi32> to vector<1x64xf32>
    %c27 = arith.constant 27 : index
    %87 = memref.load %arg0[%c27] : memref<32xi32, #tpu.memory_space<smem>>
    %88 = vector.broadcast %87 : i32 to vector<1x64xi32>
    %89 = arith.cmpi eq, %11, %88 : vector<1x64xi32>
    %90 = arith.extui %89 : vector<1x64xi1> to vector<1x64xi32>
    %91 = arith.sitofp %90 : vector<1x64xi32> to vector<1x64xf32>
    %c4 = arith.constant 4 : index
    %92 = memref.load %arg0[%c4] : memref<32xi32, #tpu.memory_space<smem>>
    %93 = vector.broadcast %92 : i32 to vector<1x64xi32>
    %94 = arith.cmpi eq, %11, %93 : vector<1x64xi32>
    %95 = arith.extui %94 : vector<1x64xi1> to vector<1x64xi32>
    %96 = arith.sitofp %95 : vector<1x64xi32> to vector<1x64xf32>
    %c20 = arith.constant 20 : index
    %97 = memref.load %arg0[%c20] : memref<32xi32, #tpu.memory_space<smem>>
    %98 = vector.broadcast %97 : i32 to vector<1x64xi32>
    %99 = arith.cmpi eq, %11, %98 : vector<1x64xi32>
    %100 = arith.extui %99 : vector<1x64xi1> to vector<1x64xi32>
    %101 = arith.sitofp %100 : vector<1x64xi32> to vector<1x64xf32>
    %c12 = arith.constant 12 : index
    %102 = memref.load %arg0[%c12] : memref<32xi32, #tpu.memory_space<smem>>
    %103 = vector.broadcast %102 : i32 to vector<1x64xi32>
    %104 = arith.cmpi eq, %11, %103 : vector<1x64xi32>
    %105 = arith.extui %104 : vector<1x64xi1> to vector<1x64xi32>
    %106 = arith.sitofp %105 : vector<1x64xi32> to vector<1x64xf32>
    %c28 = arith.constant 28 : index
    %107 = memref.load %arg0[%c28] : memref<32xi32, #tpu.memory_space<smem>>
    %108 = vector.broadcast %107 : i32 to vector<1x64xi32>
    %109 = arith.cmpi eq, %11, %108 : vector<1x64xi32>
    %110 = arith.extui %109 : vector<1x64xi1> to vector<1x64xi32>
    %111 = arith.sitofp %110 : vector<1x64xi32> to vector<1x64xf32>
    %c5 = arith.constant 5 : index
    %112 = memref.load %arg0[%c5] : memref<32xi32, #tpu.memory_space<smem>>
    %113 = vector.broadcast %112 : i32 to vector<1x64xi32>
    %114 = arith.cmpi eq, %11, %113 : vector<1x64xi32>
    %115 = arith.extui %114 : vector<1x64xi1> to vector<1x64xi32>
    %116 = arith.sitofp %115 : vector<1x64xi32> to vector<1x64xf32>
    %c21 = arith.constant 21 : index
    %117 = memref.load %arg0[%c21] : memref<32xi32, #tpu.memory_space<smem>>
    %118 = vector.broadcast %117 : i32 to vector<1x64xi32>
    %119 = arith.cmpi eq, %11, %118 : vector<1x64xi32>
    %120 = arith.extui %119 : vector<1x64xi1> to vector<1x64xi32>
    %121 = arith.sitofp %120 : vector<1x64xi32> to vector<1x64xf32>
    %c13 = arith.constant 13 : index
    %122 = memref.load %arg0[%c13] : memref<32xi32, #tpu.memory_space<smem>>
    %123 = vector.broadcast %122 : i32 to vector<1x64xi32>
    %124 = arith.cmpi eq, %11, %123 : vector<1x64xi32>
    %125 = arith.extui %124 : vector<1x64xi1> to vector<1x64xi32>
    %126 = arith.sitofp %125 : vector<1x64xi32> to vector<1x64xf32>
    %c29 = arith.constant 29 : index
    %127 = memref.load %arg0[%c29] : memref<32xi32, #tpu.memory_space<smem>>
    %128 = vector.broadcast %127 : i32 to vector<1x64xi32>
    %129 = arith.cmpi eq, %11, %128 : vector<1x64xi32>
    %130 = arith.extui %129 : vector<1x64xi1> to vector<1x64xi32>
    %131 = arith.sitofp %130 : vector<1x64xi32> to vector<1x64xf32>
    %c6 = arith.constant 6 : index
    %132 = memref.load %arg0[%c6] : memref<32xi32, #tpu.memory_space<smem>>
    %133 = vector.broadcast %132 : i32 to vector<1x64xi32>
    %134 = arith.cmpi eq, %11, %133 : vector<1x64xi32>
    %135 = arith.extui %134 : vector<1x64xi1> to vector<1x64xi32>
    %136 = arith.sitofp %135 : vector<1x64xi32> to vector<1x64xf32>
    %c22 = arith.constant 22 : index
    %137 = memref.load %arg0[%c22] : memref<32xi32, #tpu.memory_space<smem>>
    %138 = vector.broadcast %137 : i32 to vector<1x64xi32>
    %139 = arith.cmpi eq, %11, %138 : vector<1x64xi32>
    %140 = arith.extui %139 : vector<1x64xi1> to vector<1x64xi32>
    %141 = arith.sitofp %140 : vector<1x64xi32> to vector<1x64xf32>
    %c14 = arith.constant 14 : index
    %142 = memref.load %arg0[%c14] : memref<32xi32, #tpu.memory_space<smem>>
    %143 = vector.broadcast %142 : i32 to vector<1x64xi32>
    %144 = arith.cmpi eq, %11, %143 : vector<1x64xi32>
    %145 = arith.extui %144 : vector<1x64xi1> to vector<1x64xi32>
    %146 = arith.sitofp %145 : vector<1x64xi32> to vector<1x64xf32>
    %c30 = arith.constant 30 : index
    %147 = memref.load %arg0[%c30] : memref<32xi32, #tpu.memory_space<smem>>
    %148 = vector.broadcast %147 : i32 to vector<1x64xi32>
    %149 = arith.cmpi eq, %11, %148 : vector<1x64xi32>
    %150 = arith.extui %149 : vector<1x64xi1> to vector<1x64xi32>
    %151 = arith.sitofp %150 : vector<1x64xi32> to vector<1x64xf32>
    %c7 = arith.constant 7 : index
    %152 = memref.load %arg0[%c7] : memref<32xi32, #tpu.memory_space<smem>>
    %153 = vector.broadcast %152 : i32 to vector<1x64xi32>
    %154 = arith.cmpi eq, %11, %153 : vector<1x64xi32>
    %155 = arith.extui %154 : vector<1x64xi1> to vector<1x64xi32>
    %156 = arith.sitofp %155 : vector<1x64xi32> to vector<1x64xf32>
    %c23 = arith.constant 23 : index
    %157 = memref.load %arg0[%c23] : memref<32xi32, #tpu.memory_space<smem>>
    %158 = vector.broadcast %157 : i32 to vector<1x64xi32>
    %159 = arith.cmpi eq, %11, %158 : vector<1x64xi32>
    %160 = arith.extui %159 : vector<1x64xi1> to vector<1x64xi32>
    %161 = arith.sitofp %160 : vector<1x64xi32> to vector<1x64xf32>
    %c15 = arith.constant 15 : index
    %162 = memref.load %arg0[%c15] : memref<32xi32, #tpu.memory_space<smem>>
    %163 = vector.broadcast %162 : i32 to vector<1x64xi32>
    %164 = arith.cmpi eq, %11, %163 : vector<1x64xi32>
    %165 = arith.extui %164 : vector<1x64xi1> to vector<1x64xi32>
    %166 = arith.sitofp %165 : vector<1x64xi32> to vector<1x64xf32>
    %c31 = arith.constant 31 : index
    %167 = memref.load %arg0[%c31] : memref<32xi32, #tpu.memory_space<smem>>
    %168 = vector.broadcast %167 : i32 to vector<1x64xi32>
    %169 = arith.cmpi eq, %11, %168 : vector<1x64xi32>
    %170 = arith.extui %169 : vector<1x64xi1> to vector<1x64xi32>
    %171 = arith.sitofp %170 : vector<1x64xi32> to vector<1x64xf32>
    %172 = tpu.concatenate %16, %21, %26, %31, %36, %41, %46, %51, %56, %61, %66, %71, %76, %81, %86, %91 in 0 : vector<1x64xf32>, vector<1x64xf32>, vector<1x64xf32>, vector<1x64xf32>, vector<1x64xf32>, vector<1x64xf32>, vector<1x64xf32>, vector<1x64xf32>, vector<1x64xf32>, vector<1x64xf32>, vector<1x64xf32>, vector<1x64xf32>, vector<1x64xf32>, vector<1x64xf32>, vector<1x64xf32>, vector<1x64xf32> -> vector<16x64xf32>
    %173 = tpu.concatenate %96, %101, %106, %111, %116, %121, %126, %131, %136, %141, %146, %151, %156, %161, %166, %171 in 0 : vector<1x64xf32>, vector<1x64xf32>, vector<1x64xf32>, vector<1x64xf32>, vector<1x64xf32>, vector<1x64xf32>, vector<1x64xf32>, vector<1x64xf32>, vector<1x64xf32>, vector<1x64xf32>, vector<1x64xf32>, vector<1x64xf32>, vector<1x64xf32>, vector<1x64xf32>, vector<1x64xf32>, vector<1x64xf32> -> vector<16x64xf32>
    %174 = tpu.concatenate %172, %173 in 0 : vector<16x64xf32>, vector<16x64xf32> -> vector<32x64xf32>
    %cst = arith.constant dense<0.000000e+00> : vector<32x32xf32>
    %175 = tpu.matmul %174, %3, %cst {dimension_numbers = #tpu.dot_dimension_numbers<[1], [0], [0], [1], [0, 0, 1, 1], [], []>, precision = #tpu.contract_precision<fp32>} : vector<32x64xf32>, vector<64x32xf32>, vector<32x32xf32> -> vector<32x32xf32>
    %cst_14 = arith.constant dense<0.000000e+00> : vector<32x128xf32>
    %176 = tpu.matmul %175, %0, %cst_14 {dimension_numbers = #tpu.dot_dimension_numbers<[1], [0], [0], [1], [0, 0, 1, 1], [], []>, precision = #tpu.contract_precision<fp32>} : vector<32x32xf32>, vector<32x128xf32>, vector<32x128xf32> -> vector<32x128xf32>
    %177 = vector.broadcast %2 : vector<1x128xf32> to vector<32x128xf32>
    %178 = arith.addf %176, %177 : vector<32x128xf32>
    %cst_15 = arith.constant 0.000000e+00 : f32
    %179 = vector.broadcast %cst_15 : f32 to vector<4x32xf32>
    %cst_16 = arith.constant 0.000000e+00 : f32
    %180 = vector.broadcast %cst_16 : f32 to vector<4x32xf32>
    %181 = vector.extract_strided_slice %178 {offsets = [0, 0], sizes = [4, 128], strides = [1, 1]} : vector<32x128xf32> to vector<4x128xf32>
    %cst_17 = arith.constant dense<0.000000e+00> : vector<4x128xf32>
    %182 = tpu.matmul %179, %1, %cst_17 {dimension_numbers = #tpu.dot_dimension_numbers<[1], [0], [0], [1], [0, 0, 1, 1], [], []>, precision = #tpu.contract_precision<fp32>} : vector<4x32xf32>, vector<32x128xf32>, vector<4x128xf32> -> vector<4x128xf32>
    %183 = arith.addf %181, %182 : vector<4x128xf32>
    %184 = arith.negf %183 : vector<4x128xf32>
    %185 = math.exp %184 : vector<4x128xf32>
    %cst_18 = arith.constant 1.000000e+00 : f32
    %186 = vector.broadcast %cst_18 : f32 to vector<4x128xf32>
    %187 = arith.addf %186, %185 : vector<4x128xf32>
    %188 = arith.divf %186, %187 : vector<4x128xf32>
    %189 = vector.extract_strided_slice %188 {offsets = [0, 0], sizes = [4, 32], strides = [1, 1]} : vector<4x128xf32> to vector<4x32xf32>
    %190 = vector.extract_strided_slice %188 {offsets = [0, 32], sizes = [4, 32], strides = [1, 1]} : vector<4x128xf32> to vector<4x32xf32>
    %191 = vector.extract_strided_slice %188 {offsets = [0, 64], sizes = [4, 32], strides = [1, 1]} : vector<4x128xf32> to vector<4x32xf32>
    %cst_19 = arith.constant 2.000000e+00 : f32
    %192 = vector.broadcast %cst_19 : f32 to vector<4x32xf32>
    %193 = arith.mulf %192, %191 : vector<4x32xf32>
    %cst_20 = arith.constant 1.000000e+00 : f32
    %194 = vector.broadcast %cst_20 : f32 to vector<4x32xf32>
    %195 = arith.subf %193, %194 : vector<4x32xf32>
    %196 = vector.extract_strided_slice %188 {offsets = [0, 96], sizes = [4, 32], strides = [1, 1]} : vector<4x128xf32> to vector<4x32xf32>
    %197 = arith.mulf %190, %180 : vector<4x32xf32>
    %198 = arith.mulf %189, %195 : vector<4x32xf32>
    %199 = arith.addf %197, %198 : vector<4x32xf32>
    %200 = math.tanh %199 : vector<4x32xf32>
    %201 = arith.mulf %196, %200 : vector<4x32xf32>
    %202 = vector.extract_strided_slice %178 {offsets = [4, 0], sizes = [4, 128], strides = [1, 1]} : vector<32x128xf32> to vector<4x128xf32>
    %cst_21 = arith.constant dense<0.000000e+00> : vector<4x128xf32>
    %203 = tpu.matmul %201, %1, %cst_21 {dimension_numbers = #tpu.dot_dimension_numbers<[1], [0], [0], [1], [0, 0, 1, 1], [], []>, precision = #tpu.contract_precision<fp32>} : vector<4x32xf32>, vector<32x128xf32>, vector<4x128xf32> -> vector<4x128xf32>
    %204 = arith.addf %202, %203 : vector<4x128xf32>
    %205 = arith.negf %204 : vector<4x128xf32>
    %206 = math.exp %205 : vector<4x128xf32>
    %cst_22 = arith.constant 1.000000e+00 : f32
    %207 = vector.broadcast %cst_22 : f32 to vector<4x128xf32>
    %208 = arith.addf %207, %206 : vector<4x128xf32>
    %209 = arith.divf %207, %208 : vector<4x128xf32>
    %210 = vector.extract_strided_slice %209 {offsets = [0, 0], sizes = [4, 32], strides = [1, 1]} : vector<4x128xf32> to vector<4x32xf32>
    %211 = vector.extract_strided_slice %209 {offsets = [0, 32], sizes = [4, 32], strides = [1, 1]} : vector<4x128xf32> to vector<4x32xf32>
    %212 = vector.extract_strided_slice %209 {offsets = [0, 64], sizes = [4, 32], strides = [1, 1]} : vector<4x128xf32> to vector<4x32xf32>
    %cst_23 = arith.constant 2.000000e+00 : f32
    %213 = vector.broadcast %cst_23 : f32 to vector<4x32xf32>
    %214 = arith.mulf %213, %212 : vector<4x32xf32>
    %cst_24 = arith.constant 1.000000e+00 : f32
    %215 = vector.broadcast %cst_24 : f32 to vector<4x32xf32>
    %216 = arith.subf %214, %215 : vector<4x32xf32>
    %217 = vector.extract_strided_slice %209 {offsets = [0, 96], sizes = [4, 32], strides = [1, 1]} : vector<4x128xf32> to vector<4x32xf32>
    %218 = arith.mulf %211, %199 : vector<4x32xf32>
    %219 = arith.mulf %210, %216 : vector<4x32xf32>
    %220 = arith.addf %218, %219 : vector<4x32xf32>
    %221 = math.tanh %220 : vector<4x32xf32>
    %222 = arith.mulf %217, %221 : vector<4x32xf32>
    %223 = vector.extract_strided_slice %178 {offsets = [8, 0], sizes = [4, 128], strides = [1, 1]} : vector<32x128xf32> to vector<4x128xf32>
    %cst_25 = arith.constant dense<0.000000e+00> : vector<4x128xf32>
    %224 = tpu.matmul %222, %1, %cst_25 {dimension_numbers = #tpu.dot_dimension_numbers<[1], [0], [0], [1], [0, 0, 1, 1], [], []>, precision = #tpu.contract_precision<fp32>} : vector<4x32xf32>, vector<32x128xf32>, vector<4x128xf32> -> vector<4x128xf32>
    %225 = arith.addf %223, %224 : vector<4x128xf32>
    %226 = arith.negf %225 : vector<4x128xf32>
    %227 = math.exp %226 : vector<4x128xf32>
    %cst_26 = arith.constant 1.000000e+00 : f32
    %228 = vector.broadcast %cst_26 : f32 to vector<4x128xf32>
    %229 = arith.addf %228, %227 : vector<4x128xf32>
    %230 = arith.divf %228, %229 : vector<4x128xf32>
    %231 = vector.extract_strided_slice %230 {offsets = [0, 0], sizes = [4, 32], strides = [1, 1]} : vector<4x128xf32> to vector<4x32xf32>
    %232 = vector.extract_strided_slice %230 {offsets = [0, 32], sizes = [4, 32], strides = [1, 1]} : vector<4x128xf32> to vector<4x32xf32>
    %233 = vector.extract_strided_slice %230 {offsets = [0, 64], sizes = [4, 32], strides = [1, 1]} : vector<4x128xf32> to vector<4x32xf32>
    %cst_27 = arith.constant 2.000000e+00 : f32
    %234 = vector.broadcast %cst_27 : f32 to vector<4x32xf32>
    %235 = arith.mulf %234, %233 : vector<4x32xf32>
    %cst_28 = arith.constant 1.000000e+00 : f32
    %236 = vector.broadcast %cst_28 : f32 to vector<4x32xf32>
    %237 = arith.subf %235, %236 : vector<4x32xf32>
    %238 = vector.extract_strided_slice %230 {offsets = [0, 96], sizes = [4, 32], strides = [1, 1]} : vector<4x128xf32> to vector<4x32xf32>
    %239 = arith.mulf %232, %220 : vector<4x32xf32>
    %240 = arith.mulf %231, %237 : vector<4x32xf32>
    %241 = arith.addf %239, %240 : vector<4x32xf32>
    %242 = math.tanh %241 : vector<4x32xf32>
    %243 = arith.mulf %238, %242 : vector<4x32xf32>
    %244 = vector.extract_strided_slice %178 {offsets = [12, 0], sizes = [4, 128], strides = [1, 1]} : vector<32x128xf32> to vector<4x128xf32>
    %cst_29 = arith.constant dense<0.000000e+00> : vector<4x128xf32>
    %245 = tpu.matmul %243, %1, %cst_29 {dimension_numbers = #tpu.dot_dimension_numbers<[1], [0], [0], [1], [0, 0, 1, 1], [], []>, precision = #tpu.contract_precision<fp32>} : vector<4x32xf32>, vector<32x128xf32>, vector<4x128xf32> -> vector<4x128xf32>
    %246 = arith.addf %244, %245 : vector<4x128xf32>
    %247 = arith.negf %246 : vector<4x128xf32>
    %248 = math.exp %247 : vector<4x128xf32>
    %cst_30 = arith.constant 1.000000e+00 : f32
    %249 = vector.broadcast %cst_30 : f32 to vector<4x128xf32>
    %250 = arith.addf %249, %248 : vector<4x128xf32>
    %251 = arith.divf %249, %250 : vector<4x128xf32>
    %252 = vector.extract_strided_slice %251 {offsets = [0, 0], sizes = [4, 32], strides = [1, 1]} : vector<4x128xf32> to vector<4x32xf32>
    %253 = vector.extract_strided_slice %251 {offsets = [0, 32], sizes = [4, 32], strides = [1, 1]} : vector<4x128xf32> to vector<4x32xf32>
    %254 = vector.extract_strided_slice %251 {offsets = [0, 64], sizes = [4, 32], strides = [1, 1]} : vector<4x128xf32> to vector<4x32xf32>
    %cst_31 = arith.constant 2.000000e+00 : f32
    %255 = vector.broadcast %cst_31 : f32 to vector<4x32xf32>
    %256 = arith.mulf %255, %254 : vector<4x32xf32>
    %cst_32 = arith.constant 1.000000e+00 : f32
    %257 = vector.broadcast %cst_32 : f32 to vector<4x32xf32>
    %258 = arith.subf %256, %257 : vector<4x32xf32>
    %259 = vector.extract_strided_slice %251 {offsets = [0, 96], sizes = [4, 32], strides = [1, 1]} : vector<4x128xf32> to vector<4x32xf32>
    %260 = arith.mulf %253, %241 : vector<4x32xf32>
    %261 = arith.mulf %252, %258 : vector<4x32xf32>
    %262 = arith.addf %260, %261 : vector<4x32xf32>
    %263 = math.tanh %262 : vector<4x32xf32>
    %264 = arith.mulf %259, %263 : vector<4x32xf32>
    %265 = vector.extract_strided_slice %178 {offsets = [16, 0], sizes = [4, 128], strides = [1, 1]} : vector<32x128xf32> to vector<4x128xf32>
    %cst_33 = arith.constant dense<0.000000e+00> : vector<4x128xf32>
    %266 = tpu.matmul %264, %1, %cst_33 {dimension_numbers = #tpu.dot_dimension_numbers<[1], [0], [0], [1], [0, 0, 1, 1], [], []>, precision = #tpu.contract_precision<fp32>} : vector<4x32xf32>, vector<32x128xf32>, vector<4x128xf32> -> vector<4x128xf32>
    %267 = arith.addf %265, %266 : vector<4x128xf32>
    %268 = arith.negf %267 : vector<4x128xf32>
    %269 = math.exp %268 : vector<4x128xf32>
    %cst_34 = arith.constant 1.000000e+00 : f32
    %270 = vector.broadcast %cst_34 : f32 to vector<4x128xf32>
    %271 = arith.addf %270, %269 : vector<4x128xf32>
    %272 = arith.divf %270, %271 : vector<4x128xf32>
    %273 = vector.extract_strided_slice %272 {offsets = [0, 0], sizes = [4, 32], strides = [1, 1]} : vector<4x128xf32> to vector<4x32xf32>
    %274 = vector.extract_strided_slice %272 {offsets = [0, 32], sizes = [4, 32], strides = [1, 1]} : vector<4x128xf32> to vector<4x32xf32>
    %275 = vector.extract_strided_slice %272 {offsets = [0, 64], sizes = [4, 32], strides = [1, 1]} : vector<4x128xf32> to vector<4x32xf32>
    %cst_35 = arith.constant 2.000000e+00 : f32
    %276 = vector.broadcast %cst_35 : f32 to vector<4x32xf32>
    %277 = arith.mulf %276, %275 : vector<4x32xf32>
    %cst_36 = arith.constant 1.000000e+00 : f32
    %278 = vector.broadcast %cst_36 : f32 to vector<4x32xf32>
    %279 = arith.subf %277, %278 : vector<4x32xf32>
    %280 = vector.extract_strided_slice %272 {offsets = [0, 96], sizes = [4, 32], strides = [1, 1]} : vector<4x128xf32> to vector<4x32xf32>
    %281 = arith.mulf %274, %262 : vector<4x32xf32>
    %282 = arith.mulf %273, %279 : vector<4x32xf32>
    %283 = arith.addf %281, %282 : vector<4x32xf32>
    %284 = math.tanh %283 : vector<4x32xf32>
    %285 = arith.mulf %280, %284 : vector<4x32xf32>
    %286 = vector.extract_strided_slice %178 {offsets = [20, 0], sizes = [4, 128], strides = [1, 1]} : vector<32x128xf32> to vector<4x128xf32>
    %cst_37 = arith.constant dense<0.000000e+00> : vector<4x128xf32>
    %287 = tpu.matmul %285, %1, %cst_37 {dimension_numbers = #tpu.dot_dimension_numbers<[1], [0], [0], [1], [0, 0, 1, 1], [], []>, precision = #tpu.contract_precision<fp32>} : vector<4x32xf32>, vector<32x128xf32>, vector<4x128xf32> -> vector<4x128xf32>
    %288 = arith.addf %286, %287 : vector<4x128xf32>
    %289 = arith.negf %288 : vector<4x128xf32>
    %290 = math.exp %289 : vector<4x128xf32>
    %cst_38 = arith.constant 1.000000e+00 : f32
    %291 = vector.broadcast %cst_38 : f32 to vector<4x128xf32>
    %292 = arith.addf %291, %290 : vector<4x128xf32>
    %293 = arith.divf %291, %292 : vector<4x128xf32>
    %294 = vector.extract_strided_slice %293 {offsets = [0, 0], sizes = [4, 32], strides = [1, 1]} : vector<4x128xf32> to vector<4x32xf32>
    %295 = vector.extract_strided_slice %293 {offsets = [0, 32], sizes = [4, 32], strides = [1, 1]} : vector<4x128xf32> to vector<4x32xf32>
    %296 = vector.extract_strided_slice %293 {offsets = [0, 64], sizes = [4, 32], strides = [1, 1]} : vector<4x128xf32> to vector<4x32xf32>
    %cst_39 = arith.constant 2.000000e+00 : f32
    %297 = vector.broadcast %cst_39 : f32 to vector<4x32xf32>
    %298 = arith.mulf %297, %296 : vector<4x32xf32>
    %cst_40 = arith.constant 1.000000e+00 : f32
    %299 = vector.broadcast %cst_40 : f32 to vector<4x32xf32>
    %300 = arith.subf %298, %299 : vector<4x32xf32>
    %301 = vector.extract_strided_slice %293 {offsets = [0, 96], sizes = [4, 32], strides = [1, 1]} : vector<4x128xf32> to vector<4x32xf32>
    %302 = arith.mulf %295, %283 : vector<4x32xf32>
    %303 = arith.mulf %294, %300 : vector<4x32xf32>
    %304 = arith.addf %302, %303 : vector<4x32xf32>
    %305 = math.tanh %304 : vector<4x32xf32>
    %306 = arith.mulf %301, %305 : vector<4x32xf32>
    %307 = vector.extract_strided_slice %178 {offsets = [24, 0], sizes = [4, 128], strides = [1, 1]} : vector<32x128xf32> to vector<4x128xf32>
    %cst_41 = arith.constant dense<0.000000e+00> : vector<4x128xf32>
    %308 = tpu.matmul %306, %1, %cst_41 {dimension_numbers = #tpu.dot_dimension_numbers<[1], [0], [0], [1], [0, 0, 1, 1], [], []>, precision = #tpu.contract_precision<fp32>} : vector<4x32xf32>, vector<32x128xf32>, vector<4x128xf32> -> vector<4x128xf32>
    %309 = arith.addf %307, %308 : vector<4x128xf32>
    %310 = arith.negf %309 : vector<4x128xf32>
    %311 = math.exp %310 : vector<4x128xf32>
    %cst_42 = arith.constant 1.000000e+00 : f32
    %312 = vector.broadcast %cst_42 : f32 to vector<4x128xf32>
    %313 = arith.addf %312, %311 : vector<4x128xf32>
    %314 = arith.divf %312, %313 : vector<4x128xf32>
    %315 = vector.extract_strided_slice %314 {offsets = [0, 0], sizes = [4, 32], strides = [1, 1]} : vector<4x128xf32> to vector<4x32xf32>
    %316 = vector.extract_strided_slice %314 {offsets = [0, 32], sizes = [4, 32], strides = [1, 1]} : vector<4x128xf32> to vector<4x32xf32>
    %317 = vector.extract_strided_slice %314 {offsets = [0, 64], sizes = [4, 32], strides = [1, 1]} : vector<4x128xf32> to vector<4x32xf32>
    %cst_43 = arith.constant 2.000000e+00 : f32
    %318 = vector.broadcast %cst_43 : f32 to vector<4x32xf32>
    %319 = arith.mulf %318, %317 : vector<4x32xf32>
    %cst_44 = arith.constant 1.000000e+00 : f32
    %320 = vector.broadcast %cst_44 : f32 to vector<4x32xf32>
    %321 = arith.subf %319, %320 : vector<4x32xf32>
    %322 = vector.extract_strided_slice %314 {offsets = [0, 96], sizes = [4, 32], strides = [1, 1]} : vector<4x128xf32> to vector<4x32xf32>
    %323 = arith.mulf %316, %304 : vector<4x32xf32>
    %324 = arith.mulf %315, %321 : vector<4x32xf32>
    %325 = arith.addf %323, %324 : vector<4x32xf32>
    %326 = math.tanh %325 : vector<4x32xf32>
    %327 = arith.mulf %322, %326 : vector<4x32xf32>
    %328 = vector.extract_strided_slice %178 {offsets = [28, 0], sizes = [4, 128], strides = [1, 1]} : vector<32x128xf32> to vector<4x128xf32>
    %cst_45 = arith.constant dense<0.000000e+00> : vector<4x128xf32>
    %329 = tpu.matmul %327, %1, %cst_45 {dimension_numbers = #tpu.dot_dimension_numbers<[1], [0], [0], [1], [0, 0, 1, 1], [], []>, precision = #tpu.contract_precision<fp32>} : vector<4x32xf32>, vector<32x128xf32>, vector<4x128xf32> -> vector<4x128xf32>
    %330 = arith.addf %328, %329 : vector<4x128xf32>
    %331 = arith.negf %330 : vector<4x128xf32>
    %332 = math.exp %331 : vector<4x128xf32>
    %cst_46 = arith.constant 1.000000e+00 : f32
    %333 = vector.broadcast %cst_46 : f32 to vector<4x128xf32>
    %334 = arith.addf %333, %332 : vector<4x128xf32>
    %335 = arith.divf %333, %334 : vector<4x128xf32>
    %336 = vector.extract_strided_slice %335 {offsets = [0, 0], sizes = [4, 32], strides = [1, 1]} : vector<4x128xf32> to vector<4x32xf32>
    %337 = vector.extract_strided_slice %335 {offsets = [0, 32], sizes = [4, 32], strides = [1, 1]} : vector<4x128xf32> to vector<4x32xf32>
    %338 = vector.extract_strided_slice %335 {offsets = [0, 64], sizes = [4, 32], strides = [1, 1]} : vector<4x128xf32> to vector<4x32xf32>
    %cst_47 = arith.constant 2.000000e+00 : f32
    %339 = vector.broadcast %cst_47 : f32 to vector<4x32xf32>
    %340 = arith.mulf %339, %338 : vector<4x32xf32>
    %cst_48 = arith.constant 1.000000e+00 : f32
    %341 = vector.broadcast %cst_48 : f32 to vector<4x32xf32>
    %342 = arith.subf %340, %341 : vector<4x32xf32>
    %343 = vector.extract_strided_slice %335 {offsets = [0, 96], sizes = [4, 32], strides = [1, 1]} : vector<4x128xf32> to vector<4x32xf32>
    %344 = arith.mulf %337, %325 : vector<4x32xf32>
    %345 = arith.mulf %336, %342 : vector<4x32xf32>
    %346 = arith.addf %344, %345 : vector<4x32xf32>
    %347 = math.tanh %346 : vector<4x32xf32>
    %348 = arith.mulf %343, %347 : vector<4x32xf32>
    %349 = vector.shape_cast %201 : vector<4x32xf32> to vector<4x1x32xf32>
    %350 = vector.shape_cast %222 : vector<4x32xf32> to vector<4x1x32xf32>
    %351 = vector.shape_cast %243 : vector<4x32xf32> to vector<4x1x32xf32>
    %352 = vector.shape_cast %264 : vector<4x32xf32> to vector<4x1x32xf32>
    %353 = vector.shape_cast %285 : vector<4x32xf32> to vector<4x1x32xf32>
    %354 = vector.shape_cast %306 : vector<4x32xf32> to vector<4x1x32xf32>
    %355 = vector.shape_cast %327 : vector<4x32xf32> to vector<4x1x32xf32>
    %356 = vector.shape_cast %348 : vector<4x32xf32> to vector<4x1x32xf32>
    %357 = tpu.concatenate %349, %350, %351, %352, %353, %354, %355, %356 in 1 : vector<4x1x32xf32>, vector<4x1x32xf32>, vector<4x1x32xf32>, vector<4x1x32xf32>, vector<4x1x32xf32>, vector<4x1x32xf32>, vector<4x1x32xf32>, vector<4x1x32xf32> -> vector<4x8x32xf32>
    %358 = vector.extract_strided_slice %357 {offsets = [0, 0, 0], sizes = [2, 8, 32], strides = [1, 1, 1]} : vector<4x8x32xf32> to vector<2x8x32xf32>
    %359 = vector.extract_strided_slice %357 {offsets = [2, 0, 0], sizes = [2, 8, 32], strides = [1, 1, 1]} : vector<4x8x32xf32> to vector<2x8x32xf32>
    "tpu.trace_start"() <{level = 10 : i32, message = "bnh,bmh->bnm"}> : () -> ()
    %cst_49 = arith.constant dense<0.000000e+00> : vector<2x8x8xf32>
    %360 = tpu.matmul %358, %359, %cst_49 {dimension_numbers = #tpu.dot_dimension_numbers<[2], [2], [1], [1], [0, 0, 0, 1, 1, 1], [0], [0]>, precision = #tpu.contract_precision<fp32>} : vector<2x8x32xf32>, vector<2x8x32xf32>, vector<2x8x8xf32> -> vector<2x8x8xf32>
    "tpu.trace_stop"() : () -> ()
    %cst_50 = arith.constant dense<0xFF800000> : vector<2x8xf32>
    %361 = vector.multi_reduction <maximumf>, %360, %cst_50 [2] : vector<2x8x8xf32> to vector<2x8xf32>
    %362 = vector.shape_cast %361 : vector<2x8xf32> to vector<2x8x1xf32>
    %363 = vector.broadcast %362 : vector<2x8x1xf32> to vector<2x8x8xf32>
    %364 = arith.subf %360, %363 : vector<2x8x8xf32>
    %365 = math.exp %364 : vector<2x8x8xf32>
    %cst_51 = arith.constant dense<0.000000e+00> : vector<2x8xf32>
    %366 = vector.multi_reduction <add>, %365, %cst_51 [2] : vector<2x8x8xf32> to vector<2x8xf32>
    %367 = vector.shape_cast %366 : vector<2x8xf32> to vector<2x8x1xf32>
    %368 = vector.broadcast %367 : vector<2x8x1xf32> to vector<2x8x8xf32>
    %369 = arith.divf %365, %368 : vector<2x8x8xf32>
    %370 = vector.extract_strided_slice %360 {offsets = [0, 0, 0], sizes = [1, 8, 8], strides = [1, 1, 1]} : vector<2x8x8xf32> to vector<1x8x8xf32>
    %371 = vector.shape_cast %370 : vector<1x8x8xf32> to vector<8x8xf32>
    %372 = tpu.transpose %371, [1, 0] : vector<8x8xf32> -> vector<8x8xf32>
    %373 = vector.extract_strided_slice %360 {offsets = [1, 0, 0], sizes = [1, 8, 8], strides = [1, 1, 1]} : vector<2x8x8xf32> to vector<1x8x8xf32>
    %374 = vector.shape_cast %373 : vector<1x8x8xf32> to vector<8x8xf32>
    %375 = tpu.transpose %374, [1, 0] : vector<8x8xf32> -> vector<8x8xf32>
    %376 = vector.shape_cast %372 : vector<8x8xf32> to vector<1x8x8xf32>
    %377 = vector.shape_cast %375 : vector<8x8xf32> to vector<1x8x8xf32>
    %378 = tpu.concatenate %376, %377 in 0 : vector<1x8x8xf32>, vector<1x8x8xf32> -> vector<2x8x8xf32>
    %cst_52 = arith.constant dense<0xFF800000> : vector<2x8xf32>
    %379 = vector.multi_reduction <maximumf>, %378, %cst_52 [2] : vector<2x8x8xf32> to vector<2x8xf32>
    %380 = vector.shape_cast %379 : vector<2x8xf32> to vector<2x8x1xf32>
    %381 = vector.broadcast %380 : vector<2x8x1xf32> to vector<2x8x8xf32>
    %382 = arith.subf %378, %381 : vector<2x8x8xf32>
    %383 = math.exp %382 : vector<2x8x8xf32>
    %cst_53 = arith.constant dense<0.000000e+00> : vector<2x8xf32>
    %384 = vector.multi_reduction <add>, %383, %cst_53 [2] : vector<2x8x8xf32> to vector<2x8xf32>
    %385 = vector.shape_cast %384 : vector<2x8xf32> to vector<2x8x1xf32>
    %386 = vector.broadcast %385 : vector<2x8x1xf32> to vector<2x8x8xf32>
    %387 = arith.divf %383, %386 : vector<2x8x8xf32>
    "tpu.trace_start"() <{level = 10 : i32, message = "bnm,bmh->bnh"}> : () -> ()
    %cst_54 = arith.constant dense<0.000000e+00> : vector<2x8x32xf32>
    %388 = tpu.matmul %369, %359, %cst_54 {dimension_numbers = #tpu.dot_dimension_numbers<[2], [1], [1], [2], [0, 0, 0, 1, 1, 2], [0], [0]>, precision = #tpu.contract_precision<fp32>} : vector<2x8x8xf32>, vector<2x8x32xf32>, vector<2x8x32xf32> -> vector<2x8x32xf32>
    %cst_55 = arith.constant dense<0.000000e+00> : vector<2x8x32xf32>
    %389 = tpu.matmul %387, %358, %cst_55 {dimension_numbers = #tpu.dot_dimension_numbers<[2], [1], [1], [2], [0, 0, 0, 1, 1, 2], [0], [0]>, precision = #tpu.contract_precision<fp32>} : vector<2x8x8xf32>, vector<2x8x32xf32>, vector<2x8x32xf32> -> vector<2x8x32xf32>
    "tpu.trace_stop"() : () -> ()
    %390 = vector.shape_cast %357 : vector<4x8x32xf32> to vector<32x32xf32>
    %391 = tpu.concatenate %388, %389 in 0 : vector<2x8x32xf32>, vector<2x8x32xf32> -> vector<4x8x32xf32>
    %392 = vector.shape_cast %391 : vector<4x8x32xf32> to vector<32x32xf32>
    %cst_56 = arith.constant dense<0.000000e+00> : vector<32x32xf32>
    %393 = tpu.matmul %390, %4, %cst_56 {dimension_numbers = #tpu.dot_dimension_numbers<[1], [0], [0], [1], [0, 0, 1, 1], [], []>, precision = #tpu.contract_precision<fp32>} : vector<32x32xf32>, vector<32x32xf32>, vector<32x32xf32> -> vector<32x32xf32>
    %cst_57 = arith.constant dense<0.000000e+00> : vector<32x32xf32>
    %394 = tpu.matmul %392, %5, %cst_57 {dimension_numbers = #tpu.dot_dimension_numbers<[1], [0], [0], [1], [0, 0, 1, 1], [], []>, precision = #tpu.contract_precision<fp32>} : vector<32x32xf32>, vector<32x32xf32>, vector<32x32xf32> -> vector<32x32xf32>
    %395 = arith.addf %393, %394 : vector<32x32xf32>
    %396 = vector.broadcast %7 : vector<1x32xf32> to vector<32x32xf32>
    %397 = arith.addf %395, %396 : vector<32x32xf32>
    %cst_58 = arith.constant 0.000000e+00 : f32
    %398 = vector.broadcast %cst_58 : f32 to vector<32x32xf32>
    %399 = arith.maximumf %397, %398 : vector<32x32xf32>
    %400 = vector.extract_strided_slice %399 {offsets = [0, 0], sizes = [16, 32], strides = [1, 1]} : vector<32x32xf32> to vector<16x32xf32>
    %401 = vector.shape_cast %400 : vector<16x32xf32> to vector<2x8x32xf32>
    %402 = vector.extract_strided_slice %399 {offsets = [16, 0], sizes = [16, 32], strides = [1, 1]} : vector<32x32xf32> to vector<16x32xf32>
    %403 = vector.shape_cast %402 : vector<16x32xf32> to vector<2x8x32xf32>
    %cst_59 = arith.constant dense<0.000000e+00> : vector<2x32xf32>
    %404 = vector.multi_reduction <add>, %401, %cst_59 [1] : vector<2x8x32xf32> to vector<2x32xf32>
    %cst_60 = arith.constant 1.250000e-01 : f32
    %405 = vector.broadcast %cst_60 : f32 to vector<2x32xf32>
    %406 = arith.mulf %404, %405 : vector<2x32xf32>
    %cst_61 = arith.constant dense<0xFF800000> : vector<2x32xf32>
    %407 = vector.multi_reduction <maximumf>, %401, %cst_61 [1] : vector<2x8x32xf32> to vector<2x32xf32>
    %cst_62 = arith.constant dense<0.000000e+00> : vector<2x32xf32>
    %408 = vector.multi_reduction <add>, %403, %cst_62 [1] : vector<2x8x32xf32> to vector<2x32xf32>
    %cst_63 = arith.constant 1.250000e-01 : f32
    %409 = vector.broadcast %cst_63 : f32 to vector<2x32xf32>
    %410 = arith.mulf %408, %409 : vector<2x32xf32>
    %cst_64 = arith.constant dense<0xFF800000> : vector<2x32xf32>
    %411 = vector.multi_reduction <maximumf>, %403, %cst_64 [1] : vector<2x8x32xf32> to vector<2x32xf32>
    %412 = arith.subf %406, %410 : vector<2x32xf32>
    %413 = math.absf %412 : vector<2x32xf32>
    %414 = arith.subf %407, %411 : vector<2x32xf32>
    %415 = math.absf %414 : vector<2x32xf32>
    %416 = arith.mulf %406, %410 : vector<2x32xf32>
    %417 = arith.mulf %407, %411 : vector<2x32xf32>
    %418 = tpu.concatenate %413, %415, %416, %417 in 1 : vector<2x32xf32>, vector<2x32xf32>, vector<2x32xf32>, vector<2x32xf32> -> vector<2x128xf32>
    %cst_65 = arith.constant dense<0.000000e+00> : vector<2x32xf32>
    %419 = tpu.matmul %418, %6, %cst_65 {dimension_numbers = #tpu.dot_dimension_numbers<[1], [0], [0], [1], [0, 0, 1, 1], [], []>, precision = #tpu.contract_precision<fp32>} : vector<2x128xf32>, vector<128x32xf32>, vector<2x32xf32> -> vector<2x32xf32>
    %420 = vector.broadcast %8 : vector<1x32xf32> to vector<2x32xf32>
    %421 = arith.addf %419, %420 : vector<2x32xf32>
    %cst_66 = arith.constant 0.000000e+00 : f32
    %422 = vector.broadcast %cst_66 : f32 to vector<2x32xf32>
    %423 = arith.maximumf %421, %422 : vector<2x32xf32>
    %424 = vector.broadcast %9 : vector<1x32xf32> to vector<2x32xf32>
    %425 = arith.mulf %423, %424 : vector<2x32xf32>
    %cst_67 = arith.constant dense<0.000000e+00> : vector<2xf32>
    %426 = vector.multi_reduction <add>, %425, %cst_67 [1] : vector<2x32xf32> to vector<2xf32>
    %427 = vector.shape_cast %426 : vector<2xf32> to vector<2x1xf32>
    %428 = vector.extract_strided_slice %10 {offsets = [0, 0], sizes = [1, 1], strides = [1, 1]} : vector<1x32xf32> to vector<1x1xf32>
    %429 = vector.broadcast %428 : vector<1x1xf32> to vector<2x1xf32>
    %430 = arith.addf %427, %429 : vector<2x1xf32>
    %431 = arith.negf %430 : vector<2x1xf32>
    %432 = math.exp %431 : vector<2x1xf32>
    %cst_68 = arith.constant 1.000000e+00 : f32
    %433 = vector.broadcast %cst_68 : f32 to vector<2x1xf32>
    %434 = arith.addf %433, %432 : vector<2x1xf32>
    %435 = arith.divf %433, %434 : vector<2x1xf32>
    %c0_69 = arith.constant 0 : index
    %c0_70 = arith.constant 0 : index
    %436 = vector.load %arg3[%c0_69, %c0_70] : memref<2x1xf32, #tpu.memory_space<vmem>>, vector<2x1xf32>
    tpu.vector_store %arg3[%c0_69, %c0_70], %435 {strides = array<i32>} : memref<2x1xf32, #tpu.memory_space<vmem>>, vector<2x1xf32>,
    return
  }
}

</mosaic_0001>

<llo_original>
// kernel: da_forward.1
$region0: #{da_forward.1}
  #allocation0 [shape = 'u32[]', space=smem, size = 0x4, offset = 0x4, fixed_abs, tag = 'smem constant byte address 0x4 - core index']
  #allocation1 [shape = 'u32[144,128]{1,0:T(1,128)}', space=vmem, size = 0x12000, scoped, tag = 'internal scratch']
  %s0 = inlined_call_operand.vmem [shape: s32[32], index: 0, kind: input, shape index: {}]
  %s1 = inlined_call_operand.vmem [shape: f32[72,128], index: 1, kind: input, shape index: {}]
  %s2 = inlined_call_operand.vmem [shape: f32[264,32], index: 2, kind: input, shape index: {}]
  %s3 = inlined_call_operand.vmem [shape: f32[2,1], index: 3, kind: output, shape index: {}]
  %s4 = sld [smem:[#allocation0]]
  $region26: #{da_forward.1} parent=0
    _
  %s6 = ssub.s32 1, %s4
  %s7 = scalar_select 0, %s6, %s4
  $region1: #{da_forward.1} parent=0
    #allocation2 [shape = 'u8[512]{0}', space=smem, size = 0x200, scoped, tag = 'input window, operand 0, single buffered']
    #allocation3 [shape = 's32[1]{0}', space=sflag, size = 0x4, scoped, tag = 'scoped memory for da_forward.1']
    %8 = vsyncpa [#allocation3], 0
    // Predicated region
    $region2: #{da_forward.1} parent=1 // pred_check
      _
    $region3: #{da_forward.1} parent=1 // pred_check_branch
      %10 = sbr.rel (0) target = $region5
    $region4: #{da_forward.1} parent=1 // pred_region
      %s12 = ssub.s32 16, 16
      %13 = vsyncadd [#allocation3], %s12
      %s15 = sshll.u32 %s0, 4
      %s16 = int_to_ptr.vmem [resolvable:$true] %s15
      %18 = dma.vmem_to_smem %s16, 16, [#allocation2], [#allocation3]
    $region5: #{da_forward.1} parent=1 // pred_fallthru
      _
    // Predicated region
    $region6: #{da_forward.1} parent=1 // pred_check
      _
    $region7: #{da_forward.1} parent=1 // pred_check_branch
      %20 = sbr.rel (0) target = $region9
    $region8: #{da_forward.1} parent=1 // pred_region
      _
    $region9: #{da_forward.1} parent=1 // pred_fallthru
      _
    // Predicated region
    $region10: #{da_forward.1} parent=1 // pred_check
      _
    $region11: #{da_forward.1} parent=1 // pred_check_branch
      %22 = sbr.rel (0) target = $region13
    $region12: #{da_forward.1} parent=1 // pred_region
      _
    $region13: #{da_forward.1} parent=1 // pred_fallthru
      _
    // Predicated region
    $region14: #{da_forward.1} parent=1 // pred_check
      _
    $region15: #{da_forward.1} parent=1 // pred_check_branch
      %24 = sbr.rel (0) target = $region17
    $region16: #{da_forward.1} parent=1 // pred_region
      %25 = dma.done [#allocation3], 16
    $region17: #{da_forward.1} parent=1 // pred_fallthru
      _
    %26 = sfence
    %v27 = vld [vmem:[%s1] sm:$0xff]
    %v28 = vld [vmem:[%s1 + $0x8] sm:$0xff]
    %v29 = vld [vmem:[%s1 + $0x10] sm:$0xff]
    %v30 = vld [vmem:[%s1 + $0x18] sm:$0xff]
    %v31 = vld [vmem:[%s1 + $0x20] sm:$0xff]
    %v32 = vld [vmem:[%s1 + $0x28] sm:$0xff]
    %v33 = vld [vmem:[%s1 + $0x30] sm:$0xff]
    %v34 = vld [vmem:[%s1 + $0x38] sm:$0xff]
    %v35 = vld [vmem:[%s1 + $0x40] sm:$0x1]
    %v36 = vld [vmem:[%s2] sm:$0xff]
    %v37 = vld [vmem:[%s2 + $0x8] sm:$0xff]
    %v38 = vld [vmem:[%s2 + $0x10] sm:$0xff]
    %v39 = vld [vmem:[%s2 + $0x18] sm:$0xff]
    %v40 = vld [vmem:[%s2 + $0x20] sm:$0xff]
    %v41 = vld [vmem:[%s2 + $0x28] sm:$0xff]
    %v42 = vld [vmem:[%s2 + $0x30] sm:$0xff]
    %v43 = vld [vmem:[%s2 + $0x38] sm:$0xff]
    %v44 = vld [vmem:[%s2 + $0x40] sm:$0xff]
    %v45 = vld [vmem:[%s2 + $0x48] sm:$0xff]
    %v46 = vld [vmem:[%s2 + $0x50] sm:$0xff]
    %v47 = vld [vmem:[%s2 + $0x58] sm:$0xff]
    %v48 = vld [vmem:[%s2 + $0x60] sm:$0xff]
    %v49 = vld [vmem:[%s2 + $0x68] sm:$0xff]
    %v50 = vld [vmem:[%s2 + $0x70] sm:$0xff]
    %v51 = vld [vmem:[%s2 + $0x78] sm:$0xff]
    %v52 = vld [vmem:[%s2 + $0x80] sm:$0xff]
    %v53 = vld [vmem:[%s2 + $0x88] sm:$0xff]
    %v54 = vld [vmem:[%s2 + $0x90] sm:$0xff]
    %v55 = vld [vmem:[%s2 + $0x98] sm:$0xff]
    %v56 = vld [vmem:[%s2 + $0xa0] sm:$0xff]
    %v57 = vld [vmem:[%s2 + $0xa8] sm:$0xff]
    %v58 = vld [vmem:[%s2 + $0xb0] sm:$0xff]
    %v59 = vld [vmem:[%s2 + $0xb8] sm:$0xff]
    %v60 = vld [vmem:[%s2 + $0xc0] sm:$0xff]
    %v61 = vld [vmem:[%s2 + $0xc8] sm:$0xff]
    %v62 = vld [vmem:[%s2 + $0xd0] sm:$0xff]
    %v63 = vld [vmem:[%s2 + $0xd8] sm:$0xff]
    %v64 = vld [vmem:[%s2 + $0xe0] sm:$0xff]
    %v65 = vld [vmem:[%s2 + $0xe8] sm:$0xff]
    %v66 = vld [vmem:[%s2 + $0xf0] sm:$0xff]
    %v67 = vld [vmem:[%s2 + $0xf8] sm:$0xff]
    %v68 = vld [vmem:[%s2 + $0x100] sm:$0x1]
    %v69 = vld [vmem:[%s2 + $0x101] sm:$0x1]
    %v70 = vld [vmem:[%s2 + $0x102] sm:$0x1]
    %v71 = vld [vmem:[%s2 + $0x103] sm:$0x1]
    %v72 = vlaneseq
    %v73 = vand.u32 %v72, 127
    %s74 = sld [smem:[#allocation2]]
    %v75 = vstv %s74
    %vm76 = vcmp.eq.s32.totalorder %v73, %v75
    %v77 = vsel %vm76, 1, 0
    %v78 = vcvt.s32.f32 %v77
    %s79 = sld [smem:[#allocation2 + $0x10]]
    %v80 = vstv %s79
    %vm81 = vcmp.eq.s32.totalorder %v73, %v80
    %v82 = vsel %vm81, 1, 0
    %v83 = vcvt.s32.f32 %v82
    %s84 = sld [smem:[#allocation2 + $0x8]]
    %v85 = vstv %s84
    %vm86 = vcmp.eq.s32.totalorder %v73, %v85
    %v87 = vsel %vm86, 1, 0
    %v88 = vcvt.s32.f32 %v87
    %s89 = sld [smem:[#allocation2 + $0x18]]
    %v90 = vstv %s89
    %vm91 = vcmp.eq.s32.totalorder %v73, %v90
    %v92 = vsel %vm91, 1, 0
    %v93 = vcvt.s32.f32 %v92
    %s94 = sld [smem:[#allocation2 + $0x1]]
    %v95 = vstv %s94
    %vm96 = vcmp.eq.s32.totalorder %v73, %v95
    %v97 = vsel %vm96, 1, 0
    %v98 = vcvt.s32.f32 %v97
    %s99 = sld [smem:[#allocation2 + $0x11]]
    %v100 = vstv %s99
    %vm101 = vcmp.eq.s32.totalorder %v73, %v100
    %v102 = vsel %vm101, 1, 0
    %v103 = vcvt.s32.f32 %v102
    %s104 = sld [smem:[#allocation2 + $0x9]]
    %v105 = vstv %s104
    %vm106 = vcmp.eq.s32.totalorder %v73, %v105
    %v107 = vsel %vm106, 1, 0
    %v108 = vcvt.s32.f32 %v107
    %s109 = sld [smem:[#allocation2 + $0x19]]
    %v110 = vstv %s109
    %vm111 = vcmp.eq.s32.totalorder %v73, %v110
    %v112 = vsel %vm111, 1, 0
    %v113 = vcvt.s32.f32 %v112
    %s114 = sld [smem:[#allocation2 + $0x2]]
    %v115 = vstv %s114
    %vm116 = vcmp.eq.s32.totalorder %v73, %v115
    %v117 = vsel %vm116, 1, 0
    %v118 = vcvt.s32.f32 %v117
    %s119 = sld [smem:[#allocation2 + $0x12]]
    %v120 = vstv %s119
    %vm121 = vcmp.eq.s32.totalorder %v73, %v120
    %v122 = vsel %vm121, 1, 0
    %v123 = vcvt.s32.f32 %v122
    %s124 = sld [smem:[#allocation2 + $0xa]]
    %v125 = vstv %s124
    %vm126 = vcmp.eq.s32.totalorder %v73, %v125
    %v127 = vsel %vm126, 1, 0
    %v128 = vcvt.s32.f32 %v127
    %s129 = sld [smem:[#allocation2 + $0x1a]]
    %v130 = vstv %s129
    %vm131 = vcmp.eq.s32.totalorder %v73, %v130
    %v132 = vsel %vm131, 1, 0
    %v133 = vcvt.s32.f32 %v132
    %s134 = sld [smem:[#allocation2 + $0x3]]
    %v135 = vstv %s134
    %vm136 = vcmp.eq.s32.totalorder %v73, %v135
    %v137 = vsel %vm136, 1, 0
    %v138 = vcvt.s32.f32 %v137
    %s139 = sld [smem:[#allocation2 + $0x13]]
    %v140 = vstv %s139
    %vm141 = vcmp.eq.s32.totalorder %v73, %v140
    %v142 = vsel %vm141, 1, 0
    %v143 = vcvt.s32.f32 %v142
    %s144 = sld [smem:[#allocation2 + $0xb]]
    %v145 = vstv %s144
    %vm146 = vcmp.eq.s32.totalorder %v73, %v145
    %v147 = vsel %vm146, 1, 0
    %v148 = vcvt.s32.f32 %v147
    %s149 = sld [smem:[#allocation2 + $0x1b]]
    %v150 = vstv %s149
    %vm151 = vcmp.eq.s32.totalorder %v73, %v150
    %v152 = vsel %vm151, 1, 0
    %v153 = vcvt.s32.f32 %v152
    %s154 = sld [smem:[#allocation2 + $0x4]]
    %v155 = vstv %s154
    %vm156 = vcmp.eq.s32.totalorder %v73, %v155
    %v157 = vsel %vm156, 1, 0
    %v158 = vcvt.s32.f32 %v157
    %s159 = sld [smem:[#allocation2 + $0x14]]
    %v160 = vstv %s159
    %vm161 = vcmp.eq.s32.totalorder %v73, %v160
    %v162 = vsel %vm161, 1, 0
    %v163 = vcvt.s32.f32 %v162
    %s164 = sld [smem:[#allocation2 + $0xc]]
    %v165 = vstv %s164
    %vm166 = vcmp.eq.s32.totalorder %v73, %v165
    %v167 = vsel %vm166, 1, 0
    %v168 = vcvt.s32.f32 %v167
    %s169 = sld [smem:[#allocation2 + $0x1c]]
    %v170 = vstv %s169
    %vm171 = vcmp.eq.s32.totalorder %v73, %v170
    %v172 = vsel %vm171, 1, 0
    %v173 = vcvt.s32.f32 %v172
    %s174 = sld [smem:[#allocation2 + $0x5]]
    %v175 = vstv %s174
    %vm176 = vcmp.eq.s32.totalorder %v73, %v175
    %v177 = vsel %vm176, 1, 0
    %v178 = vcvt.s32.f32 %v177
    %s179 = sld [smem:[#allocation2 + $0x15]]
    %v180 = vstv %s179
    %vm181 = vcmp.eq.s32.totalorder %v73, %v180
    %v182 = vsel %vm181, 1, 0
    %v183 = vcvt.s32.f32 %v182
    %s184 = sld [smem:[#allocation2 + $0xd]]
    %v185 = vstv %s184
    %vm186 = vcmp.eq.s32.totalorder %v73, %v185
    %v187 = vsel %vm186, 1, 0
    %v188 = vcvt.s32.f32 %v187
    %s189 = sld [smem:[#allocation2 + $0x1d]]
    %v190 = vstv %s189
    %vm191 = vcmp.eq.s32.totalorder %v73, %v190
    %v192 = vsel %vm191, 1, 0
    %v193 = vcvt.s32.f32 %v192
    %s194 = sld [smem:[#allocation2 + $0x6]]
    %v195 = vstv %s194
    %vm196 = vcmp.eq.s32.totalorder %v73, %v195
    %v197 = vsel %vm196, 1, 0
    %v198 = vcvt.s32.f32 %v197
    %s199 = sld [smem:[#allocation2 + $0x16]]
    %v200 = vstv %s199
    %vm201 = vcmp.eq.s32.totalorder %v73, %v200
    %v202 = vsel %vm201, 1, 0
    %v203 = vcvt.s32.f32 %v202
    %s204 = sld [smem:[#allocation2 + $0xe]]
    %v205 = vstv %s204
    %vm206 = vcmp.eq.s32.totalorder %v73, %v205
    %v207 = vsel %vm206, 1, 0
    %v208 = vcvt.s32.f32 %v207
    %s209 = sld [smem:[#allocation2 + $0x1e]]
    %v210 = vstv %s209
    %vm211 = vcmp.eq.s32.totalorder %v73, %v210
    %v212 = vsel %vm211, 1, 0
    %v213 = vcvt.s32.f32 %v212
    %s214 = sld [smem:[#allocation2 + $0x7]]
    %v215 = vstv %s214
    %vm216 = vcmp.eq.s32.totalorder %v73, %v215
    %v217 = vsel %vm216, 1, 0
    %v218 = vcvt.s32.f32 %v217
    %s219 = sld [smem:[#allocation2 + $0x17]]
    %v220 = vstv %s219
    %vm221 = vcmp.eq.s32.totalorder %v73, %v220
    %v222 = vsel %vm221, 1, 0
    %v223 = vcvt.s32.f32 %v222
    %s224 = sld [smem:[#allocation2 + $0xf]]
    %v225 = vstv %s224
    %vm226 = vcmp.eq.s32.totalorder %v73, %v225
    %v227 = vsel %vm226, 1, 0
    %v228 = vcvt.s32.f32 %v227
    %s229 = sld [smem:[#allocation2 + $0x1f]]
    %v230 = vstv %s229
    %vm231 = vcmp.eq.s32.totalorder %v73, %v230
    %v232 = vsel %vm231, 1, 0
    %v233 = vcvt.s32.f32 %v232
    %vm234 = vcmask 1040384
    %v235 = vsel %vm234, %v78, %v83
    %vm236 = vcmask 1041408
    %v237 = vsel %vm236, %v235, %v88
    %vm238 = vcmask 1042432
    %v239 = vsel %vm238, %v237, %v93
    %vm240 = vcmask 1043456
    %v241 = vsel %vm240, %v239, %v98
    %vm242 = vcmask 1044480
    %v243 = vsel %vm242, %v241, %v103
    %vm244 = vcmask 1045504
    %v245 = vsel %vm244, %v243, %v108
    %vm246 = vcmask 1046528
    %v247 = vsel %vm246, %v245, %v113
    %v248 = vsel %vm234, %v118, %v123
    %v249 = vsel %vm236, %v248, %v128
    %v250 = vsel %vm238, %v249, %v133
    %v251 = vsel %vm240, %v250, %v138
    %v252 = vsel %vm242, %v251, %v143
    %v253 = vsel %vm244, %v252, %v148
    %v254 = vsel %vm246, %v253, %v153
    %v255 = vsel %vm234, %v158, %v163
    %v256 = vsel %vm236, %v255, %v168
    %v257 = vsel %vm238, %v256, %v173
    %v258 = vsel %vm240, %v257, %v178
    %v259 = vsel %vm242, %v258, %v183
    %v260 = vsel %vm244, %v259, %v188
    %v261 = vsel %vm246, %v260, %v193
    %v262 = vsel %vm234, %v198, %v203
    %v263 = vsel %vm236, %v262, %v208
    %v264 = vsel %vm238, %v263, %v213
    %v265 = vsel %vm240, %v264, %v218
    %v266 = vsel %vm242, %v265, %v223
    %v267 = vsel %vm244, %v266, %v228
    %v268 = vsel %vm246, %v267, %v233
    %vm269 = vcmask 523264
    %v271 = vsel %vm269, %v247, 0
    %v274 = vsel %vm269, %v254, 0
    %v277 = vsel %vm269, %v261, 0
    %v280 = vsel %vm269, %v268, 0
    %282 = vmatprep.subr.mxu0 0.0
    %v283 = vand.u32 %v36, 4294901760
    %284 = vmatpush1.msra.mxu0 %v283
    %285 = vmatprep.subr.mxu0 0.0
    %v286 = vand.u32 %v37, 4294901760
    %287 = vmatpush1.msra.mxu0 %v286
    %288 = vmatprep.subr.mxu0 0.0
    %v289 = vand.u32 %v38, 4294901760
    %290 = vmatpush1.msra.mxu0 %v289
    %291 = vmatprep.subr.mxu0 0.0
    %v292 = vand.u32 %v39, 4294901760
    %293 = vmatpush1.msra.mxu0 %v292
    %294 = vmatprep.subr.mxu0 0.0
    %v295 = vand.u32 %v40, 4294901760
    %296 = vmatpush1.msra.mxu0 %v295
    %297 = vmatprep.subr.mxu0 0.0
    %v298 = vand.u32 %v41, 4294901760
    %299 = vmatpush1.msra.mxu0 %v298
    %300 = vmatprep.subr.mxu0 0.0
    %v301 = vand.u32 %v42, 4294901760
    %302 = vmatpush1.msra.mxu0 %v301
    %303 = vmatprep.subr.mxu0 0.0
    %v304 = vand.u32 %v43, 4294901760
    %305 = vmatpush1.msra.mxu0 %v304
    %306 = vmatprep.subr.mxu0 0.0
    %307 = vmatpush1.msra.mxu0 0.0
    %308 = vmatprep.subr.mxu0 0.0
    %309 = vmatpush1.msra.mxu0 0.0
    %310 = vmatprep.subr.mxu0 0.0
    %311 = vmatpush1.msra.mxu0 0.0
    %312 = vmatprep.subr.mxu0 0.0
    %313 = vmatpush1.msra.mxu0 0.0
    %314 = vmatprep.subr.mxu0 0.0
    %315 = vmatpush1.msra.mxu0 0.0
    %316 = vmatprep.subr.mxu0 0.0
    %317 = vmatpush1.msra.mxu0 0.0
    %318 = vmatprep.subr.mxu0 0.0
    %319 = vmatpush1.msra.mxu0 0.0
    %320 = vmatprep.subr.mxu0 0.0
    %321 = vmatpush1.msra.mxu0 0.0
    %322 = vmatprep.subr.mxu0 0.0
    %323 = vmatpush1.msra.mxu0 0.0
    %324 = vmatprep.subr.mxu0 0.0
    %325 = vmatpush1.msra.mxu0 0.0
    %326 = vmatprep.subr.mxu0 0.0
    %327 = vmatpush1.msra.mxu0 0.0
    %328 = vmatprep.subr.mxu0 0.0
    %329 = vmatpush1.msra.mxu0 0.0
    %330 = vmatprep.subr.mxu0 0.0
    %331 = vmatpush1.msra.mxu0 0.0
    %332 = vmatprep.subr.mxu0 0.0
    %333 = vmatpush1.msra.mxu0 0.0
    %334 = vmatprep.subr.mxu0 0.0
    %335 = vmatpush1.msra.mxu0 0.0
    %336 = vmatprep.subr.mxu0 0.0
    %337 = vmatpush1.msra.mxu0 0.0
    %338 = vmatprep.subr.mxu0 0.0
    %339 = vmatpush1.msra.mxu0 0.0
    %340 = vmatprep.subr.mxu0 0.0
    %341 = vmatpush1.msra.mxu0 0.0
    %342 = vmatprep.subr.mxu0 0.0
    %343 = vmatpush1.msra.mxu0 0.0
    %344 = vmatprep.subr.mxu0 0.0
    %345 = vmatpush1.msra.mxu0 0.0
    %346 = vmatprep.subr.mxu0 0.0
    %347 = vmatpush1.msra.mxu0 0.0
    %348 = vmatprep.subr.mxu0 0.0
    %349 = vmatpush1.msra.mxu0 0.0
    %350 = vmatprep.subr.mxu0 0.0
    %351 = vmatpush1.msra.mxu0 0.0
    %352 = vmatprep.subr.mxu0 0.0
    %353 = vmatpush1.msra.mxu0 0.0
    %354 = vmatprep.mubr.f32.mxu0 0.0
    %v355 = vand.u32 %v271, 4294901760
    %v356 = vsub.f32 %v271, %v355
    %v357 = vand.u32 %v356, 4294901760
    %v358 = vsub.f32 %v356, %v357
    %v359 = vand.u32 %v358, 4294901760
    %360 = vmatmul.mubr.f32.gmra.mrb[0].mxu0 %v359
    %v361 = vpop.f32.mrb[0].mxu0
    %v362 = vadd.f32 0.0, %v361
    %v363 = vpop.f32.mrb[0].mxu0
    %364 = vmatprep.mubr.f32.mxu0 0.0
    %v365 = vand.u32 %v274, 4294901760
    %v366 = vsub.f32 %v274, %v365
    %v367 = vand.u32 %v366, 4294901760
    %v368 = vsub.f32 %v366, %v367
    %v369 = vand.u32 %v368, 4294901760
    %370 = vmatmul.mubr.f32.gmra.mrb[0].mxu0 %v369
    %v371 = vpop.f32.mrb[0].mxu0
    %v372 = vadd.f32 0.0, %v371
    %v373 = vpop.f32.mrb[0].mxu0
    %374 = vmatprep.mubr.f32.mxu0 0.0
    %v375 = vand.u32 %v277, 4294901760
    %v376 = vsub.f32 %v277, %v375
    %v377 = vand.u32 %v376, 4294901760
    %v378 = vsub.f32 %v376, %v377
    %v379 = vand.u32 %v378, 4294901760
    %380 = vmatmul.mubr.f32.gmra.mrb[0].mxu0 %v379
    %v381 = vpop.f32.mrb[0].mxu0
    %v382 = vadd.f32 0.0, %v381
    %v383 = vpop.f32.mrb[0].mxu0
    %384 = vmatprep.mubr.f32.mxu0 0.0
    %v385 = vand.u32 %v280, 4294901760
    %v386 = vsub.f32 %v280, %v385
    %v387 = vand.u32 %v386, 4294901760
    %v388 = vsub.f32 %v386, %v387
    %v389 = vand.u32 %v388, 4294901760
    %390 = vmatmul.mubr.f32.gmra.mrb[0].mxu0 %v389
    %v391 = vpop.f32.mrb[0].mxu0
    %v392 = vadd.f32 0.0, %v391
    %v393 = vpop.f32.mrb[0].mxu0
    %394 = vdwg.mxu0
    %395 = vmatprep.subr.mxu0 0.0
    %v396 = vand.u32 %v36, 4294901760
    %v397 = vsub.f32 %v36, %v396
    %v398 = vand.u32 %v397, 4294901760
    %v399 = vsub.f32 %v397, %v398
    %v400 = vand.u32 %v399, 4294901760
    %401 = vmatpush1.msra.mxu0 %v400
    %402 = vmatprep.subr.mxu0 0.0
    %v403 = vand.u32 %v37, 4294901760
    %v404 = vsub.f32 %v37, %v403
    %v405 = vand.u32 %v404, 4294901760
    %v406 = vsub.f32 %v404, %v405
    %v407 = vand.u32 %v406, 4294901760
    %408 = vmatpush1.msra.mxu0 %v407
    %409 = vmatprep.subr.mxu0 0.0
    %v410 = vand.u32 %v38, 4294901760
    %v411 = vsub.f32 %v38, %v410
    %v412 = vand.u32 %v411, 4294901760
    %v413 = vsub.f32 %v411, %v412
    %v414 = vand.u32 %v413, 4294901760
    %415 = vmatpush1.msra.mxu0 %v414
    %416 = vmatprep.subr.mxu0 0.0
    %v417 = vand.u32 %v39, 4294901760
    %v418 = vsub.f32 %v39, %v417
    %v419 = vand.u32 %v418, 4294901760
    %v420 = vsub.f32 %v418, %v419
    %v421 = vand.u32 %v420, 4294901760
    %422 = vmatpush1.msra.mxu0 %v421
    %423 = vmatprep.subr.mxu0 0.0
    %v424 = vand.u32 %v40, 4294901760
    %v425 = vsub.f32 %v40, %v424
    %v426 = vand.u32 %v425, 4294901760
    %v427 = vsub.f32 %v425, %v426
    %v428 = vand.u32 %v427, 4294901760
    %429 = vmatpush1.msra.mxu0 %v428
    %430 = vmatprep.subr.mxu0 0.0
    %v431 = vand.u32 %v41, 4294901760
    %v432 = vsub.f32 %v41, %v431
    %v433 = vand.u32 %v432, 4294901760
    %v434 = vsub.f32 %v432, %v433
    %v435 = vand.u32 %v434, 4294901760
    %436 = vmatpush1.msra.mxu0 %v435
    %437 = vmatprep.subr.mxu0 0.0
    %v438 = vand.u32 %v42, 4294901760
    %v439 = vsub.f32 %v42, %v438
    %v440 = vand.u32 %v439, 4294901760
    %v441 = vsub.f32 %v439, %v440
    %v442 = vand.u32 %v441, 4294901760
    %443 = vmatpush1.msra.mxu0 %v442
    %444 = vmatprep.subr.mxu0 0.0
    %v445 = vand.u32 %v43, 4294901760
    %v446 = vsub.f32 %v43, %v445
    %v447 = vand.u32 %v446, 4294901760
    %v448 = vsub.f32 %v446, %v447
    %v449 = vand.u32 %v448, 4294901760
    %450 = vmatpush1.msra.mxu0 %v449
    %451 = vmatprep.subr.mxu0 0.0
    %452 = vmatpush1.msra.mxu0 0.0
    %453 = vmatprep.subr.mxu0 0.0
    %454 = vmatpush1.msra.mxu0 0.0
    %455 = vmatprep.subr.mxu0 0.0
    %456 = vmatpush1.msra.mxu0 0.0
    %457 = vmatprep.subr.mxu0 0.0
    %458 = vmatpush1.msra.mxu0 0.0
    %459 = vmatprep.subr.mxu0 0.0
    %460 = vmatpush1.msra.mxu0 0.0
    %461 = vmatprep.subr.mxu0 0.0
    %462 = vmatpush1.msra.mxu0 0.0
    %463 = vmatprep.subr.mxu0 0.0
    %464 = vmatpush1.msra.mxu0 0.0
    %465 = vmatprep.subr.mxu0 0.0
    %466 = vmatpush1.msra.mxu0 0.0
    %467 = vmatprep.subr.mxu0 0.0
    %468 = vmatpush1.msra.mxu0 0.0
    %469 = vmatprep.subr.mxu0 0.0
    %470 = vmatpush1.msra.mxu0 0.0
    %471 = vmatprep.subr.mxu0 0.0
    %472 = vmatpush1.msra.mxu0 0.0
    %473 = vmatprep.subr.mxu0 0.0
    %474 = vmatpush1.msra.mxu0 0.0
    %475 = vmatprep.subr.mxu0 0.0
    %476 = vmatpush1.msra.mxu0 0.0
    %477 = vmatprep.subr.mxu0 0.0
    %478 = vmatpush1.msra.mxu0 0.0
    %479 = vmatprep.subr.mxu0 0.0
    %480 = vmatpush1.msra.mxu0 0.0
    %481 = vmatprep.subr.mxu0 0.0
    %482 = vmatpush1.msra.mxu0 0.0
    %483 = vmatprep.subr.mxu0 0.0
    %484 = vmatpush1.msra.mxu0 0.0
    %485 = vmatprep.subr.mxu0 0.0
    %486 = vmatpush1.msra.mxu0 0.0
    %487 = vmatprep.subr.mxu0 0.0
    %488 = vmatpush1.msra.mxu0 0.0
    %489 = vmatprep.subr.mxu0 0.0
    %490 = vmatpush1.msra.mxu0 0.0
    %491 = vmatprep.subr.mxu0 0.0
    %492 = vmatpush1.msra.mxu0 0.0
    %493 = vmatprep.subr.mxu0 0.0
    %494 = vmatpush1.msra.mxu0 0.0
    %495 = vmatprep.subr.mxu0 0.0
    %496 = vmatpush1.msra.mxu0 0.0
    %497 = vmatprep.subr.mxu0 0.0
    %498 = vmatpush1.msra.mxu0 0.0
    %499 = vmatprep.mubr.f32.mxu0 0.0
    %v500 = vand.u32 %v271, 4294901760
    %501 = vmatmul.mubr.f32.gmra.mrb[0].mxu0 %v500
    %v502 = vpop.f32.mrb[0].mxu0
    %v503 = vadd.f32 %v362, %v502
    %v504 = vpop.f32.mrb[0].mxu0
    %505 = vmatprep.mubr.f32.mxu0 0.0
    %v506 = vand.u32 %v274, 4294901760
    %507 = vmatmul.mubr.f32.gmra.mrb[0].mxu0 %v506
    %v508 = vpop.f32.mrb[0].mxu0
    %v509 = vadd.f32 %v372, %v508
    %v510 = vpop.f32.mrb[0].mxu0
    %511 = vmatprep.mubr.f32.mxu0 0.0
    %v512 = vand.u32 %v277, 4294901760
    %513 = vmatmul.mubr.f32.gmra.mrb[0].mxu0 %v512
    %v514 = vpop.f32.mrb[0].mxu0
    %v515 = vadd.f32 %v382, %v514
    %v516 = vpop.f32.mrb[0].mxu0
    %517 = vmatprep.mubr.f32.mxu0 0.0
    %v518 = vand.u32 %v280, 4294901760
    %519 = vmatmul.mubr.f32.gmra.mrb[0].mxu0 %v518
    %v520 = vpop.f32.mrb[0].mxu0
    %v521 = vadd.f32 %v392, %v520
    %v522 = vpop.f32.mrb[0].mxu0
    %523 = vdwg.mxu0
    %524 = vmatprep.subr.mxu0 0.0
    %v525 = vand.u32 %v36, 4294901760
    %v526 = vsub.f32 %v36, %v525
    %527 = vmatpush1.msra.mxu0 %v526
    %528 = vmatprep.subr.mxu0 0.0
    %v529 = vand.u32 %v37, 4294901760
    %v530 = vsub.f32 %v37, %v529
    %531 = vmatpush1.msra.mxu0 %v530
    %532 = vmatprep.subr.mxu0 0.0
    %v533 = vand.u32 %v38, 4294901760
    %v534 = vsub.f32 %v38, %v533
    %535 = vmatpush1.msra.mxu0 %v534
    %536 = vmatprep.subr.mxu0 0.0
    %v537 = vand.u32 %v39, 4294901760
    %v538 = vsub.f32 %v39, %v537
    %539 = vmatpush1.msra.mxu0 %v538
    %540 = vmatprep.subr.mxu0 0.0
    %v541 = vand.u32 %v40, 4294901760
    %v542 = vsub.f32 %v40, %v541
    %543 = vmatpush1.msra.mxu0 %v542
    %544 = vmatprep.subr.mxu0 0.0
    %v545 = vand.u32 %v41, 4294901760
    %v546 = vsub.f32 %v41, %v545
    %547 = vmatpush1.msra.mxu0 %v546
    %548 = vmatprep.subr.mxu0 0.0
    %v549 = vand.u32 %v42, 4294901760
    %v550 = vsub.f32 %v42, %v549
    %551 = vmatpush1.msra.mxu0 %v550
    %552 = vmatprep.subr.mxu0 0.0
    %v553 = vand.u32 %v43, 4294901760
    %v554 = vsub.f32 %v43, %v553
    %555 = vmatpush1.msra.mxu0 %v554
    %556 = vmatprep.subr.mxu0 0.0
    %557 = vmatpush1.msra.mxu0 0.0
    %558 = vmatprep.subr.mxu0 0.0
    %559 = vmatpush1.msra.mxu0 0.0
    %560 = vmatprep.subr.mxu0 0.0
    %561 = vmatpush1.msra.mxu0 0.0
    %562 = vmatprep.subr.mxu0 0.0
    %563 = vmatpush1.msra.mxu0 0.0
    %564 = vmatprep.subr.mxu0 0.0
    %565 = vmatpush1.msra.mxu0 0.0
    %566 = vmatprep.subr.mxu0 0.0
    %567 = vmatpush1.msra.mxu0 0.0
    %568 = vmatprep.subr.mxu0 0.0
    %569 = vmatpush1.msra.mxu0 0.0
    %570 = vmatprep.subr.mxu0 0.0
    %571 = vmatpush1.msra.mxu0 0.0
    %572 = vmatprep.subr.mxu0 0.0
    %573 = vmatpush1.msra.mxu0 0.0
    %574 = vmatprep.subr.mxu0 0.0
    %575 = vmatpush1.msra.mxu0 0.0
    %576 = vmatprep.subr.mxu0 0.0
    %577 = vmatpush1.msra.mxu0 0.0
    %578 = vmatprep.subr.mxu0 0.0
    %579 = vmatpush1.msra.mxu0 0.0
    %580 = vmatprep.subr.mxu0 0.0
    %581 = vmatpush1.msra.mxu0 0.0
    %582 = vmatprep.subr.mxu0 0.0
    %583 = vmatpush1.msra.mxu0 0.0
    %584 = vmatprep.subr.mxu0 0.0
    %585 = vmatpush1.msra.mxu0 0.0
    %586 = vmatprep.subr.mxu0 0.0
    %587 = vmatpush1.msra.mxu0 0.0
    %588 = vmatprep.subr.mxu0 0.0
    %589 = vmatpush1.msra.mxu0 0.0
    %590 = vmatprep.subr.mxu0 0.0
    %591 = vmatpush1.msra.mxu0 0.0
    %592 = vmatprep.subr.mxu0 0.0
    %593 = vmatpush1.msra.mxu0 0.0
    %594 = vmatprep.subr.mxu0 0.0
    %595 = vmatpush1.msra.mxu0 0.0
    %596 = vmatprep.subr.mxu0 0.0
    %597 = vmatpush1.msra.mxu0 0.0
    %598 = vmatprep.subr.mxu0 0.0
    %599 = vmatpush1.msra.mxu0 0.0
    %600 = vmatprep.subr.mxu0 0.0
    %601 = vmatpush1.msra.mxu0 0.0
    %602 = vmatprep.subr.mxu0 0.0
    %603 = vmatpush1.msra.mxu0 0.0
    %604 = vmatprep.mubr.f32.mxu0 0.0
    %v605 = vand.u32 %v271, 4294901760
    %v606 = vsub.f32 %v271, %v605
    %607 = vmatmul.mubr.f32.gmra.mrb[0].mxu0 %v606
    %v608 = vpop.f32.mrb[0].mxu0
    %v609 = vadd.f32 %v503, %v608
    %v610 = vpop.f32.mrb[0].mxu0
    %611 = vmatprep.mubr.f32.mxu0 0.0
    %v612 = vand.u32 %v274, 4294901760
    %v613 = vsub.f32 %v274, %v612
    %614 = vmatmul.mubr.f32.gmra.mrb[0].mxu0 %v613
    %v615 = vpop.f32.mrb[0].mxu0
    %v616 = vadd.f32 %v509, %v615
    %v617 = vpop.f32.mrb[0].mxu0
    %618 = vmatprep.mubr.f32.mxu0 0.0
    %v619 = vand.u32 %v277, 4294901760
    %v620 = vsub.f32 %v277, %v619
    %621 = vmatmul.mubr.f32.gmra.mrb[0].mxu0 %v620
    %v622 = vpop.f32.mrb[0].mxu0
    %v623 = vadd.f32 %v515, %v622
    %v624 = vpop.f32.mrb[0].mxu0
    %625 = vmatprep.mubr.f32.mxu0 0.0
    %v626 = vand.u32 %v280, 4294901760
    %v627 = vsub.f32 %v280, %v626
    %628 = vmatmul.mubr.f32.gmra.mrb[0].mxu0 %v627
    %v629 = vpop.f32.mrb[0].mxu0
    %v630 = vadd.f32 %v521, %v629
    %v631 = vpop.f32.mrb[0].mxu0
    %632 = vdwg.mxu0
    %633 = vmatprep.subr.mxu0 0.0
    %v634 = vand.u32 %v36, 4294901760
    %635 = vmatpush1.msra.mxu0 %v634
    %636 = vmatprep.subr.mxu0 0.0
    %v637 = vand.u32 %v37, 4294901760
    %638 = vmatpush1.msra.mxu0 %v637
    %639 = vmatprep.subr.mxu0 0.0
    %v640 = vand.u32 %v38, 4294901760
    %641 = vmatpush1.msra.mxu0 %v640
    %642 = vmatprep.subr.mxu0 0.0
    %v643 = vand.u32 %v39, 4294901760
    %644 = vmatpush1.msra.mxu0 %v643
    %645 = vmatprep.subr.mxu0 0.0
    %v646 = vand.u32 %v40, 4294901760
    %647 = vmatpush1.msra.mxu0 %v646
    %648 = vmatprep.subr.mxu0 0.0
    %v649 = vand.u32 %v41, 4294901760
    %650 = vmatpush1.msra.mxu0 %v649
    %651 = vmatprep.subr.mxu0 0.0
    %v652 = vand.u32 %v42, 4294901760
    %653 = vmatpush1.msra.mxu0 %v652
    %654 = vmatprep.subr.mxu0 0.0
    %v655 = vand.u32 %v43, 4294901760
    %656 = vmatpush1.msra.mxu0 %v655
    %657 = vmatprep.subr.mxu0 0.0
    %658 = vmatpush1.msra.mxu0 0.0
    %659 = vmatprep.subr.mxu0 0.0
    %660 = vmatpush1.msra.mxu0 0.0
    %661 = vmatprep.subr.mxu0 0.0
    %662 = vmatpush1.msra.mxu0 0.0
    %663 = vmatprep.subr.mxu0 0.0
    %664 = vmatpush1.msra.mxu0 0.0
    %665 = vmatprep.subr.mxu0 0.0
    %666 = vmatpush1.msra.mxu0 0.0
    %667 = vmatprep.subr.mxu0 0.0
    %668 = vmatpush1.msra.mxu0 0.0
    %669 = vmatprep.subr.mxu0 0.0
    %670 = vmatpush1.msra.mxu0 0.0
    %671 = vmatprep.subr.mxu0 0.0
    %672 = vmatpush1.msra.mxu0 0.0
    %673 = vmatprep.subr.mxu0 0.0
    %674 = vmatpush1.msra.mxu0 0.0
    %675 = vmatprep.subr.mxu0 0.0
    %676 = vmatpush1.msra.mxu0 0.0
    %677 = vmatprep.subr.mxu0 0.0
    %678 = vmatpush1.msra.mxu0 0.0
    %679 = vmatprep.subr.mxu0 0.0
    %680 = vmatpush1.msra.mxu0 0.0
    %681 = vmatprep.subr.mxu0 0.0
    %682 = vmatpush1.msra.mxu0 0.0
    %683 = vmatprep.subr.mxu0 0.0
    %684 = vmatpush1.msra.mxu0 0.0
    %685 = vmatprep.subr.mxu0 0.0
    %686 = vmatpush1.msra.mxu0 0.0
    %687 = vmatprep.subr.mxu0 0.0
    %688 = vmatpush1.msra.mxu0 0.0
    %689 = vmatprep.subr.mxu0 0.0
    %690 = vmatpush1.msra.mxu0 0.0
    %691 = vmatprep.subr.mxu0 0.0
    %692 = vmatpush1.msra.mxu0 0.0
    %693 = vmatprep.subr.mxu0 0.0
    %694 = vmatpush1.msra.mxu0 0.0
    %695 = vmatprep.subr.mxu0 0.0
    %696 = vmatpush1.msra.mxu0 0.0
    %697 = vmatprep.subr.mxu0 0.0
    %698 = vmatpush1.msra.mxu0 0.0
    %699 = vmatprep.subr.mxu0 0.0
    %700 = vmatpush1.msra.mxu0 0.0
    %701 = vmatprep.subr.mxu0 0.0
    %702 = vmatpush1.msra.mxu0 0.0
    %703 = vmatprep.subr.mxu0 0.0
    %704 = vmatpush1.msra.mxu0 0.0
    %705 = vmatprep.mubr.f32.mxu0 0.0
    %v706 = vand.u32 %v271, 4294901760
    %v707 = vsub.f32 %v271, %v706
    %v708 = vand.u32 %v707, 4294901760
    %709 = vmatmul.mubr.f32.gmra.mrb[0].mxu0 %v708
    %v710 = vpop.f32.mrb[0].mxu0
    %v711 = vadd.f32 %v609, %v710
    %v712 = vpop.f32.mrb[0].mxu0
    %713 = vmatprep.mubr.f32.mxu0 0.0
    %v714 = vand.u32 %v274, 4294901760
    %v715 = vsub.f32 %v274, %v714
    %v716 = vand.u32 %v715, 4294901760
    %717 = vmatmul.mubr.f32.gmra.mrb[0].mxu0 %v716
    %v718 = vpop.f32.mrb[0].mxu0
    %v719 = vadd.f32 %v616, %v718
    %v720 = vpop.f32.mrb[0].mxu0
    %721 = vmatprep.mubr.f32.mxu0 0.0
    %v722 = vand.u32 %v277, 4294901760
    %v723 = vsub.f32 %v277, %v722
    %v724 = vand.u32 %v723, 4294901760
    %725 = vmatmul.mubr.f32.gmra.mrb[0].mxu0 %v724
    %v726 = vpop.f32.mrb[0].mxu0
    %v727 = vadd.f32 %v623, %v726
    %v728 = vpop.f32.mrb[0].mxu0
    %729 = vmatprep.mubr.f32.mxu0 0.0
    %v730 = vand.u32 %v280, 4294901760
    %v731 = vsub.f32 %v280, %v730
    %v732 = vand.u32 %v731, 4294901760
    %733 = vmatmul.mubr.f32.gmra.mrb[0].mxu0 %v732
    %v734 = vpop.f32.mrb[0].mxu0
    %v735 = vadd.f32 %v630, %v734
    %v736 = vpop.f32.mrb[0].mxu0
    %737 = vdwg.mxu0
    %738 = vmatprep.subr.mxu0 0.0
    %v739 = vand.u32 %v36, 4294901760
    %v740 = vsub.f32 %v36, %v739
    %v741 = vand.u32 %v740, 4294901760
    %742 = vmatpush1.msra.mxu0 %v741
    %743 = vmatprep.subr.mxu0 0.0
    %v744 = vand.u32 %v37, 4294901760
    %v745 = vsub.f32 %v37, %v744
    %v746 = vand.u32 %v745, 4294901760
    %747 = vmatpush1.msra.mxu0 %v746
    %748 = vmatprep.subr.mxu0 0.0
    %v749 = vand.u32 %v38, 4294901760
    %v750 = vsub.f32 %v38, %v749
    %v751 = vand.u32 %v750, 4294901760
    %752 = vmatpush1.msra.mxu0 %v751
    %753 = vmatprep.subr.mxu0 0.0
    %v754 = vand.u32 %v39, 4294901760
    %v755 = vsub.f32 %v39, %v754
    %v756 = vand.u32 %v755, 4294901760
    %757 = vmatpush1.msra.mxu0 %v756
    %758 = vmatprep.subr.mxu0 0.0
    %v759 = vand.u32 %v40, 4294901760
    %v760 = vsub.f32 %v40, %v759
    %v761 = vand.u32 %v760, 4294901760
    %762 = vmatpush1.msra.mxu0 %v761
    %763 = vmatprep.subr.mxu0 0.0
    %v764 = vand.u32 %v41, 4294901760
    %v765 = vsub.f32 %v41, %v764
    %v766 = vand.u32 %v765, 4294901760
    %767 = vmatpush1.msra.mxu0 %v766
    %768 = vmatprep.subr.mxu0 0.0
    %v769 = vand.u32 %v42, 4294901760
    %v770 = vsub.f32 %v42, %v769
    %v771 = vand.u32 %v770, 4294901760
    %772 = vmatpush1.msra.mxu0 %v771
    %773 = vmatprep.subr.mxu0 0.0
    %v774 = vand.u32 %v43, 4294901760
    %v775 = vsub.f32 %v43, %v774
    %v776 = vand.u32 %v775, 4294901760
    %777 = vmatpush1.msra.mxu0 %v776
    %778 = vmatprep.subr.mxu0 0.0
    %779 = vmatpush1.msra.mxu0 0.0
    %780 = vmatprep.subr.mxu0 0.0
    %781 = vmatpush1.msra.mxu0 0.0
    %782 = vmatprep.subr.mxu0 0.0
    %783 = vmatpush1.msra.mxu0 0.0
    %784 = vmatprep.subr.mxu0 0.0
    %785 = vmatpush1.msra.mxu0 0.0
    %786 = vmatprep.subr.mxu0 0.0
    %787 = vmatpush1.msra.mxu0 0.0
    %788 = vmatprep.subr.mxu0 0.0
    %789 = vmatpush1.msra.mxu0 0.0
    %790 = vmatprep.subr.mxu0 0.0
    %791 = vmatpush1.msra.mxu0 0.0
    %792 = vmatprep.subr.mxu0 0.0
    %793 = vmatpush1.msra.mxu0 0.0
    %794 = vmatprep.subr.mxu0 0.0
    %795 = vmatpush1.msra.mxu0 0.0
    %796 = vmatprep.subr.mxu0 0.0
    %797 = vmatpush1.msra.mxu0 0.0
    %798 = vmatprep.subr.mxu0 0.0
    %799 = vmatpush1.msra.mxu0 0.0
    %800 = vmatprep.subr.mxu0 0.0
    %801 = vmatpush1.msra.mxu0 0.0
    %802 = vmatprep.subr.mxu0 0.0
    %803 = vmatpush1.msra.mxu0 0.0
    %804 = vmatprep.subr.mxu0 0.0
    %805 = vmatpush1.msra.mxu0 0.0
    %806 = vmatprep.subr.mxu0 0.0
    %807 = vmatpush1.msra.mxu0 0.0
    %808 = vmatprep.subr.mxu0 0.0
    %809 = vmatpush1.msra.mxu0 0.0
    %810 = vmatprep.subr.mxu0 0.0
    %811 = vmatpush1.msra.mxu0 0.0
    %812 = vmatprep.subr.mxu0 0.0
    %813 = vmatpush1.msra.mxu0 0.0
    %814 = vmatprep.subr.mxu0 0.0
    %815 = vmatpush1.msra.mxu0 0.0
    %816 = vmatprep.subr.mxu0 0.0
    %817 = vmatpush1.msra.mxu0 0.0
    %818 = vmatprep.subr.mxu0 0.0
    %819 = vmatpush1.msra.mxu0 0.0
    %820 = vmatprep.subr.mxu0 0.0
    %821 = vmatpush1.msra.mxu0 0.0
    %822 = vmatprep.subr.mxu0 0.0
    %823 = vmatpush1.msra.mxu0 0.0
    %824 = vmatprep.subr.mxu0 0.0
    %825 = vmatpush1.msra.mxu0 0.0
    %826 = vmatprep.mubr.f32.mxu0 0.0
    %v827 = vand.u32 %v271, 4294901760
    %828 = vmatmul.mubr.f32.gmra.mrb[0].mxu0 %v827
    %v829 = vpop.f32.mrb[0].mxu0
    %v830 = vadd.f32 %v711, %v829
    %v831 = vpop.f32.mrb[0].mxu0
    %832 = vmatprep.mubr.f32.mxu0 0.0
    %v833 = vand.u32 %v274, 4294901760
    %834 = vmatmul.mubr.f32.gmra.mrb[0].mxu0 %v833
    %v835 = vpop.f32.mrb[0].mxu0
    %v836 = vadd.f32 %v719, %v835
    %v837 = vpop.f32.mrb[0].mxu0
    %838 = vmatprep.mubr.f32.mxu0 0.0
    %v839 = vand.u32 %v277, 4294901760
    %840 = vmatmul.mubr.f32.gmra.mrb[0].mxu0 %v839
    %v841 = vpop.f32.mrb[0].mxu0
    %v842 = vadd.f32 %v727, %v841
    %v843 = vpop.f32.mrb[0].mxu0
    %844 = vmatprep.mubr.f32.mxu0 0.0
    %v845 = vand.u32 %v280, 4294901760
    %846 = vmatmul.mubr.f32.gmra.mrb[0].mxu0 %v845
    %v847 = vpop.f32.mrb[0].mxu0
    %v848 = vadd.f32 %v735, %v847
    %v849 = vpop.f32.mrb[0].mxu0
    %850 = vdwg.mxu0
    %851 = vmatprep.subr.mxu0 0.0
    %v852 = vand.u32 %v36, 4294901760
    %853 = vmatpush1.msra.mxu0 %v852
    %854 = vmatprep.subr.mxu0 0.0
    %v855 = vand.u32 %v37, 4294901760
    %856 = vmatpush1.msra.mxu0 %v855
    %857 = vmatprep.subr.mxu0 0.0
    %v858 = vand.u32 %v38, 4294901760
    %859 = vmatpush1.msra.mxu0 %v858
    %860 = vmatprep.subr.mxu0 0.0
    %v861 = vand.u32 %v39, 4294901760
    %862 = vmatpush1.msra.mxu0 %v861
    %863 = vmatprep.subr.mxu0 0.0
    %v864 = vand.u32 %v40, 4294901760
    %865 = vmatpush1.msra.mxu0 %v864
    %866 = vmatprep.subr.mxu0 0.0
    %v867 = vand.u32 %v41, 4294901760
    %868 = vmatpush1.msra.mxu0 %v867
    %869 = vmatprep.subr.mxu0 0.0
    %v870 = vand.u32 %v42, 4294901760
    %871 = vmatpush1.msra.mxu0 %v870
    %872 = vmatprep.subr.mxu0 0.0
    %v873 = vand.u32 %v43, 4294901760
    %874 = vmatpush1.msra.mxu0 %v873
    %875 = vmatprep.subr.mxu0 0.0
    %876 = vmatpush1.msra.mxu0 0.0
    %877 = vmatprep.subr.mxu0 0.0
    %878 = vmatpush1.msra.mxu0 0.0
    %879 = vmatprep.subr.mxu0 0.0
    %880 = vmatpush1.msra.mxu0 0.0
    %881 = vmatprep.subr.mxu0 0.0
    %882 = vmatpush1.msra.mxu0 0.0
    %883 = vmatprep.subr.mxu0 0.0
    %884 = vmatpush1.msra.mxu0 0.0
    %885 = vmatprep.subr.mxu0 0.0
    %886 = vmatpush1.msra.mxu0 0.0
    %887 = vmatprep.subr.mxu0 0.0
    %888 = vmatpush1.msra.mxu0 0.0
    %889 = vmatprep.subr.mxu0 0.0
    %890 = vmatpush1.msra.mxu0 0.0
    %891 = vmatprep.subr.mxu0 0.0
    %892 = vmatpush1.msra.mxu0 0.0
    %893 = vmatprep.subr.mxu0 0.0
    %894 = vmatpush1.msra.mxu0 0.0
    %895 = vmatprep.subr.mxu0 0.0
    %896 = vmatpush1.msra.mxu0 0.0
    %897 = vmatprep.subr.mxu0 0.0
    %898 = vmatpush1.msra.mxu0 0.0
    %899 = vmatprep.subr.mxu0 0.0
    %900 = vmatpush1.msra.mxu0 0.0
    %901 = vmatprep.subr.mxu0 0.0
    %902 = vmatpush1.msra.mxu0 0.0
    %903 = vmatprep.subr.mxu0 0.0
    %904 = vmatpush1.msra.mxu0 0.0
    %905 = vmatprep.subr.mxu0 0.0
    %906 = vmatpush1.msra.mxu0 0.0
    %907 = vmatprep.subr.mxu0 0.0
    %908 = vmatpush1.msra.mxu0 0.0
    %909 = vmatprep.subr.mxu0 0.0
    %910 = vmatpush1.msra.mxu0 0.0
    %911 = vmatprep.subr.mxu0 0.0
    %912 = vmatpush1.msra.mxu0 0.0
    %913 = vmatprep.subr.mxu0 0.0
    %914 = vmatpush1.msra.mxu0 0.0
    %915 = vmatprep.subr.mxu0 0.0
    %916 = vmatpush1.msra.mxu0 0.0
    %917 = vmatprep.subr.mxu0 0.0
    %918 = vmatpush1.msra.mxu0 0.0
    %919 = vmatprep.subr.mxu0 0.0
    %920 = vmatpush1.msra.mxu0 0.0
    %921 = vmatprep.subr.mxu0 0.0
    %922 = vmatpush1.msra.mxu0 0.0
    %923 = vmatprep.mubr.f32.mxu0 0.0
    %v924 = vand.u32 %v271, 4294901760
    %925 = vmatmul.mubr.f32.gmra.mrb[0].mxu0 %v924
    %v926 = vpop.f32.mrb[0].mxu0
    %v927 = vadd.f32 %v830, %v926
    %v928 = vpop.f32.mrb[0].mxu0
    %929 = vmatprep.mubr.f32.mxu0 0.0
    %v930 = vand.u32 %v274, 4294901760
    %931 = vmatmul.mubr.f32.gmra.mrb[0].mxu0 %v930
    %v932 = vpop.f32.mrb[0].mxu0
    %v933 = vadd.f32 %v836, %v932
    %v934 = vpop.f32.mrb[0].mxu0
    %935 = vmatprep.mubr.f32.mxu0 0.0
    %v936 = vand.u32 %v277, 4294901760
    %937 = vmatmul.mubr.f32.gmra.mrb[0].mxu0 %v936
    %v938 = vpop.f32.mrb[0].mxu0
    %v939 = vadd.f32 %v842, %v938
    %v940 = vpop.f32.mrb[0].mxu0
    %941 = vmatprep.mubr.f32.mxu0 0.0
    %v942 = vand.u32 %v280, 4294901760
    %943 = vmatmul.mubr.f32.gmra.mrb[0].mxu0 %v942
    %v944 = vpop.f32.mrb[0].mxu0
    %v945 = vadd.f32 %v848, %v944
    %v946 = vpop.f32.mrb[0].mxu0
    %947 = vdwg.mxu0
    %v948 = vlaneseq
    %v949 = vshrl.u32 %v948, 7
    %v950 = vsub.s32 0, %v949
    %v951 = vrot.slane %v35, %v950
    %vm952 = vcmask 261120
    %v954 = vsel %vm952, %v927, 0
    %v957 = vsel %vm952, %v933, 0
    %v960 = vsel %vm952, %v939, 0
    %v963 = vsel %vm952, %v945, 0
    %965 = vmatprep.subr.mxu0 0.0
    %v966 = vand.u32 %v27, 4294901760
    %967 = vmatpush1.msra.mxu0 %v966
    %968 = vmatprep.subr.mxu0 0.0
    %v969 = vand.u32 %v28, 4294901760
    %970 = vmatpush1.msra.mxu0 %v969
    %971 = vmatprep.subr.mxu0 0.0
    %v972 = vand.u32 %v29, 4294901760
    %973 = vmatpush1.msra.mxu0 %v972
    %974 = vmatprep.subr.mxu0 0.0
    %v975 = vand.u32 %v30, 4294901760
    %976 = vmatpush1.msra.mxu0 %v975
    %977 = vmatprep.subr.mxu0 0.0
    %978 = vmatpush1.msra.mxu0 0.0
    %979 = vmatprep.subr.mxu0 0.0
    %980 = vmatpush1.msra.mxu0 0.0
    %981 = vmatprep.subr.mxu0 0.0
    %982 = vmatpush1.msra.mxu0 0.0
    %983 = vmatprep.subr.mxu0 0.0
    %984 = vmatpush1.msra.mxu0 0.0
    %985 = vmatprep.subr.mxu0 0.0
    %986 = vmatpush1.msra.mxu0 0.0
    %987 = vmatprep.subr.mxu0 0.0
    %988 = vmatpush1.msra.mxu0 0.0
    %989 = vmatprep.subr.mxu0 0.0
    %990 = vmatpush1.msra.mxu0 0.0
    %991 = vmatprep.subr.mxu0 0.0
    %992 = vmatpush1.msra.mxu0 0.0
    %993 = vmatprep.subr.mxu0 0.0
    %994 = vmatpush1.msra.mxu0 0.0
    %995 = vmatprep.subr.mxu0 0.0
    %996 = vmatpush1.msra.mxu0 0.0
    %997 = vmatprep.subr.mxu0 0.0
    %998 = vmatpush1.msra.mxu0 0.0
    %999 = vmatprep.subr.mxu0 0.0
    %1000 = vmatpush1.msra.mxu0 0.0
    %1001 = vmatprep.subr.mxu0 0.0
    %1002 = vmatpush1.msra.mxu0 0.0
    %1003 = vmatprep.subr.mxu0 0.0
    %1004 = vmatpush1.msra.mxu0 0.0
    %1005 = vmatprep.subr.mxu0 0.0
    %1006 = vmatpush1.msra.mxu0 0.0
    %1007 = vmatprep.subr.mxu0 0.0
    %1008 = vmatpush1.msra.mxu0 0.0
    %1009 = vmatprep.subr.mxu0 0.0
    %1010 = vmatpush1.msra.mxu0 0.0
    %1011 = vmatprep.subr.mxu0 0.0
    %1012 = vmatpush1.msra.mxu0 0.0
    %1013 = vmatprep.subr.mxu0 0.0
    %1014 = vmatpush1.msra.mxu0 0.0
    %1015 = vmatprep.subr.mxu0 0.0
    %1016 = vmatpush1.msra.mxu0 0.0
    %1017 = vmatprep.subr.mxu0 0.0
    %1018 = vmatpush1.msra.mxu0 0.0
    %1019 = vmatprep.subr.mxu0 0.0
    %1020 = vmatpush1.msra.mxu0 0.0
    %1021 = vmatprep.subr.mxu0 0.0
    %1022 = vmatpush1.msra.mxu0 0.0
    %1023 = vmatprep.subr.mxu0 0.0
    %1024 = vmatpush1.msra.mxu0 0.0
    %1025 = vmatprep.subr.mxu0 0.0
    %1026 = vmatpush1.msra.mxu0 0.0
    %1027 = vmatprep.subr.mxu0 0.0
    %1028 = vmatpush1.msra.mxu0 0.0
    %1029 = vmatprep.subr.mxu0 0.0
    %1030 = vmatpush1.msra.mxu0 0.0
    %1031 = vmatprep.subr.mxu0 0.0
    %1032 = vmatpush1.msra.mxu0 0.0
    %1033 = vmatprep.mubr.f32.mxu0 0.0
    %v1034 = vand.u32 %v954, 4294901760
    %v1035 = vsub.f32 %v954, %v1034
    %v1036 = vand.u32 %v1035, 4294901760
    %v1037 = vsub.f32 %v1035, %v1036
    %v1038 = vand.u32 %v1037, 4294901760
    %1039 = vmatmul.mubr.f32.gmra.mrb[0].mxu0 %v1038
    %v1040 = vpop.f32.mrb[0].mxu0
    %v1041 = vadd.f32 %v951, %v1040
    %v1042 = vpop.f32.mrb[0].mxu0
    %1043 = vmatprep.mubr.f32.mxu0 0.0
    %v1044 = vand.u32 %v957, 4294901760
    %v1045 = vsub.f32 %v957, %v1044
    %v1046 = vand.u32 %v1045, 4294901760
    %v1047 = vsub.f32 %v1045, %v1046
    %v1048 = vand.u32 %v1047, 4294901760
    %1049 = vmatmul.mubr.f32.gmra.mrb[0].mxu0 %v1048
    %v1050 = vpop.f32.mrb[0].mxu0
    %v1051 = vadd.f32 %v951, %v1050
    %v1052 = vpop.f32.mrb[0].mxu0
    %1053 = vmatprep.mubr.f32.mxu0 0.0
    %v1054 = vand.u32 %v960, 4294901760
    %v1055 = vsub.f32 %v960, %v1054
    %v1056 = vand.u32 %v1055, 4294901760
    %v1057 = vsub.f32 %v1055, %v1056
    %v1058 = vand.u32 %v1057, 4294901760
    %1059 = vmatmul.mubr.f32.gmra.mrb[0].mxu0 %v1058
    %v1060 = vpop.f32.mrb[0].mxu0
    %v1061 = vadd.f32 %v951, %v1060
    %v1062 = vpop.f32.mrb[0].mxu0
    %1063 = vmatprep.mubr.f32.mxu0 0.0
    %v1064 = vand.u32 %v963, 4294901760
    %v1065 = vsub.f32 %v963, %v1064
    %v1066 = vand.u32 %v1065, 4294901760
    %v1067 = vsub.f32 %v1065, %v1066
    %v1068 = vand.u32 %v1067, 4294901760
    %1069 = vmatmul.mubr.f32.gmra.mrb[0].mxu0 %v1068
    %v1070 = vpop.f32.mrb[0].mxu0
    %v1071 = vadd.f32 %v951, %v1070
    %v1072 = vpop.f32.mrb[0].mxu0
    %1073 = vdwg.mxu0
    %1074 = vmatprep.subr.mxu0 0.0
    %v1075 = vand.u32 %v27, 4294901760
    %v1076 = vsub.f32 %v27, %v1075
    %v1077 = vand.u32 %v1076, 4294901760
    %v1078 = vsub.f32 %v1076, %v1077
    %v1079 = vand.u32 %v1078, 4294901760
    %1080 = vmatpush1.msra.mxu0 %v1079
    %1081 = vmatprep.subr.mxu0 0.0
    %v1082 = vand.u32 %v28, 4294901760
    %v1083 = vsub.f32 %v28, %v1082
    %v1084 = vand.u32 %v1083, 4294901760
    %v1085 = vsub.f32 %v1083, %v1084
    %v1086 = vand.u32 %v1085, 4294901760
    %1087 = vmatpush1.msra.mxu0 %v1086
    %1088 = vmatprep.subr.mxu0 0.0
    %v1089 = vand.u32 %v29, 4294901760
    %v1090 = vsub.f32 %v29, %v1089
    %v1091 = vand.u32 %v1090, 4294901760
    %v1092 = vsub.f32 %v1090, %v1091
    %v1093 = vand.u32 %v1092, 4294901760
    %1094 = vmatpush1.msra.mxu0 %v1093
    %1095 = vmatprep.subr.mxu0 0.0
    %v1096 = vand.u32 %v30, 4294901760
    %v1097 = vsub.f32 %v30, %v1096
    %v1098 = vand.u32 %v1097, 4294901760
    %v1099 = vsub.f32 %v1097, %v1098
    %v1100 = vand.u32 %v1099, 4294901760
    %1101 = vmatpush1.msra.mxu0 %v1100
    %1102 = vmatprep.subr.mxu0 0.0
    %1103 = vmatpush1.msra.mxu0 0.0
    %1104 = vmatprep.subr.mxu0 0.0
    %1105 = vmatpush1.msra.mxu0 0.0
    %1106 = vmatprep.subr.mxu0 0.0
    %1107 = vmatpush1.msra.mxu0 0.0
    %1108 = vmatprep.subr.mxu0 0.0
    %1109 = vmatpush1.msra.mxu0 0.0
    %1110 = vmatprep.subr.mxu0 0.0
    %1111 = vmatpush1.msra.mxu0 0.0
    %1112 = vmatprep.subr.mxu0 0.0
    %1113 = vmatpush1.msra.mxu0 0.0
    %1114 = vmatprep.subr.mxu0 0.0
    %1115 = vmatpush1.msra.mxu0 0.0
    %1116 = vmatprep.subr.mxu0 0.0
    %1117 = vmatpush1.msra.mxu0 0.0
    %1118 = vmatprep.subr.mxu0 0.0
    %1119 = vmatpush1.msra.mxu0 0.0
    %1120 = vmatprep.subr.mxu0 0.0
    %1121 = vmatpush1.msra.mxu0 0.0
    %1122 = vmatprep.subr.mxu0 0.0
    %1123 = vmatpush1.msra.mxu0 0.0
    %1124 = vmatprep.subr.mxu0 0.0
    %1125 = vmatpush1.msra.mxu0 0.0
    %1126 = vmatprep.subr.mxu0 0.0
    %1127 = vmatpush1.msra.mxu0 0.0
    %1128 = vmatprep.subr.mxu0 0.0
    %1129 = vmatpush1.msra.mxu0 0.0
    %1130 = vmatprep.subr.mxu0 0.0
    %1131 = vmatpush1.msra.mxu0 0.0
    %1132 = vmatprep.subr.mxu0 0.0
    %1133 = vmatpush1.msra.mxu0 0.0
    %1134 = vmatprep.subr.mxu0 0.0
    %1135 = vmatpush1.msra.mxu0 0.0
    %1136 = vmatprep.subr.mxu0 0.0
    %1137 = vmatpush1.msra.mxu0 0.0
    %1138 = vmatprep.subr.mxu0 0.0
    %1139 = vmatpush1.msra.mxu0 0.0
    %1140 = vmatprep.subr.mxu0 0.0
    %1141 = vmatpush1.msra.mxu0 0.0
    %1142 = vmatprep.subr.mxu0 0.0
    %1143 = vmatpush1.msra.mxu0 0.0
    %1144 = vmatprep.subr.mxu0 0.0
    %1145 = vmatpush1.msra.mxu0 0.0
    %1146 = vmatprep.subr.mxu0 0.0
    %1147 = vmatpush1.msra.mxu0 0.0
    %1148 = vmatprep.subr.mxu0 0.0
    %1149 = vmatpush1.msra.mxu0 0.0
    %1150 = vmatprep.subr.mxu0 0.0
    %1151 = vmatpush1.msra.mxu0 0.0
    %1152 = vmatprep.subr.mxu0 0.0
    %1153 = vmatpush1.msra.mxu0 0.0
    %1154 = vmatprep.subr.mxu0 0.0
    %1155 = vmatpush1.msra.mxu0 0.0
    %1156 = vmatprep.subr.mxu0 0.0
    %1157 = vmatpush1.msra.mxu0 0.0
    %1158 = vmatprep.mubr.f32.mxu0 0.0
    %v1159 = vand.u32 %v954, 4294901760
    %1160 = vmatmul.mubr.f32.gmra.mrb[0].mxu0 %v1159
    %v1161 = vpop.f32.mrb[0].mxu0
    %v1162 = vadd.f32 %v1041, %v1161
    %v1163 = vpop.f32.mrb[0].mxu0
    %1164 = vmatprep.mubr.f32.mxu0 0.0
    %v1165 = vand.u32 %v957, 4294901760
    %1166 = vmatmul.mubr.f32.gmra.mrb[0].mxu0 %v1165
    %v1167 = vpop.f32.mrb[0].mxu0
    %v1168 = vadd.f32 %v1051, %v1167
    %v1169 = vpop.f32.mrb[0].mxu0
    %1170 = vmatprep.mubr.f32.mxu0 0.0
    %v1171 = vand.u32 %v960, 4294901760
    %1172 = vmatmul.mubr.f32.gmra.mrb[0].mxu0 %v1171
    %v1173 = vpop.f32.mrb[0].mxu0
    %v1174 = vadd.f32 %v1061, %v1173
    %v1175 = vpop.f32.mrb[0].mxu0
    %1176 = vmatprep.mubr.f32.mxu0 0.0
    %v1177 = vand.u32 %v963, 4294901760
    %1178 = vmatmul.mubr.f32.gmra.mrb[0].mxu0 %v1177
    %v1179 = vpop.f32.mrb[0].mxu0
    %v1180 = vadd.f32 %v1071, %v1179
    %v1181 = vpop.f32.mrb[0].mxu0
    %1182 = vdwg.mxu0
    %1183 = vmatprep.subr.mxu0 0.0
    %v1184 = vand.u32 %v27, 4294901760
    %v1185 = vsub.f32 %v27, %v1184
    %1186 = vmatpush1.msra.mxu0 %v1185
    %1187 = vmatprep.subr.mxu0 0.0
    %v1188 = vand.u32 %v28, 4294901760
    %v1189 = vsub.f32 %v28, %v1188
    %1190 = vmatpush1.msra.mxu0 %v1189
    %1191 = vmatprep.subr.mxu0 0.0
    %v1192 = vand.u32 %v29, 4294901760
    %v1193 = vsub.f32 %v29, %v1192
    %1194 = vmatpush1.msra.mxu0 %v1193
    %1195 = vmatprep.subr.mxu0 0.0
    %v1196 = vand.u32 %v30, 4294901760
    %v1197 = vsub.f32 %v30, %v1196
    %1198 = vmatpush1.msra.mxu0 %v1197
    %1199 = vmatprep.subr.mxu0 0.0
    %1200 = vmatpush1.msra.mxu0 0.0
    %1201 = vmatprep.subr.mxu0 0.0
    %1202 = vmatpush1.msra.mxu0 0.0
    %1203 = vmatprep.subr.mxu0 0.0
    %1204 = vmatpush1.msra.mxu0 0.0
    %1205 = vmatprep.subr.mxu0 0.0
    %1206 = vmatpush1.msra.mxu0 0.0
    %1207 = vmatprep.subr.mxu0 0.0
    %1208 = vmatpush1.msra.mxu0 0.0
    %1209 = vmatprep.subr.mxu0 0.0
    %1210 = vmatpush1.msra.mxu0 0.0
    %1211 = vmatprep.subr.mxu0 0.0
    %1212 = vmatpush1.msra.mxu0 0.0
    %1213 = vmatprep.subr.mxu0 0.0
    %1214 = vmatpush1.msra.mxu0 0.0
    %1215 = vmatprep.subr.mxu0 0.0
    %1216 = vmatpush1.msra.mxu0 0.0
    %1217 = vmatprep.subr.mxu0 0.0
    %1218 = vmatpush1.msra.mxu0 0.0
    %1219 = vmatprep.subr.mxu0 0.0
    %1220 = vmatpush1.msra.mxu0 0.0
    %1221 = vmatprep.subr.mxu0 0.0
    %1222 = vmatpush1.msra.mxu0 0.0
    %1223 = vmatprep.subr.mxu0 0.0
    %1224 = vmatpush1.msra.mxu0 0.0
    %1225 = vmatprep.subr.mxu0 0.0
    %1226 = vmatpush1.msra.mxu0 0.0
    %1227 = vmatprep.subr.mxu0 0.0
    %1228 = vmatpush1.msra.mxu0 0.0
    %1229 = vmatprep.subr.mxu0 0.0
    %1230 = vmatpush1.msra.mxu0 0.0
    %1231 = vmatprep.subr.mxu0 0.0
    %1232 = vmatpush1.msra.mxu0 0.0
    %1233 = vmatprep.subr.mxu0 0.0
    %1234 = vmatpush1.msra.mxu0 0.0
    %1235 = vmatprep.subr.mxu0 0.0
    %1236 = vmatpush1.msra.mxu0 0.0
    %1237 = vmatprep.subr.mxu0 0.0
    %1238 = vmatpush1.msra.mxu0 0.0
    %1239 = vmatprep.subr.mxu0 0.0
    %1240 = vmatpush1.msra.mxu0 0.0
    %1241 = vmatprep.subr.mxu0 0.0
    %1242 = vmatpush1.msra.mxu0 0.0
    %1243 = vmatprep.subr.mxu0 0.0
    %1244 = vmatpush1.msra.mxu0 0.0
    %1245 = vmatprep.subr.mxu0 0.0
    %1246 = vmatpush1.msra.mxu0 0.0
    %1247 = vmatprep.subr.mxu0 0.0
    %1248 = vmatpush1.msra.mxu0 0.0
    %1249 = vmatprep.subr.mxu0 0.0
    %1250 = vmatpush1.msra.mxu0 0.0
    %1251 = vmatprep.subr.mxu0 0.0
    %1252 = vmatpush1.msra.mxu0 0.0
    %1253 = vmatprep.subr.mxu0 0.0
    %1254 = vmatpush1.msra.mxu0 0.0
    %1255 = vmatprep.mubr.f32.mxu0 0.0
    %v1256 = vand.u32 %v954, 4294901760
    %v1257 = vsub.f32 %v954, %v1256
    %1258 = vmatmul.mubr.f32.gmra.mrb[0].mxu0 %v1257
    %v1259 = vpop.f32.mrb[0].mxu0
    %v1260 = vadd.f32 %v1162, %v1259
    %v1261 = vpop.f32.mrb[0].mxu0
    %1262 = vmatprep.mubr.f32.mxu0 0.0
    %v1263 = vand.u32 %v957, 4294901760
    %v1264 = vsub.f32 %v957, %v1263
    %1265 = vmatmul.mubr.f32.gmra.mrb[0].mxu0 %v1264
    %v1266 = vpop.f32.mrb[0].mxu0
    %v1267 = vadd.f32 %v1168, %v1266
    %v1268 = vpop.f32.mrb[0].mxu0
    %1269 = vmatprep.mubr.f32.mxu0 0.0
    %v1270 = vand.u32 %v960, 4294901760
    %v1271 = vsub.f32 %v960, %v1270
    %1272 = vmatmul.mubr.f32.gmra.mrb[0].mxu0 %v1271
    %v1273 = vpop.f32.mrb[0].mxu0
    %v1274 = vadd.f32 %v1174, %v1273
    %v1275 = vpop.f32.mrb[0].mxu0
    %1276 = vmatprep.mubr.f32.mxu0 0.0
    %v1277 = vand.u32 %v963, 4294901760
    %v1278 = vsub.f32 %v963, %v1277
    %1279 = vmatmul.mubr.f32.gmra.mrb[0].mxu0 %v1278
    %v1280 = vpop.f32.mrb[0].mxu0
    %v1281 = vadd.f32 %v1180, %v1280
    %v1282 = vpop.f32.mrb[0].mxu0
    %1283 = vdwg.mxu0
    %1284 = vmatprep.subr.mxu0 0.0
    %v1285 = vand.u32 %v27, 4294901760
    %1286 = vmatpush1.msra.mxu0 %v1285
    %1287 = vmatprep.subr.mxu0 0.0
    %v1288 = vand.u32 %v28, 4294901760
    %1289 = vmatpush1.msra.mxu0 %v1288
    %1290 = vmatprep.subr.mxu0 0.0
    %v1291 = vand.u32 %v29, 4294901760
    %1292 = vmatpush1.msra.mxu0 %v1291
    %1293 = vmatprep.subr.mxu0 0.0
    %v1294 = vand.u32 %v30, 4294901760
    %1295 = vmatpush1.msra.mxu0 %v1294
    %1296 = vmatprep.subr.mxu0 0.0
    %1297 = vmatpush1.msra.mxu0 0.0
    %1298 = vmatprep.subr.mxu0 0.0
    %1299 = vmatpush1.msra.mxu0 0.0
    %1300 = vmatprep.subr.mxu0 0.0
    %1301 = vmatpush1.msra.mxu0 0.0
    %1302 = vmatprep.subr.mxu0 0.0
    %1303 = vmatpush1.msra.mxu0 0.0
    %1304 = vmatprep.subr.mxu0 0.0
    %1305 = vmatpush1.msra.mxu0 0.0
    %1306 = vmatprep.subr.mxu0 0.0
    %1307 = vmatpush1.msra.mxu0 0.0
    %1308 = vmatprep.subr.mxu0 0.0
    %1309 = vmatpush1.msra.mxu0 0.0
    %1310 = vmatprep.subr.mxu0 0.0
    %1311 = vmatpush1.msra.mxu0 0.0
    %1312 = vmatprep.subr.mxu0 0.0
    %1313 = vmatpush1.msra.mxu0 0.0
    %1314 = vmatprep.subr.mxu0 0.0
    %1315 = vmatpush1.msra.mxu0 0.0
    %1316 = vmatprep.subr.mxu0 0.0
    %1317 = vmatpush1.msra.mxu0 0.0
    %1318 = vmatprep.subr.mxu0 0.0
    %1319 = vmatpush1.msra.mxu0 0.0
    %1320 = vmatprep.subr.mxu0 0.0
    %1321 = vmatpush1.msra.mxu0 0.0
    %1322 = vmatprep.subr.mxu0 0.0
    %1323 = vmatpush1.msra.mxu0 0.0
    %1324 = vmatprep.subr.mxu0 0.0
    %1325 = vmatpush1.msra.mxu0 0.0
    %1326 = vmatprep.subr.mxu0 0.0
    %1327 = vmatpush1.msra.mxu0 0.0
    %1328 = vmatprep.subr.mxu0 0.0
    %1329 = vmatpush1.msra.mxu0 0.0
    %1330 = vmatprep.subr.mxu0 0.0
    %1331 = vmatpush1.msra.mxu0 0.0
    %1332 = vmatprep.subr.mxu0 0.0
    %1333 = vmatpush1.msra.mxu0 0.0
    %1334 = vmatprep.subr.mxu0 0.0
    %1335 = vmatpush1.msra.mxu0 0.0
    %1336 = vmatprep.subr.mxu0 0.0
    %1337 = vmatpush1.msra.mxu0 0.0
    %1338 = vmatprep.subr.mxu0 0.0
    %1339 = vmatpush1.msra.mxu0 0.0
    %1340 = vmatprep.subr.mxu0 0.0
    %1341 = vmatpush1.msra.mxu0 0.0
    %1342 = vmatprep.subr.mxu0 0.0
    %1343 = vmatpush1.msra.mxu0 0.0
    %1344 = vmatprep.subr.mxu0 0.0
    %1345 = vmatpush1.msra.mxu0 0.0
    %1346 = vmatprep.subr.mxu0 0.0
    %1347 = vmatpush1.msra.mxu0 0.0
    %1348 = vmatprep.subr.mxu0 0.0
    %1349 = vmatpush1.msra.mxu0 0.0
    %1350 = vmatprep.subr.mxu0 0.0
    %1351 = vmatpush1.msra.mxu0 0.0
    %1352 = vmatprep.mubr.f32.mxu0 0.0
    %v1353 = vand.u32 %v954, 4294901760
    %v1354 = vsub.f32 %v954, %v1353
    %v1355 = vand.u32 %v1354, 4294901760
    %1356 = vmatmul.mubr.f32.gmra.mrb[0].mxu0 %v1355
    %v1357 = vpop.f32.mrb[0].mxu0
    %v1358 = vadd.f32 %v1260, %v1357
    %v1359 = vpop.f32.mrb[0].mxu0
    %1360 = vmatprep.mubr.f32.mxu0 0.0
    %v1361 = vand.u32 %v957, 4294901760
    %v1362 = vsub.f32 %v957, %v1361
    %v1363 = vand.u32 %v1362, 4294901760
    %1364 = vmatmul.mubr.f32.gmra.mrb[0].mxu0 %v1363
    %v1365 = vpop.f32.mrb[0].mxu0
    %v1366 = vadd.f32 %v1267, %v1365
    %v1367 = vpop.f32.mrb[0].mxu0
    %1368 = vmatprep.mubr.f32.mxu0 0.0
    %v1369 = vand.u32 %v960, 4294901760
    %v1370 = vsub.f32 %v960, %v1369
    %v1371 = vand.u32 %v1370, 4294901760
    %1372 = vmatmul.mubr.f32.gmra.mrb[0].mxu0 %v1371
    %v1373 = vpop.f32.mrb[0].mxu0
    %v1374 = vadd.f32 %v1274, %v1373
    %v1375 = vpop.f32.mrb[0].mxu0
    %1376 = vmatprep.mubr.f32.mxu0 0.0
    %v1377 = vand.u32 %v963, 4294901760
    %v1378 = vsub.f32 %v963, %v1377
    %v1379 = vand.u32 %v1378, 4294901760
    %1380 = vmatmul.mubr.f32.gmra.mrb[0].mxu0 %v1379
    %v1381 = vpop.f32.mrb[0].mxu0
    %v1382 = vadd.f32 %v1281, %v1381
    %v1383 = vpop.f32.mrb[0].mxu0
    %1384 = vdwg.mxu0
    %1385 = vmatprep.subr.mxu0 0.0
    %v1386 = vand.u32 %v27, 4294901760
    %v1387 = vsub.f32 %v27, %v1386
    %v1388 = vand.u32 %v1387, 4294901760
    %1389 = vmatpush1.msra.mxu0 %v1388
    %1390 = vmatprep.subr.mxu0 0.0
    %v1391 = vand.u32 %v28, 4294901760
    %v1392 = vsub.f32 %v28, %v1391
    %v1393 = vand.u32 %v1392, 4294901760
    %1394 = vmatpush1.msra.mxu0 %v1393
    %1395 = vmatprep.subr.mxu0 0.0
    %v1396 = vand.u32 %v29, 4294901760
    %v1397 = vsub.f32 %v29, %v1396
    %v1398 = vand.u32 %v1397, 4294901760
    %1399 = vmatpush1.msra.mxu0 %v1398
    %1400 = vmatprep.subr.mxu0 0.0
    %v1401 = vand.u32 %v30, 4294901760
    %v1402 = vsub.f32 %v30, %v1401
    %v1403 = vand.u32 %v1402, 4294901760
    %1404 = vmatpush1.msra.mxu0 %v1403
    %1405 = vmatprep.subr.mxu0 0.0
    %1406 = vmatpush1.msra.mxu0 0.0
    %1407 = vmatprep.subr.mxu0 0.0
    %1408 = vmatpush1.msra.mxu0 0.0
    %1409 = vmatprep.subr.mxu0 0.0
    %1410 = vmatpush1.msra.mxu0 0.0
    %1411 = vmatprep.subr.mxu0 0.0
    %1412 = vmatpush1.msra.mxu0 0.0
    %1413 = vmatprep.subr.mxu0 0.0
    %1414 = vmatpush1.msra.mxu0 0.0
    %1415 = vmatprep.subr.mxu0 0.0
    %1416 = vmatpush1.msra.mxu0 0.0
    %1417 = vmatprep.subr.mxu0 0.0
    %1418 = vmatpush1.msra.mxu0 0.0
    %1419 = vmatprep.subr.mxu0 0.0
    %1420 = vmatpush1.msra.mxu0 0.0
    %1421 = vmatprep.subr.mxu0 0.0
    %1422 = vmatpush1.msra.mxu0 0.0
    %1423 = vmatprep.subr.mxu0 0.0
    %1424 = vmatpush1.msra.mxu0 0.0
    %1425 = vmatprep.subr.mxu0 0.0
    %1426 = vmatpush1.msra.mxu0 0.0
    %1427 = vmatprep.subr.mxu0 0.0
    %1428 = vmatpush1.msra.mxu0 0.0
    %1429 = vmatprep.subr.mxu0 0.0
    %1430 = vmatpush1.msra.mxu0 0.0
    %1431 = vmatprep.subr.mxu0 0.0
    %1432 = vmatpush1.msra.mxu0 0.0
    %1433 = vmatprep.subr.mxu0 0.0
    %1434 = vmatpush1.msra.mxu0 0.0
    %1435 = vmatprep.subr.mxu0 0.0
    %1436 = vmatpush1.msra.mxu0 0.0
    %1437 = vmatprep.subr.mxu0 0.0
    %1438 = vmatpush1.msra.mxu0 0.0
    %1439 = vmatprep.subr.mxu0 0.0
    %1440 = vmatpush1.msra.mxu0 0.0
    %1441 = vmatprep.subr.mxu0 0.0
    %1442 = vmatpush1.msra.mxu0 0.0
    %1443 = vmatprep.subr.mxu0 0.0
    %1444 = vmatpush1.msra.mxu0 0.0
    %1445 = vmatprep.subr.mxu0 0.0
    %1446 = vmatpush1.msra.mxu0 0.0
    %1447 = vmatprep.subr.mxu0 0.0
    %1448 = vmatpush1.msra.mxu0 0.0
    %1449 = vmatprep.subr.mxu0 0.0
    %1450 = vmatpush1.msra.mxu0 0.0
    %1451 = vmatprep.subr.mxu0 0.0
    %1452 = vmatpush1.msra.mxu0 0.0
    %1453 = vmatprep.subr.mxu0 0.0
    %1454 = vmatpush1.msra.mxu0 0.0
    %1455 = vmatprep.subr.mxu0 0.0
    %1456 = vmatpush1.msra.mxu0 0.0
    %1457 = vmatprep.subr.mxu0 0.0
    %1458 = vmatpush1.msra.mxu0 0.0
    %1459 = vmatprep.subr.mxu0 0.0
    %1460 = vmatpush1.msra.mxu0 0.0
    %1461 = vmatprep.mubr.f32.mxu0 0.0
    %v1462 = vand.u32 %v954, 4294901760
    %1463 = vmatmul.mubr.f32.gmra.mrb[0].mxu0 %v1462
    %v1464 = vpop.f32.mrb[0].mxu0
    %v1465 = vadd.f32 %v1358, %v1464
    %v1466 = vpop.f32.mrb[0].mxu0
    %1467 = vmatprep.mubr.f32.mxu0 0.0
    %v1468 = vand.u32 %v957, 4294901760
    %1469 = vmatmul.mubr.f32.gmra.mrb[0].mxu0 %v1468
    %v1470 = vpop.f32.mrb[0].mxu0
    %v1471 = vadd.f32 %v1366, %v1470
    %v1472 = vpop.f32.mrb[0].mxu0
    %1473 = vmatprep.mubr.f32.mxu0 0.0
    %v1474 = vand.u32 %v960, 4294901760
    %1475 = vmatmul.mubr.f32.gmra.mrb[0].mxu0 %v1474
    %v1476 = vpop.f32.mrb[0].mxu0
    %v1477 = vadd.f32 %v1374, %v1476
    %v1478 = vpop.f32.mrb[0].mxu0
    %1479 = vmatprep.mubr.f32.mxu0 0.0
    %v1480 = vand.u32 %v963, 4294901760
    %1481 = vmatmul.mubr.f32.gmra.mrb[0].mxu0 %v1480
    %v1482 = vpop.f32.mrb[0].mxu0
    %v1483 = vadd.f32 %v1382, %v1482
    %v1484 = vpop.f32.mrb[0].mxu0
    %1485 = vdwg.mxu0
    %1486 = vmatprep.subr.mxu0 0.0
    %v1487 = vand.u32 %v27, 4294901760
    %1488 = vmatpush1.msra.mxu0 %v1487
    %1489 = vmatprep.subr.mxu0 0.0
    %v1490 = vand.u32 %v28, 4294901760
    %1491 = vmatpush1.msra.mxu0 %v1490
    %1492 = vmatprep.subr.mxu0 0.0
    %v1493 = vand.u32 %v29, 4294901760
    %1494 = vmatpush1.msra.mxu0 %v1493
    %1495 = vmatprep.subr.mxu0 0.0
    %v1496 = vand.u32 %v30, 4294901760
    %1497 = vmatpush1.msra.mxu0 %v1496
    %1498 = vmatprep.subr.mxu0 0.0
    %1499 = vmatpush1.msra.mxu0 0.0
    %1500 = vmatprep.subr.mxu0 0.0
    %1501 = vmatpush1.msra.mxu0 0.0
    %1502 = vmatprep.subr.mxu0 0.0
    %1503 = vmatpush1.msra.mxu0 0.0
    %1504 = vmatprep.subr.mxu0 0.0
    %1505 = vmatpush1.msra.mxu0 0.0
    %1506 = vmatprep.subr.mxu0 0.0
    %1507 = vmatpush1.msra.mxu0 0.0
    %1508 = vmatprep.subr.mxu0 0.0
    %1509 = vmatpush1.msra.mxu0 0.0
    %1510 = vmatprep.subr.mxu0 0.0
    %1511 = vmatpush1.msra.mxu0 0.0
    %1512 = vmatprep.subr.mxu0 0.0
    %1513 = vmatpush1.msra.mxu0 0.0
    %1514 = vmatprep.subr.mxu0 0.0
    %1515 = vmatpush1.msra.mxu0 0.0
    %1516 = vmatprep.subr.mxu0 0.0
    %1517 = vmatpush1.msra.mxu0 0.0
    %1518 = vmatprep.subr.mxu0 0.0
    %1519 = vmatpush1.msra.mxu0 0.0
    %1520 = vmatprep.subr.mxu0 0.0
    %1521 = vmatpush1.msra.mxu0 0.0
    %1522 = vmatprep.subr.mxu0 0.0
    %1523 = vmatpush1.msra.mxu0 0.0
    %1524 = vmatprep.subr.mxu0 0.0
    %1525 = vmatpush1.msra.mxu0 0.0
    %1526 = vmatprep.subr.mxu0 0.0
    %1527 = vmatpush1.msra.mxu0 0.0
    %1528 = vmatprep.subr.mxu0 0.0
    %1529 = vmatpush1.msra.mxu0 0.0
    %1530 = vmatprep.subr.mxu0 0.0
    %1531 = vmatpush1.msra.mxu0 0.0
    %1532 = vmatprep.subr.mxu0 0.0
    %1533 = vmatpush1.msra.mxu0 0.0
    %1534 = vmatprep.subr.mxu0 0.0
    %1535 = vmatpush1.msra.mxu0 0.0
    %1536 = vmatprep.subr.mxu0 0.0
    %1537 = vmatpush1.msra.mxu0 0.0
    %1538 = vmatprep.subr.mxu0 0.0
    %1539 = vmatpush1.msra.mxu0 0.0
    %1540 = vmatprep.subr.mxu0 0.0
    %1541 = vmatpush1.msra.mxu0 0.0
    %1542 = vmatprep.subr.mxu0 0.0
    %1543 = vmatpush1.msra.mxu0 0.0
    %1544 = vmatprep.subr.mxu0 0.0
    %1545 = vmatpush1.msra.mxu0 0.0
    %1546 = vmatprep.subr.mxu0 0.0
    %1547 = vmatpush1.msra.mxu0 0.0
    %1548 = vmatprep.subr.mxu0 0.0
    %1549 = vmatpush1.msra.mxu0 0.0
    %1550 = vmatprep.subr.mxu0 0.0
    %1551 = vmatpush1.msra.mxu0 0.0
    %1552 = vmatprep.subr.mxu0 0.0
    %1553 = vmatpush1.msra.mxu0 0.0
    %1554 = vmatprep.mubr.f32.mxu0 0.0
    %v1555 = vand.u32 %v954, 4294901760
    %1556 = vmatmul.mubr.f32.gmra.mrb[0].mxu0 %v1555
    %v1557 = vpop.f32.mrb[0].mxu0
    %v1558 = vadd.f32 %v1465, %v1557
    %v1559 = vpop.f32.mrb[0].mxu0
    %1560 = vmatprep.mubr.f32.mxu0 0.0
    %v1561 = vand.u32 %v957, 4294901760
    %1562 = vmatmul.mubr.f32.gmra.mrb[0].mxu0 %v1561
    %v1563 = vpop.f32.mrb[0].mxu0
    %v1564 = vadd.f32 %v1471, %v1563
    %v1565 = vpop.f32.mrb[0].mxu0
    %1566 = vmatprep.mubr.f32.mxu0 0.0
    %v1567 = vand.u32 %v960, 4294901760
    %1568 = vmatmul.mubr.f32.gmra.mrb[0].mxu0 %v1567
    %v1569 = vpop.f32.mrb[0].mxu0
    %v1570 = vadd.f32 %v1477, %v1569
    %v1571 = vpop.f32.mrb[0].mxu0
    %1572 = vmatprep.mubr.f32.mxu0 0.0
    %v1573 = vand.u32 %v963, 4294901760
    %1574 = vmatmul.mubr.f32.gmra.mrb[0].mxu0 %v1573
    %v1575 = vpop.f32.mrb[0].mxu0
    %v1576 = vadd.f32 %v1483, %v1575
    %v1577 = vpop.f32.mrb[0].mxu0
    %1578 = vdwg.mxu0
    %v1580 = vsel %vm952, 0.0, 0
    %1582 = vmatprep.subr.mxu0 0.0
    %v1583 = vand.u32 %v31, 4294901760
    %1584 = vmatpush1.msra.mxu0 %v1583
    %1585 = vmatprep.subr.mxu0 0.0
    %v1586 = vand.u32 %v32, 4294901760
    %1587 = vmatpush1.msra.mxu0 %v1586
    %1588 = vmatprep.subr.mxu0 0.0
    %v1589 = vand.u32 %v33, 4294901760
    %1590 = vmatpush1.msra.mxu0 %v1589
    %1591 = vmatprep.subr.mxu0 0.0
    %v1592 = vand.u32 %v34, 4294901760
    %1593 = vmatpush1.msra.mxu0 %v1592
    %1594 = vmatprep.subr.mxu0 0.0
    %1595 = vmatpush1.msra.mxu0 0.0
    %1596 = vmatprep.subr.mxu0 0.0
    %1597 = vmatpush1.msra.mxu0 0.0
    %1598 = vmatprep.subr.mxu0 0.0
    %1599 = vmatpush1.msra.mxu0 0.0
    %1600 = vmatprep.subr.mxu0 0.0
    %1601 = vmatpush1.msra.mxu0 0.0
    %1602 = vmatprep.subr.mxu0 0.0
    %1603 = vmatpush1.msra.mxu0 0.0
    %1604 = vmatprep.subr.mxu0 0.0
    %1605 = vmatpush1.msra.mxu0 0.0
    %1606 = vmatprep.subr.mxu0 0.0
    %1607 = vmatpush1.msra.mxu0 0.0
    %1608 = vmatprep.subr.mxu0 0.0
    %1609 = vmatpush1.msra.mxu0 0.0
    %1610 = vmatprep.subr.mxu0 0.0
    %1611 = vmatpush1.msra.mxu0 0.0
    %1612 = vmatprep.subr.mxu0 0.0
    %1613 = vmatpush1.msra.mxu0 0.0
    %1614 = vmatprep.subr.mxu0 0.0
    %1615 = vmatpush1.msra.mxu0 0.0
    %1616 = vmatprep.subr.mxu0 0.0
    %1617 = vmatpush1.msra.mxu0 0.0
    %1618 = vmatprep.subr.mxu0 0.0
    %1619 = vmatpush1.msra.mxu0 0.0
    %1620 = vmatprep.subr.mxu0 0.0
    %1621 = vmatpush1.msra.mxu0 0.0
    %1622 = vmatprep.subr.mxu0 0.0
    %1623 = vmatpush1.msra.mxu0 0.0
    %1624 = vmatprep.subr.mxu0 0.0
    %1625 = vmatpush1.msra.mxu0 0.0
    %1626 = vmatprep.subr.mxu0 0.0
    %1627 = vmatpush1.msra.mxu0 0.0
    %1628 = vmatprep.subr.mxu0 0.0
    %1629 = vmatpush1.msra.mxu0 0.0
    %1630 = vmatprep.subr.mxu0 0.0
    %1631 = vmatpush1.msra.mxu0 0.0
    %1632 = vmatprep.subr.mxu0 0.0
    %1633 = vmatpush1.msra.mxu0 0.0
    %1634 = vmatprep.subr.mxu0 0.0
    %1635 = vmatpush1.msra.mxu0 0.0
    %1636 = vmatprep.subr.mxu0 0.0
    %1637 = vmatpush1.msra.mxu0 0.0
    %1638 = vmatprep.subr.mxu0 0.0
    %1639 = vmatpush1.msra.mxu0 0.0
    %1640 = vmatprep.subr.mxu0 0.0
    %1641 = vmatpush1.msra.mxu0 0.0
    %1642 = vmatprep.subr.mxu0 0.0
    %1643 = vmatpush1.msra.mxu0 0.0
    %1644 = vmatprep.subr.mxu0 0.0
    %1645 = vmatpush1.msra.mxu0 0.0
    %1646 = vmatprep.subr.mxu0 0.0
    %1647 = vmatpush1.msra.mxu0 0.0
    %1648 = vmatprep.subr.mxu0 0.0
    %1649 = vmatpush1.msra.mxu0 0.0
    %1650 = vmatprep.mubr.f32.mxu0 0.0
    %v1651 = vand.u32 %v1580, 4294901760
    %v1652 = vsub.f32 %v1580, %v1651
    %v1653 = vand.u32 %v1652, 4294901760
    %v1654 = vsub.f32 %v1652, %v1653
    %v1655 = vand.u32 %v1654, 4294901760
    %1656 = vmatmul.mubr.f32.gmra.mrb[0].mxu0 %v1655
    %v1657 = vpop.f32.mrb[0].mxu0
    %v1658 = vadd.f32 0.0, %v1657
    %v1659 = vpop.f32.mrb[0].mxu0
    %1660 = vdwg.mxu0
    %1661 = vmatprep.subr.mxu0 0.0
    %v1662 = vand.u32 %v31, 4294901760
    %v1663 = vsub.f32 %v31, %v1662
    %v1664 = vand.u32 %v1663, 4294901760
    %v1665 = vsub.f32 %v1663, %v1664
    %v1666 = vand.u32 %v1665, 4294901760
    %1667 = vmatpush1.msra.mxu0 %v1666
    %1668 = vmatprep.subr.mxu0 0.0
    %v1669 = vand.u32 %v32, 4294901760
    %v1670 = vsub.f32 %v32, %v1669
    %v1671 = vand.u32 %v1670, 4294901760
    %v1672 = vsub.f32 %v1670, %v1671
    %v1673 = vand.u32 %v1672, 4294901760
    %1674 = vmatpush1.msra.mxu0 %v1673
    %1675 = vmatprep.subr.mxu0 0.0
    %v1676 = vand.u32 %v33, 4294901760
    %v1677 = vsub.f32 %v33, %v1676
    %v1678 = vand.u32 %v1677, 4294901760
    %v1679 = vsub.f32 %v1677, %v1678
    %v1680 = vand.u32 %v1679, 4294901760
    %1681 = vmatpush1.msra.mxu0 %v1680
    %1682 = vmatprep.subr.mxu0 0.0
    %v1683 = vand.u32 %v34, 4294901760
    %v1684 = vsub.f32 %v34, %v1683
    %v1685 = vand.u32 %v1684, 4294901760
    %v1686 = vsub.f32 %v1684, %v1685
    %v1687 = vand.u32 %v1686, 4294901760
    %1688 = vmatpush1.msra.mxu0 %v1687
    %1689 = vmatprep.subr.mxu0 0.0
    %1690 = vmatpush1.msra.mxu0 0.0
    %1691 = vmatprep.subr.mxu0 0.0
    %1692 = vmatpush1.msra.mxu0 0.0
    %1693 = vmatprep.subr.mxu0 0.0
    %1694 = vmatpush1.msra.mxu0 0.0
    %1695 = vmatprep.subr.mxu0 0.0
    %1696 = vmatpush1.msra.mxu0 0.0
    %1697 = vmatprep.subr.mxu0 0.0
    %1698 = vmatpush1.msra.mxu0 0.0
    %1699 = vmatprep.subr.mxu0 0.0
    %1700 = vmatpush1.msra.mxu0 0.0
    %1701 = vmatprep.subr.mxu0 0.0
    %1702 = vmatpush1.msra.mxu0 0.0
    %1703 = vmatprep.subr.mxu0 0.0
    %1704 = vmatpush1.msra.mxu0 0.0
    %1705 = vmatprep.subr.mxu0 0.0
    %1706 = vmatpush1.msra.mxu0 0.0
    %1707 = vmatprep.subr.mxu0 0.0
    %1708 = vmatpush1.msra.mxu0 0.0
    %1709 = vmatprep.subr.mxu0 0.0
    %1710 = vmatpush1.msra.mxu0 0.0
    %1711 = vmatprep.subr.mxu0 0.0
    %1712 = vmatpush1.msra.mxu0 0.0
    %1713 = vmatprep.subr.mxu0 0.0
    %1714 = vmatpush1.msra.mxu0 0.0
    %1715 = vmatprep.subr.mxu0 0.0
    %1716 = vmatpush1.msra.mxu0 0.0
    %1717 = vmatprep.subr.mxu0 0.0
    %1718 = vmatpush1.msra.mxu0 0.0
    %1719 = vmatprep.subr.mxu0 0.0
    %1720 = vmatpush1.msra.mxu0 0.0
    %1721 = vmatprep.subr.mxu0 0.0
    %1722 = vmatpush1.msra.mxu0 0.0
    %1723 = vmatprep.subr.mxu0 0.0
    %1724 = vmatpush1.msra.mxu0 0.0
    %1725 = vmatprep.subr.mxu0 0.0
    %1726 = vmatpush1.msra.mxu0 0.0
    %1727 = vmatprep.subr.mxu0 0.0
    %1728 = vmatpush1.msra.mxu0 0.0
    %1729 = vmatprep.subr.mxu0 0.0
    %1730 = vmatpush1.msra.mxu0 0.0
    %1731 = vmatprep.subr.mxu0 0.0
    %1732 = vmatpush1.msra.mxu0 0.0
    %1733 = vmatprep.subr.mxu0 0.0
    %1734 = vmatpush1.msra.mxu0 0.0
    %1735 = vmatprep.subr.mxu0 0.0
    %1736 = vmatpush1.msra.mxu0 0.0
    %1737 = vmatprep.subr.mxu0 0.0
    %1738 = vmatpush1.msra.mxu0 0.0
    %1739 = vmatprep.subr.mxu0 0.0
    %1740 = vmatpush1.msra.mxu0 0.0
    %1741 = vmatprep.subr.mxu0 0.0
    %1742 = vmatpush1.msra.mxu0 0.0
    %1743 = vmatprep.subr.mxu0 0.0
    %1744 = vmatpush1.msra.mxu0 0.0
    %1745 = vmatprep.mubr.f32.mxu0 0.0
    %v1746 = vand.u32 %v1580, 4294901760
    %1747 = vmatmul.mubr.f32.gmra.mrb[0].mxu0 %v1746
    %v1748 = vpop.f32.mrb[0].mxu0
    %v1749 = vadd.f32 %v1658, %v1748
    %v1750 = vpop.f32.mrb[0].mxu0
    %1751 = vdwg.mxu0
    %1752 = vmatprep.subr.mxu0 0.0
    %v1753 = vand.u32 %v31, 4294901760
    %v1754 = vsub.f32 %v31, %v1753
    %1755 = vmatpush1.msra.mxu0 %v1754
    %1756 = vmatprep.subr.mxu0 0.0
    %v1757 = vand.u32 %v32, 4294901760
    %v1758 = vsub.f32 %v32, %v1757
    %1759 = vmatpush1.msra.mxu0 %v1758
    %1760 = vmatprep.subr.mxu0 0.0
    %v1761 = vand.u32 %v33, 4294901760
    %v1762 = vsub.f32 %v33, %v1761
    %1763 = vmatpush1.msra.mxu0 %v1762
    %1764 = vmatprep.subr.mxu0 0.0
    %v1765 = vand.u32 %v34, 4294901760
    %v1766 = vsub.f32 %v34, %v1765
    %1767 = vmatpush1.msra.mxu0 %v1766
    %1768 = vmatprep.subr.mxu0 0.0
    %1769 = vmatpush1.msra.mxu0 0.0
    %1770 = vmatprep.subr.mxu0 0.0
    %1771 = vmatpush1.msra.mxu0 0.0
    %1772 = vmatprep.subr.mxu0 0.0
    %1773 = vmatpush1.msra.mxu0 0.0
    %1774 = vmatprep.subr.mxu0 0.0
    %1775 = vmatpush1.msra.mxu0 0.0
    %1776 = vmatprep.subr.mxu0 0.0
    %1777 = vmatpush1.msra.mxu0 0.0
    %1778 = vmatprep.subr.mxu0 0.0
    %1779 = vmatpush1.msra.mxu0 0.0
    %1780 = vmatprep.subr.mxu0 0.0
    %1781 = vmatpush1.msra.mxu0 0.0
    %1782 = vmatprep.subr.mxu0 0.0
    %1783 = vmatpush1.msra.mxu0 0.0
    %1784 = vmatprep.subr.mxu0 0.0
    %1785 = vmatpush1.msra.mxu0 0.0
    %1786 = vmatprep.subr.mxu0 0.0
    %1787 = vmatpush1.msra.mxu0 0.0
    %1788 = vmatprep.subr.mxu0 0.0
    %1789 = vmatpush1.msra.mxu0 0.0
    %1790 = vmatprep.subr.mxu0 0.0
    %1791 = vmatpush1.msra.mxu0 0.0
    %1792 = vmatprep.subr.mxu0 0.0
    %1793 = vmatpush1.msra.mxu0 0.0
    %1794 = vmatprep.subr.mxu0 0.0
    %1795 = vmatpush1.msra.mxu0 0.0
    %1796 = vmatprep.subr.mxu0 0.0
    %1797 = vmatpush1.msra.mxu0 0.0
    %1798 = vmatprep.subr.mxu0 0.0
    %1799 = vmatpush1.msra.mxu0 0.0
    %1800 = vmatprep.subr.mxu0 0.0
    %1801 = vmatpush1.msra.mxu0 0.0
    %1802 = vmatprep.subr.mxu0 0.0
    %1803 = vmatpush1.msra.mxu0 0.0
    %1804 = vmatprep.subr.mxu0 0.0
    %1805 = vmatpush1.msra.mxu0 0.0
    %1806 = vmatprep.subr.mxu0 0.0
    %1807 = vmatpush1.msra.mxu0 0.0
    %1808 = vmatprep.subr.mxu0 0.0
    %1809 = vmatpush1.msra.mxu0 0.0
    %1810 = vmatprep.subr.mxu0 0.0
    %1811 = vmatpush1.msra.mxu0 0.0
    %1812 = vmatprep.subr.mxu0 0.0
    %1813 = vmatpush1.msra.mxu0 0.0
    %1814 = vmatprep.subr.mxu0 0.0
    %1815 = vmatpush1.msra.mxu0 0.0
    %1816 = vmatprep.subr.mxu0 0.0
    %1817 = vmatpush1.msra.mxu0 0.0
    %1818 = vmatprep.subr.mxu0 0.0
    %1819 = vmatpush1.msra.mxu0 0.0
    %1820 = vmatprep.subr.mxu0 0.0
    %1821 = vmatpush1.msra.mxu0 0.0
    %1822 = vmatprep.subr.mxu0 0.0
    %1823 = vmatpush1.msra.mxu0 0.0
    %1824 = vmatprep.mubr.f32.mxu0 0.0
    %v1825 = vand.u32 %v1580, 4294901760
    %v1826 = vsub.f32 %v1580, %v1825
    %1827 = vmatmul.mubr.f32.gmra.mrb[0].mxu0 %v1826
    %v1828 = vpop.f32.mrb[0].mxu0
    %v1829 = vadd.f32 %v1749, %v1828
    %v1830 = vpop.f32.mrb[0].mxu0
    %1831 = vdwg.mxu0
    %1832 = vmatprep.subr.mxu0 0.0
    %v1833 = vand.u32 %v31, 4294901760
    %1834 = vmatpush1.msra.mxu0 %v1833
    %1835 = vmatprep.subr.mxu0 0.0
    %v1836 = vand.u32 %v32, 4294901760
    %1837 = vmatpush1.msra.mxu0 %v1836
    %1838 = vmatprep.subr.mxu0 0.0
    %v1839 = vand.u32 %v33, 4294901760
    %1840 = vmatpush1.msra.mxu0 %v1839
    %1841 = vmatprep.subr.mxu0 0.0
    %v1842 = vand.u32 %v34, 4294901760
    %1843 = vmatpush1.msra.mxu0 %v1842
    %1844 = vmatprep.subr.mxu0 0.0
    %1845 = vmatpush1.msra.mxu0 0.0
    %1846 = vmatprep.subr.mxu0 0.0
    %1847 = vmatpush1.msra.mxu0 0.0
    %1848 = vmatprep.subr.mxu0 0.0
    %1849 = vmatpush1.msra.mxu0 0.0
    %1850 = vmatprep.subr.mxu0 0.0
    %1851 = vmatpush1.msra.mxu0 0.0
    %1852 = vmatprep.subr.mxu0 0.0
    %1853 = vmatpush1.msra.mxu0 0.0
    %1854 = vmatprep.subr.mxu0 0.0
    %1855 = vmatpush1.msra.mxu0 0.0
    %1856 = vmatprep.subr.mxu0 0.0
    %1857 = vmatpush1.msra.mxu0 0.0
    %1858 = vmatprep.subr.mxu0 0.0
    %1859 = vmatpush1.msra.mxu0 0.0
    %1860 = vmatprep.subr.mxu0 0.0
    %1861 = vmatpush1.msra.mxu0 0.0
    %1862 = vmatprep.subr.mxu0 0.0
    %1863 = vmatpush1.msra.mxu0 0.0
    %1864 = vmatprep.subr.mxu0 0.0
    %1865 = vmatpush1.msra.mxu0 0.0
    %1866 = vmatprep.subr.mxu0 0.0
    %1867 = vmatpush1.msra.mxu0 0.0
    %1868 = vmatprep.subr.mxu0 0.0
    %1869 = vmatpush1.msra.mxu0 0.0
    %1870 = vmatprep.subr.mxu0 0.0
    %1871 = vmatpush1.msra.mxu0 0.0
    %1872 = vmatprep.subr.mxu0 0.0
    %1873 = vmatpush1.msra.mxu0 0.0
    %1874 = vmatprep.subr.mxu0 0.0
    %1875 = vmatpush1.msra.mxu0 0.0
    %1876 = vmatprep.subr.mxu0 0.0
    %1877 = vmatpush1.msra.mxu0 0.0
    %1878 = vmatprep.subr.mxu0 0.0
    %1879 = vmatpush1.msra.mxu0 0.0
    %1880 = vmatprep.subr.mxu0 0.0
    %1881 = vmatpush1.msra.mxu0 0.0
    %1882 = vmatprep.subr.mxu0 0.0
    %1883 = vmatpush1.msra.mxu0 0.0
    %1884 = vmatprep.subr.mxu0 0.0
    %1885 = vmatpush1.msra.mxu0 0.0
    %1886 = vmatprep.subr.mxu0 0.0
    %1887 = vmatpush1.msra.mxu0 0.0
    %1888 = vmatprep.subr.mxu0 0.0
    %1889 = vmatpush1.msra.mxu0 0.0
    %1890 = vmatprep.subr.mxu0 0.0
    %1891 = vmatpush1.msra.mxu0 0.0
    %1892 = vmatprep.subr.mxu0 0.0
    %1893 = vmatpush1.msra.mxu0 0.0
    %1894 = vmatprep.subr.mxu0 0.0
    %1895 = vmatpush1.msra.mxu0 0.0
    %1896 = vmatprep.subr.mxu0 0.0
    %1897 = vmatpush1.msra.mxu0 0.0
    %1898 = vmatprep.subr.mxu0 0.0
    %1899 = vmatpush1.msra.mxu0 0.0
    %1900 = vmatprep.mubr.f32.mxu0 0.0
    %v1901 = vand.u32 %v1580, 4294901760
    %v1902 = vsub.f32 %v1580, %v1901
    %v1903 = vand.u32 %v1902, 4294901760
    %1904 = vmatmul.mubr.f32.gmra.mrb[0].mxu0 %v1903
    %v1905 = vpop.f32.mrb[0].mxu0
    %v1906 = vadd.f32 %v1829, %v1905
    %v1907 = vpop.f32.mrb[0].mxu0
    %1908 = vdwg.mxu0
    %1909 = vmatprep.subr.mxu0 0.0
    %v1910 = vand.u32 %v31, 4294901760
    %v1911 = vsub.f32 %v31, %v1910
    %v1912 = vand.u32 %v1911, 4294901760
    %1913 = vmatpush1.msra.mxu0 %v1912
    %1914 = vmatprep.subr.mxu0 0.0
    %v1915 = vand.u32 %v32, 4294901760
    %v1916 = vsub.f32 %v32, %v1915
    %v1917 = vand.u32 %v1916, 4294901760
    %1918 = vmatpush1.msra.mxu0 %v1917
    %1919 = vmatprep.subr.mxu0 0.0
    %v1920 = vand.u32 %v33, 4294901760
    %v1921 = vsub.f32 %v33, %v1920
    %v1922 = vand.u32 %v1921, 4294901760
    %1923 = vmatpush1.msra.mxu0 %v1922
    %1924 = vmatprep.subr.mxu0 0.0
    %v1925 = vand.u32 %v34, 4294901760
    %v1926 = vsub.f32 %v34, %v1925
    %v1927 = vand.u32 %v1926, 4294901760
    %1928 = vmatpush1.msra.mxu0 %v1927
    %1929 = vmatprep.subr.mxu0 0.0
    %1930 = vmatpush1.msra.mxu0 0.0
    %1931 = vmatprep.subr.mxu0 0.0
    %1932 = vmatpush1.msra.mxu0 0.0
    %1933 = vmatprep.subr.mxu0 0.0
    %1934 = vmatpush1.msra.mxu0 0.0
    %1935 = vmatprep.subr.mxu0 0.0
    %1936 = vmatpush1.msra.mxu0 0.0
    %1937 = vmatprep.subr.mxu0 0.0
    %1938 = vmatpush1.msra.mxu0 0.0
    %1939 = vmatprep.subr.mxu0 0.0
    %1940 = vmatpush1.msra.mxu0 0.0
    %1941 = vmatprep.subr.mxu0 0.0
    %1942 = vmatpush1.msra.mxu0 0.0
    %1943 = vmatprep.subr.mxu0 0.0
    %1944 = vmatpush1.msra.mxu0 0.0
    %1945 = vmatprep.subr.mxu0 0.0
    %1946 = vmatpush1.msra.mxu0 0.0
    %1947 = vmatprep.subr.mxu0 0.0
    %1948 = vmatpush1.msra.mxu0 0.0
    %1949 = vmatprep.subr.mxu0 0.0
    %1950 = vmatpush1.msra.mxu0 0.0
    %1951 = vmatprep.subr.mxu0 0.0
    %1952 = vmatpush1.msra.mxu0 0.0
    %1953 = vmatprep.subr.mxu0 0.0
    %1954 = vmatpush1.msra.mxu0 0.0
    %1955 = vmatprep.subr.mxu0 0.0
    %1956 = vmatpush1.msra.mxu0 0.0
    %1957 = vmatprep.subr.mxu0 0.0
    %1958 = vmatpush1.msra.mxu0 0.0
    %1959 = vmatprep.subr.mxu0 0.0
    %1960 = vmatpush1.msra.mxu0 0.0
    %1961 = vmatprep.subr.mxu0 0.0
    %1962 = vmatpush1.msra.mxu0 0.0
    %1963 = vmatprep.subr.mxu0 0.0
    %1964 = vmatpush1.msra.mxu0 0.0
    %1965 = vmatprep.subr.mxu0 0.0
    %1966 = vmatpush1.msra.mxu0 0.0
    %1967 = vmatprep.subr.mxu0 0.0
    %1968 = vmatpush1.msra.mxu0 0.0
    %1969 = vmatprep.subr.mxu0 0.0
    %1970 = vmatpush1.msra.mxu0 0.0
    %1971 = vmatprep.subr.mxu0 0.0
    %1972 = vmatpush1.msra.mxu0 0.0
    %1973 = vmatprep.subr.mxu0 0.0
    %1974 = vmatpush1.msra.mxu0 0.0
    %1975 = vmatprep.subr.mxu0 0.0
    %1976 = vmatpush1.msra.mxu0 0.0
    %1977 = vmatprep.subr.mxu0 0.0
    %1978 = vmatpush1.msra.mxu0 0.0
    %1979 = vmatprep.subr.mxu0 0.0
    %1980 = vmatpush1.msra.mxu0 0.0
    %1981 = vmatprep.subr.mxu0 0.0
    %1982 = vmatpush1.msra.mxu0 0.0
    %1983 = vmatprep.subr.mxu0 0.0
    %1984 = vmatpush1.msra.mxu0 0.0
    %1985 = vmatprep.mubr.f32.mxu0 0.0
    %v1986 = vand.u32 %v1580, 4294901760
    %1987 = vmatmul.mubr.f32.gmra.mrb[0].mxu0 %v1986
    %v1988 = vpop.f32.mrb[0].mxu0
    %v1989 = vadd.f32 %v1906, %v1988
    %v1990 = vpop.f32.mrb[0].mxu0
    %1991 = vdwg.mxu0
    %1992 = vmatprep.subr.mxu0 0.0
    %v1993 = vand.u32 %v31, 4294901760
    %1994 = vmatpush1.msra.mxu0 %v1993
    %1995 = vmatprep.subr.mxu0 0.0
    %v1996 = vand.u32 %v32, 4294901760
    %1997 = vmatpush1.msra.mxu0 %v1996
    %1998 = vmatprep.subr.mxu0 0.0
    %v1999 = vand.u32 %v33, 4294901760
    %2000 = vmatpush1.msra.mxu0 %v1999
    %2001 = vmatprep.subr.mxu0 0.0
    %v2002 = vand.u32 %v34, 4294901760
    %2003 = vmatpush1.msra.mxu0 %v2002
    %2004 = vmatprep.subr.mxu0 0.0
    %2005 = vmatpush1.msra.mxu0 0.0
    %2006 = vmatprep.subr.mxu0 0.0
    %2007 = vmatpush1.msra.mxu0 0.0
    %2008 = vmatprep.subr.mxu0 0.0
    %2009 = vmatpush1.msra.mxu0 0.0
    %2010 = vmatprep.subr.mxu0 0.0
    %2011 = vmatpush1.msra.mxu0 0.0
    %2012 = vmatprep.subr.mxu0 0.0
    %2013 = vmatpush1.msra.mxu0 0.0
    %2014 = vmatprep.subr.mxu0 0.0
    %2015 = vmatpush1.msra.mxu0 0.0
    %2016 = vmatprep.subr.mxu0 0.0
    %2017 = vmatpush1.msra.mxu0 0.0
    %2018 = vmatprep.subr.mxu0 0.0
    %2019 = vmatpush1.msra.mxu0 0.0
    %2020 = vmatprep.subr.mxu0 0.0
    %2021 = vmatpush1.msra.mxu0 0.0
    %2022 = vmatprep.subr.mxu0 0.0
    %2023 = vmatpush1.msra.mxu0 0.0
    %2024 = vmatprep.subr.mxu0 0.0
    %2025 = vmatpush1.msra.mxu0 0.0
    %2026 = vmatprep.subr.mxu0 0.0
    %2027 = vmatpush1.msra.mxu0 0.0
    %2028 = vmatprep.subr.mxu0 0.0
    %2029 = vmatpush1.msra.mxu0 0.0
    %2030 = vmatprep.subr.mxu0 0.0
    %2031 = vmatpush1.msra.mxu0 0.0
    %2032 = vmatprep.subr.mxu0 0.0
    %2033 = vmatpush1.msra.mxu0 0.0
    %2034 = vmatprep.subr.mxu0 0.0
    %2035 = vmatpush1.msra.mxu0 0.0
    %2036 = vmatprep.subr.mxu0 0.0
    %2037 = vmatpush1.msra.mxu0 0.0
    %2038 = vmatprep.subr.mxu0 0.0
    %2039 = vmatpush1.msra.mxu0 0.0
    %2040 = vmatprep.subr.mxu0 0.0
    %2041 = vmatpush1.msra.mxu0 0.0
    %2042 = vmatprep.subr.mxu0 0.0
    %2043 = vmatpush1.msra.mxu0 0.0
    %2044 = vmatprep.subr.mxu0 0.0
    %2045 = vmatpush1.msra.mxu0 0.0
    %2046 = vmatprep.subr.mxu0 0.0
    %2047 = vmatpush1.msra.mxu0 0.0
    %2048 = vmatprep.subr.mxu0 0.0
    %2049 = vmatpush1.msra.mxu0 0.0
    %2050 = vmatprep.subr.mxu0 0.0
    %2051 = vmatpush1.msra.mxu0 0.0
    %2052 = vmatprep.subr.mxu0 0.0
    %2053 = vmatpush1.msra.mxu0 0.0
    %2054 = vmatprep.subr.mxu0 0.0
    %2055 = vmatpush1.msra.mxu0 0.0
    %2056 = vmatprep.subr.mxu0 0.0
    %2057 = vmatpush1.msra.mxu0 0.0
    %2058 = vmatprep.subr.mxu0 0.0
    %2059 = vmatpush1.msra.mxu0 0.0
    %2060 = vmatprep.mubr.f32.mxu0 0.0
    %v2061 = vand.u32 %v1580, 4294901760
    %2062 = vmatmul.mubr.f32.gmra.mrb[0].mxu0 %v2061
    %v2063 = vpop.f32.mrb[0].mxu0
    %v2064 = vadd.f32 %v1989, %v2063
    %v2065 = vpop.f32.mrb[0].mxu0
    %2066 = vdwg.mxu0
    %v2067 = vadd.f32 %v1558, %v2064
    %v2068 = vxor.u32 %v2067, 2147483648
    %v2069 = vmul.f32 %v2068, 1.442695
    %v2070 = vpow.pop %v2069
    %v2071 = vadd.f32 %v2070, 1.0
    %v2072 = vrcp.pop %v2071
    %v2073 = vmul.f32 1.0, %v2072
    %v2074 = vmul.f32 %v2073, 2.0
    %v2075 = vsub.f32 %v2074, 1.0
    %v2076 = vmul.f32 %v2073, 0.0
    %2078 = vrot.lane.b32.xlu0 %v2075, 64
    %v2079 = vpop.permute.xlu0 %2078
    %v2081 = vmul.f32 %v2073, %v2079
    %2083 = vrot.lane.b32.xlu0 %v2081, 32
    %v2084 = vpop.permute.xlu0 %2083
    %v2086 = vadd.f32 %v2076, %v2084
    %v2087 = vtanh.pop %v2086
    %2089 = vrot.lane.b32.xlu0 %v2087, 64
    %v2090 = vpop.permute.xlu0 %2089
    %v2092 = vmul.f32 %v2073, %v2090
    %2094 = vrot.lane.b32.xlu0 %v2092, 32
    %v2095 = vpop.permute.xlu0 %2094
    %v2096 = vsel %vm952, %v2095, 0
    %2098 = vmatprep.subr.mxu0 0.0
    %v2099 = vand.u32 %v31, 4294901760
    %2100 = vmatpush1.msra.mxu0 %v2099
    %2101 = vmatprep.subr.mxu0 0.0
    %v2102 = vand.u32 %v32, 4294901760
    %2103 = vmatpush1.msra.mxu0 %v2102
    %2104 = vmatprep.subr.mxu0 0.0
    %v2105 = vand.u32 %v33, 4294901760
    %2106 = vmatpush1.msra.mxu0 %v2105
    %2107 = vmatprep.subr.mxu0 0.0
    %v2108 = vand.u32 %v34, 4294901760
    %2109 = vmatpush1.msra.mxu0 %v2108
    %2110 = vmatprep.subr.mxu0 0.0
    %2111 = vmatpush1.msra.mxu0 0.0
    %2112 = vmatprep.subr.mxu0 0.0
    %2113 = vmatpush1.msra.mxu0 0.0
    %2114 = vmatprep.subr.mxu0 0.0
    %2115 = vmatpush1.msra.mxu0 0.0
    %2116 = vmatprep.subr.mxu0 0.0
    %2117 = vmatpush1.msra.mxu0 0.0
    %2118 = vmatprep.subr.mxu0 0.0
    %2119 = vmatpush1.msra.mxu0 0.0
    %2120 = vmatprep.subr.mxu0 0.0
    %2121 = vmatpush1.msra.mxu0 0.0
    %2122 = vmatprep.subr.mxu0 0.0
    %2123 = vmatpush1.msra.mxu0 0.0
    %2124 = vmatprep.subr.mxu0 0.0
    %2125 = vmatpush1.msra.mxu0 0.0
    %2126 = vmatprep.subr.mxu0 0.0
    %2127 = vmatpush1.msra.mxu0 0.0
    %2128 = vmatprep.subr.mxu0 0.0
    %2129 = vmatpush1.msra.mxu0 0.0
    %2130 = vmatprep.subr.mxu0 0.0
    %2131 = vmatpush1.msra.mxu0 0.0
    %2132 = vmatprep.subr.mxu0 0.0
    %2133 = vmatpush1.msra.mxu0 0.0
    %2134 = vmatprep.subr.mxu0 0.0
    %2135 = vmatpush1.msra.mxu0 0.0
    %2136 = vmatprep.subr.mxu0 0.0
    %2137 = vmatpush1.msra.mxu0 0.0
    %2138 = vmatprep.subr.mxu0 0.0
    %2139 = vmatpush1.msra.mxu0 0.0
    %2140 = vmatprep.subr.mxu0 0.0
    %2141 = vmatpush1.msra.mxu0 0.0
    %2142 = vmatprep.subr.mxu0 0.0
    %2143 = vmatpush1.msra.mxu0 0.0
    %2144 = vmatprep.subr.mxu0 0.0
    %2145 = vmatpush1.msra.mxu0 0.0
    %2146 = vmatprep.subr.mxu0 0.0
    %2147 = vmatpush1.msra.mxu0 0.0
    %2148 = vmatprep.subr.mxu0 0.0
    %2149 = vmatpush1.msra.mxu0 0.0
    %2150 = vmatprep.subr.mxu0 0.0
    %2151 = vmatpush1.msra.mxu0 0.0
    %2152 = vmatprep.subr.mxu0 0.0
    %2153 = vmatpush1.msra.mxu0 0.0
    %2154 = vmatprep.subr.mxu0 0.0
    %2155 = vmatpush1.msra.mxu0 0.0
    %2156 = vmatprep.subr.mxu0 0.0
    %2157 = vmatpush1.msra.mxu0 0.0
    %2158 = vmatprep.subr.mxu0 0.0
    %2159 = vmatpush1.msra.mxu0 0.0
    %2160 = vmatprep.subr.mxu0 0.0
    %2161 = vmatpush1.msra.mxu0 0.0
    %2162 = vmatprep.subr.mxu0 0.0
    %2163 = vmatpush1.msra.mxu0 0.0
    %2164 = vmatprep.subr.mxu0 0.0
    %2165 = vmatpush1.msra.mxu0 0.0
    %2166 = vmatprep.mubr.f32.mxu0 0.0
    %v2167 = vand.u32 %v2096, 4294901760
    %v2168 = vsub.f32 %v2096, %v2167
    %v2169 = vand.u32 %v2168, 4294901760
    %v2170 = vsub.f32 %v2168, %v2169
    %v2171 = vand.u32 %v2170, 4294901760
    %2172 = vmatmul.mubr.f32.gmra.mrb[0].mxu0 %v2171
    %v2173 = vpop.f32.mrb[0].mxu0
    %v2174 = vadd.f32 0.0, %v2173
    %v2175 = vpop.f32.mrb[0].mxu0
    %2176 = vdwg.mxu0
    %2177 = vmatprep.subr.mxu0 0.0
    %v2178 = vand.u32 %v31, 4294901760
    %v2179 = vsub.f32 %v31, %v2178
    %v2180 = vand.u32 %v2179, 4294901760
    %v2181 = vsub.f32 %v2179, %v2180
    %v2182 = vand.u32 %v2181, 4294901760
    %2183 = vmatpush1.msra.mxu0 %v2182
    %2184 = vmatprep.subr.mxu0 0.0
    %v2185 = vand.u32 %v32, 4294901760
    %v2186 = vsub.f32 %v32, %v2185
    %v2187 = vand.u32 %v2186, 4294901760
    %v2188 = vsub.f32 %v2186, %v2187
    %v2189 = vand.u32 %v2188, 4294901760
    %2190 = vmatpush1.msra.mxu0 %v2189
    %2191 = vmatprep.subr.mxu0 0.0
    %v2192 = vand.u32 %v33, 4294901760
    %v2193 = vsub.f32 %v33, %v2192
    %v2194 = vand.u32 %v2193, 4294901760
    %v2195 = vsub.f32 %v2193, %v2194
    %v2196 = vand.u32 %v2195, 4294901760
    %2197 = vmatpush1.msra.mxu0 %v2196
    %2198 = vmatprep.subr.mxu0 0.0
    %v2199 = vand.u32 %v34, 4294901760
    %v2200 = vsub.f32 %v34, %v2199
    %v2201 = vand.u32 %v2200, 4294901760
    %v2202 = vsub.f32 %v2200, %v2201
    %v2203 = vand.u32 %v2202, 4294901760
    %2204 = vmatpush1.msra.mxu0 %v2203
    %2205 = vmatprep.subr.mxu0 0.0
    %2206 = vmatpush1.msra.mxu0 0.0
    %2207 = vmatprep.subr.mxu0 0.0
    %2208 = vmatpush1.msra.mxu0 0.0
    %2209 = vmatprep.subr.mxu0 0.0
    %2210 = vmatpush1.msra.mxu0 0.0
    %2211 = vmatprep.subr.mxu0 0.0
    %2212 = vmatpush1.msra.mxu0 0.0
    %2213 = vmatprep.subr.mxu0 0.0
    %2214 = vmatpush1.msra.mxu0 0.0
    %2215 = vmatprep.subr.mxu0 0.0
    %2216 = vmatpush1.msra.mxu0 0.0
    %2217 = vmatprep.subr.mxu0 0.0
    %2218 = vmatpush1.msra.mxu0 0.0
    %2219 = vmatprep.subr.mxu0 0.0
    %2220 = vmatpush1.msra.mxu0 0.0
    %2221 = vmatprep.subr.mxu0 0.0
    %2222 = vmatpush1.msra.mxu0 0.0
    %2223 = vmatprep.subr.mxu0 0.0
    %2224 = vmatpush1.msra.mxu0 0.0
    %2225 = vmatprep.subr.mxu0 0.0
    %2226 = vmatpush1.msra.mxu0 0.0
    %2227 = vmatprep.subr.mxu0 0.0
    %2228 = vmatpush1.msra.mxu0 0.0
    %2229 = vmatprep.subr.mxu0 0.0
    %2230 = vmatpush1.msra.mxu0 0.0
    %2231 = vmatprep.subr.mxu0 0.0
    %2232 = vmatpush1.msra.mxu0 0.0
    %2233 = vmatprep.subr.mxu0 0.0
    %2234 = vmatpush1.msra.mxu0 0.0
    %2235 = vmatprep.subr.mxu0 0.0
    %2236 = vmatpush1.msra.mxu0 0.0
    %2237 = vmatprep.subr.mxu0 0.0
    %2238 = vmatpush1.msra.mxu0 0.0
    %2239 = vmatprep.subr.mxu0 0.0
    %2240 = vmatpush1.msra.mxu0 0.0
    %2241 = vmatprep.subr.mxu0 0.0
    %2242 = vmatpush1.msra.mxu0 0.0
    %2243 = vmatprep.subr.mxu0 0.0
    %2244 = vmatpush1.msra.mxu0 0.0
    %2245 = vmatprep.subr.mxu0 0.0
    %2246 = vmatpush1.msra.mxu0 0.0
    %2247 = vmatprep.subr.mxu0 0.0
    %2248 = vmatpush1.msra.mxu0 0.0
    %2249 = vmatprep.subr.mxu0 0.0
    %2250 = vmatpush1.msra.mxu0 0.0
    %2251 = vmatprep.subr.mxu0 0.0
    %2252 = vmatpush1.msra.mxu0 0.0
    %2253 = vmatprep.subr.mxu0 0.0
    %2254 = vmatpush1.msra.mxu0 0.0
    %2255 = vmatprep.subr.mxu0 0.0
    %2256 = vmatpush1.msra.mxu0 0.0
    %2257 = vmatprep.subr.mxu0 0.0
    %2258 = vmatpush1.msra.mxu0 0.0
    %2259 = vmatprep.subr.mxu0 0.0
    %2260 = vmatpush1.msra.mxu0 0.0
    %2261 = vmatprep.mubr.f32.mxu0 0.0
    %v2262 = vand.u32 %v2096, 4294901760
    %2263 = vmatmul.mubr.f32.gmra.mrb[0].mxu0 %v2262
    %v2264 = vpop.f32.mrb[0].mxu0
    %v2265 = vadd.f32 %v2174, %v2264
    %v2266 = vpop.f32.mrb[0].mxu0
    %2267 = vdwg.mxu0
    %2268 = vmatprep.subr.mxu0 0.0
    %v2269 = vand.u32 %v31, 4294901760
    %v2270 = vsub.f32 %v31, %v2269
    %2271 = vmatpush1.msra.mxu0 %v2270
    %2272 = vmatprep.subr.mxu0 0.0
    %v2273 = vand.u32 %v32, 4294901760
    %v2274 = vsub.f32 %v32, %v2273
    %2275 = vmatpush1.msra.mxu0 %v2274
    %2276 = vmatprep.subr.mxu0 0.0
    %v2277 = vand.u32 %v33, 4294901760
    %v2278 = vsub.f32 %v33, %v2277
    %2279 = vmatpush1.msra.mxu0 %v2278
    %2280 = vmatprep.subr.mxu0 0.0
    %v2281 = vand.u32 %v34, 4294901760
    %v2282 = vsub.f32 %v34, %v2281
    %2283 = vmatpush1.msra.mxu0 %v2282
    %2284 = vmatprep.subr.mxu0 0.0
    %2285 = vmatpush1.msra.mxu0 0.0
    %2286 = vmatprep.subr.mxu0 0.0
    %2287 = vmatpush1.msra.mxu0 0.0
    %2288 = vmatprep.subr.mxu0 0.0
    %2289 = vmatpush1.msra.mxu0 0.0
    %2290 = vmatprep.subr.mxu0 0.0
    %2291 = vmatpush1.msra.mxu0 0.0
    %2292 = vmatprep.subr.mxu0 0.0
    %2293 = vmatpush1.msra.mxu0 0.0
    %2294 = vmatprep.subr.mxu0 0.0
    %2295 = vmatpush1.msra.mxu0 0.0
    %2296 = vmatprep.subr.mxu0 0.0
    %2297 = vmatpush1.msra.mxu0 0.0
    %2298 = vmatprep.subr.mxu0 0.0
    %2299 = vmatpush1.msra.mxu0 0.0
    %2300 = vmatprep.subr.mxu0 0.0
    %2301 = vmatpush1.msra.mxu0 0.0
    %2302 = vmatprep.subr.mxu0 0.0
    %2303 = vmatpush1.msra.mxu0 0.0
    %2304 = vmatprep.subr.mxu0 0.0
    %2305 = vmatpush1.msra.mxu0 0.0
    %2306 = vmatprep.subr.mxu0 0.0
    %2307 = vmatpush1.msra.mxu0 0.0
    %2308 = vmatprep.subr.mxu0 0.0
    %2309 = vmatpush1.msra.mxu0 0.0
    %2310 = vmatprep.subr.mxu0 0.0
    %2311 = vmatpush1.msra.mxu0 0.0
    %2312 = vmatprep.subr.mxu0 0.0
    %2313 = vmatpush1.msra.mxu0 0.0
    %2314 = vmatprep.subr.mxu0 0.0
    %2315 = vmatpush1.msra.mxu0 0.0
    %2316 = vmatprep.subr.mxu0 0.0
    %2317 = vmatpush1.msra.mxu0 0.0
    %2318 = vmatprep.subr.mxu0 0.0
    %2319 = vmatpush1.msra.mxu0 0.0
    %2320 = vmatprep.subr.mxu0 0.0
    %2321 = vmatpush1.msra.mxu0 0.0
    %2322 = vmatprep.subr.mxu0 0.0
    %2323 = vmatpush1.msra.mxu0 0.0
    %2324 = vmatprep.subr.mxu0 0.0
    %2325 = vmatpush1.msra.mxu0 0.0
    %2326 = vmatprep.subr.mxu0 0.0
    %2327 = vmatpush1.msra.mxu0 0.0
    %2328 = vmatprep.subr.mxu0 0.0
    %2329 = vmatpush1.msra.mxu0 0.0
    %2330 = vmatprep.subr.mxu0 0.0
    %2331 = vmatpush1.msra.mxu0 0.0
    %2332 = vmatprep.subr.mxu0 0.0
    %2333 = vmatpush1.msra.mxu0 0.0
    %2334 = vmatprep.subr.mxu0 0.0
    %2335 = vmatpush1.msra.mxu0 0.0
    %2336 = vmatprep.subr.mxu0 0.0
    %2337 = vmatpush1.msra.mxu0 0.0
    %2338 = vmatprep.subr.mxu0 0.0
    %2339 = vmatpush1.msra.mxu0 0.0
    %2340 = vmatprep.mubr.f32.mxu0 0.0
    %v2341 = vand.u32 %v2096, 4294901760
    %v2342 = vsub.f32 %v2096, %v2341
    %2343 = vmatmul.mubr.f32.gmra.mrb[0].mxu0 %v2342
    %v2344 = vpop.f32.mrb[0].mxu0
    %v2345 = vadd.f32 %v2265, %v2344
    %v2346 = vpop.f32.mrb[0].mxu0
    %2347 = vdwg.mxu0
    %2348 = vmatprep.subr.mxu0 0.0
    %v2349 = vand.u32 %v31, 4294901760
    %2350 = vmatpush1.msra.mxu0 %v2349
    %2351 = vmatprep.subr.mxu0 0.0
    %v2352 = vand.u32 %v32, 4294901760
    %2353 = vmatpush1.msra.mxu0 %v2352
    %2354 = vmatprep.subr.mxu0 0.0
    %v2355 = vand.u32 %v33, 4294901760
    %2356 = vmatpush1.msra.mxu0 %v2355
    %2357 = vmatprep.subr.mxu0 0.0
    %v2358 = vand.u32 %v34, 4294901760
    %2359 = vmatpush1.msra.mxu0 %v2358
    %2360 = vmatprep.subr.mxu0 0.0
    %2361 = vmatpush1.msra.mxu0 0.0
    %2362 = vmatprep.subr.mxu0 0.0
    %2363 = vmatpush1.msra.mxu0 0.0
    %2364 = vmatprep.subr.mxu0 0.0
    %2365 = vmatpush1.msra.mxu0 0.0
    %2366 = vmatprep.subr.mxu0 0.0
    %2367 = vmatpush1.msra.mxu0 0.0
    %2368 = vmatprep.subr.mxu0 0.0
    %2369 = vmatpush1.msra.mxu0 0.0
    %2370 = vmatprep.subr.mxu0 0.0
    %2371 = vmatpush1.msra.mxu0 0.0
    %2372 = vmatprep.subr.mxu0 0.0
    %2373 = vmatpush1.msra.mxu0 0.0
    %2374 = vmatprep.subr.mxu0 0.0
    %2375 = vmatpush1.msra.mxu0 0.0
    %2376 = vmatprep.subr.mxu0 0.0
    %2377 = vmatpush1.msra.mxu0 0.0
    %2378 = vmatprep.subr.mxu0 0.0
    %2379 = vmatpush1.msra.mxu0 0.0
    %2380 = vmatprep.subr.mxu0 0.0
    %2381 = vmatpush1.msra.mxu0 0.0
    %2382 = vmatprep.subr.mxu0 0.0
    %2383 = vmatpush1.msra.mxu0 0.0
    %2384 = vmatprep.subr.mxu0 0.0
    %2385 = vmatpush1.msra.mxu0 0.0
    %2386 = vmatprep.subr.mxu0 0.0
    %2387 = vmatpush1.msra.mxu0 0.0
    %2388 = vmatprep.subr.mxu0 0.0
    %2389 = vmatpush1.msra.mxu0 0.0
    %2390 = vmatprep.subr.mxu0 0.0
    %2391 = vmatpush1.msra.mxu0 0.0
    %2392 = vmatprep.subr.mxu0 0.0
    %2393 = vmatpush1.msra.mxu0 0.0
    %2394 = vmatprep.subr.mxu0 0.0
    %2395 = vmatpush1.msra.mxu0 0.0
    %2396 = vmatprep.subr.mxu0 0.0
    %2397 = vmatpush1.msra.mxu0 0.0
    %2398 = vmatprep.subr.mxu0 0.0
    %2399 = vmatpush1.msra.mxu0 0.0
    %2400 = vmatprep.subr.mxu0 0.0
    %2401 = vmatpush1.msra.mxu0 0.0
    %2402 = vmatprep.subr.mxu0 0.0
    %2403 = vmatpush1.msra.mxu0 0.0
    %2404 = vmatprep.subr.mxu0 0.0
    %2405 = vmatpush1.msra.mxu0 0.0
    %2406 = vmatprep.subr.mxu0 0.0
    %2407 = vmatpush1.msra.mxu0 0.0
    %2408 = vmatprep.subr.mxu0 0.0
    %2409 = vmatpush1.msra.mxu0 0.0
    %2410 = vmatprep.subr.mxu0 0.0
    %2411 = vmatpush1.msra.mxu0 0.0
    %2412 = vmatprep.subr.mxu0 0.0
    %2413 = vmatpush1.msra.mxu0 0.0
    %2414 = vmatprep.subr.mxu0 0.0
    %2415 = vmatpush1.msra.mxu0 0.0
    %2416 = vmatprep.mubr.f32.mxu0 0.0
    %v2417 = vand.u32 %v2096, 4294901760
    %v2418 = vsub.f32 %v2096, %v2417
    %v2419 = vand.u32 %v2418, 4294901760
    %2420 = vmatmul.mubr.f32.gmra.mrb[0].mxu0 %v2419
    %v2421 = vpop.f32.mrb[0].mxu0
    %v2422 = vadd.f32 %v2345, %v2421
    %v2423 = vpop.f32.mrb[0].mxu0
    %2424 = vdwg.mxu0
    %2425 = vmatprep.subr.mxu0 0.0
    %v2426 = vand.u32 %v31, 4294901760
    %v2427 = vsub.f32 %v31, %v2426
    %v2428 = vand.u32 %v2427, 4294901760
    %2429 = vmatpush1.msra.mxu0 %v2428
    %2430 = vmatprep.subr.mxu0 0.0
    %v2431 = vand.u32 %v32, 4294901760
    %v2432 = vsub.f32 %v32, %v2431
    %v2433 = vand.u32 %v2432, 4294901760
    %2434 = vmatpush1.msra.mxu0 %v2433
    %2435 = vmatprep.subr.mxu0 0.0
    %v2436 = vand.u32 %v33, 4294901760
    %v2437 = vsub.f32 %v33, %v2436
    %v2438 = vand.u32 %v2437, 4294901760
    %2439 = vmatpush1.msra.mxu0 %v2438
    %2440 = vmatprep.subr.mxu0 0.0
    %v2441 = vand.u32 %v34, 4294901760
    %v2442 = vsub.f32 %v34, %v2441
    %v2443 = vand.u32 %v2442, 4294901760
    %2444 = vmatpush1.msra.mxu0 %v2443
    %2445 = vmatprep.subr.mxu0 0.0
    %2446 = vmatpush1.msra.mxu0 0.0
    %2447 = vmatprep.subr.mxu0 0.0
    %2448 = vmatpush1.msra.mxu0 0.0
    %2449 = vmatprep.subr.mxu0 0.0
    %2450 = vmatpush1.msra.mxu0 0.0
    %2451 = vmatprep.subr.mxu0 0.0
    %2452 = vmatpush1.msra.mxu0 0.0
    %2453 = vmatprep.subr.mxu0 0.0
    %2454 = vmatpush1.msra.mxu0 0.0
    %2455 = vmatprep.subr.mxu0 0.0
    %2456 = vmatpush1.msra.mxu0 0.0
    %2457 = vmatprep.subr.mxu0 0.0
    %2458 = vmatpush1.msra.mxu0 0.0
    %2459 = vmatprep.subr.mxu0 0.0
    %2460 = vmatpush1.msra.mxu0 0.0
    %2461 = vmatprep.subr.mxu0 0.0
    %2462 = vmatpush1.msra.mxu0 0.0
    %2463 = vmatprep.subr.mxu0 0.0
    %2464 = vmatpush1.msra.mxu0 0.0
    %2465 = vmatprep.subr.mxu0 0.0
    %2466 = vmatpush1.msra.mxu0 0.0
    %2467 = vmatprep.subr.mxu0 0.0
    %2468 = vmatpush1.msra.mxu0 0.0
    %2469 = vmatprep.subr.mxu0 0.0
    %2470 = vmatpush1.msra.mxu0 0.0
    %2471 = vmatprep.subr.mxu0 0.0
    %2472 = vmatpush1.msra.mxu0 0.0
    %2473 = vmatprep.subr.mxu0 0.0
    %2474 = vmatpush1.msra.mxu0 0.0
    %2475 = vmatprep.subr.mxu0 0.0
    %2476 = vmatpush1.msra.mxu0 0.0
    %2477 = vmatprep.subr.mxu0 0.0
    %2478 = vmatpush1.msra.mxu0 0.0
    %2479 = vmatprep.subr.mxu0 0.0
    %2480 = vmatpush1.msra.mxu0 0.0
    %2481 = vmatprep.subr.mxu0 0.0
    %2482 = vmatpush1.msra.mxu0 0.0
    %2483 = vmatprep.subr.mxu0 0.0
    %2484 = vmatpush1.msra.mxu0 0.0
    %2485 = vmatprep.subr.mxu0 0.0
    %2486 = vmatpush1.msra.mxu0 0.0
    %2487 = vmatprep.subr.mxu0 0.0
    %2488 = vmatpush1.msra.mxu0 0.0
    %2489 = vmatprep.subr.mxu0 0.0
    %2490 = vmatpush1.msra.mxu0 0.0
    %2491 = vmatprep.subr.mxu0 0.0
    %2492 = vmatpush1.msra.mxu0 0.0
    %2493 = vmatprep.subr.mxu0 0.0
    %2494 = vmatpush1.msra.mxu0 0.0
    %2495 = vmatprep.subr.mxu0 0.0
    %2496 = vmatpush1.msra.mxu0 0.0
    %2497 = vmatprep.subr.mxu0 0.0
    %2498 = vmatpush1.msra.mxu0 0.0
    %2499 = vmatprep.subr.mxu0 0.0
    %2500 = vmatpush1.msra.mxu0 0.0
    %2501 = vmatprep.mubr.f32.mxu0 0.0
    %v2502 = vand.u32 %v2096, 4294901760
    %2503 = vmatmul.mubr.f32.gmra.mrb[0].mxu0 %v2502
    %v2504 = vpop.f32.mrb[0].mxu0
    %v2505 = vadd.f32 %v2422, %v2504
    %v2506 = vpop.f32.mrb[0].mxu0
    %2507 = vdwg.mxu0
    %2508 = vmatprep.subr.mxu0 0.0
    %v2509 = vand.u32 %v31, 4294901760
    %2510 = vmatpush1.msra.mxu0 %v2509
    %2511 = vmatprep.subr.mxu0 0.0
    %v2512 = vand.u32 %v32, 4294901760
    %2513 = vmatpush1.msra.mxu0 %v2512
    %2514 = vmatprep.subr.mxu0 0.0
    %v2515 = vand.u32 %v33, 4294901760
    %2516 = vmatpush1.msra.mxu0 %v2515
    %2517 = vmatprep.subr.mxu0 0.0
    %v2518 = vand.u32 %v34, 4294901760
    %2519 = vmatpush1.msra.mxu0 %v2518
    %2520 = vmatprep.subr.mxu0 0.0
    %2521 = vmatpush1.msra.mxu0 0.0
    %2522 = vmatprep.subr.mxu0 0.0
    %2523 = vmatpush1.msra.mxu0 0.0
    %2524 = vmatprep.subr.mxu0 0.0
    %2525 = vmatpush1.msra.mxu0 0.0
    %2526 = vmatprep.subr.mxu0 0.0
    %2527 = vmatpush1.msra.mxu0 0.0
    %2528 = vmatprep.subr.mxu0 0.0
    %2529 = vmatpush1.msra.mxu0 0.0
    %2530 = vmatprep.subr.mxu0 0.0
    %2531 = vmatpush1.msra.mxu0 0.0
    %2532 = vmatprep.subr.mxu0 0.0
    %2533 = vmatpush1.msra.mxu0 0.0
    %2534 = vmatprep.subr.mxu0 0.0
    %2535 = vmatpush1.msra.mxu0 0.0
    %2536 = vmatprep.subr.mxu0 0.0
    %2537 = vmatpush1.msra.mxu0 0.0
    %2538 = vmatprep.subr.mxu0 0.0
    %2539 = vmatpush1.msra.mxu0 0.0
    %2540 = vmatprep.subr.mxu0 0.0
    %2541 = vmatpush1.msra.mxu0 0.0
    %2542 = vmatprep.subr.mxu0 0.0
    %2543 = vmatpush1.msra.mxu0 0.0
    %2544 = vmatprep.subr.mxu0 0.0
    %2545 = vmatpush1.msra.mxu0 0.0
    %2546 = vmatprep.subr.mxu0 0.0
    %2547 = vmatpush1.msra.mxu0 0.0
    %2548 = vmatprep.subr.mxu0 0.0
    %2549 = vmatpush1.msra.mxu0 0.0
    %2550 = vmatprep.subr.mxu0 0.0
    %2551 = vmatpush1.msra.mxu0 0.0
    %2552 = vmatprep.subr.mxu0 0.0
    %2553 = vmatpush1.msra.mxu0 0.0
    %2554 = vmatprep.subr.mxu0 0.0
    %2555 = vmatpush1.msra.mxu0 0.0
    %2556 = vmatprep.subr.mxu0 0.0
    %2557 = vmatpush1.msra.mxu0 0.0
    %2558 = vmatprep.subr.mxu0 0.0
    %2559 = vmatpush1.msra.mxu0 0.0
    %2560 = vmatprep.subr.mxu0 0.0
    %2561 = vmatpush1.msra.mxu0 0.0
    %2562 = vmatprep.subr.mxu0 0.0
    %2563 = vmatpush1.msra.mxu0 0.0
    %2564 = vmatprep.subr.mxu0 0.0
    %2565 = vmatpush1.msra.mxu0 0.0
    %2566 = vmatprep.subr.mxu0 0.0
    %2567 = vmatpush1.msra.mxu0 0.0
    %2568 = vmatprep.subr.mxu0 0.0
    %2569 = vmatpush1.msra.mxu0 0.0
    %2570 = vmatprep.subr.mxu0 0.0
    %2571 = vmatpush1.msra.mxu0 0.0
    %2572 = vmatprep.subr.mxu0 0.0
    %2573 = vmatpush1.msra.mxu0 0.0
    %2574 = vmatprep.subr.mxu0 0.0
    %2575 = vmatpush1.msra.mxu0 0.0
    %2576 = vmatprep.mubr.f32.mxu0 0.0
    %v2577 = vand.u32 %v2096, 4294901760
    %2578 = vmatmul.mubr.f32.gmra.mrb[0].mxu0 %v2577
    %v2579 = vpop.f32.mrb[0].mxu0
    %v2580 = vadd.f32 %v2505, %v2579
    %v2581 = vpop.f32.mrb[0].mxu0
    %2582 = vdwg.mxu0
    %v2584 = vrot.slane %v2580, 4
    %v2586 = vadd.f32 %v1558, %v2584
    %v2587 = vxor.u32 %v2586, 2147483648
    %v2588 = vmul.f32 %v2587, 1.442695
    %v2589 = vpow.pop %v2588
    %v2590 = vadd.f32 %v2589, 1.0
    %v2591 = vrcp.pop %v2590
    %v2592 = vmul.f32 1.0, %v2591
    %v2593 = vmul.f32 %v2592, 2.0
    %v2594 = vsub.f32 %v2593, 1.0
    %v2596 = vrot.slane %v2086, 4
    %v2598 = vmul.f32 %v2592, %v2596
    %2600 = vrot.lane.b32.xlu0 %v2594, 64
    %v2601 = vpop.permute.xlu0 %2600
    %v2603 = vmul.f32 %v2592, %v2601
    %2605 = vrot.lane.b32.xlu0 %v2603, 32
    %v2606 = vpop.permute.xlu0 %2605
    %v2608 = vadd.f32 %v2598, %v2606
    %v2609 = vtanh.pop %v2608
    %2611 = vrot.lane.b32.xlu0 %v2609, 64
    %v2612 = vpop.permute.xlu0 %2611
    %v2614 = vmul.f32 %v2592, %v2612
    %v2616 = vrot.slane %v2614, 4
    %2617 = vrot.lane.b32.xlu0 %v2616, 32
    %v2618 = vpop.permute.xlu0 %2617
    %v2619 = vsel %vm952, %v2618, 0
    %2621 = vmatprep.subr.mxu0 0.0
    %v2622 = vand.u32 %v31, 4294901760
    %2623 = vmatpush1.msra.mxu0 %v2622
    %2624 = vmatprep.subr.mxu0 0.0
    %v2625 = vand.u32 %v32, 4294901760
    %2626 = vmatpush1.msra.mxu0 %v2625
    %2627 = vmatprep.subr.mxu0 0.0
    %v2628 = vand.u32 %v33, 4294901760
    %2629 = vmatpush1.msra.mxu0 %v2628
    %2630 = vmatprep.subr.mxu0 0.0
    %v2631 = vand.u32 %v34, 4294901760
    %2632 = vmatpush1.msra.mxu0 %v2631
    %2633 = vmatprep.subr.mxu0 0.0
    %2634 = vmatpush1.msra.mxu0 0.0
    %2635 = vmatprep.subr.mxu0 0.0
    %2636 = vmatpush1.msra.mxu0 0.0
    %2637 = vmatprep.subr.mxu0 0.0
    %2638 = vmatpush1.msra.mxu0 0.0
    %2639 = vmatprep.subr.mxu0 0.0
    %2640 = vmatpush1.msra.mxu0 0.0
    %2641 = vmatprep.subr.mxu0 0.0
    %2642 = vmatpush1.msra.mxu0 0.0
    %2643 = vmatprep.subr.mxu0 0.0
    %2644 = vmatpush1.msra.mxu0 0.0
    %2645 = vmatprep.subr.mxu0 0.0
    %2646 = vmatpush1.msra.mxu0 0.0
    %2647 = vmatprep.subr.mxu0 0.0
    %2648 = vmatpush1.msra.mxu0 0.0
    %2649 = vmatprep.subr.mxu0 0.0
    %2650 = vmatpush1.msra.mxu0 0.0
    %2651 = vmatprep.subr.mxu0 0.0
    %2652 = vmatpush1.msra.mxu0 0.0
    %2653 = vmatprep.subr.mxu0 0.0
    %2654 = vmatpush1.msra.mxu0 0.0
    %2655 = vmatprep.subr.mxu0 0.0
    %2656 = vmatpush1.msra.mxu0 0.0
    %2657 = vmatprep.subr.mxu0 0.0
    %2658 = vmatpush1.msra.mxu0 0.0
    %2659 = vmatprep.subr.mxu0 0.0
    %2660 = vmatpush1.msra.mxu0 0.0
    %2661 = vmatprep.subr.mxu0 0.0
    %2662 = vmatpush1.msra.mxu0 0.0
    %2663 = vmatprep.subr.mxu0 0.0
    %2664 = vmatpush1.msra.mxu0 0.0
    %2665 = vmatprep.subr.mxu0 0.0
    %2666 = vmatpush1.msra.mxu0 0.0
    %2667 = vmatprep.subr.mxu0 0.0
    %2668 = vmatpush1.msra.mxu0 0.0
    %2669 = vmatprep.subr.mxu0 0.0
    %2670 = vmatpush1.msra.mxu0 0.0
    %2671 = vmatprep.subr.mxu0 0.0
    %2672 = vmatpush1.msra.mxu0 0.0
    %2673 = vmatprep.subr.mxu0 0.0
    %2674 = vmatpush1.msra.mxu0 0.0
    %2675 = vmatprep.subr.mxu0 0.0
    %2676 = vmatpush1.msra.mxu0 0.0
    %2677 = vmatprep.subr.mxu0 0.0
    %2678 = vmatpush1.msra.mxu0 0.0
    %2679 = vmatprep.subr.mxu0 0.0
    %2680 = vmatpush1.msra.mxu0 0.0
    %2681 = vmatprep.subr.mxu0 0.0
    %2682 = vmatpush1.msra.mxu0 0.0
    %2683 = vmatprep.subr.mxu0 0.0
    %2684 = vmatpush1.msra.mxu0 0.0
    %2685 = vmatprep.subr.mxu0 0.0
    %2686 = vmatpush1.msra.mxu0 0.0
    %2687 = vmatprep.subr.mxu0 0.0
    %2688 = vmatpush1.msra.mxu0 0.0
    %2689 = vmatprep.mubr.f32.mxu0 0.0
    %v2690 = vand.u32 %v2619, 4294901760
    %v2691 = vsub.f32 %v2619, %v2690
    %v2692 = vand.u32 %v2691, 4294901760
    %v2693 = vsub.f32 %v2691, %v2692
    %v2694 = vand.u32 %v2693, 4294901760
    %2695 = vmatmul.mubr.f32.gmra.mrb[0].mxu0 %v2694
    %v2696 = vpop.f32.mrb[0].mxu0
    %v2697 = vadd.f32 0.0, %v2696
    %v2698 = vpop.f32.mrb[0].mxu0
    %2699 = vdwg.mxu0
    %2700 = vmatprep.subr.mxu0 0.0
    %v2701 = vand.u32 %v31, 4294901760
    %v2702 = vsub.f32 %v31, %v2701
    %v2703 = vand.u32 %v2702, 4294901760
    %v2704 = vsub.f32 %v2702, %v2703
    %v2705 = vand.u32 %v2704, 4294901760
    %2706 = vmatpush1.msra.mxu0 %v2705
    %2707 = vmatprep.subr.mxu0 0.0
    %v2708 = vand.u32 %v32, 4294901760
    %v2709 = vsub.f32 %v32, %v2708
    %v2710 = vand.u32 %v2709, 4294901760
    %v2711 = vsub.f32 %v2709, %v2710
    %v2712 = vand.u32 %v2711, 4294901760
    %2713 = vmatpush1.msra.mxu0 %v2712
    %2714 = vmatprep.subr.mxu0 0.0
    %v2715 = vand.u32 %v33, 4294901760
    %v2716 = vsub.f32 %v33, %v2715
    %v2717 = vand.u32 %v2716, 4294901760
    %v2718 = vsub.f32 %v2716, %v2717
    %v2719 = vand.u32 %v2718, 4294901760
    %2720 = vmatpush1.msra.mxu0 %v2719
    %2721 = vmatprep.subr.mxu0 0.0
    %v2722 = vand.u32 %v34, 4294901760
    %v2723 = vsub.f32 %v34, %v2722
    %v2724 = vand.u32 %v2723, 4294901760
    %v2725 = vsub.f32 %v2723, %v2724
    %v2726 = vand.u32 %v2725, 4294901760
    %2727 = vmatpush1.msra.mxu0 %v2726
    %2728 = vmatprep.subr.mxu0 0.0
    %2729 = vmatpush1.msra.mxu0 0.0
    %2730 = vmatprep.subr.mxu0 0.0
    %2731 = vmatpush1.msra.mxu0 0.0
    %2732 = vmatprep.subr.mxu0 0.0
    %2733 = vmatpush1.msra.mxu0 0.0
    %2734 = vmatprep.subr.mxu0 0.0
    %2735 = vmatpush1.msra.mxu0 0.0
    %2736 = vmatprep.subr.mxu0 0.0
    %2737 = vmatpush1.msra.mxu0 0.0
    %2738 = vmatprep.subr.mxu0 0.0
    %2739 = vmatpush1.msra.mxu0 0.0
    %2740 = vmatprep.subr.mxu0 0.0
    %2741 = vmatpush1.msra.mxu0 0.0
    %2742 = vmatprep.subr.mxu0 0.0
    %2743 = vmatpush1.msra.mxu0 0.0
    %2744 = vmatprep.subr.mxu0 0.0
    %2745 = vmatpush1.msra.mxu0 0.0
    %2746 = vmatprep.subr.mxu0 0.0
    %2747 = vmatpush1.msra.mxu0 0.0
    %2748 = vmatprep.subr.mxu0 0.0
    %2749 = vmatpush1.msra.mxu0 0.0
    %2750 = vmatprep.subr.mxu0 0.0
    %2751 = vmatpush1.msra.mxu0 0.0
    %2752 = vmatprep.subr.mxu0 0.0
    %2753 = vmatpush1.msra.mxu0 0.0
    %2754 = vmatprep.subr.mxu0 0.0
    %2755 = vmatpush1.msra.mxu0 0.0
    %2756 = vmatprep.subr.mxu0 0.0
    %2757 = vmatpush1.msra.mxu0 0.0
    %2758 = vmatprep.subr.mxu0 0.0
    %2759 = vmatpush1.msra.mxu0 0.0
    %2760 = vmatprep.subr.mxu0 0.0
    %2761 = vmatpush1.msra.mxu0 0.0
    %2762 = vmatprep.subr.mxu0 0.0
    %2763 = vmatpush1.msra.mxu0 0.0
    %2764 = vmatprep.subr.mxu0 0.0
    %2765 = vmatpush1.msra.mxu0 0.0
    %2766 = vmatprep.subr.mxu0 0.0
    %2767 = vmatpush1.msra.mxu0 0.0
    %2768 = vmatprep.subr.mxu0 0.0
    %2769 = vmatpush1.msra.mxu0 0.0
    %2770 = vmatprep.subr.mxu0 0.0
    %2771 = vmatpush1.msra.mxu0 0.0
    %2772 = vmatprep.subr.mxu0 0.0
    %2773 = vmatpush1.msra.mxu0 0.0
    %2774 = vmatprep.subr.mxu0 0.0
    %2775 = vmatpush1.msra.mxu0 0.0
    %2776 = vmatprep.subr.mxu0 0.0
    %2777 = vmatpush1.msra.mxu0 0.0
    %2778 = vmatprep.subr.mxu0 0.0
    %2779 = vmatpush1.msra.mxu0 0.0
    %2780 = vmatprep.subr.mxu0 0.0
    %2781 = vmatpush1.msra.mxu0 0.0
    %2782 = vmatprep.subr.mxu0 0.0
    %2783 = vmatpush1.msra.mxu0 0.0
    %2784 = vmatprep.mubr.f32.mxu0 0.0
    %v2785 = vand.u32 %v2619, 4294901760
    %2786 = vmatmul.mubr.f32.gmra.mrb[0].mxu0 %v2785
    %v2787 = vpop.f32.mrb[0].mxu0
    %v2788 = vadd.f32 %v2697, %v2787
    %v2789 = vpop.f32.mrb[0].mxu0
    %2790 = vdwg.mxu0
    %2791 = vmatprep.subr.mxu0 0.0
    %v2792 = vand.u32 %v31, 4294901760
    %v2793 = vsub.f32 %v31, %v2792
    %2794 = vmatpush1.msra.mxu0 %v2793
    %2795 = vmatprep.subr.mxu0 0.0
    %v2796 = vand.u32 %v32, 4294901760
    %v2797 = vsub.f32 %v32, %v2796
    %2798 = vmatpush1.msra.mxu0 %v2797
    %2799 = vmatprep.subr.mxu0 0.0
    %v2800 = vand.u32 %v33, 4294901760
    %v2801 = vsub.f32 %v33, %v2800
    %2802 = vmatpush1.msra.mxu0 %v2801
    %2803 = vmatprep.subr.mxu0 0.0
    %v2804 = vand.u32 %v34, 4294901760
    %v2805 = vsub.f32 %v34, %v2804
    %2806 = vmatpush1.msra.mxu0 %v2805
    %2807 = vmatprep.subr.mxu0 0.0
    %2808 = vmatpush1.msra.mxu0 0.0
    %2809 = vmatprep.subr.mxu0 0.0
    %2810 = vmatpush1.msra.mxu0 0.0
    %2811 = vmatprep.subr.mxu0 0.0
    %2812 = vmatpush1.msra.mxu0 0.0
    %2813 = vmatprep.subr.mxu0 0.0
    %2814 = vmatpush1.msra.mxu0 0.0
    %2815 = vmatprep.subr.mxu0 0.0
    %2816 = vmatpush1.msra.mxu0 0.0
    %2817 = vmatprep.subr.mxu0 0.0
    %2818 = vmatpush1.msra.mxu0 0.0
    %2819 = vmatprep.subr.mxu0 0.0
    %2820 = vmatpush1.msra.mxu0 0.0
    %2821 = vmatprep.subr.mxu0 0.0
    %2822 = vmatpush1.msra.mxu0 0.0
    %2823 = vmatprep.subr.mxu0 0.0
    %2824 = vmatpush1.msra.mxu0 0.0
    %2825 = vmatprep.subr.mxu0 0.0
    %2826 = vmatpush1.msra.mxu0 0.0
    %2827 = vmatprep.subr.mxu0 0.0
    %2828 = vmatpush1.msra.mxu0 0.0
    %2829 = vmatprep.subr.mxu0 0.0
    %2830 = vmatpush1.msra.mxu0 0.0
    %2831 = vmatprep.subr.mxu0 0.0
    %2832 = vmatpush1.msra.mxu0 0.0
    %2833 = vmatprep.subr.mxu0 0.0
    %2834 = vmatpush1.msra.mxu0 0.0
    %2835 = vmatprep.subr.mxu0 0.0
    %2836 = vmatpush1.msra.mxu0 0.0
    %2837 = vmatprep.subr.mxu0 0.0
    %2838 = vmatpush1.msra.mxu0 0.0
    %2839 = vmatprep.subr.mxu0 0.0
    %2840 = vmatpush1.msra.mxu0 0.0
    %2841 = vmatprep.subr.mxu0 0.0
    %2842 = vmatpush1.msra.mxu0 0.0
    %2843 = vmatprep.subr.mxu0 0.0
    %2844 = vmatpush1.msra.mxu0 0.0
    %2845 = vmatprep.subr.mxu0 0.0
    %2846 = vmatpush1.msra.mxu0 0.0
    %2847 = vmatprep.subr.mxu0 0.0
    %2848 = vmatpush1.msra.mxu0 0.0
    %2849 = vmatprep.subr.mxu0 0.0
    %2850 = vmatpush1.msra.mxu0 0.0
    %2851 = vmatprep.subr.mxu0 0.0
    %2852 = vmatpush1.msra.mxu0 0.0
    %2853 = vmatprep.subr.mxu0 0.0
    %2854 = vmatpush1.msra.mxu0 0.0
    %2855 = vmatprep.subr.mxu0 0.0
    %2856 = vmatpush1.msra.mxu0 0.0
    %2857 = vmatprep.subr.mxu0 0.0
    %2858 = vmatpush1.msra.mxu0 0.0
    %2859 = vmatprep.subr.mxu0 0.0
    %2860 = vmatpush1.msra.mxu0 0.0
    %2861 = vmatprep.subr.mxu0 0.0
    %2862 = vmatpush1.msra.mxu0 0.0
    %2863 = vmatprep.mubr.f32.mxu0 0.0
    %v2864 = vand.u32 %v2619, 4294901760
    %v2865 = vsub.f32 %v2619, %v2864
    %2866 = vmatmul.mubr.f32.gmra.mrb[0].mxu0 %v2865
    %v2867 = vpop.f32.mrb[0].mxu0
    %v2868 = vadd.f32 %v2788, %v2867
    %v2869 = vpop.f32.mrb[0].mxu0
    %2870 = vdwg.mxu0
    %2871 = vmatprep.subr.mxu0 0.0
    %v2872 = vand.u32 %v31, 4294901760
    %2873 = vmatpush1.msra.mxu0 %v2872
    %2874 = vmatprep.subr.mxu0 0.0
    %v2875 = vand.u32 %v32, 4294901760
    %2876 = vmatpush1.msra.mxu0 %v2875
    %2877 = vmatprep.subr.mxu0 0.0
    %v2878 = vand.u32 %v33, 4294901760
    %2879 = vmatpush1.msra.mxu0 %v2878
    %2880 = vmatprep.subr.mxu0 0.0
    %v2881 = vand.u32 %v34, 4294901760
    %2882 = vmatpush1.msra.mxu0 %v2881
    %2883 = vmatprep.subr.mxu0 0.0
    %2884 = vmatpush1.msra.mxu0 0.0
    %2885 = vmatprep.subr.mxu0 0.0
    %2886 = vmatpush1.msra.mxu0 0.0
    %2887 = vmatprep.subr.mxu0 0.0
    %2888 = vmatpush1.msra.mxu0 0.0
    %2889 = vmatprep.subr.mxu0 0.0
    %2890 = vmatpush1.msra.mxu0 0.0
    %2891 = vmatprep.subr.mxu0 0.0
    %2892 = vmatpush1.msra.mxu0 0.0
    %2893 = vmatprep.subr.mxu0 0.0
    %2894 = vmatpush1.msra.mxu0 0.0
    %2895 = vmatprep.subr.mxu0 0.0
    %2896 = vmatpush1.msra.mxu0 0.0
    %2897 = vmatprep.subr.mxu0 0.0
    %2898 = vmatpush1.msra.mxu0 0.0
    %2899 = vmatprep.subr.mxu0 0.0
    %2900 = vmatpush1.msra.mxu0 0.0
    %2901 = vmatprep.subr.mxu0 0.0
    %2902 = vmatpush1.msra.mxu0 0.0
    %2903 = vmatprep.subr.mxu0 0.0
    %2904 = vmatpush1.msra.mxu0 0.0
    %2905 = vmatprep.subr.mxu0 0.0
    %2906 = vmatpush1.msra.mxu0 0.0
    %2907 = vmatprep.subr.mxu0 0.0
    %2908 = vmatpush1.msra.mxu0 0.0
    %2909 = vmatprep.subr.mxu0 0.0
    %2910 = vmatpush1.msra.mxu0 0.0
    %2911 = vmatprep.subr.mxu0 0.0
    %2912 = vmatpush1.msra.mxu0 0.0
    %2913 = vmatprep.subr.mxu0 0.0
    %2914 = vmatpush1.msra.mxu0 0.0
    %2915 = vmatprep.subr.mxu0 0.0
    %2916 = vmatpush1.msra.mxu0 0.0
    %2917 = vmatprep.subr.mxu0 0.0
    %2918 = vmatpush1.msra.mxu0 0.0
    %2919 = vmatprep.subr.mxu0 0.0
    %2920 = vmatpush1.msra.mxu0 0.0
    %2921 = vmatprep.subr.mxu0 0.0
    %2922 = vmatpush1.msra.mxu0 0.0
    %2923 = vmatprep.subr.mxu0 0.0
    %2924 = vmatpush1.msra.mxu0 0.0
    %2925 = vmatprep.subr.mxu0 0.0
    %2926 = vmatpush1.msra.mxu0 0.0
    %2927 = vmatprep.subr.mxu0 0.0
    %2928 = vmatpush1.msra.mxu0 0.0
    %2929 = vmatprep.subr.mxu0 0.0
    %2930 = vmatpush1.msra.mxu0 0.0
    %2931 = vmatprep.subr.mxu0 0.0
    %2932 = vmatpush1.msra.mxu0 0.0
    %2933 = vmatprep.subr.mxu0 0.0
    %2934 = vmatpush1.msra.mxu0 0.0
    %2935 = vmatprep.subr.mxu0 0.0
    %2936 = vmatpush1.msra.mxu0 0.0
    %2937 = vmatprep.subr.mxu0 0.0
    %2938 = vmatpush1.msra.mxu0 0.0
    %2939 = vmatprep.mubr.f32.mxu0 0.0
    %v2940 = vand.u32 %v2619, 4294901760
    %v2941 = vsub.f32 %v2619, %v2940
    %v2942 = vand.u32 %v2941, 4294901760
    %2943 = vmatmul.mubr.f32.gmra.mrb[0].mxu0 %v2942
    %v2944 = vpop.f32.mrb[0].mxu0
    %v2945 = vadd.f32 %v2868, %v2944
    %v2946 = vpop.f32.mrb[0].mxu0
    %2947 = vdwg.mxu0
    %2948 = vmatprep.subr.mxu0 0.0
    %v2949 = vand.u32 %v31, 4294901760
    %v2950 = vsub.f32 %v31, %v2949
    %v2951 = vand.u32 %v2950, 4294901760
    %2952 = vmatpush1.msra.mxu0 %v2951
    %2953 = vmatprep.subr.mxu0 0.0
    %v2954 = vand.u32 %v32, 4294901760
    %v2955 = vsub.f32 %v32, %v2954
    %v2956 = vand.u32 %v2955, 4294901760
    %2957 = vmatpush1.msra.mxu0 %v2956
    %2958 = vmatprep.subr.mxu0 0.0
    %v2959 = vand.u32 %v33, 4294901760
    %v2960 = vsub.f32 %v33, %v2959
    %v2961 = vand.u32 %v2960, 4294901760
    %2962 = vmatpush1.msra.mxu0 %v2961
    %2963 = vmatprep.subr.mxu0 0.0
    %v2964 = vand.u32 %v34, 4294901760
    %v2965 = vsub.f32 %v34, %v2964
    %v2966 = vand.u32 %v2965, 4294901760
    %2967 = vmatpush1.msra.mxu0 %v2966
    %2968 = vmatprep.subr.mxu0 0.0
    %2969 = vmatpush1.msra.mxu0 0.0
    %2970 = vmatprep.subr.mxu0 0.0
    %2971 = vmatpush1.msra.mxu0 0.0
    %2972 = vmatprep.subr.mxu0 0.0
    %2973 = vmatpush1.msra.mxu0 0.0
    %2974 = vmatprep.subr.mxu0 0.0
    %2975 = vmatpush1.msra.mxu0 0.0
    %2976 = vmatprep.subr.mxu0 0.0
    %2977 = vmatpush1.msra.mxu0 0.0
    %2978 = vmatprep.subr.mxu0 0.0
    %2979 = vmatpush1.msra.mxu0 0.0
    %2980 = vmatprep.subr.mxu0 0.0
    %2981 = vmatpush1.msra.mxu0 0.0
    %2982 = vmatprep.subr.mxu0 0.0
    %2983 = vmatpush1.msra.mxu0 0.0
    %2984 = vmatprep.subr.mxu0 0.0
    %2985 = vmatpush1.msra.mxu0 0.0
    %2986 = vmatprep.subr.mxu0 0.0
    %2987 = vmatpush1.msra.mxu0 0.0
    %2988 = vmatprep.subr.mxu0 0.0
    %2989 = vmatpush1.msra.mxu0 0.0
    %2990 = vmatprep.subr.mxu0 0.0
    %2991 = vmatpush1.msra.mxu0 0.0
    %2992 = vmatprep.subr.mxu0 0.0
    %2993 = vmatpush1.msra.mxu0 0.0
    %2994 = vmatprep.subr.mxu0 0.0
    %2995 = vmatpush1.msra.mxu0 0.0
    %2996 = vmatprep.subr.mxu0 0.0
    %2997 = vmatpush1.msra.mxu0 0.0
    %2998 = vmatprep.subr.mxu0 0.0
    %2999 = vmatpush1.msra.mxu0 0.0
    %3000 = vmatprep.subr.mxu0 0.0
    %3001 = vmatpush1.msra.mxu0 0.0
    %3002 = vmatprep.subr.mxu0 0.0
    %3003 = vmatpush1.msra.mxu0 0.0
    %3004 = vmatprep.subr.mxu0 0.0
    %3005 = vmatpush1.msra.mxu0 0.0
    %3006 = vmatprep.subr.mxu0 0.0
    %3007 = vmatpush1.msra.mxu0 0.0
    %3008 = vmatprep.subr.mxu0 0.0
    %3009 = vmatpush1.msra.mxu0 0.0
    %3010 = vmatprep.subr.mxu0 0.0
    %3011 = vmatpush1.msra.mxu0 0.0
    %3012 = vmatprep.subr.mxu0 0.0
    %3013 = vmatpush1.msra.mxu0 0.0
    %3014 = vmatprep.subr.mxu0 0.0
    %3015 = vmatpush1.msra.mxu0 0.0
    %3016 = vmatprep.subr.mxu0 0.0
    %3017 = vmatpush1.msra.mxu0 0.0
    %3018 = vmatprep.subr.mxu0 0.0
    %3019 = vmatpush1.msra.mxu0 0.0
    %3020 = vmatprep.subr.mxu0 0.0
    %3021 = vmatpush1.msra.mxu0 0.0
    %3022 = vmatprep.subr.mxu0 0.0
    %3023 = vmatpush1.msra.mxu0 0.0
    %3024 = vmatprep.mubr.f32.mxu0 0.0
    %v3025 = vand.u32 %v2619, 4294901760
    %3026 = vmatmul.mubr.f32.gmra.mrb[0].mxu0 %v3025
    %v3027 = vpop.f32.mrb[0].mxu0
    %v3028 = vadd.f32 %v2945, %v3027
    %v3029 = vpop.f32.mrb[0].mxu0
    %3030 = vdwg.mxu0
    %3031 = vmatprep.subr.mxu0 0.0
    %v3032 = vand.u32 %v31, 4294901760
    %3033 = vmatpush1.msra.mxu0 %v3032
    %3034 = vmatprep.subr.mxu0 0.0
    %v3035 = vand.u32 %v32, 4294901760
    %3036 = vmatpush1.msra.mxu0 %v3035
    %3037 = vmatprep.subr.mxu0 0.0
    %v3038 = vand.u32 %v33, 4294901760
    %3039 = vmatpush1.msra.mxu0 %v3038
    %3040 = vmatprep.subr.mxu0 0.0
    %v3041 = vand.u32 %v34, 4294901760
    %3042 = vmatpush1.msra.mxu0 %v3041
    %3043 = vmatprep.subr.mxu0 0.0
    %3044 = vmatpush1.msra.mxu0 0.0
    %3045 = vmatprep.subr.mxu0 0.0
    %3046 = vmatpush1.msra.mxu0 0.0
    %3047 = vmatprep.subr.mxu0 0.0
    %3048 = vmatpush1.msra.mxu0 0.0
    %3049 = vmatprep.subr.mxu0 0.0
    %3050 = vmatpush1.msra.mxu0 0.0
    %3051 = vmatprep.subr.mxu0 0.0
    %3052 = vmatpush1.msra.mxu0 0.0
    %3053 = vmatprep.subr.mxu0 0.0
    %3054 = vmatpush1.msra.mxu0 0.0
    %3055 = vmatprep.subr.mxu0 0.0
    %3056 = vmatpush1.msra.mxu0 0.0
    %3057 = vmatprep.subr.mxu0 0.0
    %3058 = vmatpush1.msra.mxu0 0.0
    %3059 = vmatprep.subr.mxu0 0.0
    %3060 = vmatpush1.msra.mxu0 0.0
    %3061 = vmatprep.subr.mxu0 0.0
    %3062 = vmatpush1.msra.mxu0 0.0
    %3063 = vmatprep.subr.mxu0 0.0
    %3064 = vmatpush1.msra.mxu0 0.0
    %3065 = vmatprep.subr.mxu0 0.0
    %3066 = vmatpush1.msra.mxu0 0.0
    %3067 = vmatprep.subr.mxu0 0.0
    %3068 = vmatpush1.msra.mxu0 0.0
    %3069 = vmatprep.subr.mxu0 0.0
    %3070 = vmatpush1.msra.mxu0 0.0
    %3071 = vmatprep.subr.mxu0 0.0
    %3072 = vmatpush1.msra.mxu0 0.0
    %3073 = vmatprep.subr.mxu0 0.0
    %3074 = vmatpush1.msra.mxu0 0.0
    %3075 = vmatprep.subr.mxu0 0.0
    %3076 = vmatpush1.msra.mxu0 0.0
    %3077 = vmatprep.subr.mxu0 0.0
    %3078 = vmatpush1.msra.mxu0 0.0
    %3079 = vmatprep.subr.mxu0 0.0
    %3080 = vmatpush1.msra.mxu0 0.0
    %3081 = vmatprep.subr.mxu0 0.0
    %3082 = vmatpush1.msra.mxu0 0.0
    %3083 = vmatprep.subr.mxu0 0.0
    %3084 = vmatpush1.msra.mxu0 0.0
    %3085 = vmatprep.subr.mxu0 0.0
    %3086 = vmatpush1.msra.mxu0 0.0
    %3087 = vmatprep.subr.mxu0 0.0
    %3088 = vmatpush1.msra.mxu0 0.0
    %3089 = vmatprep.subr.mxu0 0.0
    %3090 = vmatpush1.msra.mxu0 0.0
    %3091 = vmatprep.subr.mxu0 0.0
    %3092 = vmatpush1.msra.mxu0 0.0
    %3093 = vmatprep.subr.mxu0 0.0
    %3094 = vmatpush1.msra.mxu0 0.0
    %3095 = vmatprep.subr.mxu0 0.0
    %3096 = vmatpush1.msra.mxu0 0.0
    %3097 = vmatprep.subr.mxu0 0.0
    %3098 = vmatpush1.msra.mxu0 0.0
    %3099 = vmatprep.mubr.f32.mxu0 0.0
    %v3100 = vand.u32 %v2619, 4294901760
    %3101 = vmatmul.mubr.f32.gmra.mrb[0].mxu0 %v3100
    %v3102 = vpop.f32.mrb[0].mxu0
    %v3103 = vadd.f32 %v3028, %v3102
    %v3104 = vpop.f32.mrb[0].mxu0
    %3105 = vdwg.mxu0
    %v3106 = vadd.f32 %v1564, %v3103
    %v3107 = vxor.u32 %v3106, 2147483648
    %v3108 = vmul.f32 %v3107, 1.442695
    %v3109 = vpow.pop %v3108
    %v3110 = vadd.f32 %v3109, 1.0
    %v3111 = vrcp.pop %v3110
    %v3112 = vmul.f32 1.0, %v3111
    %v3113 = vmul.f32 %v3112, 2.0
    %v3114 = vsub.f32 %v3113, 1.0
    %v3116 = vrot.slane %v2608, 4
    %v3118 = vmul.f32 %v3112, %v3116
    %3120 = vrot.lane.b32.xlu0 %v3114, 64
    %v3121 = vpop.permute.xlu0 %3120
    %v3123 = vmul.f32 %v3112, %v3121
    %3125 = vrot.lane.b32.xlu0 %v3123, 32
    %v3126 = vpop.permute.xlu0 %3125
    %v3128 = vadd.f32 %v3118, %v3126
    %v3129 = vtanh.pop %v3128
    %3131 = vrot.lane.b32.xlu0 %v3129, 64
    %v3132 = vpop.permute.xlu0 %3131
    %v3134 = vmul.f32 %v3112, %v3132
    %3136 = vrot.lane.b32.xlu0 %v3134, 32
    %v3137 = vpop.permute.xlu0 %3136
    %v3138 = vsel %vm952, %v3137, 0
    %3140 = vmatprep.subr.mxu0 0.0
    %v3141 = vand.u32 %v31, 4294901760
    %3142 = vmatpush1.msra.mxu0 %v3141
    %3143 = vmatprep.subr.mxu0 0.0
    %v3144 = vand.u32 %v32, 4294901760
    %3145 = vmatpush1.msra.mxu0 %v3144
    %3146 = vmatprep.subr.mxu0 0.0
    %v3147 = vand.u32 %v33, 4294901760
    %3148 = vmatpush1.msra.mxu0 %v3147
    %3149 = vmatprep.subr.mxu0 0.0
    %v3150 = vand.u32 %v34, 4294901760
    %3151 = vmatpush1.msra.mxu0 %v3150
    %3152 = vmatprep.subr.mxu0 0.0
    %3153 = vmatpush1.msra.mxu0 0.0
    %3154 = vmatprep.subr.mxu0 0.0
    %3155 = vmatpush1.msra.mxu0 0.0
    %3156 = vmatprep.subr.mxu0 0.0
    %3157 = vmatpush1.msra.mxu0 0.0
    %3158 = vmatprep.subr.mxu0 0.0
    %3159 = vmatpush1.msra.mxu0 0.0
    %3160 = vmatprep.subr.mxu0 0.0
    %3161 = vmatpush1.msra.mxu0 0.0
    %3162 = vmatprep.subr.mxu0 0.0
    %3163 = vmatpush1.msra.mxu0 0.0
    %3164 = vmatprep.subr.mxu0 0.0
    %3165 = vmatpush1.msra.mxu0 0.0
    %3166 = vmatprep.subr.mxu0 0.0
    %3167 = vmatpush1.msra.mxu0 0.0
    %3168 = vmatprep.subr.mxu0 0.0
    %3169 = vmatpush1.msra.mxu0 0.0
    %3170 = vmatprep.subr.mxu0 0.0
    %3171 = vmatpush1.msra.mxu0 0.0
    %3172 = vmatprep.subr.mxu0 0.0
    %3173 = vmatpush1.msra.mxu0 0.0
    %3174 = vmatprep.subr.mxu0 0.0
    %3175 = vmatpush1.msra.mxu0 0.0
    %3176 = vmatprep.subr.mxu0 0.0
    %3177 = vmatpush1.msra.mxu0 0.0
    %3178 = vmatprep.subr.mxu0 0.0
    %3179 = vmatpush1.msra.mxu0 0.0
    %3180 = vmatprep.subr.mxu0 0.0
    %3181 = vmatpush1.msra.mxu0 0.0
    %3182 = vmatprep.subr.mxu0 0.0
    %3183 = vmatpush1.msra.mxu0 0.0
    %3184 = vmatprep.subr.mxu0 0.0
    %3185 = vmatpush1.msra.mxu0 0.0
    %3186 = vmatprep.subr.mxu0 0.0
    %3187 = vmatpush1.msra.mxu0 0.0
    %3188 = vmatprep.subr.mxu0 0.0
    %3189 = vmatpush1.msra.mxu0 0.0
    %3190 = vmatprep.subr.mxu0 0.0
    %3191 = vmatpush1.msra.mxu0 0.0
    %3192 = vmatprep.subr.mxu0 0.0
    %3193 = vmatpush1.msra.mxu0 0.0
    %3194 = vmatprep.subr.mxu0 0.0
    %3195 = vmatpush1.msra.mxu0 0.0
    %3196 = vmatprep.subr.mxu0 0.0
    %3197 = vmatpush1.msra.mxu0 0.0
    %3198 = vmatprep.subr.mxu0 0.0
    %3199 = vmatpush1.msra.mxu0 0.0
    %3200 = vmatprep.subr.mxu0 0.0
    %3201 = vmatpush1.msra.mxu0 0.0
    %3202 = vmatprep.subr.mxu0 0.0
    %3203 = vmatpush1.msra.mxu0 0.0
    %3204 = vmatprep.subr.mxu0 0.0
    %3205 = vmatpush1.msra.mxu0 0.0
    %3206 = vmatprep.subr.mxu0 0.0
    %3207 = vmatpush1.msra.mxu0 0.0
    %3208 = vmatprep.mubr.f32.mxu0 0.0
    %v3209 = vand.u32 %v3138, 4294901760
    %v3210 = vsub.f32 %v3138, %v3209
    %v3211 = vand.u32 %v3210, 4294901760
    %v3212 = vsub.f32 %v3210, %v3211
    %v3213 = vand.u32 %v3212, 4294901760
    %3214 = vmatmul.mubr.f32.gmra.mrb[0].mxu0 %v3213
    %v3215 = vpop.f32.mrb[0].mxu0
    %v3216 = vadd.f32 0.0, %v3215
    %v3217 = vpop.f32.mrb[0].mxu0
    %3218 = vdwg.mxu0
    %3219 = vmatprep.subr.mxu0 0.0
    %v3220 = vand.u32 %v31, 4294901760
    %v3221 = vsub.f32 %v31, %v3220
    %v3222 = vand.u32 %v3221, 4294901760
    %v3223 = vsub.f32 %v3221, %v3222
    %v3224 = vand.u32 %v3223, 4294901760
    %3225 = vmatpush1.msra.mxu0 %v3224
    %3226 = vmatprep.subr.mxu0 0.0
    %v3227 = vand.u32 %v32, 4294901760
    %v3228 = vsub.f32 %v32, %v3227
    %v3229 = vand.u32 %v3228, 4294901760
    %v3230 = vsub.f32 %v3228, %v3229
    %v3231 = vand.u32 %v3230, 4294901760
    %3232 = vmatpush1.msra.mxu0 %v3231
    %3233 = vmatprep.subr.mxu0 0.0
    %v3234 = vand.u32 %v33, 4294901760
    %v3235 = vsub.f32 %v33, %v3234
    %v3236 = vand.u32 %v3235, 4294901760
    %v3237 = vsub.f32 %v3235, %v3236
    %v3238 = vand.u32 %v3237, 4294901760
    %3239 = vmatpush1.msra.mxu0 %v3238
    %3240 = vmatprep.subr.mxu0 0.0
    %v3241 = vand.u32 %v34, 4294901760
    %v3242 = vsub.f32 %v34, %v3241
    %v3243 = vand.u32 %v3242, 4294901760
    %v3244 = vsub.f32 %v3242, %v3243
    %v3245 = vand.u32 %v3244, 4294901760
    %3246 = vmatpush1.msra.mxu0 %v3245
    %3247 = vmatprep.subr.mxu0 0.0
    %3248 = vmatpush1.msra.mxu0 0.0
    %3249 = vmatprep.subr.mxu0 0.0
    %3250 = vmatpush1.msra.mxu0 0.0
    %3251 = vmatprep.subr.mxu0 0.0
    %3252 = vmatpush1.msra.mxu0 0.0
    %3253 = vmatprep.subr.mxu0 0.0
    %3254 = vmatpush1.msra.mxu0 0.0
    %3255 = vmatprep.subr.mxu0 0.0
    %3256 = vmatpush1.msra.mxu0 0.0
    %3257 = vmatprep.subr.mxu0 0.0
    %3258 = vmatpush1.msra.mxu0 0.0
    %3259 = vmatprep.subr.mxu0 0.0
    %3260 = vmatpush1.msra.mxu0 0.0
    %3261 = vmatprep.subr.mxu0 0.0
    %3262 = vmatpush1.msra.mxu0 0.0
    %3263 = vmatprep.subr.mxu0 0.0
    %3264 = vmatpush1.msra.mxu0 0.0
    %3265 = vmatprep.subr.mxu0 0.0
    %3266 = vmatpush1.msra.mxu0 0.0
    %3267 = vmatprep.subr.mxu0 0.0
    %3268 = vmatpush1.msra.mxu0 0.0
    %3269 = vmatprep.subr.mxu0 0.0
    %3270 = vmatpush1.msra.mxu0 0.0
    %3271 = vmatprep.subr.mxu0 0.0
    %3272 = vmatpush1.msra.mxu0 0.0
    %3273 = vmatprep.subr.mxu0 0.0
    %3274 = vmatpush1.msra.mxu0 0.0
    %3275 = vmatprep.subr.mxu0 0.0
    %3276 = vmatpush1.msra.mxu0 0.0
    %3277 = vmatprep.subr.mxu0 0.0
    %3278 = vmatpush1.msra.mxu0 0.0
    %3279 = vmatprep.subr.mxu0 0.0
    %3280 = vmatpush1.msra.mxu0 0.0
    %3281 = vmatprep.subr.mxu0 0.0
    %3282 = vmatpush1.msra.mxu0 0.0
    %3283 = vmatprep.subr.mxu0 0.0
    %3284 = vmatpush1.msra.mxu0 0.0
    %3285 = vmatprep.subr.mxu0 0.0
    %3286 = vmatpush1.msra.mxu0 0.0
    %3287 = vmatprep.subr.mxu0 0.0
    %3288 = vmatpush1.msra.mxu0 0.0
    %3289 = vmatprep.subr.mxu0 0.0
    %3290 = vmatpush1.msra.mxu0 0.0
    %3291 = vmatprep.subr.mxu0 0.0
    %3292 = vmatpush1.msra.mxu0 0.0
    %3293 = vmatprep.subr.mxu0 0.0
    %3294 = vmatpush1.msra.mxu0 0.0
    %3295 = vmatprep.subr.mxu0 0.0
    %3296 = vmatpush1.msra.mxu0 0.0
    %3297 = vmatprep.subr.mxu0 0.0
    %3298 = vmatpush1.msra.mxu0 0.0
    %3299 = vmatprep.subr.mxu0 0.0
    %3300 = vmatpush1.msra.mxu0 0.0
    %3301 = vmatprep.subr.mxu0 0.0
    %3302 = vmatpush1.msra.mxu0 0.0
    %3303 = vmatprep.mubr.f32.mxu0 0.0
    %v3304 = vand.u32 %v3138, 4294901760
    %3305 = vmatmul.mubr.f32.gmra.mrb[0].mxu0 %v3304
    %v3306 = vpop.f32.mrb[0].mxu0
    %v3307 = vadd.f32 %v3216, %v3306
    %v3308 = vpop.f32.mrb[0].mxu0
    %3309 = vdwg.mxu0
    %3310 = vmatprep.subr.mxu0 0.0
    %v3311 = vand.u32 %v31, 4294901760
    %v3312 = vsub.f32 %v31, %v3311
    %3313 = vmatpush1.msra.mxu0 %v3312
    %3314 = vmatprep.subr.mxu0 0.0
    %v3315 = vand.u32 %v32, 4294901760
    %v3316 = vsub.f32 %v32, %v3315
    %3317 = vmatpush1.msra.mxu0 %v3316
    %3318 = vmatprep.subr.mxu0 0.0
    %v3319 = vand.u32 %v33, 4294901760
    %v3320 = vsub.f32 %v33, %v3319
    %3321 = vmatpush1.msra.mxu0 %v3320
    %3322 = vmatprep.subr.mxu0 0.0
    %v3323 = vand.u32 %v34, 4294901760
    %v3324 = vsub.f32 %v34, %v3323
    %3325 = vmatpush1.msra.mxu0 %v3324
    %3326 = vmatprep.subr.mxu0 0.0
    %3327 = vmatpush1.msra.mxu0 0.0
    %3328 = vmatprep.subr.mxu0 0.0
    %3329 = vmatpush1.msra.mxu0 0.0
    %3330 = vmatprep.subr.mxu0 0.0
    %3331 = vmatpush1.msra.mxu0 0.0
    %3332 = vmatprep.subr.mxu0 0.0
    %3333 = vmatpush1.msra.mxu0 0.0
    %3334 = vmatprep.subr.mxu0 0.0
    %3335 = vmatpush1.msra.mxu0 0.0
    %3336 = vmatprep.subr.mxu0 0.0
    %3337 = vmatpush1.msra.mxu0 0.0
    %3338 = vmatprep.subr.mxu0 0.0
    %3339 = vmatpush1.msra.mxu0 0.0
    %3340 = vmatprep.subr.mxu0 0.0
    %3341 = vmatpush1.msra.mxu0 0.0
    %3342 = vmatprep.subr.mxu0 0.0
    %3343 = vmatpush1.msra.mxu0 0.0
    %3344 = vmatprep.subr.mxu0 0.0
    %3345 = vmatpush1.msra.mxu0 0.0
    %3346 = vmatprep.subr.mxu0 0.0
    %3347 = vmatpush1.msra.mxu0 0.0
    %3348 = vmatprep.subr.mxu0 0.0
    %3349 = vmatpush1.msra.mxu0 0.0
    %3350 = vmatprep.subr.mxu0 0.0
    %3351 = vmatpush1.msra.mxu0 0.0
    %3352 = vmatprep.subr.mxu0 0.0
    %3353 = vmatpush1.msra.mxu0 0.0
    %3354 = vmatprep.subr.mxu0 0.0
    %3355 = vmatpush1.msra.mxu0 0.0
    %3356 = vmatprep.subr.mxu0 0.0
    %3357 = vmatpush1.msra.mxu0 0.0
    %3358 = vmatprep.subr.mxu0 0.0
    %3359 = vmatpush1.msra.mxu0 0.0
    %3360 = vmatprep.subr.mxu0 0.0
    %3361 = vmatpush1.msra.mxu0 0.0
    %3362 = vmatprep.subr.mxu0 0.0
    %3363 = vmatpush1.msra.mxu0 0.0
    %3364 = vmatprep.subr.mxu0 0.0
    %3365 = vmatpush1.msra.mxu0 0.0
    %3366 = vmatprep.subr.mxu0 0.0
    %3367 = vmatpush1.msra.mxu0 0.0
    %3368 = vmatprep.subr.mxu0 0.0
    %3369 = vmatpush1.msra.mxu0 0.0
    %3370 = vmatprep.subr.mxu0 0.0
    %3371 = vmatpush1.msra.mxu0 0.0
    %3372 = vmatprep.subr.mxu0 0.0
    %3373 = vmatpush1.msra.mxu0 0.0
    %3374 = vmatprep.subr.mxu0 0.0
    %3375 = vmatpush1.msra.mxu0 0.0
    %3376 = vmatprep.subr.mxu0 0.0
    %3377 = vmatpush1.msra.mxu0 0.0
    %3378 = vmatprep.subr.mxu0 0.0
    %3379 = vmatpush1.msra.mxu0 0.0
    %3380 = vmatprep.subr.mxu0 0.0
    %3381 = vmatpush1.msra.mxu0 0.0
    %3382 = vmatprep.mubr.f32.mxu0 0.0
    %v3383 = vand.u32 %v3138, 4294901760
    %v3384 = vsub.f32 %v3138, %v3383
    %3385 = vmatmul.mubr.f32.gmra.mrb[0].mxu0 %v3384
    %v3386 = vpop.f32.mrb[0].mxu0
    %v3387 = vadd.f32 %v3307, %v3386
    %v3388 = vpop.f32.mrb[0].mxu0
    %3389 = vdwg.mxu0
    %3390 = vmatprep.subr.mxu0 0.0
    %v3391 = vand.u32 %v31, 4294901760
    %3392 = vmatpush1.msra.mxu0 %v3391
    %3393 = vmatprep.subr.mxu0 0.0
    %v3394 = vand.u32 %v32, 4294901760
    %3395 = vmatpush1.msra.mxu0 %v3394
    %3396 = vmatprep.subr.mxu0 0.0
    %v3397 = vand.u32 %v33, 4294901760
    %3398 = vmatpush1.msra.mxu0 %v3397
    %3399 = vmatprep.subr.mxu0 0.0
    %v3400 = vand.u32 %v34, 4294901760
    %3401 = vmatpush1.msra.mxu0 %v3400
    %3402 = vmatprep.subr.mxu0 0.0
    %3403 = vmatpush1.msra.mxu0 0.0
    %3404 = vmatprep.subr.mxu0 0.0
    %3405 = vmatpush1.msra.mxu0 0.0
    %3406 = vmatprep.subr.mxu0 0.0
    %3407 = vmatpush1.msra.mxu0 0.0
    %3408 = vmatprep.subr.mxu0 0.0
    %3409 = vmatpush1.msra.mxu0 0.0
    %3410 = vmatprep.subr.mxu0 0.0
    %3411 = vmatpush1.msra.mxu0 0.0
    %3412 = vmatprep.subr.mxu0 0.0
    %3413 = vmatpush1.msra.mxu0 0.0
    %3414 = vmatprep.subr.mxu0 0.0
    %3415 = vmatpush1.msra.mxu0 0.0
    %3416 = vmatprep.subr.mxu0 0.0
    %3417 = vmatpush1.msra.mxu0 0.0
    %3418 = vmatprep.subr.mxu0 0.0
    %3419 = vmatpush1.msra.mxu0 0.0
    %3420 = vmatprep.subr.mxu0 0.0
    %3421 = vmatpush1.msra.mxu0 0.0
    %3422 = vmatprep.subr.mxu0 0.0
    %3423 = vmatpush1.msra.mxu0 0.0
    %3424 = vmatprep.subr.mxu0 0.0
    %3425 = vmatpush1.msra.mxu0 0.0
    %3426 = vmatprep.subr.mxu0 0.0
    %3427 = vmatpush1.msra.mxu0 0.0
    %3428 = vmatprep.subr.mxu0 0.0
    %3429 = vmatpush1.msra.mxu0 0.0
    %3430 = vmatprep.subr.mxu0 0.0
    %3431 = vmatpush1.msra.mxu0 0.0
    %3432 = vmatprep.subr.mxu0 0.0
    %3433 = vmatpush1.msra.mxu0 0.0
    %3434 = vmatprep.subr.mxu0 0.0
    %3435 = vmatpush1.msra.mxu0 0.0
    %3436 = vmatprep.subr.mxu0 0.0
    %3437 = vmatpush1.msra.mxu0 0.0
    %3438 = vmatprep.subr.mxu0 0.0
    %3439 = vmatpush1.msra.mxu0 0.0
    %3440 = vmatprep.subr.mxu0 0.0
    %3441 = vmatpush1.msra.mxu0 0.0
    %3442 = vmatprep.subr.mxu0 0.0
    %3443 = vmatpush1.msra.mxu0 0.0
    %3444 = vmatprep.subr.mxu0 0.0
    %3445 = vmatpush1.msra.mxu0 0.0
    %3446 = vmatprep.subr.mxu0 0.0
    %3447 = vmatpush1.msra.mxu0 0.0
    %3448 = vmatprep.subr.mxu0 0.0
    %3449 = vmatpush1.msra.mxu0 0.0
    %3450 = vmatprep.subr.mxu0 0.0
    %3451 = vmatpush1.msra.mxu0 0.0
    %3452 = vmatprep.subr.mxu0 0.0
    %3453 = vmatpush1.msra.mxu0 0.0
    %3454 = vmatprep.subr.mxu0 0.0
    %3455 = vmatpush1.msra.mxu0 0.0
    %3456 = vmatprep.subr.mxu0 0.0
    %3457 = vmatpush1.msra.mxu0 0.0
    %3458 = vmatprep.mubr.f32.mxu0 0.0
    %v3459 = vand.u32 %v3138, 4294901760
    %v3460 = vsub.f32 %v3138, %v3459
    %v3461 = vand.u32 %v3460, 4294901760
    %3462 = vmatmul.mubr.f32.gmra.mrb[0].mxu0 %v3461
    %v3463 = vpop.f32.mrb[0].mxu0
    %v3464 = vadd.f32 %v3387, %v3463
    %v3465 = vpop.f32.mrb[0].mxu0
    %3466 = vdwg.mxu0
    %3467 = vmatprep.subr.mxu0 0.0
    %v3468 = vand.u32 %v31, 4294901760
    %v3469 = vsub.f32 %v31, %v3468
    %v3470 = vand.u32 %v3469, 4294901760
    %3471 = vmatpush1.msra.mxu0 %v3470
    %3472 = vmatprep.subr.mxu0 0.0
    %v3473 = vand.u32 %v32, 4294901760
    %v3474 = vsub.f32 %v32, %v3473
    %v3475 = vand.u32 %v3474, 4294901760
    %3476 = vmatpush1.msra.mxu0 %v3475
    %3477 = vmatprep.subr.mxu0 0.0
    %v3478 = vand.u32 %v33, 4294901760
    %v3479 = vsub.f32 %v33, %v3478
    %v3480 = vand.u32 %v3479, 4294901760
    %3481 = vmatpush1.msra.mxu0 %v3480
    %3482 = vmatprep.subr.mxu0 0.0
    %v3483 = vand.u32 %v34, 4294901760
    %v3484 = vsub.f32 %v34, %v3483
    %v3485 = vand.u32 %v3484, 4294901760
    %3486 = vmatpush1.msra.mxu0 %v3485
    %3487 = vmatprep.subr.mxu0 0.0
    %3488 = vmatpush1.msra.mxu0 0.0
    %3489 = vmatprep.subr.mxu0 0.0
    %3490 = vmatpush1.msra.mxu0 0.0
    %3491 = vmatprep.subr.mxu0 0.0
    %3492 = vmatpush1.msra.mxu0 0.0
    %3493 = vmatprep.subr.mxu0 0.0
    %3494 = vmatpush1.msra.mxu0 0.0
    %3495 = vmatprep.subr.mxu0 0.0
    %3496 = vmatpush1.msra.mxu0 0.0
    %3497 = vmatprep.subr.mxu0 0.0
    %3498 = vmatpush1.msra.mxu0 0.0
    %3499 = vmatprep.subr.mxu0 0.0
    %3500 = vmatpush1.msra.mxu0 0.0
    %3501 = vmatprep.subr.mxu0 0.0
    %3502 = vmatpush1.msra.mxu0 0.0
    %3503 = vmatprep.subr.mxu0 0.0
    %3504 = vmatpush1.msra.mxu0 0.0
    %3505 = vmatprep.subr.mxu0 0.0
    %3506 = vmatpush1.msra.mxu0 0.0
    %3507 = vmatprep.subr.mxu0 0.0
    %3508 = vmatpush1.msra.mxu0 0.0
    %3509 = vmatprep.subr.mxu0 0.0
    %3510 = vmatpush1.msra.mxu0 0.0
    %3511 = vmatprep.subr.mxu0 0.0
    %3512 = vmatpush1.msra.mxu0 0.0
    %3513 = vmatprep.subr.mxu0 0.0
    %3514 = vmatpush1.msra.mxu0 0.0
    %3515 = vmatprep.subr.mxu0 0.0
    %3516 = vmatpush1.msra.mxu0 0.0
    %3517 = vmatprep.subr.mxu0 0.0
    %3518 = vmatpush1.msra.mxu0 0.0
    %3519 = vmatprep.subr.mxu0 0.0
    %3520 = vmatpush1.msra.mxu0 0.0
    %3521 = vmatprep.subr.mxu0 0.0
    %3522 = vmatpush1.msra.mxu0 0.0
    %3523 = vmatprep.subr.mxu0 0.0
    %3524 = vmatpush1.msra.mxu0 0.0
    %3525 = vmatprep.subr.mxu0 0.0
    %3526 = vmatpush1.msra.mxu0 0.0
    %3527 = vmatprep.subr.mxu0 0.0
    %3528 = vmatpush1.msra.mxu0 0.0
    %3529 = vmatprep.subr.mxu0 0.0
    %3530 = vmatpush1.msra.mxu0 0.0
    %3531 = vmatprep.subr.mxu0 0.0
    %3532 = vmatpush1.msra.mxu0 0.0
    %3533 = vmatprep.subr.mxu0 0.0
    %3534 = vmatpush1.msra.mxu0 0.0
    %3535 = vmatprep.subr.mxu0 0.0
    %3536 = vmatpush1.msra.mxu0 0.0
    %3537 = vmatprep.subr.mxu0 0.0
    %3538 = vmatpush1.msra.mxu0 0.0
    %3539 = vmatprep.subr.mxu0 0.0
    %3540 = vmatpush1.msra.mxu0 0.0
    %3541 = vmatprep.subr.mxu0 0.0
    %3542 = vmatpush1.msra.mxu0 0.0
    %3543 = vmatprep.mubr.f32.mxu0 0.0
    %v3544 = vand.u32 %v3138, 4294901760
    %3545 = vmatmul.mubr.f32.gmra.mrb[0].mxu0 %v3544
    %v3546 = vpop.f32.mrb[0].mxu0
    %v3547 = vadd.f32 %v3464, %v3546
    %v3548 = vpop.f32.mrb[0].mxu0
    %3549 = vdwg.mxu0
    %3550 = vmatprep.subr.mxu0 0.0
    %v3551 = vand.u32 %v31, 4294901760
    %3552 = vmatpush1.msra.mxu0 %v3551
    %3553 = vmatprep.subr.mxu0 0.0
    %v3554 = vand.u32 %v32, 4294901760
    %3555 = vmatpush1.msra.mxu0 %v3554
    %3556 = vmatprep.subr.mxu0 0.0
    %v3557 = vand.u32 %v33, 4294901760
    %3558 = vmatpush1.msra.mxu0 %v3557
    %3559 = vmatprep.subr.mxu0 0.0
    %v3560 = vand.u32 %v34, 4294901760
    %3561 = vmatpush1.msra.mxu0 %v3560
    %3562 = vmatprep.subr.mxu0 0.0
    %3563 = vmatpush1.msra.mxu0 0.0
    %3564 = vmatprep.subr.mxu0 0.0
    %3565 = vmatpush1.msra.mxu0 0.0
    %3566 = vmatprep.subr.mxu0 0.0
    %3567 = vmatpush1.msra.mxu0 0.0
    %3568 = vmatprep.subr.mxu0 0.0
    %3569 = vmatpush1.msra.mxu0 0.0
    %3570 = vmatprep.subr.mxu0 0.0
    %3571 = vmatpush1.msra.mxu0 0.0
    %3572 = vmatprep.subr.mxu0 0.0
    %3573 = vmatpush1.msra.mxu0 0.0
    %3574 = vmatprep.subr.mxu0 0.0
    %3575 = vmatpush1.msra.mxu0 0.0
    %3576 = vmatprep.subr.mxu0 0.0
    %3577 = vmatpush1.msra.mxu0 0.0
    %3578 = vmatprep.subr.mxu0 0.0
    %3579 = vmatpush1.msra.mxu0 0.0
    %3580 = vmatprep.subr.mxu0 0.0
    %3581 = vmatpush1.msra.mxu0 0.0
    %3582 = vmatprep.subr.mxu0 0.0
    %3583 = vmatpush1.msra.mxu0 0.0
    %3584 = vmatprep.subr.mxu0 0.0
    %3585 = vmatpush1.msra.mxu0 0.0
    %3586 = vmatprep.subr.mxu0 0.0
    %3587 = vmatpush1.msra.mxu0 0.0
    %3588 = vmatprep.subr.mxu0 0.0
    %3589 = vmatpush1.msra.mxu0 0.0
    %3590 = vmatprep.subr.mxu0 0.0
    %3591 = vmatpush1.msra.mxu0 0.0
    %3592 = vmatprep.subr.mxu0 0.0
    %3593 = vmatpush1.msra.mxu0 0.0
    %3594 = vmatprep.subr.mxu0 0.0
    %3595 = vmatpush1.msra.mxu0 0.0
    %3596 = vmatprep.subr.mxu0 0.0
    %3597 = vmatpush1.msra.mxu0 0.0
    %3598 = vmatprep.subr.mxu0 0.0
    %3599 = vmatpush1.msra.mxu0 0.0
    %3600 = vmatprep.subr.mxu0 0.0
    %3601 = vmatpush1.msra.mxu0 0.0
    %3602 = vmatprep.subr.mxu0 0.0
    %3603 = vmatpush1.msra.mxu0 0.0
    %3604 = vmatprep.subr.mxu0 0.0
    %3605 = vmatpush1.msra.mxu0 0.0
    %3606 = vmatprep.subr.mxu0 0.0
    %3607 = vmatpush1.msra.mxu0 0.0
    %3608 = vmatprep.subr.mxu0 0.0
    %3609 = vmatpush1.msra.mxu0 0.0
    %3610 = vmatprep.subr.mxu0 0.0
    %3611 = vmatpush1.msra.mxu0 0.0
    %3612 = vmatprep.subr.mxu0 0.0
    %3613 = vmatpush1.msra.mxu0 0.0
    %3614 = vmatprep.subr.mxu0 0.0
    %3615 = vmatpush1.msra.mxu0 0.0
    %3616 = vmatprep.subr.mxu0 0.0
    %3617 = vmatpush1.msra.mxu0 0.0
    %3618 = vmatprep.mubr.f32.mxu0 0.0
    %v3619 = vand.u32 %v3138, 4294901760
    %3620 = vmatmul.mubr.f32.gmra.mrb[0].mxu0 %v3619
    %v3621 = vpop.f32.mrb[0].mxu0
    %v3622 = vadd.f32 %v3547, %v3621
    %v3623 = vpop.f32.mrb[0].mxu0
    %3624 = vdwg.mxu0
    %v3626 = vrot.slane %v3622, 4
    %v3628 = vadd.f32 %v1564, %v3626
    %v3629 = vxor.u32 %v3628, 2147483648
    %v3630 = vmul.f32 %v3629, 1.442695
    %v3631 = vpow.pop %v3630
    %v3632 = vadd.f32 %v3631, 1.0
    %v3633 = vrcp.pop %v3632
    %v3634 = vmul.f32 1.0, %v3633
    %v3635 = vmul.f32 %v3634, 2.0
    %v3636 = vsub.f32 %v3635, 1.0
    %v3638 = vrot.slane %v3128, 4
    %v3640 = vmul.f32 %v3634, %v3638
    %3642 = vrot.lane.b32.xlu0 %v3636, 64
    %v3643 = vpop.permute.xlu0 %3642
    %v3645 = vmul.f32 %v3634, %v3643
    %3647 = vrot.lane.b32.xlu0 %v3645, 32
    %v3648 = vpop.permute.xlu0 %3647
    %v3650 = vadd.f32 %v3640, %v3648
    %v3651 = vtanh.pop %v3650
    %3653 = vrot.lane.b32.xlu0 %v3651, 64
    %v3654 = vpop.permute.xlu0 %3653
    %v3656 = vmul.f32 %v3634, %v3654
    %v3658 = vrot.slane %v3656, 4
    %3659 = vrot.lane.b32.xlu0 %v3658, 32
    %v3660 = vpop.permute.xlu0 %3659
    %v3661 = vsel %vm952, %v3660, 0
    %3663 = vmatprep.subr.mxu0 0.0
    %v3664 = vand.u32 %v31, 4294901760
    %3665 = vmatpush1.msra.mxu0 %v3664
    %3666 = vmatprep.subr.mxu0 0.0
    %v3667 = vand.u32 %v32, 4294901760
    %3668 = vmatpush1.msra.mxu0 %v3667
    %3669 = vmatprep.subr.mxu0 0.0
    %v3670 = vand.u32 %v33, 4294901760
    %3671 = vmatpush1.msra.mxu0 %v3670
    %3672 = vmatprep.subr.mxu0 0.0
    %v3673 = vand.u32 %v34, 4294901760
    %3674 = vmatpush1.msra.mxu0 %v3673
    %3675 = vmatprep.subr.mxu0 0.0
    %3676 = vmatpush1.msra.mxu0 0.0
    %3677 = vmatprep.subr.mxu0 0.0
    %3678 = vmatpush1.msra.mxu0 0.0
    %3679 = vmatprep.subr.mxu0 0.0
    %3680 = vmatpush1.msra.mxu0 0.0
    %3681 = vmatprep.subr.mxu0 0.0
    %3682 = vmatpush1.msra.mxu0 0.0
    %3683 = vmatprep.subr.mxu0 0.0
    %3684 = vmatpush1.msra.mxu0 0.0
    %3685 = vmatprep.subr.mxu0 0.0
    %3686 = vmatpush1.msra.mxu0 0.0
    %3687 = vmatprep.subr.mxu0 0.0
    %3688 = vmatpush1.msra.mxu0 0.0
    %3689 = vmatprep.subr.mxu0 0.0
    %3690 = vmatpush1.msra.mxu0 0.0
    %3691 = vmatprep.subr.mxu0 0.0
    %3692 = vmatpush1.msra.mxu0 0.0
    %3693 = vmatprep.subr.mxu0 0.0
    %3694 = vmatpush1.msra.mxu0 0.0
    %3695 = vmatprep.subr.mxu0 0.0
    %3696 = vmatpush1.msra.mxu0 0.0
    %3697 = vmatprep.subr.mxu0 0.0
    %3698 = vmatpush1.msra.mxu0 0.0
    %3699 = vmatprep.subr.mxu0 0.0
    %3700 = vmatpush1.msra.mxu0 0.0
    %3701 = vmatprep.subr.mxu0 0.0
    %3702 = vmatpush1.msra.mxu0 0.0
    %3703 = vmatprep.subr.mxu0 0.0
    %3704 = vmatpush1.msra.mxu0 0.0
    %3705 = vmatprep.subr.mxu0 0.0
    %3706 = vmatpush1.msra.mxu0 0.0
    %3707 = vmatprep.subr.mxu0 0.0
    %3708 = vmatpush1.msra.mxu0 0.0
    %3709 = vmatprep.subr.mxu0 0.0
    %3710 = vmatpush1.msra.mxu0 0.0
    %3711 = vmatprep.subr.mxu0 0.0
    %3712 = vmatpush1.msra.mxu0 0.0
    %3713 = vmatprep.subr.mxu0 0.0
    %3714 = vmatpush1.msra.mxu0 0.0
    %3715 = vmatprep.subr.mxu0 0.0
    %3716 = vmatpush1.msra.mxu0 0.0
    %3717 = vmatprep.subr.mxu0 0.0
    %3718 = vmatpush1.msra.mxu0 0.0
    %3719 = vmatprep.subr.mxu0 0.0
    %3720 = vmatpush1.msra.mxu0 0.0
    %3721 = vmatprep.subr.mxu0 0.0
    %3722 = vmatpush1.msra.mxu0 0.0
    %3723 = vmatprep.subr.mxu0 0.0
    %3724 = vmatpush1.msra.mxu0 0.0
    %3725 = vmatprep.subr.mxu0 0.0
    %3726 = vmatpush1.msra.mxu0 0.0
    %3727 = vmatprep.subr.mxu0 0.0
    %3728 = vmatpush1.msra.mxu0 0.0
    %3729 = vmatprep.subr.mxu0 0.0
    %3730 = vmatpush1.msra.mxu0 0.0
    %3731 = vmatprep.mubr.f32.mxu0 0.0
    %v3732 = vand.u32 %v3661, 4294901760
    %v3733 = vsub.f32 %v3661, %v3732
    %v3734 = vand.u32 %v3733, 4294901760
    %v3735 = vsub.f32 %v3733, %v3734
    %v3736 = vand.u32 %v3735, 4294901760
    %3737 = vmatmul.mubr.f32.gmra.mrb[0].mxu0 %v3736
    %v3738 = vpop.f32.mrb[0].mxu0
    %v3739 = vadd.f32 0.0, %v3738
    %v3740 = vpop.f32.mrb[0].mxu0
    %3741 = vdwg.mxu0
    %3742 = vmatprep.subr.mxu0 0.0
    %v3743 = vand.u32 %v31, 4294901760
    %v3744 = vsub.f32 %v31, %v3743
    %v3745 = vand.u32 %v3744, 4294901760
    %v3746 = vsub.f32 %v3744, %v3745
    %v3747 = vand.u32 %v3746, 4294901760
    %3748 = vmatpush1.msra.mxu0 %v3747
    %3749 = vmatprep.subr.mxu0 0.0
    %v3750 = vand.u32 %v32, 4294901760
    %v3751 = vsub.f32 %v32, %v3750
    %v3752 = vand.u32 %v3751, 4294901760
    %v3753 = vsub.f32 %v3751, %v3752
    %v3754 = vand.u32 %v3753, 4294901760
    %3755 = vmatpush1.msra.mxu0 %v3754
    %3756 = vmatprep.subr.mxu0 0.0
    %v3757 = vand.u32 %v33, 4294901760
    %v3758 = vsub.f32 %v33, %v3757
    %v3759 = vand.u32 %v3758, 4294901760
    %v3760 = vsub.f32 %v3758, %v3759
    %v3761 = vand.u32 %v3760, 4294901760
    %3762 = vmatpush1.msra.mxu0 %v3761
    %3763 = vmatprep.subr.mxu0 0.0
    %v3764 = vand.u32 %v34, 4294901760
    %v3765 = vsub.f32 %v34, %v3764
    %v3766 = vand.u32 %v3765, 4294901760
    %v3767 = vsub.f32 %v3765, %v3766
    %v3768 = vand.u32 %v3767, 4294901760
    %3769 = vmatpush1.msra.mxu0 %v3768
    %3770 = vmatprep.subr.mxu0 0.0
    %3771 = vmatpush1.msra.mxu0 0.0
    %3772 = vmatprep.subr.mxu0 0.0
    %3773 = vmatpush1.msra.mxu0 0.0
    %3774 = vmatprep.subr.mxu0 0.0
    %3775 = vmatpush1.msra.mxu0 0.0
    %3776 = vmatprep.subr.mxu0 0.0
    %3777 = vmatpush1.msra.mxu0 0.0
    %3778 = vmatprep.subr.mxu0 0.0
    %3779 = vmatpush1.msra.mxu0 0.0
    %3780 = vmatprep.subr.mxu0 0.0
    %3781 = vmatpush1.msra.mxu0 0.0
    %3782 = vmatprep.subr.mxu0 0.0
    %3783 = vmatpush1.msra.mxu0 0.0
    %3784 = vmatprep.subr.mxu0 0.0
    %3785 = vmatpush1.msra.mxu0 0.0
    %3786 = vmatprep.subr.mxu0 0.0
    %3787 = vmatpush1.msra.mxu0 0.0
    %3788 = vmatprep.subr.mxu0 0.0
    %3789 = vmatpush1.msra.mxu0 0.0
    %3790 = vmatprep.subr.mxu0 0.0
    %3791 = vmatpush1.msra.mxu0 0.0
    %3792 = vmatprep.subr.mxu0 0.0
    %3793 = vmatpush1.msra.mxu0 0.0
    %3794 = vmatprep.subr.mxu0 0.0
    %3795 = vmatpush1.msra.mxu0 0.0
    %3796 = vmatprep.subr.mxu0 0.0
    %3797 = vmatpush1.msra.mxu0 0.0
    %3798 = vmatprep.subr.mxu0 0.0
    %3799 = vmatpush1.msra.mxu0 0.0
    %3800 = vmatprep.subr.mxu0 0.0
    %3801 = vmatpush1.msra.mxu0 0.0
    %3802 = vmatprep.subr.mxu0 0.0
    %3803 = vmatpush1.msra.mxu0 0.0
    %3804 = vmatprep.subr.mxu0 0.0
    %3805 = vmatpush1.msra.mxu0 0.0
    %3806 = vmatprep.subr.mxu0 0.0
    %3807 = vmatpush1.msra.mxu0 0.0
    %3808 = vmatprep.subr.mxu0 0.0
    %3809 = vmatpush1.msra.mxu0 0.0
    %3810 = vmatprep.subr.mxu0 0.0
    %3811 = vmatpush1.msra.mxu0 0.0
    %3812 = vmatprep.subr.mxu0 0.0
    %3813 = vmatpush1.msra.mxu0 0.0
    %3814 = vmatprep.subr.mxu0 0.0
    %3815 = vmatpush1.msra.mxu0 0.0
    %3816 = vmatprep.subr.mxu0 0.0
    %3817 = vmatpush1.msra.mxu0 0.0
    %3818 = vmatprep.subr.mxu0 0.0
    %3819 = vmatpush1.msra.mxu0 0.0
    %3820 = vmatprep.subr.mxu0 0.0
    %3821 = vmatpush1.msra.mxu0 0.0
    %3822 = vmatprep.subr.mxu0 0.0
    %3823 = vmatpush1.msra.mxu0 0.0
    %3824 = vmatprep.subr.mxu0 0.0
    %3825 = vmatpush1.msra.mxu0 0.0
    %3826 = vmatprep.mubr.f32.mxu0 0.0
    %v3827 = vand.u32 %v3661, 4294901760
    %3828 = vmatmul.mubr.f32.gmra.mrb[0].mxu0 %v3827
    %v3829 = vpop.f32.mrb[0].mxu0
    %v3830 = vadd.f32 %v3739, %v3829
    %v3831 = vpop.f32.mrb[0].mxu0
    %3832 = vdwg.mxu0
    %3833 = vmatprep.subr.mxu0 0.0
    %v3834 = vand.u32 %v31, 4294901760
    %v3835 = vsub.f32 %v31, %v3834
    %3836 = vmatpush1.msra.mxu0 %v3835
    %3837 = vmatprep.subr.mxu0 0.0
    %v3838 = vand.u32 %v32, 4294901760
    %v3839 = vsub.f32 %v32, %v3838
    %3840 = vmatpush1.msra.mxu0 %v3839
    %3841 = vmatprep.subr.mxu0 0.0
    %v3842 = vand.u32 %v33, 4294901760
    %v3843 = vsub.f32 %v33, %v3842
    %3844 = vmatpush1.msra.mxu0 %v3843
    %3845 = vmatprep.subr.mxu0 0.0
    %v3846 = vand.u32 %v34, 4294901760
    %v3847 = vsub.f32 %v34, %v3846
    %3848 = vmatpush1.msra.mxu0 %v3847
    %3849 = vmatprep.subr.mxu0 0.0
    %3850 = vmatpush1.msra.mxu0 0.0
    %3851 = vmatprep.subr.mxu0 0.0
    %3852 = vmatpush1.msra.mxu0 0.0
    %3853 = vmatprep.subr.mxu0 0.0
    %3854 = vmatpush1.msra.mxu0 0.0
    %3855 = vmatprep.subr.mxu0 0.0
    %3856 = vmatpush1.msra.mxu0 0.0
    %3857 = vmatprep.subr.mxu0 0.0
    %3858 = vmatpush1.msra.mxu0 0.0
    %3859 = vmatprep.subr.mxu0 0.0
    %3860 = vmatpush1.msra.mxu0 0.0
    %3861 = vmatprep.subr.mxu0 0.0
    %3862 = vmatpush1.msra.mxu0 0.0
    %3863 = vmatprep.subr.mxu0 0.0
    %3864 = vmatpush1.msra.mxu0 0.0
    %3865 = vmatprep.subr.mxu0 0.0
    %3866 = vmatpush1.msra.mxu0 0.0
    %3867 = vmatprep.subr.mxu0 0.0
    %3868 = vmatpush1.msra.mxu0 0.0
    %3869 = vmatprep.subr.mxu0 0.0
    %3870 = vmatpush1.msra.mxu0 0.0
    %3871 = vmatprep.subr.mxu0 0.0
    %3872 = vmatpush1.msra.mxu0 0.0
    %3873 = vmatprep.subr.mxu0 0.0
    %3874 = vmatpush1.msra.mxu0 0.0
    %3875 = vmatprep.subr.mxu0 0.0
    %3876 = vmatpush1.msra.mxu0 0.0
    %3877 = vmatprep.subr.mxu0 0.0
    %3878 = vmatpush1.msra.mxu0 0.0
    %3879 = vmatprep.subr.mxu0 0.0
    %3880 = vmatpush1.msra.mxu0 0.0
    %3881 = vmatprep.subr.mxu0 0.0
    %3882 = vmatpush1.msra.mxu0 0.0
    %3883 = vmatprep.subr.mxu0 0.0
    %3884 = vmatpush1.msra.mxu0 0.0
    %3885 = vmatprep.subr.mxu0 0.0
    %3886 = vmatpush1.msra.mxu0 0.0
    %3887 = vmatprep.subr.mxu0 0.0
    %3888 = vmatpush1.msra.mxu0 0.0
    %3889 = vmatprep.subr.mxu0 0.0
    %3890 = vmatpush1.msra.mxu0 0.0
    %3891 = vmatprep.subr.mxu0 0.0
    %3892 = vmatpush1.msra.mxu0 0.0
    %3893 = vmatprep.subr.mxu0 0.0
    %3894 = vmatpush1.msra.mxu0 0.0
    %3895 = vmatprep.subr.mxu0 0.0
    %3896 = vmatpush1.msra.mxu0 0.0
    %3897 = vmatprep.subr.mxu0 0.0
    %3898 = vmatpush1.msra.mxu0 0.0
    %3899 = vmatprep.subr.mxu0 0.0
    %3900 = vmatpush1.msra.mxu0 0.0
    %3901 = vmatprep.subr.mxu0 0.0
    %3902 = vmatpush1.msra.mxu0 0.0
    %3903 = vmatprep.subr.mxu0 0.0
    %3904 = vmatpush1.msra.mxu0 0.0
    %3905 = vmatprep.mubr.f32.mxu0 0.0
    %v3906 = vand.u32 %v3661, 4294901760
    %v3907 = vsub.f32 %v3661, %v3906
    %3908 = vmatmul.mubr.f32.gmra.mrb[0].mxu0 %v3907
    %v3909 = vpop.f32.mrb[0].mxu0
    %v3910 = vadd.f32 %v3830, %v3909
    %v3911 = vpop.f32.mrb[0].mxu0
    %3912 = vdwg.mxu0
    %3913 = vmatprep.subr.mxu0 0.0
    %v3914 = vand.u32 %v31, 4294901760
    %3915 = vmatpush1.msra.mxu0 %v3914
    %3916 = vmatprep.subr.mxu0 0.0
    %v3917 = vand.u32 %v32, 4294901760
    %3918 = vmatpush1.msra.mxu0 %v3917
    %3919 = vmatprep.subr.mxu0 0.0
    %v3920 = vand.u32 %v33, 4294901760
    %3921 = vmatpush1.msra.mxu0 %v3920
    %3922 = vmatprep.subr.mxu0 0.0
    %v3923 = vand.u32 %v34, 4294901760
    %3924 = vmatpush1.msra.mxu0 %v3923
    %3925 = vmatprep.subr.mxu0 0.0
    %3926 = vmatpush1.msra.mxu0 0.0
    %3927 = vmatprep.subr.mxu0 0.0
    %3928 = vmatpush1.msra.mxu0 0.0
    %3929 = vmatprep.subr.mxu0 0.0
    %3930 = vmatpush1.msra.mxu0 0.0
    %3931 = vmatprep.subr.mxu0 0.0
    %3932 = vmatpush1.msra.mxu0 0.0
    %3933 = vmatprep.subr.mxu0 0.0
    %3934 = vmatpush1.msra.mxu0 0.0
    %3935 = vmatprep.subr.mxu0 0.0
    %3936 = vmatpush1.msra.mxu0 0.0
    %3937 = vmatprep.subr.mxu0 0.0
    %3938 = vmatpush1.msra.mxu0 0.0
    %3939 = vmatprep.subr.mxu0 0.0
    %3940 = vmatpush1.msra.mxu0 0.0
    %3941 = vmatprep.subr.mxu0 0.0
    %3942 = vmatpush1.msra.mxu0 0.0
    %3943 = vmatprep.subr.mxu0 0.0
    %3944 = vmatpush1.msra.mxu0 0.0
    %3945 = vmatprep.subr.mxu0 0.0
    %3946 = vmatpush1.msra.mxu0 0.0
    %3947 = vmatprep.subr.mxu0 0.0
    %3948 = vmatpush1.msra.mxu0 0.0
    %3949 = vmatprep.subr.mxu0 0.0
    %3950 = vmatpush1.msra.mxu0 0.0
    %3951 = vmatprep.subr.mxu0 0.0
    %3952 = vmatpush1.msra.mxu0 0.0
    %3953 = vmatprep.subr.mxu0 0.0
    %3954 = vmatpush1.msra.mxu0 0.0
    %3955 = vmatprep.subr.mxu0 0.0
    %3956 = vmatpush1.msra.mxu0 0.0
    %3957 = vmatprep.subr.mxu0 0.0
    %3958 = vmatpush1.msra.mxu0 0.0
    %3959 = vmatprep.subr.mxu0 0.0
    %3960 = vmatpush1.msra.mxu0 0.0
    %3961 = vmatprep.subr.mxu0 0.0
    %3962 = vmatpush1.msra.mxu0 0.0
    %3963 = vmatprep.subr.mxu0 0.0
    %3964 = vmatpush1.msra.mxu0 0.0
    %3965 = vmatprep.subr.mxu0 0.0
    %3966 = vmatpush1.msra.mxu0 0.0
    %3967 = vmatprep.subr.mxu0 0.0
    %3968 = vmatpush1.msra.mxu0 0.0
    %3969 = vmatprep.subr.mxu0 0.0
    %3970 = vmatpush1.msra.mxu0 0.0
    %3971 = vmatprep.subr.mxu0 0.0
    %3972 = vmatpush1.msra.mxu0 0.0
    %3973 = vmatprep.subr.mxu0 0.0
    %3974 = vmatpush1.msra.mxu0 0.0
    %3975 = vmatprep.subr.mxu0 0.0
    %3976 = vmatpush1.msra.mxu0 0.0
    %3977 = vmatprep.subr.mxu0 0.0
    %3978 = vmatpush1.msra.mxu0 0.0
    %3979 = vmatprep.subr.mxu0 0.0
    %3980 = vmatpush1.msra.mxu0 0.0
    %3981 = vmatprep.mubr.f32.mxu0 0.0
    %v3982 = vand.u32 %v3661, 4294901760
    %v3983 = vsub.f32 %v3661, %v3982
    %v3984 = vand.u32 %v3983, 4294901760
    %3985 = vmatmul.mubr.f32.gmra.mrb[0].mxu0 %v3984
    %v3986 = vpop.f32.mrb[0].mxu0
    %v3987 = vadd.f32 %v3910, %v3986
    %v3988 = vpop.f32.mrb[0].mxu0
    %3989 = vdwg.mxu0
    %3990 = vmatprep.subr.mxu0 0.0
    %v3991 = vand.u32 %v31, 4294901760
    %v3992 = vsub.f32 %v31, %v3991
    %v3993 = vand.u32 %v3992, 4294901760
    %3994 = vmatpush1.msra.mxu0 %v3993
    %3995 = vmatprep.subr.mxu0 0.0
    %v3996 = vand.u32 %v32, 4294901760
    %v3997 = vsub.f32 %v32, %v3996
    %v3998 = vand.u32 %v3997, 4294901760
    %3999 = vmatpush1.msra.mxu0 %v3998
    %4000 = vmatprep.subr.mxu0 0.0
    %v4001 = vand.u32 %v33, 4294901760
    %v4002 = vsub.f32 %v33, %v4001
    %v4003 = vand.u32 %v4002, 4294901760
    %4004 = vmatpush1.msra.mxu0 %v4003
    %4005 = vmatprep.subr.mxu0 0.0
    %v4006 = vand.u32 %v34, 4294901760
    %v4007 = vsub.f32 %v34, %v4006
    %v4008 = vand.u32 %v4007, 4294901760
    %4009 = vmatpush1.msra.mxu0 %v4008
    %4010 = vmatprep.subr.mxu0 0.0
    %4011 = vmatpush1.msra.mxu0 0.0
    %4012 = vmatprep.subr.mxu0 0.0
    %4013 = vmatpush1.msra.mxu0 0.0
    %4014 = vmatprep.subr.mxu0 0.0
    %4015 = vmatpush1.msra.mxu0 0.0
    %4016 = vmatprep.subr.mxu0 0.0
    %4017 = vmatpush1.msra.mxu0 0.0
    %4018 = vmatprep.subr.mxu0 0.0
    %4019 = vmatpush1.msra.mxu0 0.0
    %4020 = vmatprep.subr.mxu0 0.0
    %4021 = vmatpush1.msra.mxu0 0.0
    %4022 = vmatprep.subr.mxu0 0.0
    %4023 = vmatpush1.msra.mxu0 0.0
    %4024 = vmatprep.subr.mxu0 0.0
    %4025 = vmatpush1.msra.mxu0 0.0
    %4026 = vmatprep.subr.mxu0 0.0
    %4027 = vmatpush1.msra.mxu0 0.0
    %4028 = vmatprep.subr.mxu0 0.0
    %4029 = vmatpush1.msra.mxu0 0.0
    %4030 = vmatprep.subr.mxu0 0.0
    %4031 = vmatpush1.msra.mxu0 0.0
    %4032 = vmatprep.subr.mxu0 0.0
    %4033 = vmatpush1.msra.mxu0 0.0
    %4034 = vmatprep.subr.mxu0 0.0
    %4035 = vmatpush1.msra.mxu0 0.0
    %4036 = vmatprep.subr.mxu0 0.0
    %4037 = vmatpush1.msra.mxu0 0.0
    %4038 = vmatprep.subr.mxu0 0.0
    %4039 = vmatpush1.msra.mxu0 0.0
    %4040 = vmatprep.subr.mxu0 0.0
    %4041 = vmatpush1.msra.mxu0 0.0
    %4042 = vmatprep.subr.mxu0 0.0
    %4043 = vmatpush1.msra.mxu0 0.0
    %4044 = vmatprep.subr.mxu0 0.0
    %4045 = vmatpush1.msra.mxu0 0.0
    %4046 = vmatprep.subr.mxu0 0.0
    %4047 = vmatpush1.msra.mxu0 0.0
    %4048 = vmatprep.subr.mxu0 0.0
    %4049 = vmatpush1.msra.mxu0 0.0
    %4050 = vmatprep.subr.mxu0 0.0
    %4051 = vmatpush1.msra.mxu0 0.0
    %4052 = vmatprep.subr.mxu0 0.0
    %4053 = vmatpush1.msra.mxu0 0.0
    %4054 = vmatprep.subr.mxu0 0.0
    %4055 = vmatpush1.msra.mxu0 0.0
    %4056 = vmatprep.subr.mxu0 0.0
    %4057 = vmatpush1.msra.mxu0 0.0
    %4058 = vmatprep.subr.mxu0 0.0
    %4059 = vmatpush1.msra.mxu0 0.0
    %4060 = vmatprep.subr.mxu0 0.0
    %4061 = vmatpush1.msra.mxu0 0.0
    %4062 = vmatprep.subr.mxu0 0.0
    %4063 = vmatpush1.msra.mxu0 0.0
    %4064 = vmatprep.subr.mxu0 0.0
    %4065 = vmatpush1.msra.mxu0 0.0
    %4066 = vmatprep.mubr.f32.mxu0 0.0
    %v4067 = vand.u32 %v3661, 4294901760
    %4068 = vmatmul.mubr.f32.gmra.mrb[0].mxu0 %v4067
    %v4069 = vpop.f32.mrb[0].mxu0
    %v4070 = vadd.f32 %v3987, %v4069
    %v4071 = vpop.f32.mrb[0].mxu0
    %4072 = vdwg.mxu0
    %4073 = vmatprep.subr.mxu0 0.0
    %v4074 = vand.u32 %v31, 4294901760
    %4075 = vmatpush1.msra.mxu0 %v4074
    %4076 = vmatprep.subr.mxu0 0.0
    %v4077 = vand.u32 %v32, 4294901760
    %4078 = vmatpush1.msra.mxu0 %v4077
    %4079 = vmatprep.subr.mxu0 0.0
    %v4080 = vand.u32 %v33, 4294901760
    %4081 = vmatpush1.msra.mxu0 %v4080
    %4082 = vmatprep.subr.mxu0 0.0
    %v4083 = vand.u32 %v34, 4294901760
    %4084 = vmatpush1.msra.mxu0 %v4083
    %4085 = vmatprep.subr.mxu0 0.0
    %4086 = vmatpush1.msra.mxu0 0.0
    %4087 = vmatprep.subr.mxu0 0.0
    %4088 = vmatpush1.msra.mxu0 0.0
    %4089 = vmatprep.subr.mxu0 0.0
    %4090 = vmatpush1.msra.mxu0 0.0
    %4091 = vmatprep.subr.mxu0 0.0
    %4092 = vmatpush1.msra.mxu0 0.0
    %4093 = vmatprep.subr.mxu0 0.0
    %4094 = vmatpush1.msra.mxu0 0.0
    %4095 = vmatprep.subr.mxu0 0.0
    %4096 = vmatpush1.msra.mxu0 0.0
    %4097 = vmatprep.subr.mxu0 0.0
    %4098 = vmatpush1.msra.mxu0 0.0
    %4099 = vmatprep.subr.mxu0 0.0
    %4100 = vmatpush1.msra.mxu0 0.0
    %4101 = vmatprep.subr.mxu0 0.0
    %4102 = vmatpush1.msra.mxu0 0.0
    %4103 = vmatprep.subr.mxu0 0.0
    %4104 = vmatpush1.msra.mxu0 0.0
    %4105 = vmatprep.subr.mxu0 0.0
    %4106 = vmatpush1.msra.mxu0 0.0
    %4107 = vmatprep.subr.mxu0 0.0
    %4108 = vmatpush1.msra.mxu0 0.0
    %4109 = vmatprep.subr.mxu0 0.0
    %4110 = vmatpush1.msra.mxu0 0.0
    %4111 = vmatprep.subr.mxu0 0.0
    %4112 = vmatpush1.msra.mxu0 0.0
    %4113 = vmatprep.subr.mxu0 0.0
    %4114 = vmatpush1.msra.mxu0 0.0
    %4115 = vmatprep.subr.mxu0 0.0
    %4116 = vmatpush1.msra.mxu0 0.0
    %4117 = vmatprep.subr.mxu0 0.0
    %4118 = vmatpush1.msra.mxu0 0.0
    %4119 = vmatprep.subr.mxu0 0.0
    %4120 = vmatpush1.msra.mxu0 0.0
    %4121 = vmatprep.subr.mxu0 0.0
    %4122 = vmatpush1.msra.mxu0 0.0
    %4123 = vmatprep.subr.mxu0 0.0
    %4124 = vmatpush1.msra.mxu0 0.0
    %4125 = vmatprep.subr.mxu0 0.0
    %4126 = vmatpush1.msra.mxu0 0.0
    %4127 = vmatprep.subr.mxu0 0.0
    %4128 = vmatpush1.msra.mxu0 0.0
    %4129 = vmatprep.subr.mxu0 0.0
    %4130 = vmatpush1.msra.mxu0 0.0
    %4131 = vmatprep.subr.mxu0 0.0
    %4132 = vmatpush1.msra.mxu0 0.0
    %4133 = vmatprep.subr.mxu0 0.0
    %4134 = vmatpush1.msra.mxu0 0.0
    %4135 = vmatprep.subr.mxu0 0.0
    %4136 = vmatpush1.msra.mxu0 0.0
    %4137 = vmatprep.subr.mxu0 0.0
    %4138 = vmatpush1.msra.mxu0 0.0
    %4139 = vmatprep.subr.mxu0 0.0
    %4140 = vmatpush1.msra.mxu0 0.0
    %4141 = vmatprep.mubr.f32.mxu0 0.0
    %v4142 = vand.u32 %v3661, 4294901760
    %4143 = vmatmul.mubr.f32.gmra.mrb[0].mxu0 %v4142
    %v4144 = vpop.f32.mrb[0].mxu0
    %v4145 = vadd.f32 %v4070, %v4144
    %v4146 = vpop.f32.mrb[0].mxu0
    %4147 = vdwg.mxu0
    %v4148 = vadd.f32 %v1570, %v4145
    %v4149 = vxor.u32 %v4148, 2147483648
    %v4150 = vmul.f32 %v4149, 1.442695
    %v4151 = vpow.pop %v4150
    %v4152 = vadd.f32 %v4151, 1.0
    %v4153 = vrcp.pop %v4152
    %v4154 = vmul.f32 1.0, %v4153
    %v4155 = vmul.f32 %v4154, 2.0
    %v4156 = vsub.f32 %v4155, 1.0
    %v4158 = vrot.slane %v3650, 4
    %v4160 = vmul.f32 %v4154, %v4158
    %4162 = vrot.lane.b32.xlu0 %v4156, 64
    %v4163 = vpop.permute.xlu0 %4162
    %v4165 = vmul.f32 %v4154, %v4163
    %4167 = vrot.lane.b32.xlu0 %v4165, 32
    %v4168 = vpop.permute.xlu0 %4167
    %v4170 = vadd.f32 %v4160, %v4168
    %v4171 = vtanh.pop %v4170
    %4173 = vrot.lane.b32.xlu0 %v4171, 64
    %v4174 = vpop.permute.xlu0 %4173
    %v4176 = vmul.f32 %v4154, %v4174
    %4178 = vrot.lane.b32.xlu0 %v4176, 32
    %v4179 = vpop.permute.xlu0 %4178
    %v4180 = vsel %vm952, %v4179, 0
    %4182 = vmatprep.subr.mxu0 0.0
    %v4183 = vand.u32 %v31, 4294901760
    %4184 = vmatpush1.msra.mxu0 %v4183
    %4185 = vmatprep.subr.mxu0 0.0
    %v4186 = vand.u32 %v32, 4294901760
    %4187 = vmatpush1.msra.mxu0 %v4186
    %4188 = vmatprep.subr.mxu0 0.0
    %v4189 = vand.u32 %v33, 4294901760
    %4190 = vmatpush1.msra.mxu0 %v4189
    %4191 = vmatprep.subr.mxu0 0.0
    %v4192 = vand.u32 %v34, 4294901760
    %4193 = vmatpush1.msra.mxu0 %v4192
    %4194 = vmatprep.subr.mxu0 0.0
    %4195 = vmatpush1.msra.mxu0 0.0
    %4196 = vmatprep.subr.mxu0 0.0
    %4197 = vmatpush1.msra.mxu0 0.0
    %4198 = vmatprep.subr.mxu0 0.0
    %4199 = vmatpush1.msra.mxu0 0.0
    %4200 = vmatprep.subr.mxu0 0.0
    %4201 = vmatpush1.msra.mxu0 0.0
    %4202 = vmatprep.subr.mxu0 0.0
    %4203 = vmatpush1.msra.mxu0 0.0
    %4204 = vmatprep.subr.mxu0 0.0
    %4205 = vmatpush1.msra.mxu0 0.0
    %4206 = vmatprep.subr.mxu0 0.0
    %4207 = vmatpush1.msra.mxu0 0.0
    %4208 = vmatprep.subr.mxu0 0.0
    %4209 = vmatpush1.msra.mxu0 0.0
    %4210 = vmatprep.subr.mxu0 0.0
    %4211 = vmatpush1.msra.mxu0 0.0
    %4212 = vmatprep.subr.mxu0 0.0
    %4213 = vmatpush1.msra.mxu0 0.0
    %4214 = vmatprep.subr.mxu0 0.0
    %4215 = vmatpush1.msra.mxu0 0.0
    %4216 = vmatprep.subr.mxu0 0.0
    %4217 = vmatpush1.msra.mxu0 0.0
    %4218 = vmatprep.subr.mxu0 0.0
    %4219 = vmatpush1.msra.mxu0 0.0
    %4220 = vmatprep.subr.mxu0 0.0
    %4221 = vmatpush1.msra.mxu0 0.0
    %4222 = vmatprep.subr.mxu0 0.0
    %4223 = vmatpush1.msra.mxu0 0.0
    %4224 = vmatprep.subr.mxu0 0.0
    %4225 = vmatpush1.msra.mxu0 0.0
    %4226 = vmatprep.subr.mxu0 0.0
    %4227 = vmatpush1.msra.mxu0 0.0
    %4228 = vmatprep.subr.mxu0 0.0
    %4229 = vmatpush1.msra.mxu0 0.0
    %4230 = vmatprep.subr.mxu0 0.0
    %4231 = vmatpush1.msra.mxu0 0.0
    %4232 = vmatprep.subr.mxu0 0.0
    %4233 = vmatpush1.msra.mxu0 0.0
    %4234 = vmatprep.subr.mxu0 0.0
    %4235 = vmatpush1.msra.mxu0 0.0
    %4236 = vmatprep.subr.mxu0 0.0
    %4237 = vmatpush1.msra.mxu0 0.0
    %4238 = vmatprep.subr.mxu0 0.0
    %4239 = vmatpush1.msra.mxu0 0.0
    %4240 = vmatprep.subr.mxu0 0.0
    %4241 = vmatpush1.msra.mxu0 0.0
    %4242 = vmatprep.subr.mxu0 0.0
    %4243 = vmatpush1.msra.mxu0 0.0
    %4244 = vmatprep.subr.mxu0 0.0
    %4245 = vmatpush1.msra.mxu0 0.0
    %4246 = vmatprep.subr.mxu0 0.0
    %4247 = vmatpush1.msra.mxu0 0.0
    %4248 = vmatprep.subr.mxu0 0.0
    %4249 = vmatpush1.msra.mxu0 0.0
    %4250 = vmatprep.mubr.f32.mxu0 0.0
    %v4251 = vand.u32 %v4180, 4294901760
    %v4252 = vsub.f32 %v4180, %v4251
    %v4253 = vand.u32 %v4252, 4294901760
    %v4254 = vsub.f32 %v4252, %v4253
    %v4255 = vand.u32 %v4254, 4294901760
    %4256 = vmatmul.mubr.f32.gmra.mrb[0].mxu0 %v4255
    %v4257 = vpop.f32.mrb[0].mxu0
    %v4258 = vadd.f32 0.0, %v4257
    %v4259 = vpop.f32.mrb[0].mxu0
    %4260 = vdwg.mxu0
    %4261 = vmatprep.subr.mxu0 0.0
    %v4262 = vand.u32 %v31, 4294901760
    %v4263 = vsub.f32 %v31, %v4262
    %v4264 = vand.u32 %v4263, 4294901760
    %v4265 = vsub.f32 %v4263, %v4264
    %v4266 = vand.u32 %v4265, 4294901760
    %4267 = vmatpush1.msra.mxu0 %v4266
    %4268 = vmatprep.subr.mxu0 0.0
    %v4269 = vand.u32 %v32, 4294901760
    %v4270 = vsub.f32 %v32, %v4269
    %v4271 = vand.u32 %v4270, 4294901760
    %v4272 = vsub.f32 %v4270, %v4271
    %v4273 = vand.u32 %v4272, 4294901760
    %4274 = vmatpush1.msra.mxu0 %v4273
    %4275 = vmatprep.subr.mxu0 0.0
    %v4276 = vand.u32 %v33, 4294901760
    %v4277 = vsub.f32 %v33, %v4276
    %v4278 = vand.u32 %v4277, 4294901760
    %v4279 = vsub.f32 %v4277, %v4278
    %v4280 = vand.u32 %v4279, 4294901760
    %4281 = vmatpush1.msra.mxu0 %v4280
    %4282 = vmatprep.subr.mxu0 0.0
    %v4283 = vand.u32 %v34, 4294901760
    %v4284 = vsub.f32 %v34, %v4283
    %v4285 = vand.u32 %v4284, 4294901760
    %v4286 = vsub.f32 %v4284, %v4285
    %v4287 = vand.u32 %v4286, 4294901760
    %4288 = vmatpush1.msra.mxu0 %v4287
    %4289 = vmatprep.subr.mxu0 0.0
    %4290 = vmatpush1.msra.mxu0 0.0
    %4291 = vmatprep.subr.mxu0 0.0
    %4292 = vmatpush1.msra.mxu0 0.0
    %4293 = vmatprep.subr.mxu0 0.0
    %4294 = vmatpush1.msra.mxu0 0.0
    %4295 = vmatprep.subr.mxu0 0.0
    %4296 = vmatpush1.msra.mxu0 0.0
    %4297 = vmatprep.subr.mxu0 0.0
    %4298 = vmatpush1.msra.mxu0 0.0
    %4299 = vmatprep.subr.mxu0 0.0
    %4300 = vmatpush1.msra.mxu0 0.0
    %4301 = vmatprep.subr.mxu0 0.0
    %4302 = vmatpush1.msra.mxu0 0.0
    %4303 = vmatprep.subr.mxu0 0.0
    %4304 = vmatpush1.msra.mxu0 0.0
    %4305 = vmatprep.subr.mxu0 0.0
    %4306 = vmatpush1.msra.mxu0 0.0
    %4307 = vmatprep.subr.mxu0 0.0
    %4308 = vmatpush1.msra.mxu0 0.0
    %4309 = vmatprep.subr.mxu0 0.0
    %4310 = vmatpush1.msra.mxu0 0.0
    %4311 = vmatprep.subr.mxu0 0.0
    %4312 = vmatpush1.msra.mxu0 0.0
    %4313 = vmatprep.subr.mxu0 0.0
    %4314 = vmatpush1.msra.mxu0 0.0
    %4315 = vmatprep.subr.mxu0 0.0
    %4316 = vmatpush1.msra.mxu0 0.0
    %4317 = vmatprep.subr.mxu0 0.0
    %4318 = vmatpush1.msra.mxu0 0.0
    %4319 = vmatprep.subr.mxu0 0.0
    %4320 = vmatpush1.msra.mxu0 0.0
    %4321 = vmatprep.subr.mxu0 0.0
    %4322 = vmatpush1.msra.mxu0 0.0
    %4323 = vmatprep.subr.mxu0 0.0
    %4324 = vmatpush1.msra.mxu0 0.0
    %4325 = vmatprep.subr.mxu0 0.0
    %4326 = vmatpush1.msra.mxu0 0.0
    %4327 = vmatprep.subr.mxu0 0.0
    %4328 = vmatpush1.msra.mxu0 0.0
    %4329 = vmatprep.subr.mxu0 0.0
    %4330 = vmatpush1.msra.mxu0 0.0
    %4331 = vmatprep.subr.mxu0 0.0
    %4332 = vmatpush1.msra.mxu0 0.0
    %4333 = vmatprep.subr.mxu0 0.0
    %4334 = vmatpush1.msra.mxu0 0.0
    %4335 = vmatprep.subr.mxu0 0.0
    %4336 = vmatpush1.msra.mxu0 0.0
    %4337 = vmatprep.subr.mxu0 0.0
    %4338 = vmatpush1.msra.mxu0 0.0
    %4339 = vmatprep.subr.mxu0 0.0
    %4340 = vmatpush1.msra.mxu0 0.0
    %4341 = vmatprep.subr.mxu0 0.0
    %4342 = vmatpush1.msra.mxu0 0.0
    %4343 = vmatprep.subr.mxu0 0.0
    %4344 = vmatpush1.msra.mxu0 0.0
    %4345 = vmatprep.mubr.f32.mxu0 0.0
    %v4346 = vand.u32 %v4180, 4294901760
    %4347 = vmatmul.mubr.f32.gmra.mrb[0].mxu0 %v4346
    %v4348 = vpop.f32.mrb[0].mxu0
    %v4349 = vadd.f32 %v4258, %v4348
    %v4350 = vpop.f32.mrb[0].mxu0
    %4351 = vdwg.mxu0
    %4352 = vmatprep.subr.mxu0 0.0
    %v4353 = vand.u32 %v31, 4294901760
    %v4354 = vsub.f32 %v31, %v4353
    %4355 = vmatpush1.msra.mxu0 %v4354
    %4356 = vmatprep.subr.mxu0 0.0
    %v4357 = vand.u32 %v32, 4294901760
    %v4358 = vsub.f32 %v32, %v4357
    %4359 = vmatpush1.msra.mxu0 %v4358
    %4360 = vmatprep.subr.mxu0 0.0
    %v4361 = vand.u32 %v33, 4294901760
    %v4362 = vsub.f32 %v33, %v4361
    %4363 = vmatpush1.msra.mxu0 %v4362
    %4364 = vmatprep.subr.mxu0 0.0
    %v4365 = vand.u32 %v34, 4294901760
    %v4366 = vsub.f32 %v34, %v4365
    %4367 = vmatpush1.msra.mxu0 %v4366
    %4368 = vmatprep.subr.mxu0 0.0
    %4369 = vmatpush1.msra.mxu0 0.0
    %4370 = vmatprep.subr.mxu0 0.0
    %4371 = vmatpush1.msra.mxu0 0.0
    %4372 = vmatprep.subr.mxu0 0.0
    %4373 = vmatpush1.msra.mxu0 0.0
    %4374 = vmatprep.subr.mxu0 0.0
    %4375 = vmatpush1.msra.mxu0 0.0
    %4376 = vmatprep.subr.mxu0 0.0
    %4377 = vmatpush1.msra.mxu0 0.0
    %4378 = vmatprep.subr.mxu0 0.0
    %4379 = vmatpush1.msra.mxu0 0.0
    %4380 = vmatprep.subr.mxu0 0.0
    %4381 = vmatpush1.msra.mxu0 0.0
    %4382 = vmatprep.subr.mxu0 0.0
    %4383 = vmatpush1.msra.mxu0 0.0
    %4384 = vmatprep.subr.mxu0 0.0
    %4385 = vmatpush1.msra.mxu0 0.0
    %4386 = vmatprep.subr.mxu0 0.0
    %4387 = vmatpush1.msra.mxu0 0.0
    %4388 = vmatprep.subr.mxu0 0.0
    %4389 = vmatpush1.msra.mxu0 0.0
    %4390 = vmatprep.subr.mxu0 0.0
    %4391 = vmatpush1.msra.mxu0 0.0
    %4392 = vmatprep.subr.mxu0 0.0
    %4393 = vmatpush1.msra.mxu0 0.0
    %4394 = vmatprep.subr.mxu0 0.0
    %4395 = vmatpush1.msra.mxu0 0.0
    %4396 = vmatprep.subr.mxu0 0.0
    %4397 = vmatpush1.msra.mxu0 0.0
    %4398 = vmatprep.subr.mxu0 0.0
    %4399 = vmatpush1.msra.mxu0 0.0
    %4400 = vmatprep.subr.mxu0 0.0
    %4401 = vmatpush1.msra.mxu0 0.0
    %4402 = vmatprep.subr.mxu0 0.0
    %4403 = vmatpush1.msra.mxu0 0.0
    %4404 = vmatprep.subr.mxu0 0.0
    %4405 = vmatpush1.msra.mxu0 0.0
    %4406 = vmatprep.subr.mxu0 0.0
    %4407 = vmatpush1.msra.mxu0 0.0
    %4408 = vmatprep.subr.mxu0 0.0
    %4409 = vmatpush1.msra.mxu0 0.0
    %4410 = vmatprep.subr.mxu0 0.0
    %4411 = vmatpush1.msra.mxu0 0.0
    %4412 = vmatprep.subr.mxu0 0.0
    %4413 = vmatpush1.msra.mxu0 0.0
    %4414 = vmatprep.subr.mxu0 0.0
    %4415 = vmatpush1.msra.mxu0 0.0
    %4416 = vmatprep.subr.mxu0 0.0
    %4417 = vmatpush1.msra.mxu0 0.0
    %4418 = vmatprep.subr.mxu0 0.0
    %4419 = vmatpush1.msra.mxu0 0.0
    %4420 = vmatprep.subr.mxu0 0.0
    %4421 = vmatpush1.msra.mxu0 0.0
    %4422 = vmatprep.subr.mxu0 0.0
    %4423 = vmatpush1.msra.mxu0 0.0
    %4424 = vmatprep.mubr.f32.mxu0 0.0
    %v4425 = vand.u32 %v4180, 4294901760
    %v4426 = vsub.f32 %v4180, %v4425
    %4427 = vmatmul.mubr.f32.gmra.mrb[0].mxu0 %v4426
    %v4428 = vpop.f32.mrb[0].mxu0
    %v4429 = vadd.f32 %v4349, %v4428
    %v4430 = vpop.f32.mrb[0].mxu0
    %4431 = vdwg.mxu0
    %4432 = vmatprep.subr.mxu0 0.0
    %v4433 = vand.u32 %v31, 4294901760
    %4434 = vmatpush1.msra.mxu0 %v4433
    %4435 = vmatprep.subr.mxu0 0.0
    %v4436 = vand.u32 %v32, 4294901760
    %4437 = vmatpush1.msra.mxu0 %v4436
    %4438 = vmatprep.subr.mxu0 0.0
    %v4439 = vand.u32 %v33, 4294901760
    %4440 = vmatpush1.msra.mxu0 %v4439
    %4441 = vmatprep.subr.mxu0 0.0
    %v4442 = vand.u32 %v34, 4294901760
    %4443 = vmatpush1.msra.mxu0 %v4442
    %4444 = vmatprep.subr.mxu0 0.0
    %4445 = vmatpush1.msra.mxu0 0.0
    %4446 = vmatprep.subr.mxu0 0.0
    %4447 = vmatpush1.msra.mxu0 0.0
    %4448 = vmatprep.subr.mxu0 0.0
    %4449 = vmatpush1.msra.mxu0 0.0
    %4450 = vmatprep.subr.mxu0 0.0
    %4451 = vmatpush1.msra.mxu0 0.0
    %4452 = vmatprep.subr.mxu0 0.0
    %4453 = vmatpush1.msra.mxu0 0.0
    %4454 = vmatprep.subr.mxu0 0.0
    %4455 = vmatpush1.msra.mxu0 0.0
    %4456 = vmatprep.subr.mxu0 0.0
    %4457 = vmatpush1.msra.mxu0 0.0
    %4458 = vmatprep.subr.mxu0 0.0
    %4459 = vmatpush1.msra.mxu0 0.0
    %4460 = vmatprep.subr.mxu0 0.0
    %4461 = vmatpush1.msra.mxu0 0.0
    %4462 = vmatprep.subr.mxu0 0.0
    %4463 = vmatpush1.msra.mxu0 0.0
    %4464 = vmatprep.subr.mxu0 0.0
    %4465 = vmatpush1.msra.mxu0 0.0
    %4466 = vmatprep.subr.mxu0 0.0
    %4467 = vmatpush1.msra.mxu0 0.0
    %4468 = vmatprep.subr.mxu0 0.0
    %4469 = vmatpush1.msra.mxu0 0.0
    %4470 = vmatprep.subr.mxu0 0.0
    %4471 = vmatpush1.msra.mxu0 0.0
    %4472 = vmatprep.subr.mxu0 0.0
    %4473 = vmatpush1.msra.mxu0 0.0
    %4474 = vmatprep.subr.mxu0 0.0
    %4475 = vmatpush1.msra.mxu0 0.0
    %4476 = vmatprep.subr.mxu0 0.0
    %4477 = vmatpush1.msra.mxu0 0.0
    %4478 = vmatprep.subr.mxu0 0.0
    %4479 = vmatpush1.msra.mxu0 0.0
    %4480 = vmatprep.subr.mxu0 0.0
    %4481 = vmatpush1.msra.mxu0 0.0
    %4482 = vmatprep.subr.mxu0 0.0
    %4483 = vmatpush1.msra.mxu0 0.0
    %4484 = vmatprep.subr.mxu0 0.0
    %4485 = vmatpush1.msra.mxu0 0.0
    %4486 = vmatprep.subr.mxu0 0.0
    %4487 = vmatpush1.msra.mxu0 0.0
    %4488 = vmatprep.subr.mxu0 0.0
    %4489 = vmatpush1.msra.mxu0 0.0
    %4490 = vmatprep.subr.mxu0 0.0
    %4491 = vmatpush1.msra.mxu0 0.0
    %4492 = vmatprep.subr.mxu0 0.0
    %4493 = vmatpush1.msra.mxu0 0.0
    %4494 = vmatprep.subr.mxu0 0.0
    %4495 = vmatpush1.msra.mxu0 0.0
    %4496 = vmatprep.subr.mxu0 0.0
    %4497 = vmatpush1.msra.mxu0 0.0
    %4498 = vmatprep.subr.mxu0 0.0
    %4499 = vmatpush1.msra.mxu0 0.0
    %4500 = vmatprep.mubr.f32.mxu0 0.0
    %v4501 = vand.u32 %v4180, 4294901760
    %v4502 = vsub.f32 %v4180, %v4501
    %v4503 = vand.u32 %v4502, 4294901760
    %4504 = vmatmul.mubr.f32.gmra.mrb[0].mxu0 %v4503
    %v4505 = vpop.f32.mrb[0].mxu0
    %v4506 = vadd.f32 %v4429, %v4505
    %v4507 = vpop.f32.mrb[0].mxu0
    %4508 = vdwg.mxu0
    %4509 = vmatprep.subr.mxu0 0.0
    %v4510 = vand.u32 %v31, 4294901760
    %v4511 = vsub.f32 %v31, %v4510
    %v4512 = vand.u32 %v4511, 4294901760
    %4513 = vmatpush1.msra.mxu0 %v4512
    %4514 = vmatprep.subr.mxu0 0.0
    %v4515 = vand.u32 %v32, 4294901760
    %v4516 = vsub.f32 %v32, %v4515
    %v4517 = vand.u32 %v4516, 4294901760
    %4518 = vmatpush1.msra.mxu0 %v4517
    %4519 = vmatprep.subr.mxu0 0.0
    %v4520 = vand.u32 %v33, 4294901760
    %v4521 = vsub.f32 %v33, %v4520
    %v4522 = vand.u32 %v4521, 4294901760
    %4523 = vmatpush1.msra.mxu0 %v4522
    %4524 = vmatprep.subr.mxu0 0.0
    %v4525 = vand.u32 %v34, 4294901760
    %v4526 = vsub.f32 %v34, %v4525
    %v4527 = vand.u32 %v4526, 4294901760
    %4528 = vmatpush1.msra.mxu0 %v4527
    %4529 = vmatprep.subr.mxu0 0.0
    %4530 = vmatpush1.msra.mxu0 0.0
    %4531 = vmatprep.subr.mxu0 0.0
    %4532 = vmatpush1.msra.mxu0 0.0
    %4533 = vmatprep.subr.mxu0 0.0
    %4534 = vmatpush1.msra.mxu0 0.0
    %4535 = vmatprep.subr.mxu0 0.0
    %4536 = vmatpush1.msra.mxu0 0.0
    %4537 = vmatprep.subr.mxu0 0.0
    %4538 = vmatpush1.msra.mxu0 0.0
    %4539 = vmatprep.subr.mxu0 0.0
    %4540 = vmatpush1.msra.mxu0 0.0
    %4541 = vmatprep.subr.mxu0 0.0
    %4542 = vmatpush1.msra.mxu0 0.0
    %4543 = vmatprep.subr.mxu0 0.0
    %4544 = vmatpush1.msra.mxu0 0.0
    %4545 = vmatprep.subr.mxu0 0.0
    %4546 = vmatpush1.msra.mxu0 0.0
    %4547 = vmatprep.subr.mxu0 0.0
    %4548 = vmatpush1.msra.mxu0 0.0
    %4549 = vmatprep.subr.mxu0 0.0
    %4550 = vmatpush1.msra.mxu0 0.0
    %4551 = vmatprep.subr.mxu0 0.0
    %4552 = vmatpush1.msra.mxu0 0.0
    %4553 = vmatprep.subr.mxu0 0.0
    %4554 = vmatpush1.msra.mxu0 0.0
    %4555 = vmatprep.subr.mxu0 0.0
    %4556 = vmatpush1.msra.mxu0 0.0
    %4557 = vmatprep.subr.mxu0 0.0
    %4558 = vmatpush1.msra.mxu0 0.0
    %4559 = vmatprep.subr.mxu0 0.0
    %4560 = vmatpush1.msra.mxu0 0.0
    %4561 = vmatprep.subr.mxu0 0.0
    %4562 = vmatpush1.msra.mxu0 0.0
    %4563 = vmatprep.subr.mxu0 0.0
    %4564 = vmatpush1.msra.mxu0 0.0
    %4565 = vmatprep.subr.mxu0 0.0
    %4566 = vmatpush1.msra.mxu0 0.0
    %4567 = vmatprep.subr.mxu0 0.0
    %4568 = vmatpush1.msra.mxu0 0.0
    %4569 = vmatprep.subr.mxu0 0.0
    %4570 = vmatpush1.msra.mxu0 0.0
    %4571 = vmatprep.subr.mxu0 0.0
    %4572 = vmatpush1.msra.mxu0 0.0
    %4573 = vmatprep.subr.mxu0 0.0
    %4574 = vmatpush1.msra.mxu0 0.0
    %4575 = vmatprep.subr.mxu0 0.0
    %4576 = vmatpush1.msra.mxu0 0.0
    %4577 = vmatprep.subr.mxu0 0.0
    %4578 = vmatpush1.msra.mxu0 0.0
    %4579 = vmatprep.subr.mxu0 0.0
    %4580 = vmatpush1.msra.mxu0 0.0
    %4581 = vmatprep.subr.mxu0 0.0
    %4582 = vmatpush1.msra.mxu0 0.0
    %4583 = vmatprep.subr.mxu0 0.0
    %4584 = vmatpush1.msra.mxu0 0.0
    %4585 = vmatprep.mubr.f32.mxu0 0.0
    %v4586 = vand.u32 %v4180, 4294901760
    %4587 = vmatmul.mubr.f32.gmra.mrb[0].mxu0 %v4586
    %v4588 = vpop.f32.mrb[0].mxu0
    %v4589 = vadd.f32 %v4506, %v4588
    %v4590 = vpop.f32.mrb[0].mxu0
    %4591 = vdwg.mxu0
    %4592 = vmatprep.subr.mxu0 0.0
    %v4593 = vand.u32 %v31, 4294901760
    %4594 = vmatpush1.msra.mxu0 %v4593
    %4595 = vmatprep.subr.mxu0 0.0
    %v4596 = vand.u32 %v32, 4294901760
    %4597 = vmatpush1.msra.mxu0 %v4596
    %4598 = vmatprep.subr.mxu0 0.0
    %v4599 = vand.u32 %v33, 4294901760
    %4600 = vmatpush1.msra.mxu0 %v4599
    %4601 = vmatprep.subr.mxu0 0.0
    %v4602 = vand.u32 %v34, 4294901760
    %4603 = vmatpush1.msra.mxu0 %v4602
    %4604 = vmatprep.subr.mxu0 0.0
    %4605 = vmatpush1.msra.mxu0 0.0
    %4606 = vmatprep.subr.mxu0 0.0
    %4607 = vmatpush1.msra.mxu0 0.0
    %4608 = vmatprep.subr.mxu0 0.0
    %4609 = vmatpush1.msra.mxu0 0.0
    %4610 = vmatprep.subr.mxu0 0.0
    %4611 = vmatpush1.msra.mxu0 0.0
    %4612 = vmatprep.subr.mxu0 0.0
    %4613 = vmatpush1.msra.mxu0 0.0
    %4614 = vmatprep.subr.mxu0 0.0
    %4615 = vmatpush1.msra.mxu0 0.0
    %4616 = vmatprep.subr.mxu0 0.0
    %4617 = vmatpush1.msra.mxu0 0.0
    %4618 = vmatprep.subr.mxu0 0.0
    %4619 = vmatpush1.msra.mxu0 0.0
    %4620 = vmatprep.subr.mxu0 0.0
    %4621 = vmatpush1.msra.mxu0 0.0
    %4622 = vmatprep.subr.mxu0 0.0
    %4623 = vmatpush1.msra.mxu0 0.0
    %4624 = vmatprep.subr.mxu0 0.0
    %4625 = vmatpush1.msra.mxu0 0.0
    %4626 = vmatprep.subr.mxu0 0.0
    %4627 = vmatpush1.msra.mxu0 0.0
    %4628 = vmatprep.subr.mxu0 0.0
    %4629 = vmatpush1.msra.mxu0 0.0
    %4630 = vmatprep.subr.mxu0 0.0
    %4631 = vmatpush1.msra.mxu0 0.0
    %4632 = vmatprep.subr.mxu0 0.0
    %4633 = vmatpush1.msra.mxu0 0.0
    %4634 = vmatprep.subr.mxu0 0.0
    %4635 = vmatpush1.msra.mxu0 0.0
    %4636 = vmatprep.subr.mxu0 0.0
    %4637 = vmatpush1.msra.mxu0 0.0
    %4638 = vmatprep.subr.mxu0 0.0
    %4639 = vmatpush1.msra.mxu0 0.0
    %4640 = vmatprep.subr.mxu0 0.0
    %4641 = vmatpush1.msra.mxu0 0.0
    %4642 = vmatprep.subr.mxu0 0.0
    %4643 = vmatpush1.msra.mxu0 0.0
    %4644 = vmatprep.subr.mxu0 0.0
    %4645 = vmatpush1.msra.mxu0 0.0
    %4646 = vmatprep.subr.mxu0 0.0
    %4647 = vmatpush1.msra.mxu0 0.0
    %4648 = vmatprep.subr.mxu0 0.0
    %4649 = vmatpush1.msra.mxu0 0.0
    %4650 = vmatprep.subr.mxu0 0.0
    %4651 = vmatpush1.msra.mxu0 0.0
    %4652 = vmatprep.subr.mxu0 0.0
    %4653 = vmatpush1.msra.mxu0 0.0
    %4654 = vmatprep.subr.mxu0 0.0
    %4655 = vmatpush1.msra.mxu0 0.0
    %4656 = vmatprep.subr.mxu0 0.0
    %4657 = vmatpush1.msra.mxu0 0.0
    %4658 = vmatprep.subr.mxu0 0.0
    %4659 = vmatpush1.msra.mxu0 0.0
    %4660 = vmatprep.mubr.f32.mxu0 0.0
    %v4661 = vand.u32 %v4180, 4294901760
    %4662 = vmatmul.mubr.f32.gmra.mrb[0].mxu0 %v4661
    %v4663 = vpop.f32.mrb[0].mxu0
    %v4664 = vadd.f32 %v4589, %v4663
    %v4665 = vpop.f32.mrb[0].mxu0
    %4666 = vdwg.mxu0
    %v4668 = vrot.slane %v4664, 4
    %v4670 = vadd.f32 %v1570, %v4668
    %v4671 = vxor.u32 %v4670, 2147483648
    %v4672 = vmul.f32 %v4671, 1.442695
    %v4673 = vpow.pop %v4672
    %v4674 = vadd.f32 %v4673, 1.0
    %v4675 = vrcp.pop %v4674
    %v4676 = vmul.f32 1.0, %v4675
    %v4677 = vmul.f32 %v4676, 2.0
    %v4678 = vsub.f32 %v4677, 1.0
    %v4680 = vrot.slane %v4170, 4
    %v4682 = vmul.f32 %v4676, %v4680
    %4684 = vrot.lane.b32.xlu0 %v4678, 64
    %v4685 = vpop.permute.xlu0 %4684
    %v4687 = vmul.f32 %v4676, %v4685
    %4689 = vrot.lane.b32.xlu0 %v4687, 32
    %v4690 = vpop.permute.xlu0 %4689
    %v4692 = vadd.f32 %v4682, %v4690
    %v4693 = vtanh.pop %v4692
    %4695 = vrot.lane.b32.xlu0 %v4693, 64
    %v4696 = vpop.permute.xlu0 %4695
    %v4698 = vmul.f32 %v4676, %v4696
    %v4700 = vrot.slane %v4698, 4
    %4701 = vrot.lane.b32.xlu0 %v4700, 32
    %v4702 = vpop.permute.xlu0 %4701
    %v4703 = vsel %vm952, %v4702, 0
    %4705 = vmatprep.subr.mxu0 0.0
    %v4706 = vand.u32 %v31, 4294901760
    %4707 = vmatpush1.msra.mxu0 %v4706
    %4708 = vmatprep.subr.mxu0 0.0
    %v4709 = vand.u32 %v32, 4294901760
    %4710 = vmatpush1.msra.mxu0 %v4709
    %4711 = vmatprep.subr.mxu0 0.0
    %v4712 = vand.u32 %v33, 4294901760
    %4713 = vmatpush1.msra.mxu0 %v4712
    %4714 = vmatprep.subr.mxu0 0.0
    %v4715 = vand.u32 %v34, 4294901760
    %4716 = vmatpush1.msra.mxu0 %v4715
    %4717 = vmatprep.subr.mxu0 0.0
    %4718 = vmatpush1.msra.mxu0 0.0
    %4719 = vmatprep.subr.mxu0 0.0
    %4720 = vmatpush1.msra.mxu0 0.0
    %4721 = vmatprep.subr.mxu0 0.0
    %4722 = vmatpush1.msra.mxu0 0.0
    %4723 = vmatprep.subr.mxu0 0.0
    %4724 = vmatpush1.msra.mxu0 0.0
    %4725 = vmatprep.subr.mxu0 0.0
    %4726 = vmatpush1.msra.mxu0 0.0
    %4727 = vmatprep.subr.mxu0 0.0
    %4728 = vmatpush1.msra.mxu0 0.0
    %4729 = vmatprep.subr.mxu0 0.0
    %4730 = vmatpush1.msra.mxu0 0.0
    %4731 = vmatprep.subr.mxu0 0.0
    %4732 = vmatpush1.msra.mxu0 0.0
    %4733 = vmatprep.subr.mxu0 0.0
    %4734 = vmatpush1.msra.mxu0 0.0
    %4735 = vmatprep.subr.mxu0 0.0
    %4736 = vmatpush1.msra.mxu0 0.0
    %4737 = vmatprep.subr.mxu0 0.0
    %4738 = vmatpush1.msra.mxu0 0.0
    %4739 = vmatprep.subr.mxu0 0.0
    %4740 = vmatpush1.msra.mxu0 0.0
    %4741 = vmatprep.subr.mxu0 0.0
    %4742 = vmatpush1.msra.mxu0 0.0
    %4743 = vmatprep.subr.mxu0 0.0
    %4744 = vmatpush1.msra.mxu0 0.0
    %4745 = vmatprep.subr.mxu0 0.0
    %4746 = vmatpush1.msra.mxu0 0.0
    %4747 = vmatprep.subr.mxu0 0.0
    %4748 = vmatpush1.msra.mxu0 0.0
    %4749 = vmatprep.subr.mxu0 0.0
    %4750 = vmatpush1.msra.mxu0 0.0
    %4751 = vmatprep.subr.mxu0 0.0
    %4752 = vmatpush1.msra.mxu0 0.0
    %4753 = vmatprep.subr.mxu0 0.0
    %4754 = vmatpush1.msra.mxu0 0.0
    %4755 = vmatprep.subr.mxu0 0.0
    %4756 = vmatpush1.msra.mxu0 0.0
    %4757 = vmatprep.subr.mxu0 0.0
    %4758 = vmatpush1.msra.mxu0 0.0
    %4759 = vmatprep.subr.mxu0 0.0
    %4760 = vmatpush1.msra.mxu0 0.0
    %4761 = vmatprep.subr.mxu0 0.0
    %4762 = vmatpush1.msra.mxu0 0.0
    %4763 = vmatprep.subr.mxu0 0.0
    %4764 = vmatpush1.msra.mxu0 0.0
    %4765 = vmatprep.subr.mxu0 0.0
    %4766 = vmatpush1.msra.mxu0 0.0
    %4767 = vmatprep.subr.mxu0 0.0
    %4768 = vmatpush1.msra.mxu0 0.0
    %4769 = vmatprep.subr.mxu0 0.0
    %4770 = vmatpush1.msra.mxu0 0.0
    %4771 = vmatprep.subr.mxu0 0.0
    %4772 = vmatpush1.msra.mxu0 0.0
    %4773 = vmatprep.mubr.f32.mxu0 0.0
    %v4774 = vand.u32 %v4703, 4294901760
    %v4775 = vsub.f32 %v4703, %v4774
    %v4776 = vand.u32 %v4775, 4294901760
    %v4777 = vsub.f32 %v4775, %v4776
    %v4778 = vand.u32 %v4777, 4294901760
    %4779 = vmatmul.mubr.f32.gmra.mrb[0].mxu0 %v4778
    %v4780 = vpop.f32.mrb[0].mxu0
    %v4781 = vadd.f32 0.0, %v4780
    %v4782 = vpop.f32.mrb[0].mxu0
    %4783 = vdwg.mxu0
    %4784 = vmatprep.subr.mxu0 0.0
    %v4785 = vand.u32 %v31, 4294901760
    %v4786 = vsub.f32 %v31, %v4785
    %v4787 = vand.u32 %v4786, 4294901760
    %v4788 = vsub.f32 %v4786, %v4787
    %v4789 = vand.u32 %v4788, 4294901760
    %4790 = vmatpush1.msra.mxu0 %v4789
    %4791 = vmatprep.subr.mxu0 0.0
    %v4792 = vand.u32 %v32, 4294901760
    %v4793 = vsub.f32 %v32, %v4792
    %v4794 = vand.u32 %v4793, 4294901760
    %v4795 = vsub.f32 %v4793, %v4794
    %v4796 = vand.u32 %v4795, 4294901760
    %4797 = vmatpush1.msra.mxu0 %v4796
    %4798 = vmatprep.subr.mxu0 0.0
    %v4799 = vand.u32 %v33, 4294901760
    %v4800 = vsub.f32 %v33, %v4799
    %v4801 = vand.u32 %v4800, 4294901760
    %v4802 = vsub.f32 %v4800, %v4801
    %v4803 = vand.u32 %v4802, 4294901760
    %4804 = vmatpush1.msra.mxu0 %v4803
    %4805 = vmatprep.subr.mxu0 0.0
    %v4806 = vand.u32 %v34, 4294901760
    %v4807 = vsub.f32 %v34, %v4806
    %v4808 = vand.u32 %v4807, 4294901760
    %v4809 = vsub.f32 %v4807, %v4808
    %v4810 = vand.u32 %v4809, 4294901760
    %4811 = vmatpush1.msra.mxu0 %v4810
    %4812 = vmatprep.subr.mxu0 0.0
    %4813 = vmatpush1.msra.mxu0 0.0
    %4814 = vmatprep.subr.mxu0 0.0
    %4815 = vmatpush1.msra.mxu0 0.0
    %4816 = vmatprep.subr.mxu0 0.0
    %4817 = vmatpush1.msra.mxu0 0.0
    %4818 = vmatprep.subr.mxu0 0.0
    %4819 = vmatpush1.msra.mxu0 0.0
    %4820 = vmatprep.subr.mxu0 0.0
    %4821 = vmatpush1.msra.mxu0 0.0
    %4822 = vmatprep.subr.mxu0 0.0
    %4823 = vmatpush1.msra.mxu0 0.0
    %4824 = vmatprep.subr.mxu0 0.0
    %4825 = vmatpush1.msra.mxu0 0.0
    %4826 = vmatprep.subr.mxu0 0.0
    %4827 = vmatpush1.msra.mxu0 0.0
    %4828 = vmatprep.subr.mxu0 0.0
    %4829 = vmatpush1.msra.mxu0 0.0
    %4830 = vmatprep.subr.mxu0 0.0
    %4831 = vmatpush1.msra.mxu0 0.0
    %4832 = vmatprep.subr.mxu0 0.0
    %4833 = vmatpush1.msra.mxu0 0.0
    %4834 = vmatprep.subr.mxu0 0.0
    %4835 = vmatpush1.msra.mxu0 0.0
    %4836 = vmatprep.subr.mxu0 0.0
    %4837 = vmatpush1.msra.mxu0 0.0
    %4838 = vmatprep.subr.mxu0 0.0
    %4839 = vmatpush1.msra.mxu0 0.0
    %4840 = vmatprep.subr.mxu0 0.0
    %4841 = vmatpush1.msra.mxu0 0.0
    %4842 = vmatprep.subr.mxu0 0.0
    %4843 = vmatpush1.msra.mxu0 0.0
    %4844 = vmatprep.subr.mxu0 0.0
    %4845 = vmatpush1.msra.mxu0 0.0
    %4846 = vmatprep.subr.mxu0 0.0
    %4847 = vmatpush1.msra.mxu0 0.0
    %4848 = vmatprep.subr.mxu0 0.0
    %4849 = vmatpush1.msra.mxu0 0.0
    %4850 = vmatprep.subr.mxu0 0.0
    %4851 = vmatpush1.msra.mxu0 0.0
    %4852 = vmatprep.subr.mxu0 0.0
    %4853 = vmatpush1.msra.mxu0 0.0
    %4854 = vmatprep.subr.mxu0 0.0
    %4855 = vmatpush1.msra.mxu0 0.0
    %4856 = vmatprep.subr.mxu0 0.0
    %4857 = vmatpush1.msra.mxu0 0.0
    %4858 = vmatprep.subr.mxu0 0.0
    %4859 = vmatpush1.msra.mxu0 0.0
    %4860 = vmatprep.subr.mxu0 0.0
    %4861 = vmatpush1.msra.mxu0 0.0
    %4862 = vmatprep.subr.mxu0 0.0
    %4863 = vmatpush1.msra.mxu0 0.0
    %4864 = vmatprep.subr.mxu0 0.0
    %4865 = vmatpush1.msra.mxu0 0.0
    %4866 = vmatprep.subr.mxu0 0.0
    %4867 = vmatpush1.msra.mxu0 0.0
    %4868 = vmatprep.mubr.f32.mxu0 0.0
    %v4869 = vand.u32 %v4703, 4294901760
    %4870 = vmatmul.mubr.f32.gmra.mrb[0].mxu0 %v4869
    %v4871 = vpop.f32.mrb[0].mxu0
    %v4872 = vadd.f32 %v4781, %v4871
    %v4873 = vpop.f32.mrb[0].mxu0
    %4874 = vdwg.mxu0
    %4875 = vmatprep.subr.mxu0 0.0
    %v4876 = vand.u32 %v31, 4294901760
    %v4877 = vsub.f32 %v31, %v4876
    %4878 = vmatpush1.msra.mxu0 %v4877
    %4879 = vmatprep.subr.mxu0 0.0
    %v4880 = vand.u32 %v32, 4294901760
    %v4881 = vsub.f32 %v32, %v4880
    %4882 = vmatpush1.msra.mxu0 %v4881
    %4883 = vmatprep.subr.mxu0 0.0
    %v4884 = vand.u32 %v33, 4294901760
    %v4885 = vsub.f32 %v33, %v4884
    %4886 = vmatpush1.msra.mxu0 %v4885
    %4887 = vmatprep.subr.mxu0 0.0
    %v4888 = vand.u32 %v34, 4294901760
    %v4889 = vsub.f32 %v34, %v4888
    %4890 = vmatpush1.msra.mxu0 %v4889
    %4891 = vmatprep.subr.mxu0 0.0
    %4892 = vmatpush1.msra.mxu0 0.0
    %4893 = vmatprep.subr.mxu0 0.0
    %4894 = vmatpush1.msra.mxu0 0.0
    %4895 = vmatprep.subr.mxu0 0.0
    %4896 = vmatpush1.msra.mxu0 0.0
    %4897 = vmatprep.subr.mxu0 0.0
    %4898 = vmatpush1.msra.mxu0 0.0
    %4899 = vmatprep.subr.mxu0 0.0
    %4900 = vmatpush1.msra.mxu0 0.0
    %4901 = vmatprep.subr.mxu0 0.0
    %4902 = vmatpush1.msra.mxu0 0.0
    %4903 = vmatprep.subr.mxu0 0.0
    %4904 = vmatpush1.msra.mxu0 0.0
    %4905 = vmatprep.subr.mxu0 0.0
    %4906 = vmatpush1.msra.mxu0 0.0
    %4907 = vmatprep.subr.mxu0 0.0
    %4908 = vmatpush1.msra.mxu0 0.0
    %4909 = vmatprep.subr.mxu0 0.0
    %4910 = vmatpush1.msra.mxu0 0.0
    %4911 = vmatprep.subr.mxu0 0.0
    %4912 = vmatpush1.msra.mxu0 0.0
    %4913 = vmatprep.subr.mxu0 0.0
    %4914 = vmatpush1.msra.mxu0 0.0
    %4915 = vmatprep.subr.mxu0 0.0
    %4916 = vmatpush1.msra.mxu0 0.0
    %4917 = vmatprep.subr.mxu0 0.0
    %4918 = vmatpush1.msra.mxu0 0.0
    %4919 = vmatprep.subr.mxu0 0.0
    %4920 = vmatpush1.msra.mxu0 0.0
    %4921 = vmatprep.subr.mxu0 0.0
    %4922 = vmatpush1.msra.mxu0 0.0
    %4923 = vmatprep.subr.mxu0 0.0
    %4924 = vmatpush1.msra.mxu0 0.0
    %4925 = vmatprep.subr.mxu0 0.0
    %4926 = vmatpush1.msra.mxu0 0.0
    %4927 = vmatprep.subr.mxu0 0.0
    %4928 = vmatpush1.msra.mxu0 0.0
    %4929 = vmatprep.subr.mxu0 0.0
    %4930 = vmatpush1.msra.mxu0 0.0
    %4931 = vmatprep.subr.mxu0 0.0
    %4932 = vmatpush1.msra.mxu0 0.0
    %4933 = vmatprep.subr.mxu0 0.0
    %4934 = vmatpush1.msra.mxu0 0.0
    %4935 = vmatprep.subr.mxu0 0.0
    %4936 = vmatpush1.msra.mxu0 0.0
    %4937 = vmatprep.subr.mxu0 0.0
    %4938 = vmatpush1.msra.mxu0 0.0
    %4939 = vmatprep.subr.mxu0 0.0
    %4940 = vmatpush1.msra.mxu0 0.0
    %4941 = vmatprep.subr.mxu0 0.0
    %4942 = vmatpush1.msra.mxu0 0.0
    %4943 = vmatprep.subr.mxu0 0.0
    %4944 = vmatpush1.msra.mxu0 0.0
    %4945 = vmatprep.subr.mxu0 0.0
    %4946 = vmatpush1.msra.mxu0 0.0
    %4947 = vmatprep.mubr.f32.mxu0 0.0
    %v4948 = vand.u32 %v4703, 4294901760
    %v4949 = vsub.f32 %v4703, %v4948
    %4950 = vmatmul.mubr.f32.gmra.mrb[0].mxu0 %v4949
    %v4951 = vpop.f32.mrb[0].mxu0
    %v4952 = vadd.f32 %v4872, %v4951
    %v4953 = vpop.f32.mrb[0].mxu0
    %4954 = vdwg.mxu0
    %4955 = vmatprep.subr.mxu0 0.0
    %v4956 = vand.u32 %v31, 4294901760
    %4957 = vmatpush1.msra.mxu0 %v4956
    %4958 = vmatprep.subr.mxu0 0.0
    %v4959 = vand.u32 %v32, 4294901760
    %4960 = vmatpush1.msra.mxu0 %v4959
    %4961 = vmatprep.subr.mxu0 0.0
    %v4962 = vand.u32 %v33, 4294901760
    %4963 = vmatpush1.msra.mxu0 %v4962
    %4964 = vmatprep.subr.mxu0 0.0
    %v4965 = vand.u32 %v34, 4294901760
    %4966 = vmatpush1.msra.mxu0 %v4965
    %4967 = vmatprep.subr.mxu0 0.0
    %4968 = vmatpush1.msra.mxu0 0.0
    %4969 = vmatprep.subr.mxu0 0.0
    %4970 = vmatpush1.msra.mxu0 0.0
    %4971 = vmatprep.subr.mxu0 0.0
    %4972 = vmatpush1.msra.mxu0 0.0
    %4973 = vmatprep.subr.mxu0 0.0
    %4974 = vmatpush1.msra.mxu0 0.0
    %4975 = vmatprep.subr.mxu0 0.0
    %4976 = vmatpush1.msra.mxu0 0.0
    %4977 = vmatprep.subr.mxu0 0.0
    %4978 = vmatpush1.msra.mxu0 0.0
    %4979 = vmatprep.subr.mxu0 0.0
    %4980 = vmatpush1.msra.mxu0 0.0
    %4981 = vmatprep.subr.mxu0 0.0
    %4982 = vmatpush1.msra.mxu0 0.0
    %4983 = vmatprep.subr.mxu0 0.0
    %4984 = vmatpush1.msra.mxu0 0.0
    %4985 = vmatprep.subr.mxu0 0.0
    %4986 = vmatpush1.msra.mxu0 0.0
    %4987 = vmatprep.subr.mxu0 0.0
    %4988 = vmatpush1.msra.mxu0 0.0
    %4989 = vmatprep.subr.mxu0 0.0
    %4990 = vmatpush1.msra.mxu0 0.0
    %4991 = vmatprep.subr.mxu0 0.0
    %4992 = vmatpush1.msra.mxu0 0.0
    %4993 = vmatprep.subr.mxu0 0.0
    %4994 = vmatpush1.msra.mxu0 0.0
    %4995 = vmatprep.subr.mxu0 0.0
    %4996 = vmatpush1.msra.mxu0 0.0
    %4997 = vmatprep.subr.mxu0 0.0
    %4998 = vmatpush1.msra.mxu0 0.0
    %4999 = vmatprep.subr.mxu0 0.0
    %5000 = vmatpush1.msra.mxu0 0.0
    %5001 = vmatprep.subr.mxu0 0.0
    %5002 = vmatpush1.msra.mxu0 0.0
    %5003 = vmatprep.subr.mxu0 0.0
    %5004 = vmatpush1.msra.mxu0 0.0
    %5005 = vmatprep.subr.mxu0 0.0
    %5006 = vmatpush1.msra.mxu0 0.0
    %5007 = vmatprep.subr.mxu0 0.0
    %5008 = vmatpush1.msra.mxu0 0.0
    %5009 = vmatprep.subr.mxu0 0.0
    %5010 = vmatpush1.msra.mxu0 0.0
    %5011 = vmatprep.subr.mxu0 0.0
    %5012 = vmatpush1.msra.mxu0 0.0
    %5013 = vmatprep.subr.mxu0 0.0
    %5014 = vmatpush1.msra.mxu0 0.0
    %5015 = vmatprep.subr.mxu0 0.0
    %5016 = vmatpush1.msra.mxu0 0.0
    %5017 = vmatprep.subr.mxu0 0.0
    %5018 = vmatpush1.msra.mxu0 0.0
    %5019 = vmatprep.subr.mxu0 0.0
    %5020 = vmatpush1.msra.mxu0 0.0
    %5021 = vmatprep.subr.mxu0 0.0
    %5022 = vmatpush1.msra.mxu0 0.0
    %5023 = vmatprep.mubr.f32.mxu0 0.0
    %v5024 = vand.u32 %v4703, 4294901760
    %v5025 = vsub.f32 %v4703, %v5024
    %v5026 = vand.u32 %v5025, 4294901760
    %5027 = vmatmul.mubr.f32.gmra.mrb[0].mxu0 %v5026
    %v5028 = vpop.f32.mrb[0].mxu0
    %v5029 = vadd.f32 %v4952, %v5028
    %v5030 = vpop.f32.mrb[0].mxu0
    %5031 = vdwg.mxu0
    %5032 = vmatprep.subr.mxu0 0.0
    %v5033 = vand.u32 %v31, 4294901760
    %v5034 = vsub.f32 %v31, %v5033
    %v5035 = vand.u32 %v5034, 4294901760
    %5036 = vmatpush1.msra.mxu0 %v5035
    %5037 = vmatprep.subr.mxu0 0.0
    %v5038 = vand.u32 %v32, 4294901760
    %v5039 = vsub.f32 %v32, %v5038
    %v5040 = vand.u32 %v5039, 4294901760
    %5041 = vmatpush1.msra.mxu0 %v5040
    %5042 = vmatprep.subr.mxu0 0.0
    %v5043 = vand.u32 %v33, 4294901760
    %v5044 = vsub.f32 %v33, %v5043
    %v5045 = vand.u32 %v5044, 4294901760
    %5046 = vmatpush1.msra.mxu0 %v5045
    %5047 = vmatprep.subr.mxu0 0.0
    %v5048 = vand.u32 %v34, 4294901760
    %v5049 = vsub.f32 %v34, %v5048
    %v5050 = vand.u32 %v5049, 4294901760
    %5051 = vmatpush1.msra.mxu0 %v5050
    %5052 = vmatprep.subr.mxu0 0.0
    %5053 = vmatpush1.msra.mxu0 0.0
    %5054 = vmatprep.subr.mxu0 0.0
    %5055 = vmatpush1.msra.mxu0 0.0
    %5056 = vmatprep.subr.mxu0 0.0
    %5057 = vmatpush1.msra.mxu0 0.0
    %5058 = vmatprep.subr.mxu0 0.0
    %5059 = vmatpush1.msra.mxu0 0.0
    %5060 = vmatprep.subr.mxu0 0.0
    %5061 = vmatpush1.msra.mxu0 0.0
    %5062 = vmatprep.subr.mxu0 0.0
    %5063 = vmatpush1.msra.mxu0 0.0
    %5064 = vmatprep.subr.mxu0 0.0
    %5065 = vmatpush1.msra.mxu0 0.0
    %5066 = vmatprep.subr.mxu0 0.0
    %5067 = vmatpush1.msra.mxu0 0.0
    %5068 = vmatprep.subr.mxu0 0.0
    %5069 = vmatpush1.msra.mxu0 0.0
    %5070 = vmatprep.subr.mxu0 0.0
    %5071 = vmatpush1.msra.mxu0 0.0
    %5072 = vmatprep.subr.mxu0 0.0
    %5073 = vmatpush1.msra.mxu0 0.0
    %5074 = vmatprep.subr.mxu0 0.0
    %5075 = vmatpush1.msra.mxu0 0.0
    %5076 = vmatprep.subr.mxu0 0.0
    %5077 = vmatpush1.msra.mxu0 0.0
    %5078 = vmatprep.subr.mxu0 0.0
    %5079 = vmatpush1.msra.mxu0 0.0
    %5080 = vmatprep.subr.mxu0 0.0
    %5081 = vmatpush1.msra.mxu0 0.0
    %5082 = vmatprep.subr.mxu0 0.0
    %5083 = vmatpush1.msra.mxu0 0.0
    %5084 = vmatprep.subr.mxu0 0.0
    %5085 = vmatpush1.msra.mxu0 0.0
    %5086 = vmatprep.subr.mxu0 0.0
    %5087 = vmatpush1.msra.mxu0 0.0
    %5088 = vmatprep.subr.mxu0 0.0
    %5089 = vmatpush1.msra.mxu0 0.0
    %5090 = vmatprep.subr.mxu0 0.0
    %5091 = vmatpush1.msra.mxu0 0.0
    %5092 = vmatprep.subr.mxu0 0.0
    %5093 = vmatpush1.msra.mxu0 0.0
    %5094 = vmatprep.subr.mxu0 0.0
    %5095 = vmatpush1.msra.mxu0 0.0
    %5096 = vmatprep.subr.mxu0 0.0
    %5097 = vmatpush1.msra.mxu0 0.0
    %5098 = vmatprep.subr.mxu0 0.0
    %5099 = vmatpush1.msra.mxu0 0.0
    %5100 = vmatprep.subr.mxu0 0.0
    %5101 = vmatpush1.msra.mxu0 0.0
    %5102 = vmatprep.subr.mxu0 0.0
    %5103 = vmatpush1.msra.mxu0 0.0
    %5104 = vmatprep.subr.mxu0 0.0
    %5105 = vmatpush1.msra.mxu0 0.0
    %5106 = vmatprep.subr.mxu0 0.0
    %5107 = vmatpush1.msra.mxu0 0.0
    %5108 = vmatprep.mubr.f32.mxu0 0.0
    %v5109 = vand.u32 %v4703, 4294901760
    %5110 = vmatmul.mubr.f32.gmra.mrb[0].mxu0 %v5109
    %v5111 = vpop.f32.mrb[0].mxu0
    %v5112 = vadd.f32 %v5029, %v5111
    %v5113 = vpop.f32.mrb[0].mxu0
    %5114 = vdwg.mxu0
    %5115 = vmatprep.subr.mxu0 0.0
    %v5116 = vand.u32 %v31, 4294901760
    %5117 = vmatpush1.msra.mxu0 %v5116
    %5118 = vmatprep.subr.mxu0 0.0
    %v5119 = vand.u32 %v32, 4294901760
    %5120 = vmatpush1.msra.mxu0 %v5119
    %5121 = vmatprep.subr.mxu0 0.0
    %v5122 = vand.u32 %v33, 4294901760
    %5123 = vmatpush1.msra.mxu0 %v5122
    %5124 = vmatprep.subr.mxu0 0.0
    %v5125 = vand.u32 %v34, 4294901760
    %5126 = vmatpush1.msra.mxu0 %v5125
    %5127 = vmatprep.subr.mxu0 0.0
    %5128 = vmatpush1.msra.mxu0 0.0
    %5129 = vmatprep.subr.mxu0 0.0
    %5130 = vmatpush1.msra.mxu0 0.0
    %5131 = vmatprep.subr.mxu0 0.0
    %5132 = vmatpush1.msra.mxu0 0.0
    %5133 = vmatprep.subr.mxu0 0.0
    %5134 = vmatpush1.msra.mxu0 0.0
    %5135 = vmatprep.subr.mxu0 0.0
    %5136 = vmatpush1.msra.mxu0 0.0
    %5137 = vmatprep.subr.mxu0 0.0
    %5138 = vmatpush1.msra.mxu0 0.0
    %5139 = vmatprep.subr.mxu0 0.0
    %5140 = vmatpush1.msra.mxu0 0.0
    %5141 = vmatprep.subr.mxu0 0.0
    %5142 = vmatpush1.msra.mxu0 0.0
    %5143 = vmatprep.subr.mxu0 0.0
    %5144 = vmatpush1.msra.mxu0 0.0
    %5145 = vmatprep.subr.mxu0 0.0
    %5146 = vmatpush1.msra.mxu0 0.0
    %5147 = vmatprep.subr.mxu0 0.0
    %5148 = vmatpush1.msra.mxu0 0.0
    %5149 = vmatprep.subr.mxu0 0.0
    %5150 = vmatpush1.msra.mxu0 0.0
    %5151 = vmatprep.subr.mxu0 0.0
    %5152 = vmatpush1.msra.mxu0 0.0
    %5153 = vmatprep.subr.mxu0 0.0
    %5154 = vmatpush1.msra.mxu0 0.0
    %5155 = vmatprep.subr.mxu0 0.0
    %5156 = vmatpush1.msra.mxu0 0.0
    %5157 = vmatprep.subr.mxu0 0.0
    %5158 = vmatpush1.msra.mxu0 0.0
    %5159 = vmatprep.subr.mxu0 0.0
    %5160 = vmatpush1.msra.mxu0 0.0
    %5161 = vmatprep.subr.mxu0 0.0
    %5162 = vmatpush1.msra.mxu0 0.0
    %5163 = vmatprep.subr.mxu0 0.0
    %5164 = vmatpush1.msra.mxu0 0.0
    %5165 = vmatprep.subr.mxu0 0.0
    %5166 = vmatpush1.msra.mxu0 0.0
    %5167 = vmatprep.subr.mxu0 0.0
    %5168 = vmatpush1.msra.mxu0 0.0
    %5169 = vmatprep.subr.mxu0 0.0
    %5170 = vmatpush1.msra.mxu0 0.0
    %5171 = vmatprep.subr.mxu0 0.0
    %5172 = vmatpush1.msra.mxu0 0.0
    %5173 = vmatprep.subr.mxu0 0.0
    %5174 = vmatpush1.msra.mxu0 0.0
    %5175 = vmatprep.subr.mxu0 0.0
    %5176 = vmatpush1.msra.mxu0 0.0
    %5177 = vmatprep.subr.mxu0 0.0
    %5178 = vmatpush1.msra.mxu0 0.0
    %5179 = vmatprep.subr.mxu0 0.0
    %5180 = vmatpush1.msra.mxu0 0.0
    %5181 = vmatprep.subr.mxu0 0.0
    %5182 = vmatpush1.msra.mxu0 0.0
    %5183 = vmatprep.mubr.f32.mxu0 0.0
    %v5184 = vand.u32 %v4703, 4294901760
    %5185 = vmatmul.mubr.f32.gmra.mrb[0].mxu0 %v5184
    %v5186 = vpop.f32.mrb[0].mxu0
    %v5187 = vadd.f32 %v5112, %v5186
    %v5188 = vpop.f32.mrb[0].mxu0
    %5189 = vdwg.mxu0
    %v5190 = vadd.f32 %v1576, %v5187
    %v5191 = vxor.u32 %v5190, 2147483648
    %v5192 = vmul.f32 %v5191, 1.442695
    %v5193 = vpow.pop %v5192
    %v5194 = vadd.f32 %v5193, 1.0
    %v5195 = vrcp.pop %v5194
    %v5196 = vmul.f32 1.0, %v5195
    %v5197 = vmul.f32 %v5196, 2.0
    %v5198 = vsub.f32 %v5197, 1.0
    %v5200 = vrot.slane %v4692, 4
    %v5202 = vmul.f32 %v5196, %v5200
    %5204 = vrot.lane.b32.xlu0 %v5198, 64
    %v5205 = vpop.permute.xlu0 %5204
    %v5207 = vmul.f32 %v5196, %v5205
    %5209 = vrot.lane.b32.xlu0 %v5207, 32
    %v5210 = vpop.permute.xlu0 %5209
    %v5212 = vadd.f32 %v5202, %v5210
    %v5213 = vtanh.pop %v5212
    %5215 = vrot.lane.b32.xlu0 %v5213, 64
    %v5216 = vpop.permute.xlu0 %5215
    %v5218 = vmul.f32 %v5196, %v5216
    %5220 = vrot.lane.b32.xlu0 %v5218, 32
    %v5221 = vpop.permute.xlu0 %5220
    %v5222 = vsel %vm952, %v5221, 0
    %5224 = vmatprep.subr.mxu0 0.0
    %v5225 = vand.u32 %v31, 4294901760
    %5226 = vmatpush1.msra.mxu0 %v5225
    %5227 = vmatprep.subr.mxu0 0.0
    %v5228 = vand.u32 %v32, 4294901760
    %5229 = vmatpush1.msra.mxu0 %v5228
    %5230 = vmatprep.subr.mxu0 0.0
    %v5231 = vand.u32 %v33, 4294901760
    %5232 = vmatpush1.msra.mxu0 %v5231
    %5233 = vmatprep.subr.mxu0 0.0
    %v5234 = vand.u32 %v34, 4294901760
    %5235 = vmatpush1.msra.mxu0 %v5234
    %5236 = vmatprep.subr.mxu0 0.0
    %5237 = vmatpush1.msra.mxu0 0.0
    %5238 = vmatprep.subr.mxu0 0.0
    %5239 = vmatpush1.msra.mxu0 0.0
    %5240 = vmatprep.subr.mxu0 0.0
    %5241 = vmatpush1.msra.mxu0 0.0
    %5242 = vmatprep.subr.mxu0 0.0
    %5243 = vmatpush1.msra.mxu0 0.0
    %5244 = vmatprep.subr.mxu0 0.0
    %5245 = vmatpush1.msra.mxu0 0.0
    %5246 = vmatprep.subr.mxu0 0.0
    %5247 = vmatpush1.msra.mxu0 0.0
    %5248 = vmatprep.subr.mxu0 0.0
    %5249 = vmatpush1.msra.mxu0 0.0
    %5250 = vmatprep.subr.mxu0 0.0
    %5251 = vmatpush1.msra.mxu0 0.0
    %5252 = vmatprep.subr.mxu0 0.0
    %5253 = vmatpush1.msra.mxu0 0.0
    %5254 = vmatprep.subr.mxu0 0.0
    %5255 = vmatpush1.msra.mxu0 0.0
    %5256 = vmatprep.subr.mxu0 0.0
    %5257 = vmatpush1.msra.mxu0 0.0
    %5258 = vmatprep.subr.mxu0 0.0
    %5259 = vmatpush1.msra.mxu0 0.0
    %5260 = vmatprep.subr.mxu0 0.0
    %5261 = vmatpush1.msra.mxu0 0.0
    %5262 = vmatprep.subr.mxu0 0.0
    %5263 = vmatpush1.msra.mxu0 0.0
    %5264 = vmatprep.subr.mxu0 0.0
    %5265 = vmatpush1.msra.mxu0 0.0
    %5266 = vmatprep.subr.mxu0 0.0
    %5267 = vmatpush1.msra.mxu0 0.0
    %5268 = vmatprep.subr.mxu0 0.0
    %5269 = vmatpush1.msra.mxu0 0.0
    %5270 = vmatprep.subr.mxu0 0.0
    %5271 = vmatpush1.msra.mxu0 0.0
    %5272 = vmatprep.subr.mxu0 0.0
    %5273 = vmatpush1.msra.mxu0 0.0
    %5274 = vmatprep.subr.mxu0 0.0
    %5275 = vmatpush1.msra.mxu0 0.0
    %5276 = vmatprep.subr.mxu0 0.0
    %5277 = vmatpush1.msra.mxu0 0.0
    %5278 = vmatprep.subr.mxu0 0.0
    %5279 = vmatpush1.msra.mxu0 0.0
    %5280 = vmatprep.subr.mxu0 0.0
    %5281 = vmatpush1.msra.mxu0 0.0
    %5282 = vmatprep.subr.mxu0 0.0
    %5283 = vmatpush1.msra.mxu0 0.0
    %5284 = vmatprep.subr.mxu0 0.0
    %5285 = vmatpush1.msra.mxu0 0.0
    %5286 = vmatprep.subr.mxu0 0.0
    %5287 = vmatpush1.msra.mxu0 0.0
    %5288 = vmatprep.subr.mxu0 0.0
    %5289 = vmatpush1.msra.mxu0 0.0
    %5290 = vmatprep.subr.mxu0 0.0
    %5291 = vmatpush1.msra.mxu0 0.0
    %5292 = vmatprep.mubr.f32.mxu0 0.0
    %v5293 = vand.u32 %v5222, 4294901760
    %v5294 = vsub.f32 %v5222, %v5293
    %v5295 = vand.u32 %v5294, 4294901760
    %v5296 = vsub.f32 %v5294, %v5295
    %v5297 = vand.u32 %v5296, 4294901760
    %5298 = vmatmul.mubr.f32.gmra.mrb[0].mxu0 %v5297
    %v5299 = vpop.f32.mrb[0].mxu0
    %v5300 = vadd.f32 0.0, %v5299
    %v5301 = vpop.f32.mrb[0].mxu0
    %5302 = vdwg.mxu0
    %5303 = vmatprep.subr.mxu0 0.0
    %v5304 = vand.u32 %v31, 4294901760
    %v5305 = vsub.f32 %v31, %v5304
    %v5306 = vand.u32 %v5305, 4294901760
    %v5307 = vsub.f32 %v5305, %v5306
    %v5308 = vand.u32 %v5307, 4294901760
    %5309 = vmatpush1.msra.mxu0 %v5308
    %5310 = vmatprep.subr.mxu0 0.0
    %v5311 = vand.u32 %v32, 4294901760
    %v5312 = vsub.f32 %v32, %v5311
    %v5313 = vand.u32 %v5312, 4294901760
    %v5314 = vsub.f32 %v5312, %v5313
    %v5315 = vand.u32 %v5314, 4294901760
    %5316 = vmatpush1.msra.mxu0 %v5315
    %5317 = vmatprep.subr.mxu0 0.0
    %v5318 = vand.u32 %v33, 4294901760
    %v5319 = vsub.f32 %v33, %v5318
    %v5320 = vand.u32 %v5319, 4294901760
    %v5321 = vsub.f32 %v5319, %v5320
    %v5322 = vand.u32 %v5321, 4294901760
    %5323 = vmatpush1.msra.mxu0 %v5322
    %5324 = vmatprep.subr.mxu0 0.0
    %v5325 = vand.u32 %v34, 4294901760
    %v5326 = vsub.f32 %v34, %v5325
    %v5327 = vand.u32 %v5326, 4294901760
    %v5328 = vsub.f32 %v5326, %v5327
    %v5329 = vand.u32 %v5328, 4294901760
    %5330 = vmatpush1.msra.mxu0 %v5329
    %5331 = vmatprep.subr.mxu0 0.0
    %5332 = vmatpush1.msra.mxu0 0.0
    %5333 = vmatprep.subr.mxu0 0.0
    %5334 = vmatpush1.msra.mxu0 0.0
    %5335 = vmatprep.subr.mxu0 0.0
    %5336 = vmatpush1.msra.mxu0 0.0
    %5337 = vmatprep.subr.mxu0 0.0
    %5338 = vmatpush1.msra.mxu0 0.0
    %5339 = vmatprep.subr.mxu0 0.0
    %5340 = vmatpush1.msra.mxu0 0.0
    %5341 = vmatprep.subr.mxu0 0.0
    %5342 = vmatpush1.msra.mxu0 0.0
    %5343 = vmatprep.subr.mxu0 0.0
    %5344 = vmatpush1.msra.mxu0 0.0
    %5345 = vmatprep.subr.mxu0 0.0
    %5346 = vmatpush1.msra.mxu0 0.0
    %5347 = vmatprep.subr.mxu0 0.0
    %5348 = vmatpush1.msra.mxu0 0.0
    %5349 = vmatprep.subr.mxu0 0.0
    %5350 = vmatpush1.msra.mxu0 0.0
    %5351 = vmatprep.subr.mxu0 0.0
    %5352 = vmatpush1.msra.mxu0 0.0
    %5353 = vmatprep.subr.mxu0 0.0
    %5354 = vmatpush1.msra.mxu0 0.0
    %5355 = vmatprep.subr.mxu0 0.0
    %5356 = vmatpush1.msra.mxu0 0.0
    %5357 = vmatprep.subr.mxu0 0.0
    %5358 = vmatpush1.msra.mxu0 0.0
    %5359 = vmatprep.subr.mxu0 0.0
    %5360 = vmatpush1.msra.mxu0 0.0
    %5361 = vmatprep.subr.mxu0 0.0
    %5362 = vmatpush1.msra.mxu0 0.0
    %5363 = vmatprep.subr.mxu0 0.0
    %5364 = vmatpush1.msra.mxu0 0.0
    %5365 = vmatprep.subr.mxu0 0.0
    %5366 = vmatpush1.msra.mxu0 0.0
    %5367 = vmatprep.subr.mxu0 0.0
    %5368 = vmatpush1.msra.mxu0 0.0
    %5369 = vmatprep.subr.mxu0 0.0
    %5370 = vmatpush1.msra.mxu0 0.0
    %5371 = vmatprep.subr.mxu0 0.0
    %5372 = vmatpush1.msra.mxu0 0.0
    %5373 = vmatprep.subr.mxu0 0.0
    %5374 = vmatpush1.msra.mxu0 0.0
    %5375 = vmatprep.subr.mxu0 0.0
    %5376 = vmatpush1.msra.mxu0 0.0
    %5377 = vmatprep.subr.mxu0 0.0
    %5378 = vmatpush1.msra.mxu0 0.0
    %5379 = vmatprep.subr.mxu0 0.0
    %5380 = vmatpush1.msra.mxu0 0.0
    %5381 = vmatprep.subr.mxu0 0.0
    %5382 = vmatpush1.msra.mxu0 0.0
    %5383 = vmatprep.subr.mxu0 0.0
    %5384 = vmatpush1.msra.mxu0 0.0
    %5385 = vmatprep.subr.mxu0 0.0
    %5386 = vmatpush1.msra.mxu0 0.0
    %5387 = vmatprep.mubr.f32.mxu0 0.0
    %v5388 = vand.u32 %v5222, 4294901760
    %5389 = vmatmul.mubr.f32.gmra.mrb[0].mxu0 %v5388
    %v5390 = vpop.f32.mrb[0].mxu0
    %v5391 = vadd.f32 %v5300, %v5390
    %v5392 = vpop.f32.mrb[0].mxu0
    %5393 = vdwg.mxu0
    %5394 = vmatprep.subr.mxu0 0.0
    %v5395 = vand.u32 %v31, 4294901760
    %v5396 = vsub.f32 %v31, %v5395
    %5397 = vmatpush1.msra.mxu0 %v5396
    %5398 = vmatprep.subr.mxu0 0.0
    %v5399 = vand.u32 %v32, 4294901760
    %v5400 = vsub.f32 %v32, %v5399
    %5401 = vmatpush1.msra.mxu0 %v5400
    %5402 = vmatprep.subr.mxu0 0.0
    %v5403 = vand.u32 %v33, 4294901760
    %v5404 = vsub.f32 %v33, %v5403
    %5405 = vmatpush1.msra.mxu0 %v5404
    %5406 = vmatprep.subr.mxu0 0.0
    %v5407 = vand.u32 %v34, 4294901760
    %v5408 = vsub.f32 %v34, %v5407
    %5409 = vmatpush1.msra.mxu0 %v5408
    %5410 = vmatprep.subr.mxu0 0.0
    %5411 = vmatpush1.msra.mxu0 0.0
    %5412 = vmatprep.subr.mxu0 0.0
    %5413 = vmatpush1.msra.mxu0 0.0
    %5414 = vmatprep.subr.mxu0 0.0
    %5415 = vmatpush1.msra.mxu0 0.0
    %5416 = vmatprep.subr.mxu0 0.0
    %5417 = vmatpush1.msra.mxu0 0.0
    %5418 = vmatprep.subr.mxu0 0.0
    %5419 = vmatpush1.msra.mxu0 0.0
    %5420 = vmatprep.subr.mxu0 0.0
    %5421 = vmatpush1.msra.mxu0 0.0
    %5422 = vmatprep.subr.mxu0 0.0
    %5423 = vmatpush1.msra.mxu0 0.0
    %5424 = vmatprep.subr.mxu0 0.0
    %5425 = vmatpush1.msra.mxu0 0.0
    %5426 = vmatprep.subr.mxu0 0.0
    %5427 = vmatpush1.msra.mxu0 0.0
    %5428 = vmatprep.subr.mxu0 0.0
    %5429 = vmatpush1.msra.mxu0 0.0
    %5430 = vmatprep.subr.mxu0 0.0
    %5431 = vmatpush1.msra.mxu0 0.0
    %5432 = vmatprep.subr.mxu0 0.0
    %5433 = vmatpush1.msra.mxu0 0.0
    %5434 = vmatprep.subr.mxu0 0.0
    %5435 = vmatpush1.msra.mxu0 0.0
    %5436 = vmatprep.subr.mxu0 0.0
    %5437 = vmatpush1.msra.mxu0 0.0
    %5438 = vmatprep.subr.mxu0 0.0
    %5439 = vmatpush1.msra.mxu0 0.0
    %5440 = vmatprep.subr.mxu0 0.0
    %5441 = vmatpush1.msra.mxu0 0.0
    %5442 = vmatprep.subr.mxu0 0.0
    %5443 = vmatpush1.msra.mxu0 0.0
    %5444 = vmatprep.subr.mxu0 0.0
    %5445 = vmatpush1.msra.mxu0 0.0
    %5446 = vmatprep.subr.mxu0 0.0
    %5447 = vmatpush1.msra.mxu0 0.0
    %5448 = vmatprep.subr.mxu0 0.0
    %5449 = vmatpush1.msra.mxu0 0.0
    %5450 = vmatprep.subr.mxu0 0.0
    %5451 = vmatpush1.msra.mxu0 0.0
    %5452 = vmatprep.subr.mxu0 0.0
    %5453 = vmatpush1.msra.mxu0 0.0
    %5454 = vmatprep.subr.mxu0 0.0
    %5455 = vmatpush1.msra.mxu0 0.0
    %5456 = vmatprep.subr.mxu0 0.0
    %5457 = vmatpush1.msra.mxu0 0.0
    %5458 = vmatprep.subr.mxu0 0.0
    %5459 = vmatpush1.msra.mxu0 0.0
    %5460 = vmatprep.subr.mxu0 0.0
    %5461 = vmatpush1.msra.mxu0 0.0
    %5462 = vmatprep.subr.mxu0 0.0
    %5463 = vmatpush1.msra.mxu0 0.0
    %5464 = vmatprep.subr.mxu0 0.0
    %5465 = vmatpush1.msra.mxu0 0.0
    %5466 = vmatprep.mubr.f32.mxu0 0.0
    %v5467 = vand.u32 %v5222, 4294901760
    %v5468 = vsub.f32 %v5222, %v5467
    %5469 = vmatmul.mubr.f32.gmra.mrb[0].mxu0 %v5468
    %v5470 = vpop.f32.mrb[0].mxu0
    %v5471 = vadd.f32 %v5391, %v5470
    %v5472 = vpop.f32.mrb[0].mxu0
    %5473 = vdwg.mxu0
    %5474 = vmatprep.subr.mxu0 0.0
    %v5475 = vand.u32 %v31, 4294901760
    %5476 = vmatpush1.msra.mxu0 %v5475
    %5477 = vmatprep.subr.mxu0 0.0
    %v5478 = vand.u32 %v32, 4294901760
    %5479 = vmatpush1.msra.mxu0 %v5478
    %5480 = vmatprep.subr.mxu0 0.0
    %v5481 = vand.u32 %v33, 4294901760
    %5482 = vmatpush1.msra.mxu0 %v5481
    %5483 = vmatprep.subr.mxu0 0.0
    %v5484 = vand.u32 %v34, 4294901760
    %5485 = vmatpush1.msra.mxu0 %v5484
    %5486 = vmatprep.subr.mxu0 0.0
    %5487 = vmatpush1.msra.mxu0 0.0
    %5488 = vmatprep.subr.mxu0 0.0
    %5489 = vmatpush1.msra.mxu0 0.0
    %5490 = vmatprep.subr.mxu0 0.0
    %5491 = vmatpush1.msra.mxu0 0.0
    %5492 = vmatprep.subr.mxu0 0.0
    %5493 = vmatpush1.msra.mxu0 0.0
    %5494 = vmatprep.subr.mxu0 0.0
    %5495 = vmatpush1.msra.mxu0 0.0
    %5496 = vmatprep.subr.mxu0 0.0
    %5497 = vmatpush1.msra.mxu0 0.0
    %5498 = vmatprep.subr.mxu0 0.0
    %5499 = vmatpush1.msra.mxu0 0.0
    %5500 = vmatprep.subr.mxu0 0.0
    %5501 = vmatpush1.msra.mxu0 0.0
    %5502 = vmatprep.subr.mxu0 0.0
    %5503 = vmatpush1.msra.mxu0 0.0
    %5504 = vmatprep.subr.mxu0 0.0
    %5505 = vmatpush1.msra.mxu0 0.0
    %5506 = vmatprep.subr.mxu0 0.0
    %5507 = vmatpush1.msra.mxu0 0.0
    %5508 = vmatprep.subr.mxu0 0.0
    %5509 = vmatpush1.msra.mxu0 0.0
    %5510 = vmatprep.subr.mxu0 0.0
    %5511 = vmatpush1.msra.mxu0 0.0
    %5512 = vmatprep.subr.mxu0 0.0
    %5513 = vmatpush1.msra.mxu0 0.0
    %5514 = vmatprep.subr.mxu0 0.0
    %5515 = vmatpush1.msra.mxu0 0.0
    %5516 = vmatprep.subr.mxu0 0.0
    %5517 = vmatpush1.msra.mxu0 0.0
    %5518 = vmatprep.subr.mxu0 0.0
    %5519 = vmatpush1.msra.mxu0 0.0
    %5520 = vmatprep.subr.mxu0 0.0
    %5521 = vmatpush1.msra.mxu0 0.0
    %5522 = vmatprep.subr.mxu0 0.0
    %5523 = vmatpush1.msra.mxu0 0.0
    %5524 = vmatprep.subr.mxu0 0.0
    %5525 = vmatpush1.msra.mxu0 0.0
    %5526 = vmatprep.subr.mxu0 0.0
    %5527 = vmatpush1.msra.mxu0 0.0
    %5528 = vmatprep.subr.mxu0 0.0
    %5529 = vmatpush1.msra.mxu0 0.0
    %5530 = vmatprep.subr.mxu0 0.0
    %5531 = vmatpush1.msra.mxu0 0.0
    %5532 = vmatprep.subr.mxu0 0.0
    %5533 = vmatpush1.msra.mxu0 0.0
    %5534 = vmatprep.subr.mxu0 0.0
    %5535 = vmatpush1.msra.mxu0 0.0
    %5536 = vmatprep.subr.mxu0 0.0
    %5537 = vmatpush1.msra.mxu0 0.0
    %5538 = vmatprep.subr.mxu0 0.0
    %5539 = vmatpush1.msra.mxu0 0.0
    %5540 = vmatprep.subr.mxu0 0.0
    %5541 = vmatpush1.msra.mxu0 0.0
    %5542 = vmatprep.mubr.f32.mxu0 0.0
    %v5543 = vand.u32 %v5222, 4294901760
    %v5544 = vsub.f32 %v5222, %v5543
    %v5545 = vand.u32 %v5544, 4294901760
    %5546 = vmatmul.mubr.f32.gmra.mrb[0].mxu0 %v5545
    %v5547 = vpop.f32.mrb[0].mxu0
    %v5548 = vadd.f32 %v5471, %v5547
    %v5549 = vpop.f32.mrb[0].mxu0
    %5550 = vdwg.mxu0
    %5551 = vmatprep.subr.mxu0 0.0
    %v5552 = vand.u32 %v31, 4294901760
    %v5553 = vsub.f32 %v31, %v5552
    %v5554 = vand.u32 %v5553, 4294901760
    %5555 = vmatpush1.msra.mxu0 %v5554
    %5556 = vmatprep.subr.mxu0 0.0
    %v5557 = vand.u32 %v32, 4294901760
    %v5558 = vsub.f32 %v32, %v5557
    %v5559 = vand.u32 %v5558, 4294901760
    %5560 = vmatpush1.msra.mxu0 %v5559
    %5561 = vmatprep.subr.mxu0 0.0
    %v5562 = vand.u32 %v33, 4294901760
    %v5563 = vsub.f32 %v33, %v5562
    %v5564 = vand.u32 %v5563, 4294901760
    %5565 = vmatpush1.msra.mxu0 %v5564
    %5566 = vmatprep.subr.mxu0 0.0
    %v5567 = vand.u32 %v34, 4294901760
    %v5568 = vsub.f32 %v34, %v5567
    %v5569 = vand.u32 %v5568, 4294901760
    %5570 = vmatpush1.msra.mxu0 %v5569
    %5571 = vmatprep.subr.mxu0 0.0
    %5572 = vmatpush1.msra.mxu0 0.0
    %5573 = vmatprep.subr.mxu0 0.0
    %5574 = vmatpush1.msra.mxu0 0.0
    %5575 = vmatprep.subr.mxu0 0.0
    %5576 = vmatpush1.msra.mxu0 0.0
    %5577 = vmatprep.subr.mxu0 0.0
    %5578 = vmatpush1.msra.mxu0 0.0
    %5579 = vmatprep.subr.mxu0 0.0
    %5580 = vmatpush1.msra.mxu0 0.0
    %5581 = vmatprep.subr.mxu0 0.0
    %5582 = vmatpush1.msra.mxu0 0.0
    %5583 = vmatprep.subr.mxu0 0.0
    %5584 = vmatpush1.msra.mxu0 0.0
    %5585 = vmatprep.subr.mxu0 0.0
    %5586 = vmatpush1.msra.mxu0 0.0
    %5587 = vmatprep.subr.mxu0 0.0
    %5588 = vmatpush1.msra.mxu0 0.0
    %5589 = vmatprep.subr.mxu0 0.0
    %5590 = vmatpush1.msra.mxu0 0.0
    %5591 = vmatprep.subr.mxu0 0.0
    %5592 = vmatpush1.msra.mxu0 0.0
    %5593 = vmatprep.subr.mxu0 0.0
    %5594 = vmatpush1.msra.mxu0 0.0
    %5595 = vmatprep.subr.mxu0 0.0
    %5596 = vmatpush1.msra.mxu0 0.0
    %5597 = vmatprep.subr.mxu0 0.0
    %5598 = vmatpush1.msra.mxu0 0.0
    %5599 = vmatprep.subr.mxu0 0.0
    %5600 = vmatpush1.msra.mxu0 0.0
    %5601 = vmatprep.subr.mxu0 0.0
    %5602 = vmatpush1.msra.mxu0 0.0
    %5603 = vmatprep.subr.mxu0 0.0
    %5604 = vmatpush1.msra.mxu0 0.0
    %5605 = vmatprep.subr.mxu0 0.0
    %5606 = vmatpush1.msra.mxu0 0.0
    %5607 = vmatprep.subr.mxu0 0.0
    %5608 = vmatpush1.msra.mxu0 0.0
    %5609 = vmatprep.subr.mxu0 0.0
    %5610 = vmatpush1.msra.mxu0 0.0
    %5611 = vmatprep.subr.mxu0 0.0
    %5612 = vmatpush1.msra.mxu0 0.0
    %5613 = vmatprep.subr.mxu0 0.0
    %5614 = vmatpush1.msra.mxu0 0.0
    %5615 = vmatprep.subr.mxu0 0.0
    %5616 = vmatpush1.msra.mxu0 0.0
    %5617 = vmatprep.subr.mxu0 0.0
    %5618 = vmatpush1.msra.mxu0 0.0
    %5619 = vmatprep.subr.mxu0 0.0
    %5620 = vmatpush1.msra.mxu0 0.0
    %5621 = vmatprep.subr.mxu0 0.0
    %5622 = vmatpush1.msra.mxu0 0.0
    %5623 = vmatprep.subr.mxu0 0.0
    %5624 = vmatpush1.msra.mxu0 0.0
    %5625 = vmatprep.subr.mxu0 0.0
    %5626 = vmatpush1.msra.mxu0 0.0
    %5627 = vmatprep.mubr.f32.mxu0 0.0
    %v5628 = vand.u32 %v5222, 4294901760
    %5629 = vmatmul.mubr.f32.gmra.mrb[0].mxu0 %v5628
    %v5630 = vpop.f32.mrb[0].mxu0
    %v5631 = vadd.f32 %v5548, %v5630
    %v5632 = vpop.f32.mrb[0].mxu0
    %5633 = vdwg.mxu0
    %5634 = vmatprep.subr.mxu0 0.0
    %v5635 = vand.u32 %v31, 4294901760
    %5636 = vmatpush1.msra.mxu0 %v5635
    %5637 = vmatprep.subr.mxu0 0.0
    %v5638 = vand.u32 %v32, 4294901760
    %5639 = vmatpush1.msra.mxu0 %v5638
    %5640 = vmatprep.subr.mxu0 0.0
    %v5641 = vand.u32 %v33, 4294901760
    %5642 = vmatpush1.msra.mxu0 %v5641
    %5643 = vmatprep.subr.mxu0 0.0
    %v5644 = vand.u32 %v34, 4294901760
    %5645 = vmatpush1.msra.mxu0 %v5644
    %5646 = vmatprep.subr.mxu0 0.0
    %5647 = vmatpush1.msra.mxu0 0.0
    %5648 = vmatprep.subr.mxu0 0.0
    %5649 = vmatpush1.msra.mxu0 0.0
    %5650 = vmatprep.subr.mxu0 0.0
    %5651 = vmatpush1.msra.mxu0 0.0
    %5652 = vmatprep.subr.mxu0 0.0
    %5653 = vmatpush1.msra.mxu0 0.0
    %5654 = vmatprep.subr.mxu0 0.0
    %5655 = vmatpush1.msra.mxu0 0.0
    %5656 = vmatprep.subr.mxu0 0.0
    %5657 = vmatpush1.msra.mxu0 0.0
    %5658 = vmatprep.subr.mxu0 0.0
    %5659 = vmatpush1.msra.mxu0 0.0
    %5660 = vmatprep.subr.mxu0 0.0
    %5661 = vmatpush1.msra.mxu0 0.0
    %5662 = vmatprep.subr.mxu0 0.0
    %5663 = vmatpush1.msra.mxu0 0.0
    %5664 = vmatprep.subr.mxu0 0.0
    %5665 = vmatpush1.msra.mxu0 0.0
    %5666 = vmatprep.subr.mxu0 0.0
    %5667 = vmatpush1.msra.mxu0 0.0
    %5668 = vmatprep.subr.mxu0 0.0
    %5669 = vmatpush1.msra.mxu0 0.0
    %5670 = vmatprep.subr.mxu0 0.0
    %5671 = vmatpush1.msra.mxu0 0.0
    %5672 = vmatprep.subr.mxu0 0.0
    %5673 = vmatpush1.msra.mxu0 0.0
    %5674 = vmatprep.subr.mxu0 0.0
    %5675 = vmatpush1.msra.mxu0 0.0
    %5676 = vmatprep.subr.mxu0 0.0
    %5677 = vmatpush1.msra.mxu0 0.0
    %5678 = vmatprep.subr.mxu0 0.0
    %5679 = vmatpush1.msra.mxu0 0.0
    %5680 = vmatprep.subr.mxu0 0.0
    %5681 = vmatpush1.msra.mxu0 0.0
    %5682 = vmatprep.subr.mxu0 0.0
    %5683 = vmatpush1.msra.mxu0 0.0
    %5684 = vmatprep.subr.mxu0 0.0
    %5685 = vmatpush1.msra.mxu0 0.0
    %5686 = vmatprep.subr.mxu0 0.0
    %5687 = vmatpush1.msra.mxu0 0.0
    %5688 = vmatprep.subr.mxu0 0.0
    %5689 = vmatpush1.msra.mxu0 0.0
    %5690 = vmatprep.subr.mxu0 0.0
    %5691 = vmatpush1.msra.mxu0 0.0
    %5692 = vmatprep.subr.mxu0 0.0
    %5693 = vmatpush1.msra.mxu0 0.0
    %5694 = vmatprep.subr.mxu0 0.0
    %5695 = vmatpush1.msra.mxu0 0.0
    %5696 = vmatprep.subr.mxu0 0.0
    %5697 = vmatpush1.msra.mxu0 0.0
    %5698 = vmatprep.subr.mxu0 0.0
    %5699 = vmatpush1.msra.mxu0 0.0
    %5700 = vmatprep.subr.mxu0 0.0
    %5701 = vmatpush1.msra.mxu0 0.0
    %5702 = vmatprep.mubr.f32.mxu0 0.0
    %v5703 = vand.u32 %v5222, 4294901760
    %5704 = vmatmul.mubr.f32.gmra.mrb[0].mxu0 %v5703
    %v5705 = vpop.f32.mrb[0].mxu0
    %v5706 = vadd.f32 %v5631, %v5705
    %v5707 = vpop.f32.mrb[0].mxu0
    %5708 = vdwg.mxu0
    %v5710 = vrot.slane %v5706, 4
    %v5712 = vadd.f32 %v1576, %v5710
    %v5713 = vxor.u32 %v5712, 2147483648
    %v5714 = vmul.f32 %v5713, 1.442695
    %v5715 = vpow.pop %v5714
    %v5716 = vadd.f32 %v5715, 1.0
    %v5717 = vrcp.pop %v5716
    %v5718 = vmul.f32 1.0, %v5717
    %v5719 = vmul.f32 %v5718, 2.0
    %v5720 = vsub.f32 %v5719, 1.0
    %v5722 = vrot.slane %v5212, 4
    %v5724 = vmul.f32 %v5718, %v5722
    %5726 = vrot.lane.b32.xlu0 %v5720, 64
    %v5727 = vpop.permute.xlu0 %5726
    %v5729 = vmul.f32 %v5718, %v5727
    %5731 = vrot.lane.b32.xlu0 %v5729, 32
    %v5732 = vpop.permute.xlu0 %5731
    %v5734 = vadd.f32 %v5724, %v5732
    %v5735 = vtanh.pop %v5734
    %5737 = vrot.lane.b32.xlu0 %v5735, 64
    %v5738 = vpop.permute.xlu0 %5737
    %v5740 = vmul.f32 %v5718, %v5738
    %v5742 = vunpack.c.l.s4 1966171168
    %v5743 = vunpack.c.0.s8 %v5742
    %v5744 = vlaneseq
    %v5745 = vshrl.u32 %v5744, 7
    %v5746 = vsub.s32 %v5743, %v5745
    %v5747 = vrot.slane %v2092, %v5746
    %v5748 = vcombine.high %v5747, %v5747
    %v5750 = vunpack.c.l.s4 1966171168
    %v5751 = vunpack.c.0.s8 %v5750
    %v5752 = vlaneseq
    %v5753 = vshrl.u32 %v5752, 7
    %v5754 = vsub.s32 %v5751, %v5753
    %v5755 = vrot.slane %v5747, %v5754
    %v5757 = vunpack.c.l.s4 1966171168
    %v5758 = vunpack.c.0.s8 %v5757
    %v5759 = vlaneseq
    %v5760 = vshrl.u32 %v5759, 7
    %v5761 = vsub.s32 %v5758, %v5760
    %v5762 = vrot.slane %v5748, %v5761
    %v5763 = vcombine.high %v5755, %v5755
    %v5764 = vcombine.high %v5762, %v5762
    %v5769 = vcombine.high %v2614, %v2614
    %v5771 = vunpack.c.l.s4 1966171168
    %v5772 = vunpack.c.0.s8 %v5771
    %v5773 = vlaneseq
    %v5774 = vshrl.u32 %v5773, 7
    %v5775 = vsub.s32 %v5772, %v5774
    %v5776 = vrot.slane %v5769, %v5775
    %v5777 = vcombine.high %v5776, %v5776
    %v5779 = vunpack.c.l.s4 1966171168
    %v5780 = vunpack.c.0.s8 %v5779
    %v5781 = vlaneseq
    %v5782 = vshrl.u32 %v5781, 7
    %v5783 = vsub.s32 %v5780, %v5782
    %v5784 = vrot.slane %v5776, %v5783
    %v5786 = vunpack.c.l.s4 1966171168
    %v5787 = vunpack.c.0.s8 %v5786
    %v5788 = vlaneseq
    %v5789 = vshrl.u32 %v5788, 7
    %v5790 = vsub.s32 %v5787, %v5789
    %v5791 = vrot.slane %v5777, %v5790
    %v5792 = vcombine.high %v5784, %v5784
    %v5793 = vcombine.high %v5791, %v5791
    %v5795 = vunpack.c.l.s4 1966171168
    %v5796 = vunpack.c.0.s8 %v5795
    %v5797 = vlaneseq
    %v5798 = vshrl.u32 %v5797, 7
    %v5799 = vsub.s32 %v5796, %v5798
    %v5800 = vrot.slane %v3134, %v5799
    %v5801 = vcombine.high %v5800, %v5800
    %v5803 = vunpack.c.l.s4 1966171168
    %v5804 = vunpack.c.0.s8 %v5803
    %v5805 = vlaneseq
    %v5806 = vshrl.u32 %v5805, 7
    %v5807 = vsub.s32 %v5804, %v5806
    %v5808 = vrot.slane %v5800, %v5807
    %v5810 = vunpack.c.l.s4 1966171168
    %v5811 = vunpack.c.0.s8 %v5810
    %v5812 = vlaneseq
    %v5813 = vshrl.u32 %v5812, 7
    %v5814 = vsub.s32 %v5811, %v5813
    %v5815 = vrot.slane %v5801, %v5814
    %v5816 = vcombine.high %v5808, %v5808
    %v5817 = vcombine.high %v5815, %v5815
    %v5818 = vcombine.high %v3656, %v3656
    %v5820 = vunpack.c.l.s4 1966171168
    %v5821 = vunpack.c.0.s8 %v5820
    %v5822 = vlaneseq
    %v5823 = vshrl.u32 %v5822, 7
    %v5824 = vsub.s32 %v5821, %v5823
    %v5825 = vrot.slane %v5818, %v5824
    %v5826 = vcombine.high %v5825, %v5825
    %v5828 = vunpack.c.l.s4 1966171168
    %v5829 = vunpack.c.0.s8 %v5828
    %v5830 = vlaneseq
    %v5831 = vshrl.u32 %v5830, 7
    %v5832 = vsub.s32 %v5829, %v5831
    %v5833 = vrot.slane %v5825, %v5832
    %v5835 = vunpack.c.l.s4 1966171168
    %v5836 = vunpack.c.0.s8 %v5835
    %v5837 = vlaneseq
    %v5838 = vshrl.u32 %v5837, 7
    %v5839 = vsub.s32 %v5836, %v5838
    %v5840 = vrot.slane %v5826, %v5839
    %v5841 = vcombine.high %v5833, %v5833
    %v5842 = vcombine.high %v5840, %v5840
    %v5844 = vunpack.c.l.s4 1966171168
    %v5845 = vunpack.c.0.s8 %v5844
    %v5846 = vlaneseq
    %v5847 = vshrl.u32 %v5846, 7
    %v5848 = vsub.s32 %v5845, %v5847
    %v5849 = vrot.slane %v4176, %v5848
    %v5850 = vcombine.high %v5849, %v5849
    %v5852 = vunpack.c.l.s4 1966171168
    %v5853 = vunpack.c.0.s8 %v5852
    %v5854 = vlaneseq
    %v5855 = vshrl.u32 %v5854, 7
    %v5856 = vsub.s32 %v5853, %v5855
    %v5857 = vrot.slane %v5849, %v5856
    %v5859 = vunpack.c.l.s4 1966171168
    %v5860 = vunpack.c.0.s8 %v5859
    %v5861 = vlaneseq
    %v5862 = vshrl.u32 %v5861, 7
    %v5863 = vsub.s32 %v5860, %v5862
    %v5864 = vrot.slane %v5850, %v5863
    %v5865 = vcombine.high %v5857, %v5857
    %v5866 = vcombine.high %v5864, %v5864
    %v5867 = vcombine.high %v4698, %v4698
    %v5869 = vunpack.c.l.s4 1966171168
    %v5870 = vunpack.c.0.s8 %v5869
    %v5871 = vlaneseq
    %v5872 = vshrl.u32 %v5871, 7
    %v5873 = vsub.s32 %v5870, %v5872
    %v5874 = vrot.slane %v5867, %v5873
    %v5875 = vcombine.high %v5874, %v5874
    %v5877 = vunpack.c.l.s4 1966171168
    %v5878 = vunpack.c.0.s8 %v5877
    %v5879 = vlaneseq
    %v5880 = vshrl.u32 %v5879, 7
    %v5881 = vsub.s32 %v5878, %v5880
    %v5882 = vrot.slane %v5874, %v5881
    %v5884 = vunpack.c.l.s4 1966171168
    %v5885 = vunpack.c.0.s8 %v5884
    %v5886 = vlaneseq
    %v5887 = vshrl.u32 %v5886, 7
    %v5888 = vsub.s32 %v5885, %v5887
    %v5889 = vrot.slane %v5875, %v5888
    %v5890 = vcombine.high %v5882, %v5882
    %v5891 = vcombine.high %v5889, %v5889
    %v5893 = vunpack.c.l.s4 1966171168
    %v5894 = vunpack.c.0.s8 %v5893
    %v5895 = vlaneseq
    %v5896 = vshrl.u32 %v5895, 7
    %v5897 = vsub.s32 %v5894, %v5896
    %v5898 = vrot.slane %v5218, %v5897
    %v5899 = vcombine.high %v5898, %v5898
    %v5901 = vunpack.c.l.s4 1966171168
    %v5902 = vunpack.c.0.s8 %v5901
    %v5903 = vlaneseq
    %v5904 = vshrl.u32 %v5903, 7
    %v5905 = vsub.s32 %v5902, %v5904
    %v5906 = vrot.slane %v5898, %v5905
    %v5908 = vunpack.c.l.s4 1966171168
    %v5909 = vunpack.c.0.s8 %v5908
    %v5910 = vlaneseq
    %v5911 = vshrl.u32 %v5910, 7
    %v5912 = vsub.s32 %v5909, %v5911
    %v5913 = vrot.slane %v5899, %v5912
    %v5914 = vcombine.high %v5906, %v5906
    %v5915 = vcombine.high %v5913, %v5913
    %v5917 = vcombine.high %v5740, %v5740
    %v5919 = vunpack.c.l.s4 1966171168
    %v5920 = vunpack.c.0.s8 %v5919
    %v5921 = vlaneseq
    %v5922 = vshrl.u32 %v5921, 7
    %v5923 = vsub.s32 %v5920, %v5922
    %v5924 = vrot.slane %v5917, %v5923
    %v5925 = vcombine.high %v5924, %v5924
    %v5927 = vunpack.c.l.s4 1966171168
    %v5928 = vunpack.c.0.s8 %v5927
    %v5929 = vlaneseq
    %v5930 = vshrl.u32 %v5929, 7
    %v5931 = vsub.s32 %v5928, %v5930
    %v5932 = vrot.slane %v5924, %v5931
    %v5934 = vunpack.c.l.s4 1966171168
    %v5935 = vunpack.c.0.s8 %v5934
    %v5936 = vlaneseq
    %v5937 = vshrl.u32 %v5936, 7
    %v5938 = vsub.s32 %v5935, %v5937
    %v5939 = vrot.slane %v5925, %v5938
    %v5940 = vcombine.high %v5932, %v5932
    %v5941 = vcombine.high %v5939, %v5939
    %v5942 = vlaneseq
    %v5943 = vshrl.u32 %v5942, 7
    %v5944 = vsub.s32 0, %v5943
    %v5945 = vrot.slane %v5784, %v5944
    %v5946 = vlaneseq
    %v5947 = vshrl.u32 %v5946, 7
    %v5948 = vsub.s32 0, %v5947
    %v5949 = vrot.slane %v5791, %v5948
    %v5950 = vlaneseq
    %v5951 = vshrl.u32 %v5950, 7
    %v5952 = vsub.s32 0, %v5951
    %v5953 = vrot.slane %v5792, %v5952
    %v5954 = vlaneseq
    %v5955 = vshrl.u32 %v5954, 7
    %v5956 = vsub.s32 0, %v5955
    %v5957 = vrot.slane %v5793, %v5956
    %v5962 = vlaneseq
    %v5963 = vshrl.u32 %v5962, 7
    %v5964 = vsub.s32 0, %v5963
    %v5965 = vrot.slane %v5808, %v5964
    %v5966 = vlaneseq
    %v5967 = vshrl.u32 %v5966, 7
    %v5968 = vsub.s32 0, %v5967
    %v5969 = vrot.slane %v5815, %v5968
    %v5970 = vlaneseq
    %v5971 = vshrl.u32 %v5970, 7
    %v5972 = vsub.s32 0, %v5971
    %v5973 = vrot.slane %v5816, %v5972
    %v5974 = vlaneseq
    %v5975 = vshrl.u32 %v5974, 7
    %v5976 = vsub.s32 0, %v5975
    %v5977 = vrot.slane %v5817, %v5976
    %v5982 = vlaneseq
    %v5983 = vshrl.u32 %v5982, 7
    %v5984 = vsub.s32 0, %v5983
    %v5985 = vrot.slane %v5833, %v5984
    %v5986 = vlaneseq
    %v5987 = vshrl.u32 %v5986, 7
    %v5988 = vsub.s32 0, %v5987
    %v5989 = vrot.slane %v5840, %v5988
    %v5990 = vlaneseq
    %v5991 = vshrl.u32 %v5990, 7
    %v5992 = vsub.s32 0, %v5991
    %v5993 = vrot.slane %v5841, %v5992
    %v5994 = vlaneseq
    %v5995 = vshrl.u32 %v5994, 7
    %v5996 = vsub.s32 0, %v5995
    %v5997 = vrot.slane %v5842, %v5996
    %v6002 = vlaneseq
    %v6003 = vshrl.u32 %v6002, 7
    %v6004 = vsub.s32 0, %v6003
    %v6005 = vrot.slane %v5857, %v6004
    %v6006 = vlaneseq
    %v6007 = vshrl.u32 %v6006, 7
    %v6008 = vsub.s32 0, %v6007
    %v6009 = vrot.slane %v5864, %v6008
    %v6010 = vlaneseq
    %v6011 = vshrl.u32 %v6010, 7
    %v6012 = vsub.s32 0, %v6011
    %v6013 = vrot.slane %v5865, %v6012
    %v6014 = vlaneseq
    %v6015 = vshrl.u32 %v6014, 7
    %v6016 = vsub.s32 0, %v6015
    %v6017 = vrot.slane %v5866, %v6016
    %v6022 = vlaneseq
    %v6023 = vshrl.u32 %v6022, 7
    %v6024 = vsub.s32 0, %v6023
    %v6025 = vrot.slane %v5882, %v6024
    %v6026 = vlaneseq
    %v6027 = vshrl.u32 %v6026, 7
    %v6028 = vsub.s32 0, %v6027
    %v6029 = vrot.slane %v5889, %v6028
    %v6030 = vlaneseq
    %v6031 = vshrl.u32 %v6030, 7
    %v6032 = vsub.s32 0, %v6031
    %v6033 = vrot.slane %v5890, %v6032
    %v6034 = vlaneseq
    %v6035 = vshrl.u32 %v6034, 7
    %v6036 = vsub.s32 0, %v6035
    %v6037 = vrot.slane %v5891, %v6036
    %v6042 = vlaneseq
    %v6043 = vshrl.u32 %v6042, 7
    %v6044 = vsub.s32 0, %v6043
    %v6045 = vrot.slane %v5906, %v6044
    %v6046 = vlaneseq
    %v6047 = vshrl.u32 %v6046, 7
    %v6048 = vsub.s32 0, %v6047
    %v6049 = vrot.slane %v5913, %v6048
    %v6050 = vlaneseq
    %v6051 = vshrl.u32 %v6050, 7
    %v6052 = vsub.s32 0, %v6051
    %v6053 = vrot.slane %v5914, %v6052
    %v6054 = vlaneseq
    %v6055 = vshrl.u32 %v6054, 7
    %v6056 = vsub.s32 0, %v6055
    %v6057 = vrot.slane %v5915, %v6056
    %v6062 = vlaneseq
    %v6063 = vshrl.u32 %v6062, 7
    %v6064 = vsub.s32 0, %v6063
    %v6065 = vrot.slane %v5932, %v6064
    %v6066 = vlaneseq
    %v6067 = vshrl.u32 %v6066, 7
    %v6068 = vsub.s32 0, %v6067
    %v6069 = vrot.slane %v5939, %v6068
    %v6070 = vlaneseq
    %v6071 = vshrl.u32 %v6070, 7
    %v6072 = vsub.s32 0, %v6071
    %v6073 = vrot.slane %v5940, %v6072
    %v6074 = vlaneseq
    %v6075 = vshrl.u32 %v6074, 7
    %v6076 = vsub.s32 0, %v6075
    %v6077 = vrot.slane %v5941, %v6076
    %v6082 = vsel %vm234, %v5755, %v5945
    %v6083 = vsel %vm234, %v5762, %v5949
    %v6084 = vsel %vm234, %v5763, %v5953
    %v6085 = vsel %vm234, %v5764, %v5957
    %v6086 = vsel %vm236, %v6082, %v5965
    %v6087 = vsel %vm236, %v6083, %v5969
    %v6088 = vsel %vm236, %v6084, %v5973
    %v6089 = vsel %vm236, %v6085, %v5977
    %v6090 = vsel %vm238, %v6086, %v5985
    %v6091 = vsel %vm238, %v6087, %v5989
    %v6092 = vsel %vm238, %v6088, %v5993
    %v6093 = vsel %vm238, %v6089, %v5997
    %v6094 = vsel %vm240, %v6090, %v6005
    %v6095 = vsel %vm240, %v6091, %v6009
    %v6096 = vsel %vm240, %v6092, %v6013
    %v6097 = vsel %vm240, %v6093, %v6017
    %v6098 = vsel %vm242, %v6094, %v6025
    %v6099 = vsel %vm242, %v6095, %v6029
    %v6100 = vsel %vm242, %v6096, %v6033
    %v6101 = vsel %vm242, %v6097, %v6037
    %v6102 = vsel %vm244, %v6098, %v6045
    %v6103 = vsel %vm244, %v6099, %v6049
    %v6104 = vsel %vm244, %v6100, %v6053
    %v6105 = vsel %vm244, %v6101, %v6057
    %v6106 = vsel %vm246, %v6102, %v6065
    %v6107 = vsel %vm246, %v6103, %v6069
    %v6108 = vsel %vm246, %v6104, %v6073
    %v6109 = vsel %vm246, %v6105, %v6077
    %6111 = vrot.lane.b32.xlu0 %v6106, 32
    %v6112 = vpop.permute.xlu0 %6111
    %6114 = vrot.lane.b32.xlu0 %v6108, 32
    %v6115 = vpop.permute.xlu0 %6114
    %v6116 = vsel %vm952, %v6112, 0
    %v6118 = vsel %vm952, %v6115, 0
    %6120 = vmatprep.subr.mxu0 0.0
    %v6121 = vand.u32 %v6118, 4294901760
    %6122 = vmatpush1.xpose.msra.mxu0 %v6121
    %6123 = vmatprep.subr.mxu0 0.0
    %6124 = vmatpush1.xpose.msra.mxu0 0.0
    %6125 = vmatprep.subr.mxu0 0.0
    %6126 = vmatpush1.xpose.msra.mxu0 0.0
    %6127 = vmatprep.subr.mxu0 0.0
    %6128 = vmatpush1.xpose.msra.mxu0 0.0
    %6129 = vmatprep.subr.mxu0 0.0
    %6130 = vmatpush1.xpose.msra.mxu0 0.0
    %6131 = vmatprep.subr.mxu0 0.0
    %6132 = vmatpush1.xpose.msra.mxu0 0.0
    %6133 = vmatprep.subr.mxu0 0.0
    %6134 = vmatpush1.xpose.msra.mxu0 0.0
    %6135 = vmatprep.subr.mxu0 0.0
    %6136 = vmatpush1.xpose.msra.mxu0 0.0
    %6137 = vmatprep.subr.mxu0 0.0
    %6138 = vmatpush1.xpose.msra.mxu0 0.0
    %6139 = vmatprep.subr.mxu0 0.0
    %6140 = vmatpush1.xpose.msra.mxu0 0.0
    %6141 = vmatprep.subr.mxu0 0.0
    %6142 = vmatpush1.xpose.msra.mxu0 0.0
    %6143 = vmatprep.subr.mxu0 0.0
    %6144 = vmatpush1.xpose.msra.mxu0 0.0
    %6145 = vmatprep.subr.mxu0 0.0
    %6146 = vmatpush1.xpose.msra.mxu0 0.0
    %6147 = vmatprep.subr.mxu0 0.0
    %6148 = vmatpush1.xpose.msra.mxu0 0.0
    %6149 = vmatprep.subr.mxu0 0.0
    %6150 = vmatpush1.xpose.msra.mxu0 0.0
    %6151 = vmatprep.subr.mxu0 0.0
    %6152 = vmatpush1.xpose.msra.mxu0 0.0
    %6153 = vmatprep.subr.mxu0 0.0
    %6154 = vmatpush1.xpose.msra.mxu0 0.0
    %6155 = vmatprep.subr.mxu0 0.0
    %6156 = vmatpush1.xpose.msra.mxu0 0.0
    %6157 = vmatprep.subr.mxu0 0.0
    %6158 = vmatpush1.xpose.msra.mxu0 0.0
    %6159 = vmatprep.subr.mxu0 0.0
    %6160 = vmatpush1.xpose.msra.mxu0 0.0
    %6161 = vmatprep.subr.mxu0 0.0
    %6162 = vmatpush1.xpose.msra.mxu0 0.0
    %6163 = vmatprep.subr.mxu0 0.0
    %6164 = vmatpush1.xpose.msra.mxu0 0.0
    %6165 = vmatprep.subr.mxu0 0.0
    %6166 = vmatpush1.xpose.msra.mxu0 0.0
    %6167 = vmatprep.subr.mxu0 0.0
    %6168 = vmatpush1.xpose.msra.mxu0 0.0
    %6169 = vmatprep.subr.mxu0 0.0
    %6170 = vmatpush1.xpose.msra.mxu0 0.0
    %6171 = vmatprep.subr.mxu0 0.0
    %6172 = vmatpush1.xpose.msra.mxu0 0.0
    %6173 = vmatprep.subr.mxu0 0.0
    %6174 = vmatpush1.xpose.msra.mxu0 0.0
    %6175 = vmatprep.subr.mxu0 0.0
    %6176 = vmatpush1.xpose.msra.mxu0 0.0
    %6177 = vmatprep.subr.mxu0 0.0
    %6178 = vmatpush1.xpose.msra.mxu0 0.0
    %6179 = vmatprep.subr.mxu0 0.0
    %6180 = vmatpush1.xpose.msra.mxu0 0.0
    %6181 = vmatprep.subr.mxu0 0.0
    %6182 = vmatpush1.xpose.msra.mxu0 0.0
    %6183 = vmatprep.subr.mxu0 0.0
    %6184 = vmatpush1.xpose.msra.mxu0 0.0
    %6185 = vmatprep.mubr.f32.mxu0 0.0
    %v6186 = vand.u32 %v6116, 4294901760
    %v6187 = vsub.f32 %v6116, %v6186
    %v6188 = vand.u32 %v6187, 4294901760
    %v6189 = vsub.f32 %v6187, %v6188
    %v6190 = vand.u32 %v6189, 4294901760
    %6191 = vmatmul.mubr.f32.gmra.mrb[0].mxu0 %v6190
    %v6192 = vpop.f32.mrb[0].mxu0
    %v6193 = vadd.f32 0.0, %v6192
    %v6194 = vpop.f32.mrb[0].mxu0
    %6195 = vdwg.mxu0
    %6196 = vmatprep.subr.mxu0 0.0
    %v6197 = vand.u32 %v6118, 4294901760
    %v6198 = vsub.f32 %v6118, %v6197
    %v6199 = vand.u32 %v6198, 4294901760
    %v6200 = vsub.f32 %v6198, %v6199
    %v6201 = vand.u32 %v6200, 4294901760
    %6202 = vmatpush1.xpose.msra.mxu0 %v6201
    %6203 = vmatprep.subr.mxu0 0.0
    %6204 = vmatpush1.xpose.msra.mxu0 0.0
    %6205 = vmatprep.subr.mxu0 0.0
    %6206 = vmatpush1.xpose.msra.mxu0 0.0
    %6207 = vmatprep.subr.mxu0 0.0
    %6208 = vmatpush1.xpose.msra.mxu0 0.0
    %6209 = vmatprep.subr.mxu0 0.0
    %6210 = vmatpush1.xpose.msra.mxu0 0.0
    %6211 = vmatprep.subr.mxu0 0.0
    %6212 = vmatpush1.xpose.msra.mxu0 0.0
    %6213 = vmatprep.subr.mxu0 0.0
    %6214 = vmatpush1.xpose.msra.mxu0 0.0
    %6215 = vmatprep.subr.mxu0 0.0
    %6216 = vmatpush1.xpose.msra.mxu0 0.0
    %6217 = vmatprep.subr.mxu0 0.0
    %6218 = vmatpush1.xpose.msra.mxu0 0.0
    %6219 = vmatprep.subr.mxu0 0.0
    %6220 = vmatpush1.xpose.msra.mxu0 0.0
    %6221 = vmatprep.subr.mxu0 0.0
    %6222 = vmatpush1.xpose.msra.mxu0 0.0
    %6223 = vmatprep.subr.mxu0 0.0
    %6224 = vmatpush1.xpose.msra.mxu0 0.0
    %6225 = vmatprep.subr.mxu0 0.0
    %6226 = vmatpush1.xpose.msra.mxu0 0.0
    %6227 = vmatprep.subr.mxu0 0.0
    %6228 = vmatpush1.xpose.msra.mxu0 0.0
    %6229 = vmatprep.subr.mxu0 0.0
    %6230 = vmatpush1.xpose.msra.mxu0 0.0
    %6231 = vmatprep.subr.mxu0 0.0
    %6232 = vmatpush1.xpose.msra.mxu0 0.0
    %6233 = vmatprep.subr.mxu0 0.0
    %6234 = vmatpush1.xpose.msra.mxu0 0.0
    %6235 = vmatprep.subr.mxu0 0.0
    %6236 = vmatpush1.xpose.msra.mxu0 0.0
    %6237 = vmatprep.subr.mxu0 0.0
    %6238 = vmatpush1.xpose.msra.mxu0 0.0
    %6239 = vmatprep.subr.mxu0 0.0
    %6240 = vmatpush1.xpose.msra.mxu0 0.0
    %6241 = vmatprep.subr.mxu0 0.0
    %6242 = vmatpush1.xpose.msra.mxu0 0.0
    %6243 = vmatprep.subr.mxu0 0.0
    %6244 = vmatpush1.xpose.msra.mxu0 0.0
    %6245 = vmatprep.subr.mxu0 0.0
    %6246 = vmatpush1.xpose.msra.mxu0 0.0
    %6247 = vmatprep.subr.mxu0 0.0
    %6248 = vmatpush1.xpose.msra.mxu0 0.0
    %6249 = vmatprep.subr.mxu0 0.0
    %6250 = vmatpush1.xpose.msra.mxu0 0.0
    %6251 = vmatprep.subr.mxu0 0.0
    %6252 = vmatpush1.xpose.msra.mxu0 0.0
    %6253 = vmatprep.subr.mxu0 0.0
    %6254 = vmatpush1.xpose.msra.mxu0 0.0
    %6255 = vmatprep.subr.mxu0 0.0
    %6256 = vmatpush1.xpose.msra.mxu0 0.0
    %6257 = vmatprep.subr.mxu0 0.0
    %6258 = vmatpush1.xpose.msra.mxu0 0.0
    %6259 = vmatprep.subr.mxu0 0.0
    %6260 = vmatpush1.xpose.msra.mxu0 0.0
    %6261 = vmatprep.subr.mxu0 0.0
    %6262 = vmatpush1.xpose.msra.mxu0 0.0
    %6263 = vmatprep.subr.mxu0 0.0
    %6264 = vmatpush1.xpose.msra.mxu0 0.0
    %6265 = vmatprep.mubr.f32.mxu0 0.0
    %v6266 = vand.u32 %v6116, 4294901760
    %6267 = vmatmul.mubr.f32.gmra.mrb[0].mxu0 %v6266
    %v6268 = vpop.f32.mrb[0].mxu0
    %v6269 = vadd.f32 %v6193, %v6268
    %v6270 = vpop.f32.mrb[0].mxu0
    %6271 = vdwg.mxu0
    %6272 = vmatprep.subr.mxu0 0.0
    %v6273 = vand.u32 %v6118, 4294901760
    %v6274 = vsub.f32 %v6118, %v6273
    %6275 = vmatpush1.xpose.msra.mxu0 %v6274
    %6276 = vmatprep.subr.mxu0 0.0
    %6277 = vmatpush1.xpose.msra.mxu0 0.0
    %6278 = vmatprep.subr.mxu0 0.0
    %6279 = vmatpush1.xpose.msra.mxu0 0.0
    %6280 = vmatprep.subr.mxu0 0.0
    %6281 = vmatpush1.xpose.msra.mxu0 0.0
    %6282 = vmatprep.subr.mxu0 0.0
    %6283 = vmatpush1.xpose.msra.mxu0 0.0
    %6284 = vmatprep.subr.mxu0 0.0
    %6285 = vmatpush1.xpose.msra.mxu0 0.0
    %6286 = vmatprep.subr.mxu0 0.0
    %6287 = vmatpush1.xpose.msra.mxu0 0.0
    %6288 = vmatprep.subr.mxu0 0.0
    %6289 = vmatpush1.xpose.msra.mxu0 0.0
    %6290 = vmatprep.subr.mxu0 0.0
    %6291 = vmatpush1.xpose.msra.mxu0 0.0
    %6292 = vmatprep.subr.mxu0 0.0
    %6293 = vmatpush1.xpose.msra.mxu0 0.0
    %6294 = vmatprep.subr.mxu0 0.0
    %6295 = vmatpush1.xpose.msra.mxu0 0.0
    %6296 = vmatprep.subr.mxu0 0.0
    %6297 = vmatpush1.xpose.msra.mxu0 0.0
    %6298 = vmatprep.subr.mxu0 0.0
    %6299 = vmatpush1.xpose.msra.mxu0 0.0
    %6300 = vmatprep.subr.mxu0 0.0
    %6301 = vmatpush1.xpose.msra.mxu0 0.0
    %6302 = vmatprep.subr.mxu0 0.0
    %6303 = vmatpush1.xpose.msra.mxu0 0.0
    %6304 = vmatprep.subr.mxu0 0.0
    %6305 = vmatpush1.xpose.msra.mxu0 0.0
    %6306 = vmatprep.subr.mxu0 0.0
    %6307 = vmatpush1.xpose.msra.mxu0 0.0
    %6308 = vmatprep.subr.mxu0 0.0
    %6309 = vmatpush1.xpose.msra.mxu0 0.0
    %6310 = vmatprep.subr.mxu0 0.0
    %6311 = vmatpush1.xpose.msra.mxu0 0.0
    %6312 = vmatprep.subr.mxu0 0.0
    %6313 = vmatpush1.xpose.msra.mxu0 0.0
    %6314 = vmatprep.subr.mxu0 0.0
    %6315 = vmatpush1.xpose.msra.mxu0 0.0
    %6316 = vmatprep.subr.mxu0 0.0
    %6317 = vmatpush1.xpose.msra.mxu0 0.0
    %6318 = vmatprep.subr.mxu0 0.0
    %6319 = vmatpush1.xpose.msra.mxu0 0.0
    %6320 = vmatprep.subr.mxu0 0.0
    %6321 = vmatpush1.xpose.msra.mxu0 0.0
    %6322 = vmatprep.subr.mxu0 0.0
    %6323 = vmatpush1.xpose.msra.mxu0 0.0
    %6324 = vmatprep.subr.mxu0 0.0
    %6325 = vmatpush1.xpose.msra.mxu0 0.0
    %6326 = vmatprep.subr.mxu0 0.0
    %6327 = vmatpush1.xpose.msra.mxu0 0.0
    %6328 = vmatprep.subr.mxu0 0.0
    %6329 = vmatpush1.xpose.msra.mxu0 0.0
    %6330 = vmatprep.subr.mxu0 0.0
    %6331 = vmatpush1.xpose.msra.mxu0 0.0
    %6332 = vmatprep.subr.mxu0 0.0
    %6333 = vmatpush1.xpose.msra.mxu0 0.0
    %6334 = vmatprep.subr.mxu0 0.0
    %6335 = vmatpush1.xpose.msra.mxu0 0.0
    %6336 = vmatprep.subr.mxu0 0.0
    %6337 = vmatpush1.xpose.msra.mxu0 0.0
    %6338 = vmatprep.mubr.f32.mxu0 0.0
    %v6339 = vand.u32 %v6116, 4294901760
    %v6340 = vsub.f32 %v6116, %v6339
    %6341 = vmatmul.mubr.f32.gmra.mrb[0].mxu0 %v6340
    %v6342 = vpop.f32.mrb[0].mxu0
    %v6343 = vadd.f32 %v6269, %v6342
    %v6344 = vpop.f32.mrb[0].mxu0
    %6345 = vdwg.mxu0
    %6346 = vmatprep.subr.mxu0 0.0
    %v6347 = vand.u32 %v6118, 4294901760
    %6348 = vmatpush1.xpose.msra.mxu0 %v6347
    %6349 = vmatprep.subr.mxu0 0.0
    %6350 = vmatpush1.xpose.msra.mxu0 0.0
    %6351 = vmatprep.subr.mxu0 0.0
    %6352 = vmatpush1.xpose.msra.mxu0 0.0
    %6353 = vmatprep.subr.mxu0 0.0
    %6354 = vmatpush1.xpose.msra.mxu0 0.0
    %6355 = vmatprep.subr.mxu0 0.0
    %6356 = vmatpush1.xpose.msra.mxu0 0.0
    %6357 = vmatprep.subr.mxu0 0.0
    %6358 = vmatpush1.xpose.msra.mxu0 0.0
    %6359 = vmatprep.subr.mxu0 0.0
    %6360 = vmatpush1.xpose.msra.mxu0 0.0
    %6361 = vmatprep.subr.mxu0 0.0
    %6362 = vmatpush1.xpose.msra.mxu0 0.0
    %6363 = vmatprep.subr.mxu0 0.0
    %6364 = vmatpush1.xpose.msra.mxu0 0.0
    %6365 = vmatprep.subr.mxu0 0.0
    %6366 = vmatpush1.xpose.msra.mxu0 0.0
    %6367 = vmatprep.subr.mxu0 0.0
    %6368 = vmatpush1.xpose.msra.mxu0 0.0
    %6369 = vmatprep.subr.mxu0 0.0
    %6370 = vmatpush1.xpose.msra.mxu0 0.0
    %6371 = vmatprep.subr.mxu0 0.0
    %6372 = vmatpush1.xpose.msra.mxu0 0.0
    %6373 = vmatprep.subr.mxu0 0.0
    %6374 = vmatpush1.xpose.msra.mxu0 0.0
    %6375 = vmatprep.subr.mxu0 0.0
    %6376 = vmatpush1.xpose.msra.mxu0 0.0
    %6377 = vmatprep.subr.mxu0 0.0
    %6378 = vmatpush1.xpose.msra.mxu0 0.0
    %6379 = vmatprep.subr.mxu0 0.0
    %6380 = vmatpush1.xpose.msra.mxu0 0.0
    %6381 = vmatprep.subr.mxu0 0.0
    %6382 = vmatpush1.xpose.msra.mxu0 0.0
    %6383 = vmatprep.subr.mxu0 0.0
    %6384 = vmatpush1.xpose.msra.mxu0 0.0
    %6385 = vmatprep.subr.mxu0 0.0
    %6386 = vmatpush1.xpose.msra.mxu0 0.0
    %6387 = vmatprep.subr.mxu0 0.0
    %6388 = vmatpush1.xpose.msra.mxu0 0.0
    %6389 = vmatprep.subr.mxu0 0.0
    %6390 = vmatpush1.xpose.msra.mxu0 0.0
    %6391 = vmatprep.subr.mxu0 0.0
    %6392 = vmatpush1.xpose.msra.mxu0 0.0
    %6393 = vmatprep.subr.mxu0 0.0
    %6394 = vmatpush1.xpose.msra.mxu0 0.0
    %6395 = vmatprep.subr.mxu0 0.0
    %6396 = vmatpush1.xpose.msra.mxu0 0.0
    %6397 = vmatprep.subr.mxu0 0.0
    %6398 = vmatpush1.xpose.msra.mxu0 0.0
    %6399 = vmatprep.subr.mxu0 0.0
    %6400 = vmatpush1.xpose.msra.mxu0 0.0
    %6401 = vmatprep.subr.mxu0 0.0
    %6402 = vmatpush1.xpose.msra.mxu0 0.0
    %6403 = vmatprep.subr.mxu0 0.0
    %6404 = vmatpush1.xpose.msra.mxu0 0.0
    %6405 = vmatprep.subr.mxu0 0.0
    %6406 = vmatpush1.xpose.msra.mxu0 0.0
    %6407 = vmatprep.subr.mxu0 0.0
    %6408 = vmatpush1.xpose.msra.mxu0 0.0
    %6409 = vmatprep.subr.mxu0 0.0
    %6410 = vmatpush1.xpose.msra.mxu0 0.0
    %6411 = vmatprep.mubr.f32.mxu0 0.0
    %v6412 = vand.u32 %v6116, 4294901760
    %v6413 = vsub.f32 %v6116, %v6412
    %v6414 = vand.u32 %v6413, 4294901760
    %6415 = vmatmul.mubr.f32.gmra.mrb[0].mxu0 %v6414
    %v6416 = vpop.f32.mrb[0].mxu0
    %v6417 = vadd.f32 %v6343, %v6416
    %v6418 = vpop.f32.mrb[0].mxu0
    %6419 = vdwg.mxu0
    %6420 = vmatprep.subr.mxu0 0.0
    %v6421 = vand.u32 %v6118, 4294901760
    %v6422 = vsub.f32 %v6118, %v6421
    %v6423 = vand.u32 %v6422, 4294901760
    %6424 = vmatpush1.xpose.msra.mxu0 %v6423
    %6425 = vmatprep.subr.mxu0 0.0
    %6426 = vmatpush1.xpose.msra.mxu0 0.0
    %6427 = vmatprep.subr.mxu0 0.0
    %6428 = vmatpush1.xpose.msra.mxu0 0.0
    %6429 = vmatprep.subr.mxu0 0.0
    %6430 = vmatpush1.xpose.msra.mxu0 0.0
    %6431 = vmatprep.subr.mxu0 0.0
    %6432 = vmatpush1.xpose.msra.mxu0 0.0
    %6433 = vmatprep.subr.mxu0 0.0
    %6434 = vmatpush1.xpose.msra.mxu0 0.0
    %6435 = vmatprep.subr.mxu0 0.0
    %6436 = vmatpush1.xpose.msra.mxu0 0.0
    %6437 = vmatprep.subr.mxu0 0.0
    %6438 = vmatpush1.xpose.msra.mxu0 0.0
    %6439 = vmatprep.subr.mxu0 0.0
    %6440 = vmatpush1.xpose.msra.mxu0 0.0
    %6441 = vmatprep.subr.mxu0 0.0
    %6442 = vmatpush1.xpose.msra.mxu0 0.0
    %6443 = vmatprep.subr.mxu0 0.0
    %6444 = vmatpush1.xpose.msra.mxu0 0.0
    %6445 = vmatprep.subr.mxu0 0.0
    %6446 = vmatpush1.xpose.msra.mxu0 0.0
    %6447 = vmatprep.subr.mxu0 0.0
    %6448 = vmatpush1.xpose.msra.mxu0 0.0
    %6449 = vmatprep.subr.mxu0 0.0
    %6450 = vmatpush1.xpose.msra.mxu0 0.0
    %6451 = vmatprep.subr.mxu0 0.0
    %6452 = vmatpush1.xpose.msra.mxu0 0.0
    %6453 = vmatprep.subr.mxu0 0.0
    %6454 = vmatpush1.xpose.msra.mxu0 0.0
    %6455 = vmatprep.subr.mxu0 0.0
    %6456 = vmatpush1.xpose.msra.mxu0 0.0
    %6457 = vmatprep.subr.mxu0 0.0
    %6458 = vmatpush1.xpose.msra.mxu0 0.0
    %6459 = vmatprep.subr.mxu0 0.0
    %6460 = vmatpush1.xpose.msra.mxu0 0.0
    %6461 = vmatprep.subr.mxu0 0.0
    %6462 = vmatpush1.xpose.msra.mxu0 0.0
    %6463 = vmatprep.subr.mxu0 0.0
    %6464 = vmatpush1.xpose.msra.mxu0 0.0
    %6465 = vmatprep.subr.mxu0 0.0
    %6466 = vmatpush1.xpose.msra.mxu0 0.0
    %6467 = vmatprep.subr.mxu0 0.0
    %6468 = vmatpush1.xpose.msra.mxu0 0.0
    %6469 = vmatprep.subr.mxu0 0.0
    %6470 = vmatpush1.xpose.msra.mxu0 0.0
    %6471 = vmatprep.subr.mxu0 0.0
    %6472 = vmatpush1.xpose.msra.mxu0 0.0
    %6473 = vmatprep.subr.mxu0 0.0
    %6474 = vmatpush1.xpose.msra.mxu0 0.0
    %6475 = vmatprep.subr.mxu0 0.0
    %6476 = vmatpush1.xpose.msra.mxu0 0.0
    %6477 = vmatprep.subr.mxu0 0.0
    %6478 = vmatpush1.xpose.msra.mxu0 0.0
    %6479 = vmatprep.subr.mxu0 0.0
    %6480 = vmatpush1.xpose.msra.mxu0 0.0
    %6481 = vmatprep.subr.mxu0 0.0
    %6482 = vmatpush1.xpose.msra.mxu0 0.0
    %6483 = vmatprep.subr.mxu0 0.0
    %6484 = vmatpush1.xpose.msra.mxu0 0.0
    %6485 = vmatprep.subr.mxu0 0.0
    %6486 = vmatpush1.xpose.msra.mxu0 0.0
    %6487 = vmatprep.mubr.f32.mxu0 0.0
    %v6488 = vand.u32 %v6116, 4294901760
    %6489 = vmatmul.mubr.f32.gmra.mrb[0].mxu0 %v6488
    %v6490 = vpop.f32.mrb[0].mxu0
    %v6491 = vadd.f32 %v6417, %v6490
    %v6492 = vpop.f32.mrb[0].mxu0
    %6493 = vdwg.mxu0
    %6494 = vmatprep.subr.mxu0 0.0
    %v6495 = vand.u32 %v6118, 4294901760
    %6496 = vmatpush1.xpose.msra.mxu0 %v6495
    %6497 = vmatprep.subr.mxu0 0.0
    %6498 = vmatpush1.xpose.msra.mxu0 0.0
    %6499 = vmatprep.subr.mxu0 0.0
    %6500 = vmatpush1.xpose.msra.mxu0 0.0
    %6501 = vmatprep.subr.mxu0 0.0
    %6502 = vmatpush1.xpose.msra.mxu0 0.0
    %6503 = vmatprep.subr.mxu0 0.0
    %6504 = vmatpush1.xpose.msra.mxu0 0.0
    %6505 = vmatprep.subr.mxu0 0.0
    %6506 = vmatpush1.xpose.msra.mxu0 0.0
    %6507 = vmatprep.subr.mxu0 0.0
    %6508 = vmatpush1.xpose.msra.mxu0 0.0
    %6509 = vmatprep.subr.mxu0 0.0
    %6510 = vmatpush1.xpose.msra.mxu0 0.0
    %6511 = vmatprep.subr.mxu0 0.0
    %6512 = vmatpush1.xpose.msra.mxu0 0.0
    %6513 = vmatprep.subr.mxu0 0.0
    %6514 = vmatpush1.xpose.msra.mxu0 0.0
    %6515 = vmatprep.subr.mxu0 0.0
    %6516 = vmatpush1.xpose.msra.mxu0 0.0
    %6517 = vmatprep.subr.mxu0 0.0
    %6518 = vmatpush1.xpose.msra.mxu0 0.0
    %6519 = vmatprep.subr.mxu0 0.0
    %6520 = vmatpush1.xpose.msra.mxu0 0.0
    %6521 = vmatprep.subr.mxu0 0.0
    %6522 = vmatpush1.xpose.msra.mxu0 0.0
    %6523 = vmatprep.subr.mxu0 0.0
    %6524 = vmatpush1.xpose.msra.mxu0 0.0
    %6525 = vmatprep.subr.mxu0 0.0
    %6526 = vmatpush1.xpose.msra.mxu0 0.0
    %6527 = vmatprep.subr.mxu0 0.0
    %6528 = vmatpush1.xpose.msra.mxu0 0.0
    %6529 = vmatprep.subr.mxu0 0.0
    %6530 = vmatpush1.xpose.msra.mxu0 0.0
    %6531 = vmatprep.subr.mxu0 0.0
    %6532 = vmatpush1.xpose.msra.mxu0 0.0
    %6533 = vmatprep.subr.mxu0 0.0
    %6534 = vmatpush1.xpose.msra.mxu0 0.0
    %6535 = vmatprep.subr.mxu0 0.0
    %6536 = vmatpush1.xpose.msra.mxu0 0.0
    %6537 = vmatprep.subr.mxu0 0.0
    %6538 = vmatpush1.xpose.msra.mxu0 0.0
    %6539 = vmatprep.subr.mxu0 0.0
    %6540 = vmatpush1.xpose.msra.mxu0 0.0
    %6541 = vmatprep.subr.mxu0 0.0
    %6542 = vmatpush1.xpose.msra.mxu0 0.0
    %6543 = vmatprep.subr.mxu0 0.0
    %6544 = vmatpush1.xpose.msra.mxu0 0.0
    %6545 = vmatprep.subr.mxu0 0.0
    %6546 = vmatpush1.xpose.msra.mxu0 0.0
    %6547 = vmatprep.subr.mxu0 0.0
    %6548 = vmatpush1.xpose.msra.mxu0 0.0
    %6549 = vmatprep.subr.mxu0 0.0
    %6550 = vmatpush1.xpose.msra.mxu0 0.0
    %6551 = vmatprep.subr.mxu0 0.0
    %6552 = vmatpush1.xpose.msra.mxu0 0.0
    %6553 = vmatprep.subr.mxu0 0.0
    %6554 = vmatpush1.xpose.msra.mxu0 0.0
    %6555 = vmatprep.subr.mxu0 0.0
    %6556 = vmatpush1.xpose.msra.mxu0 0.0
    %6557 = vmatprep.subr.mxu0 0.0
    %6558 = vmatpush1.xpose.msra.mxu0 0.0
    %6559 = vmatprep.mubr.f32.mxu0 0.0
    %v6560 = vand.u32 %v6116, 4294901760
    %6561 = vmatmul.mubr.f32.gmra.mrb[0].mxu0 %v6560
    %v6562 = vpop.f32.mrb[0].mxu0
    %v6563 = vadd.f32 %v6491, %v6562
    %v6564 = vpop.f32.mrb[0].mxu0
    %6565 = vdwg.mxu0
    %6567 = vrot.lane.b32.xlu0 %v6107, 32
    %v6568 = vpop.permute.xlu0 %6567
    %6570 = vrot.lane.b32.xlu0 %v6109, 32
    %v6571 = vpop.permute.xlu0 %6570
    %v6572 = vsel %vm952, %v6568, 0
    %v6574 = vsel %vm952, %v6571, 0
    %6576 = vmatprep.subr.mxu0 0.0
    %v6577 = vand.u32 %v6574, 4294901760
    %6578 = vmatpush1.xpose.msra.mxu0 %v6577
    %6579 = vmatprep.subr.mxu0 0.0
    %6580 = vmatpush1.xpose.msra.mxu0 0.0
    %6581 = vmatprep.subr.mxu0 0.0
    %6582 = vmatpush1.xpose.msra.mxu0 0.0
    %6583 = vmatprep.subr.mxu0 0.0
    %6584 = vmatpush1.xpose.msra.mxu0 0.0
    %6585 = vmatprep.subr.mxu0 0.0
    %6586 = vmatpush1.xpose.msra.mxu0 0.0
    %6587 = vmatprep.subr.mxu0 0.0
    %6588 = vmatpush1.xpose.msra.mxu0 0.0
    %6589 = vmatprep.subr.mxu0 0.0
    %6590 = vmatpush1.xpose.msra.mxu0 0.0
    %6591 = vmatprep.subr.mxu0 0.0
    %6592 = vmatpush1.xpose.msra.mxu0 0.0
    %6593 = vmatprep.subr.mxu0 0.0
    %6594 = vmatpush1.xpose.msra.mxu0 0.0
    %6595 = vmatprep.subr.mxu0 0.0
    %6596 = vmatpush1.xpose.msra.mxu0 0.0
    %6597 = vmatprep.subr.mxu0 0.0
    %6598 = vmatpush1.xpose.msra.mxu0 0.0
    %6599 = vmatprep.subr.mxu0 0.0
    %6600 = vmatpush1.xpose.msra.mxu0 0.0
    %6601 = vmatprep.subr.mxu0 0.0
    %6602 = vmatpush1.xpose.msra.mxu0 0.0
    %6603 = vmatprep.subr.mxu0 0.0
    %6604 = vmatpush1.xpose.msra.mxu0 0.0
    %6605 = vmatprep.subr.mxu0 0.0
    %6606 = vmatpush1.xpose.msra.mxu0 0.0
    %6607 = vmatprep.subr.mxu0 0.0
    %6608 = vmatpush1.xpose.msra.mxu0 0.0
    %6609 = vmatprep.subr.mxu0 0.0
    %6610 = vmatpush1.xpose.msra.mxu0 0.0
    %6611 = vmatprep.subr.mxu0 0.0
    %6612 = vmatpush1.xpose.msra.mxu0 0.0
    %6613 = vmatprep.subr.mxu0 0.0
    %6614 = vmatpush1.xpose.msra.mxu0 0.0
    %6615 = vmatprep.subr.mxu0 0.0
    %6616 = vmatpush1.xpose.msra.mxu0 0.0
    %6617 = vmatprep.subr.mxu0 0.0
    %6618 = vmatpush1.xpose.msra.mxu0 0.0
    %6619 = vmatprep.subr.mxu0 0.0
    %6620 = vmatpush1.xpose.msra.mxu0 0.0
    %6621 = vmatprep.subr.mxu0 0.0
    %6622 = vmatpush1.xpose.msra.mxu0 0.0
    %6623 = vmatprep.subr.mxu0 0.0
    %6624 = vmatpush1.xpose.msra.mxu0 0.0
    %6625 = vmatprep.subr.mxu0 0.0
    %6626 = vmatpush1.xpose.msra.mxu0 0.0
    %6627 = vmatprep.subr.mxu0 0.0
    %6628 = vmatpush1.xpose.msra.mxu0 0.0
    %6629 = vmatprep.subr.mxu0 0.0
    %6630 = vmatpush1.xpose.msra.mxu0 0.0
    %6631 = vmatprep.subr.mxu0 0.0
    %6632 = vmatpush1.xpose.msra.mxu0 0.0
    %6633 = vmatprep.subr.mxu0 0.0
    %6634 = vmatpush1.xpose.msra.mxu0 0.0
    %6635 = vmatprep.subr.mxu0 0.0
    %6636 = vmatpush1.xpose.msra.mxu0 0.0
    %6637 = vmatprep.subr.mxu0 0.0
    %6638 = vmatpush1.xpose.msra.mxu0 0.0
    %6639 = vmatprep.subr.mxu0 0.0
    %6640 = vmatpush1.xpose.msra.mxu0 0.0
    %6641 = vmatprep.mubr.f32.mxu0 0.0
    %v6642 = vand.u32 %v6572, 4294901760
    %v6643 = vsub.f32 %v6572, %v6642
    %v6644 = vand.u32 %v6643, 4294901760
    %v6645 = vsub.f32 %v6643, %v6644
    %v6646 = vand.u32 %v6645, 4294901760
    %6647 = vmatmul.mubr.f32.gmra.mrb[0].mxu0 %v6646
    %v6648 = vpop.f32.mrb[0].mxu0
    %v6649 = vadd.f32 0.0, %v6648
    %v6650 = vpop.f32.mrb[0].mxu0
    %6651 = vdwg.mxu0
    %6652 = vmatprep.subr.mxu0 0.0
    %v6653 = vand.u32 %v6574, 4294901760
    %v6654 = vsub.f32 %v6574, %v6653
    %v6655 = vand.u32 %v6654, 4294901760
    %v6656 = vsub.f32 %v6654, %v6655
    %v6657 = vand.u32 %v6656, 4294901760
    %6658 = vmatpush1.xpose.msra.mxu0 %v6657
    %6659 = vmatprep.subr.mxu0 0.0
    %6660 = vmatpush1.xpose.msra.mxu0 0.0
    %6661 = vmatprep.subr.mxu0 0.0
    %6662 = vmatpush1.xpose.msra.mxu0 0.0
    %6663 = vmatprep.subr.mxu0 0.0
    %6664 = vmatpush1.xpose.msra.mxu0 0.0
    %6665 = vmatprep.subr.mxu0 0.0
    %6666 = vmatpush1.xpose.msra.mxu0 0.0
    %6667 = vmatprep.subr.mxu0 0.0
    %6668 = vmatpush1.xpose.msra.mxu0 0.0
    %6669 = vmatprep.subr.mxu0 0.0
    %6670 = vmatpush1.xpose.msra.mxu0 0.0
    %6671 = vmatprep.subr.mxu0 0.0
    %6672 = vmatpush1.xpose.msra.mxu0 0.0
    %6673 = vmatprep.subr.mxu0 0.0
    %6674 = vmatpush1.xpose.msra.mxu0 0.0
    %6675 = vmatprep.subr.mxu0 0.0
    %6676 = vmatpush1.xpose.msra.mxu0 0.0
    %6677 = vmatprep.subr.mxu0 0.0
    %6678 = vmatpush1.xpose.msra.mxu0 0.0
    %6679 = vmatprep.subr.mxu0 0.0
    %6680 = vmatpush1.xpose.msra.mxu0 0.0
    %6681 = vmatprep.subr.mxu0 0.0
    %6682 = vmatpush1.xpose.msra.mxu0 0.0
    %6683 = vmatprep.subr.mxu0 0.0
    %6684 = vmatpush1.xpose.msra.mxu0 0.0
    %6685 = vmatprep.subr.mxu0 0.0
    %6686 = vmatpush1.xpose.msra.mxu0 0.0
    %6687 = vmatprep.subr.mxu0 0.0
    %6688 = vmatpush1.xpose.msra.mxu0 0.0
    %6689 = vmatprep.subr.mxu0 0.0
    %6690 = vmatpush1.xpose.msra.mxu0 0.0
    %6691 = vmatprep.subr.mxu0 0.0
    %6692 = vmatpush1.xpose.msra.mxu0 0.0
    %6693 = vmatprep.subr.mxu0 0.0
    %6694 = vmatpush1.xpose.msra.mxu0 0.0
    %6695 = vmatprep.subr.mxu0 0.0
    %6696 = vmatpush1.xpose.msra.mxu0 0.0
    %6697 = vmatprep.subr.mxu0 0.0
    %6698 = vmatpush1.xpose.msra.mxu0 0.0
    %6699 = vmatprep.subr.mxu0 0.0
    %6700 = vmatpush1.xpose.msra.mxu0 0.0
    %6701 = vmatprep.subr.mxu0 0.0
    %6702 = vmatpush1.xpose.msra.mxu0 0.0
    %6703 = vmatprep.subr.mxu0 0.0
    %6704 = vmatpush1.xpose.msra.mxu0 0.0
    %6705 = vmatprep.subr.mxu0 0.0
    %6706 = vmatpush1.xpose.msra.mxu0 0.0
    %6707 = vmatprep.subr.mxu0 0.0
    %6708 = vmatpush1.xpose.msra.mxu0 0.0
    %6709 = vmatprep.subr.mxu0 0.0
    %6710 = vmatpush1.xpose.msra.mxu0 0.0
    %6711 = vmatprep.subr.mxu0 0.0
    %6712 = vmatpush1.xpose.msra.mxu0 0.0
    %6713 = vmatprep.subr.mxu0 0.0
    %6714 = vmatpush1.xpose.msra.mxu0 0.0
    %6715 = vmatprep.subr.mxu0 0.0
    %6716 = vmatpush1.xpose.msra.mxu0 0.0
    %6717 = vmatprep.subr.mxu0 0.0
    %6718 = vmatpush1.xpose.msra.mxu0 0.0
    %6719 = vmatprep.subr.mxu0 0.0
    %6720 = vmatpush1.xpose.msra.mxu0 0.0
    %6721 = vmatprep.mubr.f32.mxu0 0.0
    %v6722 = vand.u32 %v6572, 4294901760
    %6723 = vmatmul.mubr.f32.gmra.mrb[0].mxu0 %v6722
    %v6724 = vpop.f32.mrb[0].mxu0
    %v6725 = vadd.f32 %v6649, %v6724
    %v6726 = vpop.f32.mrb[0].mxu0
    %6727 = vdwg.mxu0
    %6728 = vmatprep.subr.mxu0 0.0
    %v6729 = vand.u32 %v6574, 4294901760
    %v6730 = vsub.f32 %v6574, %v6729
    %6731 = vmatpush1.xpose.msra.mxu0 %v6730
    %6732 = vmatprep.subr.mxu0 0.0
    %6733 = vmatpush1.xpose.msra.mxu0 0.0
    %6734 = vmatprep.subr.mxu0 0.0
    %6735 = vmatpush1.xpose.msra.mxu0 0.0
    %6736 = vmatprep.subr.mxu0 0.0
    %6737 = vmatpush1.xpose.msra.mxu0 0.0
    %6738 = vmatprep.subr.mxu0 0.0
    %6739 = vmatpush1.xpose.msra.mxu0 0.0
    %6740 = vmatprep.subr.mxu0 0.0
    %6741 = vmatpush1.xpose.msra.mxu0 0.0
    %6742 = vmatprep.subr.mxu0 0.0
    %6743 = vmatpush1.xpose.msra.mxu0 0.0
    %6744 = vmatprep.subr.mxu0 0.0
    %6745 = vmatpush1.xpose.msra.mxu0 0.0
    %6746 = vmatprep.subr.mxu0 0.0
    %6747 = vmatpush1.xpose.msra.mxu0 0.0
    %6748 = vmatprep.subr.mxu0 0.0
    %6749 = vmatpush1.xpose.msra.mxu0 0.0
    %6750 = vmatprep.subr.mxu0 0.0
    %6751 = vmatpush1.xpose.msra.mxu0 0.0
    %6752 = vmatprep.subr.mxu0 0.0
    %6753 = vmatpush1.xpose.msra.mxu0 0.0
    %6754 = vmatprep.subr.mxu0 0.0
    %6755 = vmatpush1.xpose.msra.mxu0 0.0
    %6756 = vmatprep.subr.mxu0 0.0
    %6757 = vmatpush1.xpose.msra.mxu0 0.0
    %6758 = vmatprep.subr.mxu0 0.0
    %6759 = vmatpush1.xpose.msra.mxu0 0.0
    %6760 = vmatprep.subr.mxu0 0.0
    %6761 = vmatpush1.xpose.msra.mxu0 0.0
    %6762 = vmatprep.subr.mxu0 0.0
    %6763 = vmatpush1.xpose.msra.mxu0 0.0
    %6764 = vmatprep.subr.mxu0 0.0
    %6765 = vmatpush1.xpose.msra.mxu0 0.0
    %6766 = vmatprep.subr.mxu0 0.0
    %6767 = vmatpush1.xpose.msra.mxu0 0.0
    %6768 = vmatprep.subr.mxu0 0.0
    %6769 = vmatpush1.xpose.msra.mxu0 0.0
    %6770 = vmatprep.subr.mxu0 0.0
    %6771 = vmatpush1.xpose.msra.mxu0 0.0
    %6772 = vmatprep.subr.mxu0 0.0
    %6773 = vmatpush1.xpose.msra.mxu0 0.0
    %6774 = vmatprep.subr.mxu0 0.0
    %6775 = vmatpush1.xpose.msra.mxu0 0.0
    %6776 = vmatprep.subr.mxu0 0.0
    %6777 = vmatpush1.xpose.msra.mxu0 0.0
    %6778 = vmatprep.subr.mxu0 0.0
    %6779 = vmatpush1.xpose.msra.mxu0 0.0
    %6780 = vmatprep.subr.mxu0 0.0
    %6781 = vmatpush1.xpose.msra.mxu0 0.0
    %6782 = vmatprep.subr.mxu0 0.0
    %6783 = vmatpush1.xpose.msra.mxu0 0.0
    %6784 = vmatprep.subr.mxu0 0.0
    %6785 = vmatpush1.xpose.msra.mxu0 0.0
    %6786 = vmatprep.subr.mxu0 0.0
    %6787 = vmatpush1.xpose.msra.mxu0 0.0
    %6788 = vmatprep.subr.mxu0 0.0
    %6789 = vmatpush1.xpose.msra.mxu0 0.0
    %6790 = vmatprep.subr.mxu0 0.0
    %6791 = vmatpush1.xpose.msra.mxu0 0.0
    %6792 = vmatprep.subr.mxu0 0.0
    %6793 = vmatpush1.xpose.msra.mxu0 0.0
    %6794 = vmatprep.mubr.f32.mxu0 0.0
    %v6795 = vand.u32 %v6572, 4294901760
    %v6796 = vsub.f32 %v6572, %v6795
    %6797 = vmatmul.mubr.f32.gmra.mrb[0].mxu0 %v6796
    %v6798 = vpop.f32.mrb[0].mxu0
    %v6799 = vadd.f32 %v6725, %v6798
    %v6800 = vpop.f32.mrb[0].mxu0
    %6801 = vdwg.mxu0
    %6802 = vmatprep.subr.mxu0 0.0
    %v6803 = vand.u32 %v6574, 4294901760
    %6804 = vmatpush1.xpose.msra.mxu0 %v6803
    %6805 = vmatprep.subr.mxu0 0.0
    %6806 = vmatpush1.xpose.msra.mxu0 0.0
    %6807 = vmatprep.subr.mxu0 0.0
    %6808 = vmatpush1.xpose.msra.mxu0 0.0
    %6809 = vmatprep.subr.mxu0 0.0
    %6810 = vmatpush1.xpose.msra.mxu0 0.0
    %6811 = vmatprep.subr.mxu0 0.0
    %6812 = vmatpush1.xpose.msra.mxu0 0.0
    %6813 = vmatprep.subr.mxu0 0.0
    %6814 = vmatpush1.xpose.msra.mxu0 0.0
    %6815 = vmatprep.subr.mxu0 0.0
    %6816 = vmatpush1.xpose.msra.mxu0 0.0
    %6817 = vmatprep.subr.mxu0 0.0
    %6818 = vmatpush1.xpose.msra.mxu0 0.0
    %6819 = vmatprep.subr.mxu0 0.0
    %6820 = vmatpush1.xpose.msra.mxu0 0.0
    %6821 = vmatprep.subr.mxu0 0.0
    %6822 = vmatpush1.xpose.msra.mxu0 0.0
    %6823 = vmatprep.subr.mxu0 0.0
    %6824 = vmatpush1.xpose.msra.mxu0 0.0
    %6825 = vmatprep.subr.mxu0 0.0
    %6826 = vmatpush1.xpose.msra.mxu0 0.0
    %6827 = vmatprep.subr.mxu0 0.0
    %6828 = vmatpush1.xpose.msra.mxu0 0.0
    %6829 = vmatprep.subr.mxu0 0.0
    %6830 = vmatpush1.xpose.msra.mxu0 0.0
    %6831 = vmatprep.subr.mxu0 0.0
    %6832 = vmatpush1.xpose.msra.mxu0 0.0
    %6833 = vmatprep.subr.mxu0 0.0
    %6834 = vmatpush1.xpose.msra.mxu0 0.0
    %6835 = vmatprep.subr.mxu0 0.0
    %6836 = vmatpush1.xpose.msra.mxu0 0.0
    %6837 = vmatprep.subr.mxu0 0.0
    %6838 = vmatpush1.xpose.msra.mxu0 0.0
    %6839 = vmatprep.subr.mxu0 0.0
    %6840 = vmatpush1.xpose.msra.mxu0 0.0
    %6841 = vmatprep.subr.mxu0 0.0
    %6842 = vmatpush1.xpose.msra.mxu0 0.0
    %6843 = vmatprep.subr.mxu0 0.0
    %6844 = vmatpush1.xpose.msra.mxu0 0.0
    %6845 = vmatprep.subr.mxu0 0.0
    %6846 = vmatpush1.xpose.msra.mxu0 0.0
    %6847 = vmatprep.subr.mxu0 0.0
    %6848 = vmatpush1.xpose.msra.mxu0 0.0
    %6849 = vmatprep.subr.mxu0 0.0
    %6850 = vmatpush1.xpose.msra.mxu0 0.0
    %6851 = vmatprep.subr.mxu0 0.0
    %6852 = vmatpush1.xpose.msra.mxu0 0.0
    %6853 = vmatprep.subr.mxu0 0.0
    %6854 = vmatpush1.xpose.msra.mxu0 0.0
    %6855 = vmatprep.subr.mxu0 0.0
    %6856 = vmatpush1.xpose.msra.mxu0 0.0
    %6857 = vmatprep.subr.mxu0 0.0
    %6858 = vmatpush1.xpose.msra.mxu0 0.0
    %6859 = vmatprep.subr.mxu0 0.0
    %6860 = vmatpush1.xpose.msra.mxu0 0.0
    %6861 = vmatprep.subr.mxu0 0.0
    %6862 = vmatpush1.xpose.msra.mxu0 0.0
    %6863 = vmatprep.subr.mxu0 0.0
    %6864 = vmatpush1.xpose.msra.mxu0 0.0
    %6865 = vmatprep.subr.mxu0 0.0
    %6866 = vmatpush1.xpose.msra.mxu0 0.0
    %6867 = vmatprep.mubr.f32.mxu0 0.0
    %v6868 = vand.u32 %v6572, 4294901760
    %v6869 = vsub.f32 %v6572, %v6868
    %v6870 = vand.u32 %v6869, 4294901760
    %6871 = vmatmul.mubr.f32.gmra.mrb[0].mxu0 %v6870
    %v6872 = vpop.f32.mrb[0].mxu0
    %v6873 = vadd.f32 %v6799, %v6872
    %v6874 = vpop.f32.mrb[0].mxu0
    %6875 = vdwg.mxu0
    %6876 = vmatprep.subr.mxu0 0.0
    %v6877 = vand.u32 %v6574, 4294901760
    %v6878 = vsub.f32 %v6574, %v6877
    %v6879 = vand.u32 %v6878, 4294901760
    %6880 = vmatpush1.xpose.msra.mxu0 %v6879
    %6881 = vmatprep.subr.mxu0 0.0
    %6882 = vmatpush1.xpose.msra.mxu0 0.0
    %6883 = vmatprep.subr.mxu0 0.0
    %6884 = vmatpush1.xpose.msra.mxu0 0.0
    %6885 = vmatprep.subr.mxu0 0.0
    %6886 = vmatpush1.xpose.msra.mxu0 0.0
    %6887 = vmatprep.subr.mxu0 0.0
    %6888 = vmatpush1.xpose.msra.mxu0 0.0
    %6889 = vmatprep.subr.mxu0 0.0
    %6890 = vmatpush1.xpose.msra.mxu0 0.0
    %6891 = vmatprep.subr.mxu0 0.0
    %6892 = vmatpush1.xpose.msra.mxu0 0.0
    %6893 = vmatprep.subr.mxu0 0.0
    %6894 = vmatpush1.xpose.msra.mxu0 0.0
    %6895 = vmatprep.subr.mxu0 0.0
    %6896 = vmatpush1.xpose.msra.mxu0 0.0
    %6897 = vmatprep.subr.mxu0 0.0
    %6898 = vmatpush1.xpose.msra.mxu0 0.0
    %6899 = vmatprep.subr.mxu0 0.0
    %6900 = vmatpush1.xpose.msra.mxu0 0.0
    %6901 = vmatprep.subr.mxu0 0.0
    %6902 = vmatpush1.xpose.msra.mxu0 0.0
    %6903 = vmatprep.subr.mxu0 0.0
    %6904 = vmatpush1.xpose.msra.mxu0 0.0
    %6905 = vmatprep.subr.mxu0 0.0
    %6906 = vmatpush1.xpose.msra.mxu0 0.0
    %6907 = vmatprep.subr.mxu0 0.0
    %6908 = vmatpush1.xpose.msra.mxu0 0.0
    %6909 = vmatprep.subr.mxu0 0.0
    %6910 = vmatpush1.xpose.msra.mxu0 0.0
    %6911 = vmatprep.subr.mxu0 0.0
    %6912 = vmatpush1.xpose.msra.mxu0 0.0
    %6913 = vmatprep.subr.mxu0 0.0
    %6914 = vmatpush1.xpose.msra.mxu0 0.0
    %6915 = vmatprep.subr.mxu0 0.0
    %6916 = vmatpush1.xpose.msra.mxu0 0.0
    %6917 = vmatprep.subr.mxu0 0.0
    %6918 = vmatpush1.xpose.msra.mxu0 0.0
    %6919 = vmatprep.subr.mxu0 0.0
    %6920 = vmatpush1.xpose.msra.mxu0 0.0
    %6921 = vmatprep.subr.mxu0 0.0
    %6922 = vmatpush1.xpose.msra.mxu0 0.0
    %6923 = vmatprep.subr.mxu0 0.0
    %6924 = vmatpush1.xpose.msra.mxu0 0.0
    %6925 = vmatprep.subr.mxu0 0.0
    %6926 = vmatpush1.xpose.msra.mxu0 0.0
    %6927 = vmatprep.subr.mxu0 0.0
    %6928 = vmatpush1.xpose.msra.mxu0 0.0
    %6929 = vmatprep.subr.mxu0 0.0
    %6930 = vmatpush1.xpose.msra.mxu0 0.0
    %6931 = vmatprep.subr.mxu0 0.0
    %6932 = vmatpush1.xpose.msra.mxu0 0.0
    %6933 = vmatprep.subr.mxu0 0.0
    %6934 = vmatpush1.xpose.msra.mxu0 0.0
    %6935 = vmatprep.subr.mxu0 0.0
    %6936 = vmatpush1.xpose.msra.mxu0 0.0
    %6937 = vmatprep.subr.mxu0 0.0
    %6938 = vmatpush1.xpose.msra.mxu0 0.0
    %6939 = vmatprep.subr.mxu0 0.0
    %6940 = vmatpush1.xpose.msra.mxu0 0.0
    %6941 = vmatprep.subr.mxu0 0.0
    %6942 = vmatpush1.xpose.msra.mxu0 0.0
    %6943 = vmatprep.mubr.f32.mxu0 0.0
    %v6944 = vand.u32 %v6572, 4294901760
    %6945 = vmatmul.mubr.f32.gmra.mrb[0].mxu0 %v6944
    %v6946 = vpop.f32.mrb[0].mxu0
    %v6947 = vadd.f32 %v6873, %v6946
    %v6948 = vpop.f32.mrb[0].mxu0
    %6949 = vdwg.mxu0
    %6950 = vmatprep.subr.mxu0 0.0
    %v6951 = vand.u32 %v6574, 4294901760
    %6952 = vmatpush1.xpose.msra.mxu0 %v6951
    %6953 = vmatprep.subr.mxu0 0.0
    %6954 = vmatpush1.xpose.msra.mxu0 0.0
    %6955 = vmatprep.subr.mxu0 0.0
    %6956 = vmatpush1.xpose.msra.mxu0 0.0
    %6957 = vmatprep.subr.mxu0 0.0
    %6958 = vmatpush1.xpose.msra.mxu0 0.0
    %6959 = vmatprep.subr.mxu0 0.0
    %6960 = vmatpush1.xpose.msra.mxu0 0.0
    %6961 = vmatprep.subr.mxu0 0.0
    %6962 = vmatpush1.xpose.msra.mxu0 0.0
    %6963 = vmatprep.subr.mxu0 0.0
    %6964 = vmatpush1.xpose.msra.mxu0 0.0
    %6965 = vmatprep.subr.mxu0 0.0
    %6966 = vmatpush1.xpose.msra.mxu0 0.0
    %6967 = vmatprep.subr.mxu0 0.0
    %6968 = vmatpush1.xpose.msra.mxu0 0.0
    %6969 = vmatprep.subr.mxu0 0.0
    %6970 = vmatpush1.xpose.msra.mxu0 0.0
    %6971 = vmatprep.subr.mxu0 0.0
    %6972 = vmatpush1.xpose.msra.mxu0 0.0
    %6973 = vmatprep.subr.mxu0 0.0
    %6974 = vmatpush1.xpose.msra.mxu0 0.0
    %6975 = vmatprep.subr.mxu0 0.0
    %6976 = vmatpush1.xpose.msra.mxu0 0.0
    %6977 = vmatprep.subr.mxu0 0.0
    %6978 = vmatpush1.xpose.msra.mxu0 0.0
    %6979 = vmatprep.subr.mxu0 0.0
    %6980 = vmatpush1.xpose.msra.mxu0 0.0
    %6981 = vmatprep.subr.mxu0 0.0
    %6982 = vmatpush1.xpose.msra.mxu0 0.0
    %6983 = vmatprep.subr.mxu0 0.0
    %6984 = vmatpush1.xpose.msra.mxu0 0.0
    %6985 = vmatprep.subr.mxu0 0.0
    %6986 = vmatpush1.xpose.msra.mxu0 0.0
    %6987 = vmatprep.subr.mxu0 0.0
    %6988 = vmatpush1.xpose.msra.mxu0 0.0
    %6989 = vmatprep.subr.mxu0 0.0
    %6990 = vmatpush1.xpose.msra.mxu0 0.0
    %6991 = vmatprep.subr.mxu0 0.0
    %6992 = vmatpush1.xpose.msra.mxu0 0.0
    %6993 = vmatprep.subr.mxu0 0.0
    %6994 = vmatpush1.xpose.msra.mxu0 0.0
    %6995 = vmatprep.subr.mxu0 0.0
    %6996 = vmatpush1.xpose.msra.mxu0 0.0
    %6997 = vmatprep.subr.mxu0 0.0
    %6998 = vmatpush1.xpose.msra.mxu0 0.0
    %6999 = vmatprep.subr.mxu0 0.0
    %7000 = vmatpush1.xpose.msra.mxu0 0.0
    %7001 = vmatprep.subr.mxu0 0.0
    %7002 = vmatpush1.xpose.msra.mxu0 0.0
    %7003 = vmatprep.subr.mxu0 0.0
    %7004 = vmatpush1.xpose.msra.mxu0 0.0
    %7005 = vmatprep.subr.mxu0 0.0
    %7006 = vmatpush1.xpose.msra.mxu0 0.0
    %7007 = vmatprep.subr.mxu0 0.0
    %7008 = vmatpush1.xpose.msra.mxu0 0.0
    %7009 = vmatprep.subr.mxu0 0.0
    %7010 = vmatpush1.xpose.msra.mxu0 0.0
    %7011 = vmatprep.subr.mxu0 0.0
    %7012 = vmatpush1.xpose.msra.mxu0 0.0
    %7013 = vmatprep.subr.mxu0 0.0
    %7014 = vmatpush1.xpose.msra.mxu0 0.0
    %7015 = vmatprep.mubr.f32.mxu0 0.0
    %v7016 = vand.u32 %v6572, 4294901760
    %7017 = vmatmul.mubr.f32.gmra.mrb[0].mxu0 %v7016
    %v7018 = vpop.f32.mrb[0].mxu0
    %v7019 = vadd.f32 %v6947, %v7018
    %v7020 = vpop.f32.mrb[0].mxu0
    %7021 = vdwg.mxu0
    %vm7022 = vcmask 64512
    %v7023 = vsel %vm7022, %v6563, -inf
    %7024 = vmax.xlane.f32.xlu0 %v7023
    %v7025 = vpop.xlane.xlu0 %7024
    %v7026 = vsel %vm7022, %v7019, -inf
    %7027 = vmax.xlane.f32.xlu0 %v7026
    %v7028 = vpop.xlane.xlu0 %7027
    %v7029 = vsub.f32 %v6563, %v7025
    %v7030 = vsub.f32 %v7019, %v7028
    %v7031 = vmul.f32 %v7029, 1.442695
    %v7032 = vpow.pop %v7031
    %v7033 = vmul.f32 %v7030, 1.442695
    %v7034 = vpow.pop %v7033
    %v7035 = vsel %vm7022, %v7032, 0.0
    %7036 = vadd.xlane.f32.xlu0 %v7035
    %v7037 = vpop.xlane.xlu0 %7036
    %v7038 = vsel %vm7022, %v7034, 0.0
    %7039 = vadd.xlane.f32.xlu0 %v7038
    %v7040 = vpop.xlane.xlu0 %7039
    %v7041 = vrcp.pop %v7037
    %v7042 = vmul.f32 %v7032, %v7041
    %v7043 = vrcp.pop %v7040
    %v7044 = vmul.f32 %v7034, %v7043
    %7045 = vxpose.xlu0.b32.start [1/16] %v6563, 128
    %7046 = vxpose.xlu0.b32.cont [2/16] 0.0, 128
    %7047 = vxpose.xlu0.b32.cont [3/16] 0.0, 128
    %7048 = vxpose.xlu0.b32.cont [4/16] 0.0, 128
    %7049 = vxpose.xlu0.b32.cont [5/16] 0.0, 128
    %7050 = vxpose.xlu0.b32.cont [6/16] 0.0, 128
    %7051 = vxpose.xlu0.b32.cont [7/16] 0.0, 128
    %7052 = vxpose.xlu0.b32.cont [8/16] 0.0, 128
    %7053 = vxpose.xlu0.b32.cont [9/16] 0.0, 128
    %7054 = vxpose.xlu0.b32.cont [10/16] 0.0, 128
    %7055 = vxpose.xlu0.b32.cont [11/16] 0.0, 128
    %7056 = vxpose.xlu0.b32.cont [12/16] 0.0, 128
    %7057 = vxpose.xlu0.b32.cont [13/16] 0.0, 128
    %7058 = vxpose.xlu0.b32.cont [14/16] 0.0, 128
    %7059 = vxpose.xlu0.b32.cont [15/16] 0.0, 128
    %7060 = vxpose.xlu0.b32.end [16/16] 0.0, 128
    %v7061 = vpop.trf.xlu0
    %v7062 = vpop.trf.xlu0
    %v7063 = vpop.trf.xlu0
    %v7064 = vpop.trf.xlu0
    %v7065 = vpop.trf.xlu0
    %v7066 = vpop.trf.xlu0
    %v7067 = vpop.trf.xlu0
    %v7068 = vpop.trf.xlu0
    %v7069 = vpop.trf.xlu0
    %v7070 = vpop.trf.xlu0
    %v7071 = vpop.trf.xlu0
    %v7072 = vpop.trf.xlu0
    %v7073 = vpop.trf.xlu0
    %v7074 = vpop.trf.xlu0
    %v7075 = vpop.trf.xlu0
    %v7076 = vpop.trf.xlu0
    %7077 = vxpose.xlu0.b32.start [1/16] %v7019, 128
    %7078 = vxpose.xlu0.b32.cont [2/16] 0.0, 128
    %7079 = vxpose.xlu0.b32.cont [3/16] 0.0, 128
    %7080 = vxpose.xlu0.b32.cont [4/16] 0.0, 128
    %7081 = vxpose.xlu0.b32.cont [5/16] 0.0, 128
    %7082 = vxpose.xlu0.b32.cont [6/16] 0.0, 128
    %7083 = vxpose.xlu0.b32.cont [7/16] 0.0, 128
    %7084 = vxpose.xlu0.b32.cont [8/16] 0.0, 128
    %7085 = vxpose.xlu0.b32.cont [9/16] 0.0, 128
    %7086 = vxpose.xlu0.b32.cont [10/16] 0.0, 128
    %7087 = vxpose.xlu0.b32.cont [11/16] 0.0, 128
    %7088 = vxpose.xlu0.b32.cont [12/16] 0.0, 128
    %7089 = vxpose.xlu0.b32.cont [13/16] 0.0, 128
    %7090 = vxpose.xlu0.b32.cont [14/16] 0.0, 128
    %7091 = vxpose.xlu0.b32.cont [15/16] 0.0, 128
    %7092 = vxpose.xlu0.b32.end [16/16] 0.0, 128
    %v7093 = vpop.trf.xlu0
    %v7094 = vpop.trf.xlu0
    %v7095 = vpop.trf.xlu0
    %v7096 = vpop.trf.xlu0
    %v7097 = vpop.trf.xlu0
    %v7098 = vpop.trf.xlu0
    %v7099 = vpop.trf.xlu0
    %v7100 = vpop.trf.xlu0
    %v7101 = vpop.trf.xlu0
    %v7102 = vpop.trf.xlu0
    %v7103 = vpop.trf.xlu0
    %v7104 = vpop.trf.xlu0
    %v7105 = vpop.trf.xlu0
    %v7106 = vpop.trf.xlu0
    %v7107 = vpop.trf.xlu0
    %v7108 = vpop.trf.xlu0
    %v7109 = vsel %vm7022, %v7061, -inf
    %7110 = vmax.xlane.f32.xlu0 %v7109
    %v7111 = vpop.xlane.xlu0 %7110
    %v7112 = vsel %vm7022, %v7093, -inf
    %7113 = vmax.xlane.f32.xlu0 %v7112
    %v7114 = vpop.xlane.xlu0 %7113
    %v7115 = vsub.f32 %v7061, %v7111
    %v7116 = vsub.f32 %v7093, %v7114
    %v7117 = vmul.f32 %v7115, 1.442695
    %v7118 = vpow.pop %v7117
    %v7119 = vmul.f32 %v7116, 1.442695
    %v7120 = vpow.pop %v7119
    %v7121 = vsel %vm7022, %v7118, 0.0
    %7122 = vadd.xlane.f32.xlu0 %v7121
    %v7123 = vpop.xlane.xlu0 %7122
    %v7124 = vsel %vm7022, %v7120, 0.0
    %7125 = vadd.xlane.f32.xlu0 %v7124
    %v7126 = vpop.xlane.xlu0 %7125
    %v7127 = vrcp.pop %v7123
    %v7128 = vmul.f32 %v7118, %v7127
    %v7129 = vrcp.pop %v7126
    %v7130 = vmul.f32 %v7120, %v7129
    %v7133 = vsel %vm7022, %v7042, 0
    %7135 = vmatprep.subr.mxu0 0.0
    %v7136 = vand.u32 %v6115, 4294901760
    %7137 = vmatpush1.msra.mxu0 %v7136
    %7138 = vmatprep.subr.mxu0 0.0
    %7139 = vmatpush1.msra.mxu0 0.0
    %7140 = vmatprep.subr.mxu0 0.0
    %7141 = vmatpush1.msra.mxu0 0.0
    %7142 = vmatprep.subr.mxu0 0.0
    %7143 = vmatpush1.msra.mxu0 0.0
    %7144 = vmatprep.subr.mxu0 0.0
    %7145 = vmatpush1.msra.mxu0 0.0
    %7146 = vmatprep.subr.mxu0 0.0
    %7147 = vmatpush1.msra.mxu0 0.0
    %7148 = vmatprep.subr.mxu0 0.0
    %7149 = vmatpush1.msra.mxu0 0.0
    %7150 = vmatprep.subr.mxu0 0.0
    %7151 = vmatpush1.msra.mxu0 0.0
    %7152 = vmatprep.subr.mxu0 0.0
    %7153 = vmatpush1.msra.mxu0 0.0
    %7154 = vmatprep.subr.mxu0 0.0
    %7155 = vmatpush1.msra.mxu0 0.0
    %7156 = vmatprep.subr.mxu0 0.0
    %7157 = vmatpush1.msra.mxu0 0.0
    %7158 = vmatprep.subr.mxu0 0.0
    %7159 = vmatpush1.msra.mxu0 0.0
    %7160 = vmatprep.subr.mxu0 0.0
    %7161 = vmatpush1.msra.mxu0 0.0
    %7162 = vmatprep.subr.mxu0 0.0
    %7163 = vmatpush1.msra.mxu0 0.0
    %7164 = vmatprep.subr.mxu0 0.0
    %7165 = vmatpush1.msra.mxu0 0.0
    %7166 = vmatprep.subr.mxu0 0.0
    %7167 = vmatpush1.msra.mxu0 0.0
    %7168 = vmatprep.subr.mxu0 0.0
    %7169 = vmatpush1.msra.mxu0 0.0
    %7170 = vmatprep.subr.mxu0 0.0
    %7171 = vmatpush1.msra.mxu0 0.0
    %7172 = vmatprep.subr.mxu0 0.0
    %7173 = vmatpush1.msra.mxu0 0.0
    %7174 = vmatprep.subr.mxu0 0.0
    %7175 = vmatpush1.msra.mxu0 0.0
    %7176 = vmatprep.subr.mxu0 0.0
    %7177 = vmatpush1.msra.mxu0 0.0
    %7178 = vmatprep.subr.mxu0 0.0
    %7179 = vmatpush1.msra.mxu0 0.0
    %7180 = vmatprep.subr.mxu0 0.0
    %7181 = vmatpush1.msra.mxu0 0.0
    %7182 = vmatprep.subr.mxu0 0.0
    %7183 = vmatpush1.msra.mxu0 0.0
    %7184 = vmatprep.subr.mxu0 0.0
    %7185 = vmatpush1.msra.mxu0 0.0
    %7186 = vmatprep.subr.mxu0 0.0
    %7187 = vmatpush1.msra.mxu0 0.0
    %7188 = vmatprep.subr.mxu0 0.0
    %7189 = vmatpush1.msra.mxu0 0.0
    %7190 = vmatprep.subr.mxu0 0.0
    %7191 = vmatpush1.msra.mxu0 0.0
    %7192 = vmatprep.subr.mxu0 0.0
    %7193 = vmatpush1.msra.mxu0 0.0
    %7194 = vmatprep.subr.mxu0 0.0
    %7195 = vmatpush1.msra.mxu0 0.0
    %7196 = vmatprep.subr.mxu0 0.0
    %7197 = vmatpush1.msra.mxu0 0.0
    %7198 = vmatprep.subr.mxu0 0.0
    %7199 = vmatpush1.msra.mxu0 0.0
    %7200 = vmatprep.mubr.f32.mxu0 0.0
    %v7201 = vand.u32 %v7133, 4294901760
    %v7202 = vsub.f32 %v7133, %v7201
    %v7203 = vand.u32 %v7202, 4294901760
    %v7204 = vsub.f32 %v7202, %v7203
    %v7205 = vand.u32 %v7204, 4294901760
    %7206 = vmatmul.mubr.f32.gmra.mrb[0].mxu0 %v7205
    %v7207 = vpop.f32.mrb[0].mxu0
    %v7208 = vadd.f32 0.0, %v7207
    %v7209 = vpop.f32.mrb[0].mxu0
    %7210 = vdwg.mxu0
    %7211 = vmatprep.subr.mxu0 0.0
    %v7212 = vand.u32 %v6115, 4294901760
    %v7213 = vsub.f32 %v6115, %v7212
    %v7214 = vand.u32 %v7213, 4294901760
    %v7215 = vsub.f32 %v7213, %v7214
    %v7216 = vand.u32 %v7215, 4294901760
    %7217 = vmatpush1.msra.mxu0 %v7216
    %7218 = vmatprep.subr.mxu0 0.0
    %7219 = vmatpush1.msra.mxu0 0.0
    %7220 = vmatprep.subr.mxu0 0.0
    %7221 = vmatpush1.msra.mxu0 0.0
    %7222 = vmatprep.subr.mxu0 0.0
    %7223 = vmatpush1.msra.mxu0 0.0
    %7224 = vmatprep.subr.mxu0 0.0
    %7225 = vmatpush1.msra.mxu0 0.0
    %7226 = vmatprep.subr.mxu0 0.0
    %7227 = vmatpush1.msra.mxu0 0.0
    %7228 = vmatprep.subr.mxu0 0.0
    %7229 = vmatpush1.msra.mxu0 0.0
    %7230 = vmatprep.subr.mxu0 0.0
    %7231 = vmatpush1.msra.mxu0 0.0
    %7232 = vmatprep.subr.mxu0 0.0
    %7233 = vmatpush1.msra.mxu0 0.0
    %7234 = vmatprep.subr.mxu0 0.0
    %7235 = vmatpush1.msra.mxu0 0.0
    %7236 = vmatprep.subr.mxu0 0.0
    %7237 = vmatpush1.msra.mxu0 0.0
    %7238 = vmatprep.subr.mxu0 0.0
    %7239 = vmatpush1.msra.mxu0 0.0
    %7240 = vmatprep.subr.mxu0 0.0
    %7241 = vmatpush1.msra.mxu0 0.0
    %7242 = vmatprep.subr.mxu0 0.0
    %7243 = vmatpush1.msra.mxu0 0.0
    %7244 = vmatprep.subr.mxu0 0.0
    %7245 = vmatpush1.msra.mxu0 0.0
    %7246 = vmatprep.subr.mxu0 0.0
    %7247 = vmatpush1.msra.mxu0 0.0
    %7248 = vmatprep.subr.mxu0 0.0
    %7249 = vmatpush1.msra.mxu0 0.0
    %7250 = vmatprep.subr.mxu0 0.0
    %7251 = vmatpush1.msra.mxu0 0.0
    %7252 = vmatprep.subr.mxu0 0.0
    %7253 = vmatpush1.msra.mxu0 0.0
    %7254 = vmatprep.subr.mxu0 0.0
    %7255 = vmatpush1.msra.mxu0 0.0
    %7256 = vmatprep.subr.mxu0 0.0
    %7257 = vmatpush1.msra.mxu0 0.0
    %7258 = vmatprep.subr.mxu0 0.0
    %7259 = vmatpush1.msra.mxu0 0.0
    %7260 = vmatprep.subr.mxu0 0.0
    %7261 = vmatpush1.msra.mxu0 0.0
    %7262 = vmatprep.subr.mxu0 0.0
    %7263 = vmatpush1.msra.mxu0 0.0
    %7264 = vmatprep.subr.mxu0 0.0
    %7265 = vmatpush1.msra.mxu0 0.0
    %7266 = vmatprep.subr.mxu0 0.0
    %7267 = vmatpush1.msra.mxu0 0.0
    %7268 = vmatprep.subr.mxu0 0.0
    %7269 = vmatpush1.msra.mxu0 0.0
    %7270 = vmatprep.subr.mxu0 0.0
    %7271 = vmatpush1.msra.mxu0 0.0
    %7272 = vmatprep.subr.mxu0 0.0
    %7273 = vmatpush1.msra.mxu0 0.0
    %7274 = vmatprep.subr.mxu0 0.0
    %7275 = vmatpush1.msra.mxu0 0.0
    %7276 = vmatprep.subr.mxu0 0.0
    %7277 = vmatpush1.msra.mxu0 0.0
    %7278 = vmatprep.subr.mxu0 0.0
    %7279 = vmatpush1.msra.mxu0 0.0
    %7280 = vmatprep.mubr.f32.mxu0 0.0
    %v7281 = vand.u32 %v7133, 4294901760
    %7282 = vmatmul.mubr.f32.gmra.mrb[0].mxu0 %v7281
    %v7283 = vpop.f32.mrb[0].mxu0
    %v7284 = vadd.f32 %v7208, %v7283
    %v7285 = vpop.f32.mrb[0].mxu0
    %7286 = vdwg.mxu0
    %7287 = vmatprep.subr.mxu0 0.0
    %v7288 = vand.u32 %v6115, 4294901760
    %v7289 = vsub.f32 %v6115, %v7288
    %7290 = vmatpush1.msra.mxu0 %v7289
    %7291 = vmatprep.subr.mxu0 0.0
    %7292 = vmatpush1.msra.mxu0 0.0
    %7293 = vmatprep.subr.mxu0 0.0
    %7294 = vmatpush1.msra.mxu0 0.0
    %7295 = vmatprep.subr.mxu0 0.0
    %7296 = vmatpush1.msra.mxu0 0.0
    %7297 = vmatprep.subr.mxu0 0.0
    %7298 = vmatpush1.msra.mxu0 0.0
    %7299 = vmatprep.subr.mxu0 0.0
    %7300 = vmatpush1.msra.mxu0 0.0
    %7301 = vmatprep.subr.mxu0 0.0
    %7302 = vmatpush1.msra.mxu0 0.0
    %7303 = vmatprep.subr.mxu0 0.0
    %7304 = vmatpush1.msra.mxu0 0.0
    %7305 = vmatprep.subr.mxu0 0.0
    %7306 = vmatpush1.msra.mxu0 0.0
    %7307 = vmatprep.subr.mxu0 0.0
    %7308 = vmatpush1.msra.mxu0 0.0
    %7309 = vmatprep.subr.mxu0 0.0
    %7310 = vmatpush1.msra.mxu0 0.0
    %7311 = vmatprep.subr.mxu0 0.0
    %7312 = vmatpush1.msra.mxu0 0.0
    %7313 = vmatprep.subr.mxu0 0.0
    %7314 = vmatpush1.msra.mxu0 0.0
    %7315 = vmatprep.subr.mxu0 0.0
    %7316 = vmatpush1.msra.mxu0 0.0
    %7317 = vmatprep.subr.mxu0 0.0
    %7318 = vmatpush1.msra.mxu0 0.0
    %7319 = vmatprep.subr.mxu0 0.0
    %7320 = vmatpush1.msra.mxu0 0.0
    %7321 = vmatprep.subr.mxu0 0.0
    %7322 = vmatpush1.msra.mxu0 0.0
    %7323 = vmatprep.subr.mxu0 0.0
    %7324 = vmatpush1.msra.mxu0 0.0
    %7325 = vmatprep.subr.mxu0 0.0
    %7326 = vmatpush1.msra.mxu0 0.0
    %7327 = vmatprep.subr.mxu0 0.0
    %7328 = vmatpush1.msra.mxu0 0.0
    %7329 = vmatprep.subr.mxu0 0.0
    %7330 = vmatpush1.msra.mxu0 0.0
    %7331 = vmatprep.subr.mxu0 0.0
    %7332 = vmatpush1.msra.mxu0 0.0
    %7333 = vmatprep.subr.mxu0 0.0
    %7334 = vmatpush1.msra.mxu0 0.0
    %7335 = vmatprep.subr.mxu0 0.0
    %7336 = vmatpush1.msra.mxu0 0.0
    %7337 = vmatprep.subr.mxu0 0.0
    %7338 = vmatpush1.msra.mxu0 0.0
    %7339 = vmatprep.subr.mxu0 0.0
    %7340 = vmatpush1.msra.mxu0 0.0
    %7341 = vmatprep.subr.mxu0 0.0
    %7342 = vmatpush1.msra.mxu0 0.0
    %7343 = vmatprep.subr.mxu0 0.0
    %7344 = vmatpush1.msra.mxu0 0.0
    %7345 = vmatprep.subr.mxu0 0.0
    %7346 = vmatpush1.msra.mxu0 0.0
    %7347 = vmatprep.subr.mxu0 0.0
    %7348 = vmatpush1.msra.mxu0 0.0
    %7349 = vmatprep.subr.mxu0 0.0
    %7350 = vmatpush1.msra.mxu0 0.0
    %7351 = vmatprep.subr.mxu0 0.0
    %7352 = vmatpush1.msra.mxu0 0.0
    %7353 = vmatprep.mubr.f32.mxu0 0.0
    %v7354 = vand.u32 %v7133, 4294901760
    %v7355 = vsub.f32 %v7133, %v7354
    %7356 = vmatmul.mubr.f32.gmra.mrb[0].mxu0 %v7355
    %v7357 = vpop.f32.mrb[0].mxu0
    %v7358 = vadd.f32 %v7284, %v7357
    %v7359 = vpop.f32.mrb[0].mxu0
    %7360 = vdwg.mxu0
    %7361 = vmatprep.subr.mxu0 0.0
    %v7362 = vand.u32 %v6115, 4294901760
    %7363 = vmatpush1.msra.mxu0 %v7362
    %7364 = vmatprep.subr.mxu0 0.0
    %7365 = vmatpush1.msra.mxu0 0.0
    %7366 = vmatprep.subr.mxu0 0.0
    %7367 = vmatpush1.msra.mxu0 0.0
    %7368 = vmatprep.subr.mxu0 0.0
    %7369 = vmatpush1.msra.mxu0 0.0
    %7370 = vmatprep.subr.mxu0 0.0
    %7371 = vmatpush1.msra.mxu0 0.0
    %7372 = vmatprep.subr.mxu0 0.0
    %7373 = vmatpush1.msra.mxu0 0.0
    %7374 = vmatprep.subr.mxu0 0.0
    %7375 = vmatpush1.msra.mxu0 0.0
    %7376 = vmatprep.subr.mxu0 0.0
    %7377 = vmatpush1.msra.mxu0 0.0
    %7378 = vmatprep.subr.mxu0 0.0
    %7379 = vmatpush1.msra.mxu0 0.0
    %7380 = vmatprep.subr.mxu0 0.0
    %7381 = vmatpush1.msra.mxu0 0.0
    %7382 = vmatprep.subr.mxu0 0.0
    %7383 = vmatpush1.msra.mxu0 0.0
    %7384 = vmatprep.subr.mxu0 0.0
    %7385 = vmatpush1.msra.mxu0 0.0
    %7386 = vmatprep.subr.mxu0 0.0
    %7387 = vmatpush1.msra.mxu0 0.0
    %7388 = vmatprep.subr.mxu0 0.0
    %7389 = vmatpush1.msra.mxu0 0.0
    %7390 = vmatprep.subr.mxu0 0.0
    %7391 = vmatpush1.msra.mxu0 0.0
    %7392 = vmatprep.subr.mxu0 0.0
    %7393 = vmatpush1.msra.mxu0 0.0
    %7394 = vmatprep.subr.mxu0 0.0
    %7395 = vmatpush1.msra.mxu0 0.0
    %7396 = vmatprep.subr.mxu0 0.0
    %7397 = vmatpush1.msra.mxu0 0.0
    %7398 = vmatprep.subr.mxu0 0.0
    %7399 = vmatpush1.msra.mxu0 0.0
    %7400 = vmatprep.subr.mxu0 0.0
    %7401 = vmatpush1.msra.mxu0 0.0
    %7402 = vmatprep.subr.mxu0 0.0
    %7403 = vmatpush1.msra.mxu0 0.0
    %7404 = vmatprep.subr.mxu0 0.0
    %7405 = vmatpush1.msra.mxu0 0.0
    %7406 = vmatprep.subr.mxu0 0.0
    %7407 = vmatpush1.msra.mxu0 0.0
    %7408 = vmatprep.subr.mxu0 0.0
    %7409 = vmatpush1.msra.mxu0 0.0
    %7410 = vmatprep.subr.mxu0 0.0
    %7411 = vmatpush1.msra.mxu0 0.0
    %7412 = vmatprep.subr.mxu0 0.0
    %7413 = vmatpush1.msra.mxu0 0.0
    %7414 = vmatprep.subr.mxu0 0.0
    %7415 = vmatpush1.msra.mxu0 0.0
    %7416 = vmatprep.subr.mxu0 0.0
    %7417 = vmatpush1.msra.mxu0 0.0
    %7418 = vmatprep.subr.mxu0 0.0
    %7419 = vmatpush1.msra.mxu0 0.0
    %7420 = vmatprep.subr.mxu0 0.0
    %7421 = vmatpush1.msra.mxu0 0.0
    %7422 = vmatprep.subr.mxu0 0.0
    %7423 = vmatpush1.msra.mxu0 0.0
    %7424 = vmatprep.subr.mxu0 0.0
    %7425 = vmatpush1.msra.mxu0 0.0
    %7426 = vmatprep.mubr.f32.mxu0 0.0
    %v7427 = vand.u32 %v7133, 4294901760
    %v7428 = vsub.f32 %v7133, %v7427
    %v7429 = vand.u32 %v7428, 4294901760
    %7430 = vmatmul.mubr.f32.gmra.mrb[0].mxu0 %v7429
    %v7431 = vpop.f32.mrb[0].mxu0
    %v7432 = vadd.f32 %v7358, %v7431
    %v7433 = vpop.f32.mrb[0].mxu0
    %7434 = vdwg.mxu0
    %7435 = vmatprep.subr.mxu0 0.0
    %v7436 = vand.u32 %v6115, 4294901760
    %v7437 = vsub.f32 %v6115, %v7436
    %v7438 = vand.u32 %v7437, 4294901760
    %7439 = vmatpush1.msra.mxu0 %v7438
    %7440 = vmatprep.subr.mxu0 0.0
    %7441 = vmatpush1.msra.mxu0 0.0
    %7442 = vmatprep.subr.mxu0 0.0
    %7443 = vmatpush1.msra.mxu0 0.0
    %7444 = vmatprep.subr.mxu0 0.0
    %7445 = vmatpush1.msra.mxu0 0.0
    %7446 = vmatprep.subr.mxu0 0.0
    %7447 = vmatpush1.msra.mxu0 0.0
    %7448 = vmatprep.subr.mxu0 0.0
    %7449 = vmatpush1.msra.mxu0 0.0
    %7450 = vmatprep.subr.mxu0 0.0
    %7451 = vmatpush1.msra.mxu0 0.0
    %7452 = vmatprep.subr.mxu0 0.0
    %7453 = vmatpush1.msra.mxu0 0.0
    %7454 = vmatprep.subr.mxu0 0.0
    %7455 = vmatpush1.msra.mxu0 0.0
    %7456 = vmatprep.subr.mxu0 0.0
    %7457 = vmatpush1.msra.mxu0 0.0
    %7458 = vmatprep.subr.mxu0 0.0
    %7459 = vmatpush1.msra.mxu0 0.0
    %7460 = vmatprep.subr.mxu0 0.0
    %7461 = vmatpush1.msra.mxu0 0.0
    %7462 = vmatprep.subr.mxu0 0.0
    %7463 = vmatpush1.msra.mxu0 0.0
    %7464 = vmatprep.subr.mxu0 0.0
    %7465 = vmatpush1.msra.mxu0 0.0
    %7466 = vmatprep.subr.mxu0 0.0
    %7467 = vmatpush1.msra.mxu0 0.0
    %7468 = vmatprep.subr.mxu0 0.0
    %7469 = vmatpush1.msra.mxu0 0.0
    %7470 = vmatprep.subr.mxu0 0.0
    %7471 = vmatpush1.msra.mxu0 0.0
    %7472 = vmatprep.subr.mxu0 0.0
    %7473 = vmatpush1.msra.mxu0 0.0
    %7474 = vmatprep.subr.mxu0 0.0
    %7475 = vmatpush1.msra.mxu0 0.0
    %7476 = vmatprep.subr.mxu0 0.0
    %7477 = vmatpush1.msra.mxu0 0.0
    %7478 = vmatprep.subr.mxu0 0.0
    %7479 = vmatpush1.msra.mxu0 0.0
    %7480 = vmatprep.subr.mxu0 0.0
    %7481 = vmatpush1.msra.mxu0 0.0
    %7482 = vmatprep.subr.mxu0 0.0
    %7483 = vmatpush1.msra.mxu0 0.0
    %7484 = vmatprep.subr.mxu0 0.0
    %7485 = vmatpush1.msra.mxu0 0.0
    %7486 = vmatprep.subr.mxu0 0.0
    %7487 = vmatpush1.msra.mxu0 0.0
    %7488 = vmatprep.subr.mxu0 0.0
    %7489 = vmatpush1.msra.mxu0 0.0
    %7490 = vmatprep.subr.mxu0 0.0
    %7491 = vmatpush1.msra.mxu0 0.0
    %7492 = vmatprep.subr.mxu0 0.0
    %7493 = vmatpush1.msra.mxu0 0.0
    %7494 = vmatprep.subr.mxu0 0.0
    %7495 = vmatpush1.msra.mxu0 0.0
    %7496 = vmatprep.subr.mxu0 0.0
    %7497 = vmatpush1.msra.mxu0 0.0
    %7498 = vmatprep.subr.mxu0 0.0
    %7499 = vmatpush1.msra.mxu0 0.0
    %7500 = vmatprep.subr.mxu0 0.0
    %7501 = vmatpush1.msra.mxu0 0.0
    %7502 = vmatprep.mubr.f32.mxu0 0.0
    %v7503 = vand.u32 %v7133, 4294901760
    %7504 = vmatmul.mubr.f32.gmra.mrb[0].mxu0 %v7503
    %v7505 = vpop.f32.mrb[0].mxu0
    %v7506 = vadd.f32 %v7432, %v7505
    %v7507 = vpop.f32.mrb[0].mxu0
    %7508 = vdwg.mxu0
    %7509 = vmatprep.subr.mxu0 0.0
    %v7510 = vand.u32 %v6115, 4294901760
    %7511 = vmatpush1.msra.mxu0 %v7510
    %7512 = vmatprep.subr.mxu0 0.0
    %7513 = vmatpush1.msra.mxu0 0.0
    %7514 = vmatprep.subr.mxu0 0.0
    %7515 = vmatpush1.msra.mxu0 0.0
    %7516 = vmatprep.subr.mxu0 0.0
    %7517 = vmatpush1.msra.mxu0 0.0
    %7518 = vmatprep.subr.mxu0 0.0
    %7519 = vmatpush1.msra.mxu0 0.0
    %7520 = vmatprep.subr.mxu0 0.0
    %7521 = vmatpush1.msra.mxu0 0.0
    %7522 = vmatprep.subr.mxu0 0.0
    %7523 = vmatpush1.msra.mxu0 0.0
    %7524 = vmatprep.subr.mxu0 0.0
    %7525 = vmatpush1.msra.mxu0 0.0
    %7526 = vmatprep.subr.mxu0 0.0
    %7527 = vmatpush1.msra.mxu0 0.0
    %7528 = vmatprep.subr.mxu0 0.0
    %7529 = vmatpush1.msra.mxu0 0.0
    %7530 = vmatprep.subr.mxu0 0.0
    %7531 = vmatpush1.msra.mxu0 0.0
    %7532 = vmatprep.subr.mxu0 0.0
    %7533 = vmatpush1.msra.mxu0 0.0
    %7534 = vmatprep.subr.mxu0 0.0
    %7535 = vmatpush1.msra.mxu0 0.0
    %7536 = vmatprep.subr.mxu0 0.0
    %7537 = vmatpush1.msra.mxu0 0.0
    %7538 = vmatprep.subr.mxu0 0.0
    %7539 = vmatpush1.msra.mxu0 0.0
    %7540 = vmatprep.subr.mxu0 0.0
    %7541 = vmatpush1.msra.mxu0 0.0
    %7542 = vmatprep.subr.mxu0 0.0
    %7543 = vmatpush1.msra.mxu0 0.0
    %7544 = vmatprep.subr.mxu0 0.0
    %7545 = vmatpush1.msra.mxu0 0.0
    %7546 = vmatprep.subr.mxu0 0.0
    %7547 = vmatpush1.msra.mxu0 0.0
    %7548 = vmatprep.subr.mxu0 0.0
    %7549 = vmatpush1.msra.mxu0 0.0
    %7550 = vmatprep.subr.mxu0 0.0
    %7551 = vmatpush1.msra.mxu0 0.0
    %7552 = vmatprep.subr.mxu0 0.0
    %7553 = vmatpush1.msra.mxu0 0.0
    %7554 = vmatprep.subr.mxu0 0.0
    %7555 = vmatpush1.msra.mxu0 0.0
    %7556 = vmatprep.subr.mxu0 0.0
    %7557 = vmatpush1.msra.mxu0 0.0
    %7558 = vmatprep.subr.mxu0 0.0
    %7559 = vmatpush1.msra.mxu0 0.0
    %7560 = vmatprep.subr.mxu0 0.0
    %7561 = vmatpush1.msra.mxu0 0.0
    %7562 = vmatprep.subr.mxu0 0.0
    %7563 = vmatpush1.msra.mxu0 0.0
    %7564 = vmatprep.subr.mxu0 0.0
    %7565 = vmatpush1.msra.mxu0 0.0
    %7566 = vmatprep.subr.mxu0 0.0
    %7567 = vmatpush1.msra.mxu0 0.0
    %7568 = vmatprep.subr.mxu0 0.0
    %7569 = vmatpush1.msra.mxu0 0.0
    %7570 = vmatprep.subr.mxu0 0.0
    %7571 = vmatpush1.msra.mxu0 0.0
    %7572 = vmatprep.subr.mxu0 0.0
    %7573 = vmatpush1.msra.mxu0 0.0
    %7574 = vmatprep.mubr.f32.mxu0 0.0
    %v7575 = vand.u32 %v7133, 4294901760
    %7576 = vmatmul.mubr.f32.gmra.mrb[0].mxu0 %v7575
    %v7577 = vpop.f32.mrb[0].mxu0
    %v7578 = vadd.f32 %v7506, %v7577
    %v7579 = vpop.f32.mrb[0].mxu0
    %7580 = vdwg.mxu0
    %v7583 = vsel %vm7022, %v7044, 0
    %7585 = vmatprep.subr.mxu0 0.0
    %v7586 = vand.u32 %v6571, 4294901760
    %7587 = vmatpush1.msra.mxu0 %v7586
    %7588 = vmatprep.subr.mxu0 0.0
    %7589 = vmatpush1.msra.mxu0 0.0
    %7590 = vmatprep.subr.mxu0 0.0
    %7591 = vmatpush1.msra.mxu0 0.0
    %7592 = vmatprep.subr.mxu0 0.0
    %7593 = vmatpush1.msra.mxu0 0.0
    %7594 = vmatprep.subr.mxu0 0.0
    %7595 = vmatpush1.msra.mxu0 0.0
    %7596 = vmatprep.subr.mxu0 0.0
    %7597 = vmatpush1.msra.mxu0 0.0
    %7598 = vmatprep.subr.mxu0 0.0
    %7599 = vmatpush1.msra.mxu0 0.0
    %7600 = vmatprep.subr.mxu0 0.0
    %7601 = vmatpush1.msra.mxu0 0.0
    %7602 = vmatprep.subr.mxu0 0.0
    %7603 = vmatpush1.msra.mxu0 0.0
    %7604 = vmatprep.subr.mxu0 0.0
    %7605 = vmatpush1.msra.mxu0 0.0
    %7606 = vmatprep.subr.mxu0 0.0
    %7607 = vmatpush1.msra.mxu0 0.0
    %7608 = vmatprep.subr.mxu0 0.0
    %7609 = vmatpush1.msra.mxu0 0.0
    %7610 = vmatprep.subr.mxu0 0.0
    %7611 = vmatpush1.msra.mxu0 0.0
    %7612 = vmatprep.subr.mxu0 0.0
    %7613 = vmatpush1.msra.mxu0 0.0
    %7614 = vmatprep.subr.mxu0 0.0
    %7615 = vmatpush1.msra.mxu0 0.0
    %7616 = vmatprep.subr.mxu0 0.0
    %7617 = vmatpush1.msra.mxu0 0.0
    %7618 = vmatprep.subr.mxu0 0.0
    %7619 = vmatpush1.msra.mxu0 0.0
    %7620 = vmatprep.subr.mxu0 0.0
    %7621 = vmatpush1.msra.mxu0 0.0
    %7622 = vmatprep.subr.mxu0 0.0
    %7623 = vmatpush1.msra.mxu0 0.0
    %7624 = vmatprep.subr.mxu0 0.0
    %7625 = vmatpush1.msra.mxu0 0.0
    %7626 = vmatprep.subr.mxu0 0.0
    %7627 = vmatpush1.msra.mxu0 0.0
    %7628 = vmatprep.subr.mxu0 0.0
    %7629 = vmatpush1.msra.mxu0 0.0
    %7630 = vmatprep.subr.mxu0 0.0
    %7631 = vmatpush1.msra.mxu0 0.0
    %7632 = vmatprep.subr.mxu0 0.0
    %7633 = vmatpush1.msra.mxu0 0.0
    %7634 = vmatprep.subr.mxu0 0.0
    %7635 = vmatpush1.msra.mxu0 0.0
    %7636 = vmatprep.subr.mxu0 0.0
    %7637 = vmatpush1.msra.mxu0 0.0
    %7638 = vmatprep.subr.mxu0 0.0
    %7639 = vmatpush1.msra.mxu0 0.0
    %7640 = vmatprep.subr.mxu0 0.0
    %7641 = vmatpush1.msra.mxu0 0.0
    %7642 = vmatprep.subr.mxu0 0.0
    %7643 = vmatpush1.msra.mxu0 0.0
    %7644 = vmatprep.subr.mxu0 0.0
    %7645 = vmatpush1.msra.mxu0 0.0
    %7646 = vmatprep.subr.mxu0 0.0
    %7647 = vmatpush1.msra.mxu0 0.0
    %7648 = vmatprep.subr.mxu0 0.0
    %7649 = vmatpush1.msra.mxu0 0.0
    %7650 = vmatprep.mubr.f32.mxu0 0.0
    %v7651 = vand.u32 %v7583, 4294901760
    %v7652 = vsub.f32 %v7583, %v7651
    %v7653 = vand.u32 %v7652, 4294901760
    %v7654 = vsub.f32 %v7652, %v7653
    %v7655 = vand.u32 %v7654, 4294901760
    %7656 = vmatmul.mubr.f32.gmra.mrb[0].mxu0 %v7655
    %v7657 = vpop.f32.mrb[0].mxu0
    %v7658 = vadd.f32 0.0, %v7657
    %v7659 = vpop.f32.mrb[0].mxu0
    %7660 = vdwg.mxu0
    %7661 = vmatprep.subr.mxu0 0.0
    %v7662 = vand.u32 %v6571, 4294901760
    %v7663 = vsub.f32 %v6571, %v7662
    %v7664 = vand.u32 %v7663, 4294901760
    %v7665 = vsub.f32 %v7663, %v7664
    %v7666 = vand.u32 %v7665, 4294901760
    %7667 = vmatpush1.msra.mxu0 %v7666
    %7668 = vmatprep.subr.mxu0 0.0
    %7669 = vmatpush1.msra.mxu0 0.0
    %7670 = vmatprep.subr.mxu0 0.0
    %7671 = vmatpush1.msra.mxu0 0.0
    %7672 = vmatprep.subr.mxu0 0.0
    %7673 = vmatpush1.msra.mxu0 0.0
    %7674 = vmatprep.subr.mxu0 0.0
    %7675 = vmatpush1.msra.mxu0 0.0
    %7676 = vmatprep.subr.mxu0 0.0
    %7677 = vmatpush1.msra.mxu0 0.0
    %7678 = vmatprep.subr.mxu0 0.0
    %7679 = vmatpush1.msra.mxu0 0.0
    %7680 = vmatprep.subr.mxu0 0.0
    %7681 = vmatpush1.msra.mxu0 0.0
    %7682 = vmatprep.subr.mxu0 0.0
    %7683 = vmatpush1.msra.mxu0 0.0
    %7684 = vmatprep.subr.mxu0 0.0
    %7685 = vmatpush1.msra.mxu0 0.0
    %7686 = vmatprep.subr.mxu0 0.0
    %7687 = vmatpush1.msra.mxu0 0.0
    %7688 = vmatprep.subr.mxu0 0.0
    %7689 = vmatpush1.msra.mxu0 0.0
    %7690 = vmatprep.subr.mxu0 0.0
    %7691 = vmatpush1.msra.mxu0 0.0
    %7692 = vmatprep.subr.mxu0 0.0
    %7693 = vmatpush1.msra.mxu0 0.0
    %7694 = vmatprep.subr.mxu0 0.0
    %7695 = vmatpush1.msra.mxu0 0.0
    %7696 = vmatprep.subr.mxu0 0.0
    %7697 = vmatpush1.msra.mxu0 0.0
    %7698 = vmatprep.subr.mxu0 0.0
    %7699 = vmatpush1.msra.mxu0 0.0
    %7700 = vmatprep.subr.mxu0 0.0
    %7701 = vmatpush1.msra.mxu0 0.0
    %7702 = vmatprep.subr.mxu0 0.0
    %7703 = vmatpush1.msra.mxu0 0.0
    %7704 = vmatprep.subr.mxu0 0.0
    %7705 = vmatpush1.msra.mxu0 0.0
    %7706 = vmatprep.subr.mxu0 0.0
    %7707 = vmatpush1.msra.mxu0 0.0
    %7708 = vmatprep.subr.mxu0 0.0
    %7709 = vmatpush1.msra.mxu0 0.0
    %7710 = vmatprep.subr.mxu0 0.0
    %7711 = vmatpush1.msra.mxu0 0.0
    %7712 = vmatprep.subr.mxu0 0.0
    %7713 = vmatpush1.msra.mxu0 0.0
    %7714 = vmatprep.subr.mxu0 0.0
    %7715 = vmatpush1.msra.mxu0 0.0
    %7716 = vmatprep.subr.mxu0 0.0
    %7717 = vmatpush1.msra.mxu0 0.0
    %7718 = vmatprep.subr.mxu0 0.0
    %7719 = vmatpush1.msra.mxu0 0.0
    %7720 = vmatprep.subr.mxu0 0.0
    %7721 = vmatpush1.msra.mxu0 0.0
    %7722 = vmatprep.subr.mxu0 0.0
    %7723 = vmatpush1.msra.mxu0 0.0
    %7724 = vmatprep.subr.mxu0 0.0
    %7725 = vmatpush1.msra.mxu0 0.0
    %7726 = vmatprep.subr.mxu0 0.0
    %7727 = vmatpush1.msra.mxu0 0.0
    %7728 = vmatprep.subr.mxu0 0.0
    %7729 = vmatpush1.msra.mxu0 0.0
    %7730 = vmatprep.mubr.f32.mxu0 0.0
    %v7731 = vand.u32 %v7583, 4294901760
    %7732 = vmatmul.mubr.f32.gmra.mrb[0].mxu0 %v7731
    %v7733 = vpop.f32.mrb[0].mxu0
    %v7734 = vadd.f32 %v7658, %v7733
    %v7735 = vpop.f32.mrb[0].mxu0
    %7736 = vdwg.mxu0
    %7737 = vmatprep.subr.mxu0 0.0
    %v7738 = vand.u32 %v6571, 4294901760
    %v7739 = vsub.f32 %v6571, %v7738
    %7740 = vmatpush1.msra.mxu0 %v7739
    %7741 = vmatprep.subr.mxu0 0.0
    %7742 = vmatpush1.msra.mxu0 0.0
    %7743 = vmatprep.subr.mxu0 0.0
    %7744 = vmatpush1.msra.mxu0 0.0
    %7745 = vmatprep.subr.mxu0 0.0
    %7746 = vmatpush1.msra.mxu0 0.0
    %7747 = vmatprep.subr.mxu0 0.0
    %7748 = vmatpush1.msra.mxu0 0.0
    %7749 = vmatprep.subr.mxu0 0.0
    %7750 = vmatpush1.msra.mxu0 0.0
    %7751 = vmatprep.subr.mxu0 0.0
    %7752 = vmatpush1.msra.mxu0 0.0
    %7753 = vmatprep.subr.mxu0 0.0
    %7754 = vmatpush1.msra.mxu0 0.0
    %7755 = vmatprep.subr.mxu0 0.0
    %7756 = vmatpush1.msra.mxu0 0.0
    %7757 = vmatprep.subr.mxu0 0.0
    %7758 = vmatpush1.msra.mxu0 0.0
    %7759 = vmatprep.subr.mxu0 0.0
    %7760 = vmatpush1.msra.mxu0 0.0
    %7761 = vmatprep.subr.mxu0 0.0
    %7762 = vmatpush1.msra.mxu0 0.0
    %7763 = vmatprep.subr.mxu0 0.0
    %7764 = vmatpush1.msra.mxu0 0.0
    %7765 = vmatprep.subr.mxu0 0.0
    %7766 = vmatpush1.msra.mxu0 0.0
    %7767 = vmatprep.subr.mxu0 0.0
    %7768 = vmatpush1.msra.mxu0 0.0
    %7769 = vmatprep.subr.mxu0 0.0
    %7770 = vmatpush1.msra.mxu0 0.0
    %7771 = vmatprep.subr.mxu0 0.0
    %7772 = vmatpush1.msra.mxu0 0.0
    %7773 = vmatprep.subr.mxu0 0.0
    %7774 = vmatpush1.msra.mxu0 0.0
    %7775 = vmatprep.subr.mxu0 0.0
    %7776 = vmatpush1.msra.mxu0 0.0
    %7777 = vmatprep.subr.mxu0 0.0
    %7778 = vmatpush1.msra.mxu0 0.0
    %7779 = vmatprep.subr.mxu0 0.0
    %7780 = vmatpush1.msra.mxu0 0.0
    %7781 = vmatprep.subr.mxu0 0.0
    %7782 = vmatpush1.msra.mxu0 0.0
    %7783 = vmatprep.subr.mxu0 0.0
    %7784 = vmatpush1.msra.mxu0 0.0
    %7785 = vmatprep.subr.mxu0 0.0
    %7786 = vmatpush1.msra.mxu0 0.0
    %7787 = vmatprep.subr.mxu0 0.0
    %7788 = vmatpush1.msra.mxu0 0.0
    %7789 = vmatprep.subr.mxu0 0.0
    %7790 = vmatpush1.msra.mxu0 0.0
    %7791 = vmatprep.subr.mxu0 0.0
    %7792 = vmatpush1.msra.mxu0 0.0
    %7793 = vmatprep.subr.mxu0 0.0
    %7794 = vmatpush1.msra.mxu0 0.0
    %7795 = vmatprep.subr.mxu0 0.0
    %7796 = vmatpush1.msra.mxu0 0.0
    %7797 = vmatprep.subr.mxu0 0.0
    %7798 = vmatpush1.msra.mxu0 0.0
    %7799 = vmatprep.subr.mxu0 0.0
    %7800 = vmatpush1.msra.mxu0 0.0
    %7801 = vmatprep.subr.mxu0 0.0
    %7802 = vmatpush1.msra.mxu0 0.0
    %7803 = vmatprep.mubr.f32.mxu0 0.0
    %v7804 = vand.u32 %v7583, 4294901760
    %v7805 = vsub.f32 %v7583, %v7804
    %7806 = vmatmul.mubr.f32.gmra.mrb[0].mxu0 %v7805
    %v7807 = vpop.f32.mrb[0].mxu0
    %v7808 = vadd.f32 %v7734, %v7807
    %v7809 = vpop.f32.mrb[0].mxu0
    %7810 = vdwg.mxu0
    %7811 = vmatprep.subr.mxu0 0.0
    %v7812 = vand.u32 %v6571, 4294901760
    %7813 = vmatpush1.msra.mxu0 %v7812
    %7814 = vmatprep.subr.mxu0 0.0
    %7815 = vmatpush1.msra.mxu0 0.0
    %7816 = vmatprep.subr.mxu0 0.0
    %7817 = vmatpush1.msra.mxu0 0.0
    %7818 = vmatprep.subr.mxu0 0.0
    %7819 = vmatpush1.msra.mxu0 0.0
    %7820 = vmatprep.subr.mxu0 0.0
    %7821 = vmatpush1.msra.mxu0 0.0
    %7822 = vmatprep.subr.mxu0 0.0
    %7823 = vmatpush1.msra.mxu0 0.0
    %7824 = vmatprep.subr.mxu0 0.0
    %7825 = vmatpush1.msra.mxu0 0.0
    %7826 = vmatprep.subr.mxu0 0.0
    %7827 = vmatpush1.msra.mxu0 0.0
    %7828 = vmatprep.subr.mxu0 0.0
    %7829 = vmatpush1.msra.mxu0 0.0
    %7830 = vmatprep.subr.mxu0 0.0
    %7831 = vmatpush1.msra.mxu0 0.0
    %7832 = vmatprep.subr.mxu0 0.0
    %7833 = vmatpush1.msra.mxu0 0.0
    %7834 = vmatprep.subr.mxu0 0.0
    %7835 = vmatpush1.msra.mxu0 0.0
    %7836 = vmatprep.subr.mxu0 0.0
    %7837 = vmatpush1.msra.mxu0 0.0
    %7838 = vmatprep.subr.mxu0 0.0
    %7839 = vmatpush1.msra.mxu0 0.0
    %7840 = vmatprep.subr.mxu0 0.0
    %7841 = vmatpush1.msra.mxu0 0.0
    %7842 = vmatprep.subr.mxu0 0.0
    %7843 = vmatpush1.msra.mxu0 0.0
    %7844 = vmatprep.subr.mxu0 0.0
    %7845 = vmatpush1.msra.mxu0 0.0
    %7846 = vmatprep.subr.mxu0 0.0
    %7847 = vmatpush1.msra.mxu0 0.0
    %7848 = vmatprep.subr.mxu0 0.0
    %7849 = vmatpush1.msra.mxu0 0.0
    %7850 = vmatprep.subr.mxu0 0.0
    %7851 = vmatpush1.msra.mxu0 0.0
    %7852 = vmatprep.subr.mxu0 0.0
    %7853 = vmatpush1.msra.mxu0 0.0
    %7854 = vmatprep.subr.mxu0 0.0
    %7855 = vmatpush1.msra.mxu0 0.0
    %7856 = vmatprep.subr.mxu0 0.0
    %7857 = vmatpush1.msra.mxu0 0.0
    %7858 = vmatprep.subr.mxu0 0.0
    %7859 = vmatpush1.msra.mxu0 0.0
    %7860 = vmatprep.subr.mxu0 0.0
    %7861 = vmatpush1.msra.mxu0 0.0
    %7862 = vmatprep.subr.mxu0 0.0
    %7863 = vmatpush1.msra.mxu0 0.0
    %7864 = vmatprep.subr.mxu0 0.0
    %7865 = vmatpush1.msra.mxu0 0.0
    %7866 = vmatprep.subr.mxu0 0.0
    %7867 = vmatpush1.msra.mxu0 0.0
    %7868 = vmatprep.subr.mxu0 0.0
    %7869 = vmatpush1.msra.mxu0 0.0
    %7870 = vmatprep.subr.mxu0 0.0
    %7871 = vmatpush1.msra.mxu0 0.0
    %7872 = vmatprep.subr.mxu0 0.0
    %7873 = vmatpush1.msra.mxu0 0.0
    %7874 = vmatprep.subr.mxu0 0.0
    %7875 = vmatpush1.msra.mxu0 0.0
    %7876 = vmatprep.mubr.f32.mxu0 0.0
    %v7877 = vand.u32 %v7583, 4294901760
    %v7878 = vsub.f32 %v7583, %v7877
    %v7879 = vand.u32 %v7878, 4294901760
    %7880 = vmatmul.mubr.f32.gmra.mrb[0].mxu0 %v7879
    %v7881 = vpop.f32.mrb[0].mxu0
    %v7882 = vadd.f32 %v7808, %v7881
    %v7883 = vpop.f32.mrb[0].mxu0
    %7884 = vdwg.mxu0
    %7885 = vmatprep.subr.mxu0 0.0
    %v7886 = vand.u32 %v6571, 4294901760
    %v7887 = vsub.f32 %v6571, %v7886
    %v7888 = vand.u32 %v7887, 4294901760
    %7889 = vmatpush1.msra.mxu0 %v7888
    %7890 = vmatprep.subr.mxu0 0.0
    %7891 = vmatpush1.msra.mxu0 0.0
    %7892 = vmatprep.subr.mxu0 0.0
    %7893 = vmatpush1.msra.mxu0 0.0
    %7894 = vmatprep.subr.mxu0 0.0
    %7895 = vmatpush1.msra.mxu0 0.0
    %7896 = vmatprep.subr.mxu0 0.0
    %7897 = vmatpush1.msra.mxu0 0.0
    %7898 = vmatprep.subr.mxu0 0.0
    %7899 = vmatpush1.msra.mxu0 0.0
    %7900 = vmatprep.subr.mxu0 0.0
    %7901 = vmatpush1.msra.mxu0 0.0
    %7902 = vmatprep.subr.mxu0 0.0
    %7903 = vmatpush1.msra.mxu0 0.0
    %7904 = vmatprep.subr.mxu0 0.0
    %7905 = vmatpush1.msra.mxu0 0.0
    %7906 = vmatprep.subr.mxu0 0.0
    %7907 = vmatpush1.msra.mxu0 0.0
    %7908 = vmatprep.subr.mxu0 0.0
    %7909 = vmatpush1.msra.mxu0 0.0
    %7910 = vmatprep.subr.mxu0 0.0
    %7911 = vmatpush1.msra.mxu0 0.0
    %7912 = vmatprep.subr.mxu0 0.0
    %7913 = vmatpush1.msra.mxu0 0.0
    %7914 = vmatprep.subr.mxu0 0.0
    %7915 = vmatpush1.msra.mxu0 0.0
    %7916 = vmatprep.subr.mxu0 0.0
    %7917 = vmatpush1.msra.mxu0 0.0
    %7918 = vmatprep.subr.mxu0 0.0
    %7919 = vmatpush1.msra.mxu0 0.0
    %7920 = vmatprep.subr.mxu0 0.0
    %7921 = vmatpush1.msra.mxu0 0.0
    %7922 = vmatprep.subr.mxu0 0.0
    %7923 = vmatpush1.msra.mxu0 0.0
    %7924 = vmatprep.subr.mxu0 0.0
    %7925 = vmatpush1.msra.mxu0 0.0
    %7926 = vmatprep.subr.mxu0 0.0
    %7927 = vmatpush1.msra.mxu0 0.0
    %7928 = vmatprep.subr.mxu0 0.0
    %7929 = vmatpush1.msra.mxu0 0.0
    %7930 = vmatprep.subr.mxu0 0.0
    %7931 = vmatpush1.msra.mxu0 0.0
    %7932 = vmatprep.subr.mxu0 0.0
    %7933 = vmatpush1.msra.mxu0 0.0
    %7934 = vmatprep.subr.mxu0 0.0
    %7935 = vmatpush1.msra.mxu0 0.0
    %7936 = vmatprep.subr.mxu0 0.0
    %7937 = vmatpush1.msra.mxu0 0.0
    %7938 = vmatprep.subr.mxu0 0.0
    %7939 = vmatpush1.msra.mxu0 0.0
    %7940 = vmatprep.subr.mxu0 0.0
    %7941 = vmatpush1.msra.mxu0 0.0
    %7942 = vmatprep.subr.mxu0 0.0
    %7943 = vmatpush1.msra.mxu0 0.0
    %7944 = vmatprep.subr.mxu0 0.0
    %7945 = vmatpush1.msra.mxu0 0.0
    %7946 = vmatprep.subr.mxu0 0.0
    %7947 = vmatpush1.msra.mxu0 0.0
    %7948 = vmatprep.subr.mxu0 0.0
    %7949 = vmatpush1.msra.mxu0 0.0
    %7950 = vmatprep.subr.mxu0 0.0
    %7951 = vmatpush1.msra.mxu0 0.0
    %7952 = vmatprep.mubr.f32.mxu0 0.0
    %v7953 = vand.u32 %v7583, 4294901760
    %7954 = vmatmul.mubr.f32.gmra.mrb[0].mxu0 %v7953
    %v7955 = vpop.f32.mrb[0].mxu0
    %v7956 = vadd.f32 %v7882, %v7955
    %v7957 = vpop.f32.mrb[0].mxu0
    %7958 = vdwg.mxu0
    %7959 = vmatprep.subr.mxu0 0.0
    %v7960 = vand.u32 %v6571, 4294901760
    %7961 = vmatpush1.msra.mxu0 %v7960
    %7962 = vmatprep.subr.mxu0 0.0
    %7963 = vmatpush1.msra.mxu0 0.0
    %7964 = vmatprep.subr.mxu0 0.0
    %7965 = vmatpush1.msra.mxu0 0.0
    %7966 = vmatprep.subr.mxu0 0.0
    %7967 = vmatpush1.msra.mxu0 0.0
    %7968 = vmatprep.subr.mxu0 0.0
    %7969 = vmatpush1.msra.mxu0 0.0
    %7970 = vmatprep.subr.mxu0 0.0
    %7971 = vmatpush1.msra.mxu0 0.0
    %7972 = vmatprep.subr.mxu0 0.0
    %7973 = vmatpush1.msra.mxu0 0.0
    %7974 = vmatprep.subr.mxu0 0.0
    %7975 = vmatpush1.msra.mxu0 0.0
    %7976 = vmatprep.subr.mxu0 0.0
    %7977 = vmatpush1.msra.mxu0 0.0
    %7978 = vmatprep.subr.mxu0 0.0
    %7979 = vmatpush1.msra.mxu0 0.0
    %7980 = vmatprep.subr.mxu0 0.0
    %7981 = vmatpush1.msra.mxu0 0.0
    %7982 = vmatprep.subr.mxu0 0.0
    %7983 = vmatpush1.msra.mxu0 0.0
    %7984 = vmatprep.subr.mxu0 0.0
    %7985 = vmatpush1.msra.mxu0 0.0
    %7986 = vmatprep.subr.mxu0 0.0
    %7987 = vmatpush1.msra.mxu0 0.0
    %7988 = vmatprep.subr.mxu0 0.0
    %7989 = vmatpush1.msra.mxu0 0.0
    %7990 = vmatprep.subr.mxu0 0.0
    %7991 = vmatpush1.msra.mxu0 0.0
    %7992 = vmatprep.subr.mxu0 0.0
    %7993 = vmatpush1.msra.mxu0 0.0
    %7994 = vmatprep.subr.mxu0 0.0
    %7995 = vmatpush1.msra.mxu0 0.0
    %7996 = vmatprep.subr.mxu0 0.0
    %7997 = vmatpush1.msra.mxu0 0.0
    %7998 = vmatprep.subr.mxu0 0.0
    %7999 = vmatpush1.msra.mxu0 0.0
    %8000 = vmatprep.subr.mxu0 0.0
    %8001 = vmatpush1.msra.mxu0 0.0
    %8002 = vmatprep.subr.mxu0 0.0
    %8003 = vmatpush1.msra.mxu0 0.0
    %8004 = vmatprep.subr.mxu0 0.0
    %8005 = vmatpush1.msra.mxu0 0.0
    %8006 = vmatprep.subr.mxu0 0.0
    %8007 = vmatpush1.msra.mxu0 0.0
    %8008 = vmatprep.subr.mxu0 0.0
    %8009 = vmatpush1.msra.mxu0 0.0
    %8010 = vmatprep.subr.mxu0 0.0
    %8011 = vmatpush1.msra.mxu0 0.0
    %8012 = vmatprep.subr.mxu0 0.0
    %8013 = vmatpush1.msra.mxu0 0.0
    %8014 = vmatprep.subr.mxu0 0.0
    %8015 = vmatpush1.msra.mxu0 0.0
    %8016 = vmatprep.subr.mxu0 0.0
    %8017 = vmatpush1.msra.mxu0 0.0
    %8018 = vmatprep.subr.mxu0 0.0
    %8019 = vmatpush1.msra.mxu0 0.0
    %8020 = vmatprep.subr.mxu0 0.0
    %8021 = vmatpush1.msra.mxu0 0.0
    %8022 = vmatprep.subr.mxu0 0.0
    %8023 = vmatpush1.msra.mxu0 0.0
    %8024 = vmatprep.mubr.f32.mxu0 0.0
    %v8025 = vand.u32 %v7583, 4294901760
    %8026 = vmatmul.mubr.f32.gmra.mrb[0].mxu0 %v8025
    %v8027 = vpop.f32.mrb[0].mxu0
    %v8028 = vadd.f32 %v7956, %v8027
    %v8029 = vpop.f32.mrb[0].mxu0
    %8030 = vdwg.mxu0
    %v8033 = vsel %vm7022, %v7128, 0
    %8035 = vmatprep.subr.mxu0 0.0
    %v8036 = vand.u32 %v6112, 4294901760
    %8037 = vmatpush1.msra.mxu0 %v8036
    %8038 = vmatprep.subr.mxu0 0.0
    %8039 = vmatpush1.msra.mxu0 0.0
    %8040 = vmatprep.subr.mxu0 0.0
    %8041 = vmatpush1.msra.mxu0 0.0
    %8042 = vmatprep.subr.mxu0 0.0
    %8043 = vmatpush1.msra.mxu0 0.0
    %8044 = vmatprep.subr.mxu0 0.0
    %8045 = vmatpush1.msra.mxu0 0.0
    %8046 = vmatprep.subr.mxu0 0.0
    %8047 = vmatpush1.msra.mxu0 0.0
    %8048 = vmatprep.subr.mxu0 0.0
    %8049 = vmatpush1.msra.mxu0 0.0
    %8050 = vmatprep.subr.mxu0 0.0
    %8051 = vmatpush1.msra.mxu0 0.0
    %8052 = vmatprep.subr.mxu0 0.0
    %8053 = vmatpush1.msra.mxu0 0.0
    %8054 = vmatprep.subr.mxu0 0.0
    %8055 = vmatpush1.msra.mxu0 0.0
    %8056 = vmatprep.subr.mxu0 0.0
    %8057 = vmatpush1.msra.mxu0 0.0
    %8058 = vmatprep.subr.mxu0 0.0
    %8059 = vmatpush1.msra.mxu0 0.0
    %8060 = vmatprep.subr.mxu0 0.0
    %8061 = vmatpush1.msra.mxu0 0.0
    %8062 = vmatprep.subr.mxu0 0.0
    %8063 = vmatpush1.msra.mxu0 0.0
    %8064 = vmatprep.subr.mxu0 0.0
    %8065 = vmatpush1.msra.mxu0 0.0
    %8066 = vmatprep.subr.mxu0 0.0
    %8067 = vmatpush1.msra.mxu0 0.0
    %8068 = vmatprep.subr.mxu0 0.0
    %8069 = vmatpush1.msra.mxu0 0.0
    %8070 = vmatprep.subr.mxu0 0.0
    %8071 = vmatpush1.msra.mxu0 0.0
    %8072 = vmatprep.subr.mxu0 0.0
    %8073 = vmatpush1.msra.mxu0 0.0
    %8074 = vmatprep.subr.mxu0 0.0
    %8075 = vmatpush1.msra.mxu0 0.0
    %8076 = vmatprep.subr.mxu0 0.0
    %8077 = vmatpush1.msra.mxu0 0.0
    %8078 = vmatprep.subr.mxu0 0.0
    %8079 = vmatpush1.msra.mxu0 0.0
    %8080 = vmatprep.subr.mxu0 0.0
    %8081 = vmatpush1.msra.mxu0 0.0
    %8082 = vmatprep.subr.mxu0 0.0
    %8083 = vmatpush1.msra.mxu0 0.0
    %8084 = vmatprep.subr.mxu0 0.0
    %8085 = vmatpush1.msra.mxu0 0.0
    %8086 = vmatprep.subr.mxu0 0.0
    %8087 = vmatpush1.msra.mxu0 0.0
    %8088 = vmatprep.subr.mxu0 0.0
    %8089 = vmatpush1.msra.mxu0 0.0
    %8090 = vmatprep.subr.mxu0 0.0
    %8091 = vmatpush1.msra.mxu0 0.0
    %8092 = vmatprep.subr.mxu0 0.0
    %8093 = vmatpush1.msra.mxu0 0.0
    %8094 = vmatprep.subr.mxu0 0.0
    %8095 = vmatpush1.msra.mxu0 0.0
    %8096 = vmatprep.subr.mxu0 0.0
    %8097 = vmatpush1.msra.mxu0 0.0
    %8098 = vmatprep.subr.mxu0 0.0
    %8099 = vmatpush1.msra.mxu0 0.0
    %8100 = vmatprep.mubr.f32.mxu0 0.0
    %v8101 = vand.u32 %v8033, 4294901760
    %v8102 = vsub.f32 %v8033, %v8101
    %v8103 = vand.u32 %v8102, 4294901760
    %v8104 = vsub.f32 %v8102, %v8103
    %v8105 = vand.u32 %v8104, 4294901760
    %8106 = vmatmul.mubr.f32.gmra.mrb[0].mxu0 %v8105
    %v8107 = vpop.f32.mrb[0].mxu0
    %v8108 = vadd.f32 0.0, %v8107
    %v8109 = vpop.f32.mrb[0].mxu0
    %8110 = vdwg.mxu0
    %8111 = vmatprep.subr.mxu0 0.0
    %v8112 = vand.u32 %v6112, 4294901760
    %v8113 = vsub.f32 %v6112, %v8112
    %v8114 = vand.u32 %v8113, 4294901760
    %v8115 = vsub.f32 %v8113, %v8114
    %v8116 = vand.u32 %v8115, 4294901760
    %8117 = vmatpush1.msra.mxu0 %v8116
    %8118 = vmatprep.subr.mxu0 0.0
    %8119 = vmatpush1.msra.mxu0 0.0
    %8120 = vmatprep.subr.mxu0 0.0
    %8121 = vmatpush1.msra.mxu0 0.0
    %8122 = vmatprep.subr.mxu0 0.0
    %8123 = vmatpush1.msra.mxu0 0.0
    %8124 = vmatprep.subr.mxu0 0.0
    %8125 = vmatpush1.msra.mxu0 0.0
    %8126 = vmatprep.subr.mxu0 0.0
    %8127 = vmatpush1.msra.mxu0 0.0
    %8128 = vmatprep.subr.mxu0 0.0
    %8129 = vmatpush1.msra.mxu0 0.0
    %8130 = vmatprep.subr.mxu0 0.0
    %8131 = vmatpush1.msra.mxu0 0.0
    %8132 = vmatprep.subr.mxu0 0.0
    %8133 = vmatpush1.msra.mxu0 0.0
    %8134 = vmatprep.subr.mxu0 0.0
    %8135 = vmatpush1.msra.mxu0 0.0
    %8136 = vmatprep.subr.mxu0 0.0
    %8137 = vmatpush1.msra.mxu0 0.0
    %8138 = vmatprep.subr.mxu0 0.0
    %8139 = vmatpush1.msra.mxu0 0.0
    %8140 = vmatprep.subr.mxu0 0.0
    %8141 = vmatpush1.msra.mxu0 0.0
    %8142 = vmatprep.subr.mxu0 0.0
    %8143 = vmatpush1.msra.mxu0 0.0
    %8144 = vmatprep.subr.mxu0 0.0
    %8145 = vmatpush1.msra.mxu0 0.0
    %8146 = vmatprep.subr.mxu0 0.0
    %8147 = vmatpush1.msra.mxu0 0.0
    %8148 = vmatprep.subr.mxu0 0.0
    %8149 = vmatpush1.msra.mxu0 0.0
    %8150 = vmatprep.subr.mxu0 0.0
    %8151 = vmatpush1.msra.mxu0 0.0
    %8152 = vmatprep.subr.mxu0 0.0
    %8153 = vmatpush1.msra.mxu0 0.0
    %8154 = vmatprep.subr.mxu0 0.0
    %8155 = vmatpush1.msra.mxu0 0.0
    %8156 = vmatprep.subr.mxu0 0.0
    %8157 = vmatpush1.msra.mxu0 0.0
    %8158 = vmatprep.subr.mxu0 0.0
    %8159 = vmatpush1.msra.mxu0 0.0
    %8160 = vmatprep.subr.mxu0 0.0
    %8161 = vmatpush1.msra.mxu0 0.0
    %8162 = vmatprep.subr.mxu0 0.0
    %8163 = vmatpush1.msra.mxu0 0.0
    %8164 = vmatprep.subr.mxu0 0.0
    %8165 = vmatpush1.msra.mxu0 0.0
    %8166 = vmatprep.subr.mxu0 0.0
    %8167 = vmatpush1.msra.mxu0 0.0
    %8168 = vmatprep.subr.mxu0 0.0
    %8169 = vmatpush1.msra.mxu0 0.0
    %8170 = vmatprep.subr.mxu0 0.0
    %8171 = vmatpush1.msra.mxu0 0.0
    %8172 = vmatprep.subr.mxu0 0.0
    %8173 = vmatpush1.msra.mxu0 0.0
    %8174 = vmatprep.subr.mxu0 0.0
    %8175 = vmatpush1.msra.mxu0 0.0
    %8176 = vmatprep.subr.mxu0 0.0
    %8177 = vmatpush1.msra.mxu0 0.0
    %8178 = vmatprep.subr.mxu0 0.0
    %8179 = vmatpush1.msra.mxu0 0.0
    %8180 = vmatprep.mubr.f32.mxu0 0.0
    %v8181 = vand.u32 %v8033, 4294901760
    %8182 = vmatmul.mubr.f32.gmra.mrb[0].mxu0 %v8181
    %v8183 = vpop.f32.mrb[0].mxu0
    %v8184 = vadd.f32 %v8108, %v8183
    %v8185 = vpop.f32.mrb[0].mxu0
    %8186 = vdwg.mxu0
    %8187 = vmatprep.subr.mxu0 0.0
    %v8188 = vand.u32 %v6112, 4294901760
    %v8189 = vsub.f32 %v6112, %v8188
    %8190 = vmatpush1.msra.mxu0 %v8189
    %8191 = vmatprep.subr.mxu0 0.0
    %8192 = vmatpush1.msra.mxu0 0.0
    %8193 = vmatprep.subr.mxu0 0.0
    %8194 = vmatpush1.msra.mxu0 0.0
    %8195 = vmatprep.subr.mxu0 0.0
    %8196 = vmatpush1.msra.mxu0 0.0
    %8197 = vmatprep.subr.mxu0 0.0
    %8198 = vmatpush1.msra.mxu0 0.0
    %8199 = vmatprep.subr.mxu0 0.0
    %8200 = vmatpush1.msra.mxu0 0.0
    %8201 = vmatprep.subr.mxu0 0.0
    %8202 = vmatpush1.msra.mxu0 0.0
    %8203 = vmatprep.subr.mxu0 0.0
    %8204 = vmatpush1.msra.mxu0 0.0
    %8205 = vmatprep.subr.mxu0 0.0
    %8206 = vmatpush1.msra.mxu0 0.0
    %8207 = vmatprep.subr.mxu0 0.0
    %8208 = vmatpush1.msra.mxu0 0.0
    %8209 = vmatprep.subr.mxu0 0.0
    %8210 = vmatpush1.msra.mxu0 0.0
    %8211 = vmatprep.subr.mxu0 0.0
    %8212 = vmatpush1.msra.mxu0 0.0
    %8213 = vmatprep.subr.mxu0 0.0
    %8214 = vmatpush1.msra.mxu0 0.0
    %8215 = vmatprep.subr.mxu0 0.0
    %8216 = vmatpush1.msra.mxu0 0.0
    %8217 = vmatprep.subr.mxu0 0.0
    %8218 = vmatpush1.msra.mxu0 0.0
    %8219 = vmatprep.subr.mxu0 0.0
    %8220 = vmatpush1.msra.mxu0 0.0
    %8221 = vmatprep.subr.mxu0 0.0
    %8222 = vmatpush1.msra.mxu0 0.0
    %8223 = vmatprep.subr.mxu0 0.0
    %8224 = vmatpush1.msra.mxu0 0.0
    %8225 = vmatprep.subr.mxu0 0.0
    %8226 = vmatpush1.msra.mxu0 0.0
    %8227 = vmatprep.subr.mxu0 0.0
    %8228 = vmatpush1.msra.mxu0 0.0
    %8229 = vmatprep.subr.mxu0 0.0
    %8230 = vmatpush1.msra.mxu0 0.0
    %8231 = vmatprep.subr.mxu0 0.0
    %8232 = vmatpush1.msra.mxu0 0.0
    %8233 = vmatprep.subr.mxu0 0.0
    %8234 = vmatpush1.msra.mxu0 0.0
    %8235 = vmatprep.subr.mxu0 0.0
    %8236 = vmatpush1.msra.mxu0 0.0
    %8237 = vmatprep.subr.mxu0 0.0
    %8238 = vmatpush1.msra.mxu0 0.0
    %8239 = vmatprep.subr.mxu0 0.0
    %8240 = vmatpush1.msra.mxu0 0.0
    %8241 = vmatprep.subr.mxu0 0.0
    %8242 = vmatpush1.msra.mxu0 0.0
    %8243 = vmatprep.subr.mxu0 0.0
    %8244 = vmatpush1.msra.mxu0 0.0
    %8245 = vmatprep.subr.mxu0 0.0
    %8246 = vmatpush1.msra.mxu0 0.0
    %8247 = vmatprep.subr.mxu0 0.0
    %8248 = vmatpush1.msra.mxu0 0.0
    %8249 = vmatprep.subr.mxu0 0.0
    %8250 = vmatpush1.msra.mxu0 0.0
    %8251 = vmatprep.subr.mxu0 0.0
    %8252 = vmatpush1.msra.mxu0 0.0
    %8253 = vmatprep.mubr.f32.mxu0 0.0
    %v8254 = vand.u32 %v8033, 4294901760
    %v8255 = vsub.f32 %v8033, %v8254
    %8256 = vmatmul.mubr.f32.gmra.mrb[0].mxu0 %v8255
    %v8257 = vpop.f32.mrb[0].mxu0
    %v8258 = vadd.f32 %v8184, %v8257
    %v8259 = vpop.f32.mrb[0].mxu0
    %8260 = vdwg.mxu0
    %8261 = vmatprep.subr.mxu0 0.0
    %v8262 = vand.u32 %v6112, 4294901760
    %8263 = vmatpush1.msra.mxu0 %v8262
    %8264 = vmatprep.subr.mxu0 0.0
    %8265 = vmatpush1.msra.mxu0 0.0
    %8266 = vmatprep.subr.mxu0 0.0
    %8267 = vmatpush1.msra.mxu0 0.0
    %8268 = vmatprep.subr.mxu0 0.0
    %8269 = vmatpush1.msra.mxu0 0.0
    %8270 = vmatprep.subr.mxu0 0.0
    %8271 = vmatpush1.msra.mxu0 0.0
    %8272 = vmatprep.subr.mxu0 0.0
    %8273 = vmatpush1.msra.mxu0 0.0
    %8274 = vmatprep.subr.mxu0 0.0
    %8275 = vmatpush1.msra.mxu0 0.0
    %8276 = vmatprep.subr.mxu0 0.0
    %8277 = vmatpush1.msra.mxu0 0.0
    %8278 = vmatprep.subr.mxu0 0.0
    %8279 = vmatpush1.msra.mxu0 0.0
    %8280 = vmatprep.subr.mxu0 0.0
    %8281 = vmatpush1.msra.mxu0 0.0
    %8282 = vmatprep.subr.mxu0 0.0
    %8283 = vmatpush1.msra.mxu0 0.0
    %8284 = vmatprep.subr.mxu0 0.0
    %8285 = vmatpush1.msra.mxu0 0.0
    %8286 = vmatprep.subr.mxu0 0.0
    %8287 = vmatpush1.msra.mxu0 0.0
    %8288 = vmatprep.subr.mxu0 0.0
    %8289 = vmatpush1.msra.mxu0 0.0
    %8290 = vmatprep.subr.mxu0 0.0
    %8291 = vmatpush1.msra.mxu0 0.0
    %8292 = vmatprep.subr.mxu0 0.0
    %8293 = vmatpush1.msra.mxu0 0.0
    %8294 = vmatprep.subr.mxu0 0.0
    %8295 = vmatpush1.msra.mxu0 0.0
    %8296 = vmatprep.subr.mxu0 0.0
    %8297 = vmatpush1.msra.mxu0 0.0
    %8298 = vmatprep.subr.mxu0 0.0
    %8299 = vmatpush1.msra.mxu0 0.0
    %8300 = vmatprep.subr.mxu0 0.0
    %8301 = vmatpush1.msra.mxu0 0.0
    %8302 = vmatprep.subr.mxu0 0.0
    %8303 = vmatpush1.msra.mxu0 0.0
    %8304 = vmatprep.subr.mxu0 0.0
    %8305 = vmatpush1.msra.mxu0 0.0
    %8306 = vmatprep.subr.mxu0 0.0
    %8307 = vmatpush1.msra.mxu0 0.0
    %8308 = vmatprep.subr.mxu0 0.0
    %8309 = vmatpush1.msra.mxu0 0.0
    %8310 = vmatprep.subr.mxu0 0.0
    %8311 = vmatpush1.msra.mxu0 0.0
    %8312 = vmatprep.subr.mxu0 0.0
    %8313 = vmatpush1.msra.mxu0 0.0
    %8314 = vmatprep.subr.mxu0 0.0
    %8315 = vmatpush1.msra.mxu0 0.0
    %8316 = vmatprep.subr.mxu0 0.0
    %8317 = vmatpush1.msra.mxu0 0.0
    %8318 = vmatprep.subr.mxu0 0.0
    %8319 = vmatpush1.msra.mxu0 0.0
    %8320 = vmatprep.subr.mxu0 0.0
    %8321 = vmatpush1.msra.mxu0 0.0
    %8322 = vmatprep.subr.mxu0 0.0
    %8323 = vmatpush1.msra.mxu0 0.0
    %8324 = vmatprep.subr.mxu0 0.0
    %8325 = vmatpush1.msra.mxu0 0.0
    %8326 = vmatprep.mubr.f32.mxu0 0.0
    %v8327 = vand.u32 %v8033, 4294901760
    %v8328 = vsub.f32 %v8033, %v8327
    %v8329 = vand.u32 %v8328, 4294901760
    %8330 = vmatmul.mubr.f32.gmra.mrb[0].mxu0 %v8329
    %v8331 = vpop.f32.mrb[0].mxu0
    %v8332 = vadd.f32 %v8258, %v8331
    %v8333 = vpop.f32.mrb[0].mxu0
    %8334 = vdwg.mxu0
    %8335 = vmatprep.subr.mxu0 0.0
    %v8336 = vand.u32 %v6112, 4294901760
    %v8337 = vsub.f32 %v6112, %v8336
    %v8338 = vand.u32 %v8337, 4294901760
    %8339 = vmatpush1.msra.mxu0 %v8338
    %8340 = vmatprep.subr.mxu0 0.0
    %8341 = vmatpush1.msra.mxu0 0.0
    %8342 = vmatprep.subr.mxu0 0.0
    %8343 = vmatpush1.msra.mxu0 0.0
    %8344 = vmatprep.subr.mxu0 0.0
    %8345 = vmatpush1.msra.mxu0 0.0
    %8346 = vmatprep.subr.mxu0 0.0
    %8347 = vmatpush1.msra.mxu0 0.0
    %8348 = vmatprep.subr.mxu0 0.0
    %8349 = vmatpush1.msra.mxu0 0.0
    %8350 = vmatprep.subr.mxu0 0.0
    %8351 = vmatpush1.msra.mxu0 0.0
    %8352 = vmatprep.subr.mxu0 0.0
    %8353 = vmatpush1.msra.mxu0 0.0
    %8354 = vmatprep.subr.mxu0 0.0
    %8355 = vmatpush1.msra.mxu0 0.0
    %8356 = vmatprep.subr.mxu0 0.0
    %8357 = vmatpush1.msra.mxu0 0.0
    %8358 = vmatprep.subr.mxu0 0.0
    %8359 = vmatpush1.msra.mxu0 0.0
    %8360 = vmatprep.subr.mxu0 0.0
    %8361 = vmatpush1.msra.mxu0 0.0
    %8362 = vmatprep.subr.mxu0 0.0
    %8363 = vmatpush1.msra.mxu0 0.0
    %8364 = vmatprep.subr.mxu0 0.0
    %8365 = vmatpush1.msra.mxu0 0.0
    %8366 = vmatprep.subr.mxu0 0.0
    %8367 = vmatpush1.msra.mxu0 0.0
    %8368 = vmatprep.subr.mxu0 0.0
    %8369 = vmatpush1.msra.mxu0 0.0
    %8370 = vmatprep.subr.mxu0 0.0
    %8371 = vmatpush1.msra.mxu0 0.0
    %8372 = vmatprep.subr.mxu0 0.0
    %8373 = vmatpush1.msra.mxu0 0.0
    %8374 = vmatprep.subr.mxu0 0.0
    %8375 = vmatpush1.msra.mxu0 0.0
    %8376 = vmatprep.subr.mxu0 0.0
    %8377 = vmatpush1.msra.mxu0 0.0
    %8378 = vmatprep.subr.mxu0 0.0
    %8379 = vmatpush1.msra.mxu0 0.0
    %8380 = vmatprep.subr.mxu0 0.0
    %8381 = vmatpush1.msra.mxu0 0.0
    %8382 = vmatprep.subr.mxu0 0.0
    %8383 = vmatpush1.msra.mxu0 0.0
    %8384 = vmatprep.subr.mxu0 0.0
    %8385 = vmatpush1.msra.mxu0 0.0
    %8386 = vmatprep.subr.mxu0 0.0
    %8387 = vmatpush1.msra.mxu0 0.0
    %8388 = vmatprep.subr.mxu0 0.0
    %8389 = vmatpush1.msra.mxu0 0.0
    %8390 = vmatprep.subr.mxu0 0.0
    %8391 = vmatpush1.msra.mxu0 0.0
    %8392 = vmatprep.subr.mxu0 0.0
    %8393 = vmatpush1.msra.mxu0 0.0
    %8394 = vmatprep.subr.mxu0 0.0
    %8395 = vmatpush1.msra.mxu0 0.0
    %8396 = vmatprep.subr.mxu0 0.0
    %8397 = vmatpush1.msra.mxu0 0.0
    %8398 = vmatprep.subr.mxu0 0.0
    %8399 = vmatpush1.msra.mxu0 0.0
    %8400 = vmatprep.subr.mxu0 0.0
    %8401 = vmatpush1.msra.mxu0 0.0
    %8402 = vmatprep.mubr.f32.mxu0 0.0
    %v8403 = vand.u32 %v8033, 4294901760
    %8404 = vmatmul.mubr.f32.gmra.mrb[0].mxu0 %v8403
    %v8405 = vpop.f32.mrb[0].mxu0
    %v8406 = vadd.f32 %v8332, %v8405
    %v8407 = vpop.f32.mrb[0].mxu0
    %8408 = vdwg.mxu0
    %8409 = vmatprep.subr.mxu0 0.0
    %v8410 = vand.u32 %v6112, 4294901760
    %8411 = vmatpush1.msra.mxu0 %v8410
    %8412 = vmatprep.subr.mxu0 0.0
    %8413 = vmatpush1.msra.mxu0 0.0
    %8414 = vmatprep.subr.mxu0 0.0
    %8415 = vmatpush1.msra.mxu0 0.0
    %8416 = vmatprep.subr.mxu0 0.0
    %8417 = vmatpush1.msra.mxu0 0.0
    %8418 = vmatprep.subr.mxu0 0.0
    %8419 = vmatpush1.msra.mxu0 0.0
    %8420 = vmatprep.subr.mxu0 0.0
    %8421 = vmatpush1.msra.mxu0 0.0
    %8422 = vmatprep.subr.mxu0 0.0
    %8423 = vmatpush1.msra.mxu0 0.0
    %8424 = vmatprep.subr.mxu0 0.0
    %8425 = vmatpush1.msra.mxu0 0.0
    %8426 = vmatprep.subr.mxu0 0.0
    %8427 = vmatpush1.msra.mxu0 0.0
    %8428 = vmatprep.subr.mxu0 0.0
    %8429 = vmatpush1.msra.mxu0 0.0
    %8430 = vmatprep.subr.mxu0 0.0
    %8431 = vmatpush1.msra.mxu0 0.0
    %8432 = vmatprep.subr.mxu0 0.0
    %8433 = vmatpush1.msra.mxu0 0.0
    %8434 = vmatprep.subr.mxu0 0.0
    %8435 = vmatpush1.msra.mxu0 0.0
    %8436 = vmatprep.subr.mxu0 0.0
    %8437 = vmatpush1.msra.mxu0 0.0
    %8438 = vmatprep.subr.mxu0 0.0
    %8439 = vmatpush1.msra.mxu0 0.0
    %8440 = vmatprep.subr.mxu0 0.0
    %8441 = vmatpush1.msra.mxu0 0.0
    %8442 = vmatprep.subr.mxu0 0.0
    %8443 = vmatpush1.msra.mxu0 0.0
    %8444 = vmatprep.subr.mxu0 0.0
    %8445 = vmatpush1.msra.mxu0 0.0
    %8446 = vmatprep.subr.mxu0 0.0
    %8447 = vmatpush1.msra.mxu0 0.0
    %8448 = vmatprep.subr.mxu0 0.0
    %8449 = vmatpush1.msra.mxu0 0.0
    %8450 = vmatprep.subr.mxu0 0.0
    %8451 = vmatpush1.msra.mxu0 0.0
    %8452 = vmatprep.subr.mxu0 0.0
    %8453 = vmatpush1.msra.mxu0 0.0
    %8454 = vmatprep.subr.mxu0 0.0
    %8455 = vmatpush1.msra.mxu0 0.0
    %8456 = vmatprep.subr.mxu0 0.0
    %8457 = vmatpush1.msra.mxu0 0.0
    %8458 = vmatprep.subr.mxu0 0.0
    %8459 = vmatpush1.msra.mxu0 0.0
    %8460 = vmatprep.subr.mxu0 0.0
    %8461 = vmatpush1.msra.mxu0 0.0
    %8462 = vmatprep.subr.mxu0 0.0
    %8463 = vmatpush1.msra.mxu0 0.0
    %8464 = vmatprep.subr.mxu0 0.0
    %8465 = vmatpush1.msra.mxu0 0.0
    %8466 = vmatprep.subr.mxu0 0.0
    %8467 = vmatpush1.msra.mxu0 0.0
    %8468 = vmatprep.subr.mxu0 0.0
    %8469 = vmatpush1.msra.mxu0 0.0
    %8470 = vmatprep.subr.mxu0 0.0
    %8471 = vmatpush1.msra.mxu0 0.0
    %8472 = vmatprep.subr.mxu0 0.0
    %8473 = vmatpush1.msra.mxu0 0.0
    %8474 = vmatprep.mubr.f32.mxu0 0.0
    %v8475 = vand.u32 %v8033, 4294901760
    %8476 = vmatmul.mubr.f32.gmra.mrb[0].mxu0 %v8475
    %v8477 = vpop.f32.mrb[0].mxu0
    %v8478 = vadd.f32 %v8406, %v8477
    %v8479 = vpop.f32.mrb[0].mxu0
    %8480 = vdwg.mxu0
    %v8483 = vsel %vm7022, %v7130, 0
    %8485 = vmatprep.subr.mxu0 0.0
    %v8486 = vand.u32 %v6568, 4294901760
    %8487 = vmatpush1.msra.mxu0 %v8486
    %8488 = vmatprep.subr.mxu0 0.0
    %8489 = vmatpush1.msra.mxu0 0.0
    %8490 = vmatprep.subr.mxu0 0.0
    %8491 = vmatpush1.msra.mxu0 0.0
    %8492 = vmatprep.subr.mxu0 0.0
    %8493 = vmatpush1.msra.mxu0 0.0
    %8494 = vmatprep.subr.mxu0 0.0
    %8495 = vmatpush1.msra.mxu0 0.0
    %8496 = vmatprep.subr.mxu0 0.0
    %8497 = vmatpush1.msra.mxu0 0.0
    %8498 = vmatprep.subr.mxu0 0.0
    %8499 = vmatpush1.msra.mxu0 0.0
    %8500 = vmatprep.subr.mxu0 0.0
    %8501 = vmatpush1.msra.mxu0 0.0
    %8502 = vmatprep.subr.mxu0 0.0
    %8503 = vmatpush1.msra.mxu0 0.0
    %8504 = vmatprep.subr.mxu0 0.0
    %8505 = vmatpush1.msra.mxu0 0.0
    %8506 = vmatprep.subr.mxu0 0.0
    %8507 = vmatpush1.msra.mxu0 0.0
    %8508 = vmatprep.subr.mxu0 0.0
    %8509 = vmatpush1.msra.mxu0 0.0
    %8510 = vmatprep.subr.mxu0 0.0
    %8511 = vmatpush1.msra.mxu0 0.0
    %8512 = vmatprep.subr.mxu0 0.0
    %8513 = vmatpush1.msra.mxu0 0.0
    %8514 = vmatprep.subr.mxu0 0.0
    %8515 = vmatpush1.msra.mxu0 0.0
    %8516 = vmatprep.subr.mxu0 0.0
    %8517 = vmatpush1.msra.mxu0 0.0
    %8518 = vmatprep.subr.mxu0 0.0
    %8519 = vmatpush1.msra.mxu0 0.0
    %8520 = vmatprep.subr.mxu0 0.0
    %8521 = vmatpush1.msra.mxu0 0.0
    %8522 = vmatprep.subr.mxu0 0.0
    %8523 = vmatpush1.msra.mxu0 0.0
    %8524 = vmatprep.subr.mxu0 0.0
    %8525 = vmatpush1.msra.mxu0 0.0
    %8526 = vmatprep.subr.mxu0 0.0
    %8527 = vmatpush1.msra.mxu0 0.0
    %8528 = vmatprep.subr.mxu0 0.0
    %8529 = vmatpush1.msra.mxu0 0.0
    %8530 = vmatprep.subr.mxu0 0.0
    %8531 = vmatpush1.msra.mxu0 0.0
    %8532 = vmatprep.subr.mxu0 0.0
    %8533 = vmatpush1.msra.mxu0 0.0
    %8534 = vmatprep.subr.mxu0 0.0
    %8535 = vmatpush1.msra.mxu0 0.0
    %8536 = vmatprep.subr.mxu0 0.0
    %8537 = vmatpush1.msra.mxu0 0.0
    %8538 = vmatprep.subr.mxu0 0.0
    %8539 = vmatpush1.msra.mxu0 0.0
    %8540 = vmatprep.subr.mxu0 0.0
    %8541 = vmatpush1.msra.mxu0 0.0
    %8542 = vmatprep.subr.mxu0 0.0
    %8543 = vmatpush1.msra.mxu0 0.0
    %8544 = vmatprep.subr.mxu0 0.0
    %8545 = vmatpush1.msra.mxu0 0.0
    %8546 = vmatprep.subr.mxu0 0.0
    %8547 = vmatpush1.msra.mxu0 0.0
    %8548 = vmatprep.subr.mxu0 0.0
    %8549 = vmatpush1.msra.mxu0 0.0
    %8550 = vmatprep.mubr.f32.mxu0 0.0
    %v8551 = vand.u32 %v8483, 4294901760
    %v8552 = vsub.f32 %v8483, %v8551
    %v8553 = vand.u32 %v8552, 4294901760
    %v8554 = vsub.f32 %v8552, %v8553
    %v8555 = vand.u32 %v8554, 4294901760
    %8556 = vmatmul.mubr.f32.gmra.mrb[0].mxu0 %v8555
    %v8557 = vpop.f32.mrb[0].mxu0
    %v8558 = vadd.f32 0.0, %v8557
    %v8559 = vpop.f32.mrb[0].mxu0
    %8560 = vdwg.mxu0
    %8561 = vmatprep.subr.mxu0 0.0
    %v8562 = vand.u32 %v6568, 4294901760
    %v8563 = vsub.f32 %v6568, %v8562
    %v8564 = vand.u32 %v8563, 4294901760
    %v8565 = vsub.f32 %v8563, %v8564
    %v8566 = vand.u32 %v8565, 4294901760
    %8567 = vmatpush1.msra.mxu0 %v8566
    %8568 = vmatprep.subr.mxu0 0.0
    %8569 = vmatpush1.msra.mxu0 0.0
    %8570 = vmatprep.subr.mxu0 0.0
    %8571 = vmatpush1.msra.mxu0 0.0
    %8572 = vmatprep.subr.mxu0 0.0
    %8573 = vmatpush1.msra.mxu0 0.0
    %8574 = vmatprep.subr.mxu0 0.0
    %8575 = vmatpush1.msra.mxu0 0.0
    %8576 = vmatprep.subr.mxu0 0.0
    %8577 = vmatpush1.msra.mxu0 0.0
    %8578 = vmatprep.subr.mxu0 0.0
    %8579 = vmatpush1.msra.mxu0 0.0
    %8580 = vmatprep.subr.mxu0 0.0
    %8581 = vmatpush1.msra.mxu0 0.0
    %8582 = vmatprep.subr.mxu0 0.0
    %8583 = vmatpush1.msra.mxu0 0.0
    %8584 = vmatprep.subr.mxu0 0.0
    %8585 = vmatpush1.msra.mxu0 0.0
    %8586 = vmatprep.subr.mxu0 0.0
    %8587 = vmatpush1.msra.mxu0 0.0
    %8588 = vmatprep.subr.mxu0 0.0
    %8589 = vmatpush1.msra.mxu0 0.0
    %8590 = vmatprep.subr.mxu0 0.0
    %8591 = vmatpush1.msra.mxu0 0.0
    %8592 = vmatprep.subr.mxu0 0.0
    %8593 = vmatpush1.msra.mxu0 0.0
    %8594 = vmatprep.subr.mxu0 0.0
    %8595 = vmatpush1.msra.mxu0 0.0
    %8596 = vmatprep.subr.mxu0 0.0
    %8597 = vmatpush1.msra.mxu0 0.0
    %8598 = vmatprep.subr.mxu0 0.0
    %8599 = vmatpush1.msra.mxu0 0.0
    %8600 = vmatprep.subr.mxu0 0.0
    %8601 = vmatpush1.msra.mxu0 0.0
    %8602 = vmatprep.subr.mxu0 0.0
    %8603 = vmatpush1.msra.mxu0 0.0
    %8604 = vmatprep.subr.mxu0 0.0
    %8605 = vmatpush1.msra.mxu0 0.0
    %8606 = vmatprep.subr.mxu0 0.0
    %8607 = vmatpush1.msra.mxu0 0.0
    %8608 = vmatprep.subr.mxu0 0.0
    %8609 = vmatpush1.msra.mxu0 0.0
    %8610 = vmatprep.subr.mxu0 0.0
    %8611 = vmatpush1.msra.mxu0 0.0
    %8612 = vmatprep.subr.mxu0 0.0
    %8613 = vmatpush1.msra.mxu0 0.0
    %8614 = vmatprep.subr.mxu0 0.0
    %8615 = vmatpush1.msra.mxu0 0.0
    %8616 = vmatprep.subr.mxu0 0.0
    %8617 = vmatpush1.msra.mxu0 0.0
    %8618 = vmatprep.subr.mxu0 0.0
    %8619 = vmatpush1.msra.mxu0 0.0
    %8620 = vmatprep.subr.mxu0 0.0
    %8621 = vmatpush1.msra.mxu0 0.0
    %8622 = vmatprep.subr.mxu0 0.0
    %8623 = vmatpush1.msra.mxu0 0.0
    %8624 = vmatprep.subr.mxu0 0.0
    %8625 = vmatpush1.msra.mxu0 0.0
    %8626 = vmatprep.subr.mxu0 0.0
    %8627 = vmatpush1.msra.mxu0 0.0
    %8628 = vmatprep.subr.mxu0 0.0
    %8629 = vmatpush1.msra.mxu0 0.0
    %8630 = vmatprep.mubr.f32.mxu0 0.0
    %v8631 = vand.u32 %v8483, 4294901760
    %8632 = vmatmul.mubr.f32.gmra.mrb[0].mxu0 %v8631
    %v8633 = vpop.f32.mrb[0].mxu0
    %v8634 = vadd.f32 %v8558, %v8633
    %v8635 = vpop.f32.mrb[0].mxu0
    %8636 = vdwg.mxu0
    %8637 = vmatprep.subr.mxu0 0.0
    %v8638 = vand.u32 %v6568, 4294901760
    %v8639 = vsub.f32 %v6568, %v8638
    %8640 = vmatpush1.msra.mxu0 %v8639
    %8641 = vmatprep.subr.mxu0 0.0
    %8642 = vmatpush1.msra.mxu0 0.0
    %8643 = vmatprep.subr.mxu0 0.0
    %8644 = vmatpush1.msra.mxu0 0.0
    %8645 = vmatprep.subr.mxu0 0.0
    %8646 = vmatpush1.msra.mxu0 0.0
    %8647 = vmatprep.subr.mxu0 0.0
    %8648 = vmatpush1.msra.mxu0 0.0
    %8649 = vmatprep.subr.mxu0 0.0
    %8650 = vmatpush1.msra.mxu0 0.0
    %8651 = vmatprep.subr.mxu0 0.0
    %8652 = vmatpush1.msra.mxu0 0.0
    %8653 = vmatprep.subr.mxu0 0.0
    %8654 = vmatpush1.msra.mxu0 0.0
    %8655 = vmatprep.subr.mxu0 0.0
    %8656 = vmatpush1.msra.mxu0 0.0
    %8657 = vmatprep.subr.mxu0 0.0
    %8658 = vmatpush1.msra.mxu0 0.0
    %8659 = vmatprep.subr.mxu0 0.0
    %8660 = vmatpush1.msra.mxu0 0.0
    %8661 = vmatprep.subr.mxu0 0.0
    %8662 = vmatpush1.msra.mxu0 0.0
    %8663 = vmatprep.subr.mxu0 0.0
    %8664 = vmatpush1.msra.mxu0 0.0
    %8665 = vmatprep.subr.mxu0 0.0
    %8666 = vmatpush1.msra.mxu0 0.0
    %8667 = vmatprep.subr.mxu0 0.0
    %8668 = vmatpush1.msra.mxu0 0.0
    %8669 = vmatprep.subr.mxu0 0.0
    %8670 = vmatpush1.msra.mxu0 0.0
    %8671 = vmatprep.subr.mxu0 0.0
    %8672 = vmatpush1.msra.mxu0 0.0
    %8673 = vmatprep.subr.mxu0 0.0
    %8674 = vmatpush1.msra.mxu0 0.0
    %8675 = vmatprep.subr.mxu0 0.0
    %8676 = vmatpush1.msra.mxu0 0.0
    %8677 = vmatprep.subr.mxu0 0.0
    %8678 = vmatpush1.msra.mxu0 0.0
    %8679 = vmatprep.subr.mxu0 0.0
    %8680 = vmatpush1.msra.mxu0 0.0
    %8681 = vmatprep.subr.mxu0 0.0
    %8682 = vmatpush1.msra.mxu0 0.0
    %8683 = vmatprep.subr.mxu0 0.0
    %8684 = vmatpush1.msra.mxu0 0.0
    %8685 = vmatprep.subr.mxu0 0.0
    %8686 = vmatpush1.msra.mxu0 0.0
    %8687 = vmatprep.subr.mxu0 0.0
    %8688 = vmatpush1.msra.mxu0 0.0
    %8689 = vmatprep.subr.mxu0 0.0
    %8690 = vmatpush1.msra.mxu0 0.0
    %8691 = vmatprep.subr.mxu0 0.0
    %8692 = vmatpush1.msra.mxu0 0.0
    %8693 = vmatprep.subr.mxu0 0.0
    %8694 = vmatpush1.msra.mxu0 0.0
    %8695 = vmatprep.subr.mxu0 0.0
    %8696 = vmatpush1.msra.mxu0 0.0
    %8697 = vmatprep.subr.mxu0 0.0
    %8698 = vmatpush1.msra.mxu0 0.0
    %8699 = vmatprep.subr.mxu0 0.0
    %8700 = vmatpush1.msra.mxu0 0.0
    %8701 = vmatprep.subr.mxu0 0.0
    %8702 = vmatpush1.msra.mxu0 0.0
    %8703 = vmatprep.mubr.f32.mxu0 0.0
    %v8704 = vand.u32 %v8483, 4294901760
    %v8705 = vsub.f32 %v8483, %v8704
    %8706 = vmatmul.mubr.f32.gmra.mrb[0].mxu0 %v8705
    %v8707 = vpop.f32.mrb[0].mxu0
    %v8708 = vadd.f32 %v8634, %v8707
    %v8709 = vpop.f32.mrb[0].mxu0
    %8710 = vdwg.mxu0
    %8711 = vmatprep.subr.mxu0 0.0
    %v8712 = vand.u32 %v6568, 4294901760
    %8713 = vmatpush1.msra.mxu0 %v8712
    %8714 = vmatprep.subr.mxu0 0.0
    %8715 = vmatpush1.msra.mxu0 0.0
    %8716 = vmatprep.subr.mxu0 0.0
    %8717 = vmatpush1.msra.mxu0 0.0
    %8718 = vmatprep.subr.mxu0 0.0
    %8719 = vmatpush1.msra.mxu0 0.0
    %8720 = vmatprep.subr.mxu0 0.0
    %8721 = vmatpush1.msra.mxu0 0.0
    %8722 = vmatprep.subr.mxu0 0.0
    %8723 = vmatpush1.msra.mxu0 0.0
    %8724 = vmatprep.subr.mxu0 0.0
    %8725 = vmatpush1.msra.mxu0 0.0
    %8726 = vmatprep.subr.mxu0 0.0
    %8727 = vmatpush1.msra.mxu0 0.0
    %8728 = vmatprep.subr.mxu0 0.0
    %8729 = vmatpush1.msra.mxu0 0.0
    %8730 = vmatprep.subr.mxu0 0.0
    %8731 = vmatpush1.msra.mxu0 0.0
    %8732 = vmatprep.subr.mxu0 0.0
    %8733 = vmatpush1.msra.mxu0 0.0
    %8734 = vmatprep.subr.mxu0 0.0
    %8735 = vmatpush1.msra.mxu0 0.0
    %8736 = vmatprep.subr.mxu0 0.0
    %8737 = vmatpush1.msra.mxu0 0.0
    %8738 = vmatprep.subr.mxu0 0.0
    %8739 = vmatpush1.msra.mxu0 0.0
    %8740 = vmatprep.subr.mxu0 0.0
    %8741 = vmatpush1.msra.mxu0 0.0
    %8742 = vmatprep.subr.mxu0 0.0
    %8743 = vmatpush1.msra.mxu0 0.0
    %8744 = vmatprep.subr.mxu0 0.0
    %8745 = vmatpush1.msra.mxu0 0.0
    %8746 = vmatprep.subr.mxu0 0.0
    %8747 = vmatpush1.msra.mxu0 0.0
    %8748 = vmatprep.subr.mxu0 0.0
    %8749 = vmatpush1.msra.mxu0 0.0
    %8750 = vmatprep.subr.mxu0 0.0
    %8751 = vmatpush1.msra.mxu0 0.0
    %8752 = vmatprep.subr.mxu0 0.0
    %8753 = vmatpush1.msra.mxu0 0.0
    %8754 = vmatprep.subr.mxu0 0.0
    %8755 = vmatpush1.msra.mxu0 0.0
    %8756 = vmatprep.subr.mxu0 0.0
    %8757 = vmatpush1.msra.mxu0 0.0
    %8758 = vmatprep.subr.mxu0 0.0
    %8759 = vmatpush1.msra.mxu0 0.0
    %8760 = vmatprep.subr.mxu0 0.0
    %8761 = vmatpush1.msra.mxu0 0.0
    %8762 = vmatprep.subr.mxu0 0.0
    %8763 = vmatpush1.msra.mxu0 0.0
    %8764 = vmatprep.subr.mxu0 0.0
    %8765 = vmatpush1.msra.mxu0 0.0
    %8766 = vmatprep.subr.mxu0 0.0
    %8767 = vmatpush1.msra.mxu0 0.0
    %8768 = vmatprep.subr.mxu0 0.0
    %8769 = vmatpush1.msra.mxu0 0.0
    %8770 = vmatprep.subr.mxu0 0.0
    %8771 = vmatpush1.msra.mxu0 0.0
    %8772 = vmatprep.subr.mxu0 0.0
    %8773 = vmatpush1.msra.mxu0 0.0
    %8774 = vmatprep.subr.mxu0 0.0
    %8775 = vmatpush1.msra.mxu0 0.0
    %8776 = vmatprep.mubr.f32.mxu0 0.0
    %v8777 = vand.u32 %v8483, 4294901760
    %v8778 = vsub.f32 %v8483, %v8777
    %v8779 = vand.u32 %v8778, 4294901760
    %8780 = vmatmul.mubr.f32.gmra.mrb[0].mxu0 %v8779
    %v8781 = vpop.f32.mrb[0].mxu0
    %v8782 = vadd.f32 %v8708, %v8781
    %v8783 = vpop.f32.mrb[0].mxu0
    %8784 = vdwg.mxu0
    %8785 = vmatprep.subr.mxu0 0.0
    %v8786 = vand.u32 %v6568, 4294901760
    %v8787 = vsub.f32 %v6568, %v8786
    %v8788 = vand.u32 %v8787, 4294901760
    %8789 = vmatpush1.msra.mxu0 %v8788
    %8790 = vmatprep.subr.mxu0 0.0
    %8791 = vmatpush1.msra.mxu0 0.0
    %8792 = vmatprep.subr.mxu0 0.0
    %8793 = vmatpush1.msra.mxu0 0.0
    %8794 = vmatprep.subr.mxu0 0.0
    %8795 = vmatpush1.msra.mxu0 0.0
    %8796 = vmatprep.subr.mxu0 0.0
    %8797 = vmatpush1.msra.mxu0 0.0
    %8798 = vmatprep.subr.mxu0 0.0
    %8799 = vmatpush1.msra.mxu0 0.0
    %8800 = vmatprep.subr.mxu0 0.0
    %8801 = vmatpush1.msra.mxu0 0.0
    %8802 = vmatprep.subr.mxu0 0.0
    %8803 = vmatpush1.msra.mxu0 0.0
    %8804 = vmatprep.subr.mxu0 0.0
    %8805 = vmatpush1.msra.mxu0 0.0
    %8806 = vmatprep.subr.mxu0 0.0
    %8807 = vmatpush1.msra.mxu0 0.0
    %8808 = vmatprep.subr.mxu0 0.0
    %8809 = vmatpush1.msra.mxu0 0.0
    %8810 = vmatprep.subr.mxu0 0.0
    %8811 = vmatpush1.msra.mxu0 0.0
    %8812 = vmatprep.subr.mxu0 0.0
    %8813 = vmatpush1.msra.mxu0 0.0
    %8814 = vmatprep.subr.mxu0 0.0
    %8815 = vmatpush1.msra.mxu0 0.0
    %8816 = vmatprep.subr.mxu0 0.0
    %8817 = vmatpush1.msra.mxu0 0.0
    %8818 = vmatprep.subr.mxu0 0.0
    %8819 = vmatpush1.msra.mxu0 0.0
    %8820 = vmatprep.subr.mxu0 0.0
    %8821 = vmatpush1.msra.mxu0 0.0
    %8822 = vmatprep.subr.mxu0 0.0
    %8823 = vmatpush1.msra.mxu0 0.0
    %8824 = vmatprep.subr.mxu0 0.0
    %8825 = vmatpush1.msra.mxu0 0.0
    %8826 = vmatprep.subr.mxu0 0.0
    %8827 = vmatpush1.msra.mxu0 0.0
    %8828 = vmatprep.subr.mxu0 0.0
    %8829 = vmatpush1.msra.mxu0 0.0
    %8830 = vmatprep.subr.mxu0 0.0
    %8831 = vmatpush1.msra.mxu0 0.0
    %8832 = vmatprep.subr.mxu0 0.0
    %8833 = vmatpush1.msra.mxu0 0.0
    %8834 = vmatprep.subr.mxu0 0.0
    %8835 = vmatpush1.msra.mxu0 0.0
    %8836 = vmatprep.subr.mxu0 0.0
    %8837 = vmatpush1.msra.mxu0 0.0
    %8838 = vmatprep.subr.mxu0 0.0
    %8839 = vmatpush1.msra.mxu0 0.0
    %8840 = vmatprep.subr.mxu0 0.0
    %8841 = vmatpush1.msra.mxu0 0.0
    %8842 = vmatprep.subr.mxu0 0.0
    %8843 = vmatpush1.msra.mxu0 0.0
    %8844 = vmatprep.subr.mxu0 0.0
    %8845 = vmatpush1.msra.mxu0 0.0
    %8846 = vmatprep.subr.mxu0 0.0
    %8847 = vmatpush1.msra.mxu0 0.0
    %8848 = vmatprep.subr.mxu0 0.0
    %8849 = vmatpush1.msra.mxu0 0.0
    %8850 = vmatprep.subr.mxu0 0.0
    %8851 = vmatpush1.msra.mxu0 0.0
    %8852 = vmatprep.mubr.f32.mxu0 0.0
    %v8853 = vand.u32 %v8483, 4294901760
    %8854 = vmatmul.mubr.f32.gmra.mrb[0].mxu0 %v8853
    %v8855 = vpop.f32.mrb[0].mxu0
    %v8856 = vadd.f32 %v8782, %v8855
    %v8857 = vpop.f32.mrb[0].mxu0
    %8858 = vdwg.mxu0
    %8859 = vmatprep.subr.mxu0 0.0
    %v8860 = vand.u32 %v6568, 4294901760
    %8861 = vmatpush1.msra.mxu0 %v8860
    %8862 = vmatprep.subr.mxu0 0.0
    %8863 = vmatpush1.msra.mxu0 0.0
    %8864 = vmatprep.subr.mxu0 0.0
    %8865 = vmatpush1.msra.mxu0 0.0
    %8866 = vmatprep.subr.mxu0 0.0
    %8867 = vmatpush1.msra.mxu0 0.0
    %8868 = vmatprep.subr.mxu0 0.0
    %8869 = vmatpush1.msra.mxu0 0.0
    %8870 = vmatprep.subr.mxu0 0.0
    %8871 = vmatpush1.msra.mxu0 0.0
    %8872 = vmatprep.subr.mxu0 0.0
    %8873 = vmatpush1.msra.mxu0 0.0
    %8874 = vmatprep.subr.mxu0 0.0
    %8875 = vmatpush1.msra.mxu0 0.0
    %8876 = vmatprep.subr.mxu0 0.0
    %8877 = vmatpush1.msra.mxu0 0.0
    %8878 = vmatprep.subr.mxu0 0.0
    %8879 = vmatpush1.msra.mxu0 0.0
    %8880 = vmatprep.subr.mxu0 0.0
    %8881 = vmatpush1.msra.mxu0 0.0
    %8882 = vmatprep.subr.mxu0 0.0
    %8883 = vmatpush1.msra.mxu0 0.0
    %8884 = vmatprep.subr.mxu0 0.0
    %8885 = vmatpush1.msra.mxu0 0.0
    %8886 = vmatprep.subr.mxu0 0.0
    %8887 = vmatpush1.msra.mxu0 0.0
    %8888 = vmatprep.subr.mxu0 0.0
    %8889 = vmatpush1.msra.mxu0 0.0
    %8890 = vmatprep.subr.mxu0 0.0
    %8891 = vmatpush1.msra.mxu0 0.0
    %8892 = vmatprep.subr.mxu0 0.0
    %8893 = vmatpush1.msra.mxu0 0.0
    %8894 = vmatprep.subr.mxu0 0.0
    %8895 = vmatpush1.msra.mxu0 0.0
    %8896 = vmatprep.subr.mxu0 0.0
    %8897 = vmatpush1.msra.mxu0 0.0
    %8898 = vmatprep.subr.mxu0 0.0
    %8899 = vmatpush1.msra.mxu0 0.0
    %8900 = vmatprep.subr.mxu0 0.0
    %8901 = vmatpush1.msra.mxu0 0.0
    %8902 = vmatprep.subr.mxu0 0.0
    %8903 = vmatpush1.msra.mxu0 0.0
    %8904 = vmatprep.subr.mxu0 0.0
    %8905 = vmatpush1.msra.mxu0 0.0
    %8906 = vmatprep.subr.mxu0 0.0
    %8907 = vmatpush1.msra.mxu0 0.0
    %8908 = vmatprep.subr.mxu0 0.0
    %8909 = vmatpush1.msra.mxu0 0.0
    %8910 = vmatprep.subr.mxu0 0.0
    %8911 = vmatpush1.msra.mxu0 0.0
    %8912 = vmatprep.subr.mxu0 0.0
    %8913 = vmatpush1.msra.mxu0 0.0
    %8914 = vmatprep.subr.mxu0 0.0
    %8915 = vmatpush1.msra.mxu0 0.0
    %8916 = vmatprep.subr.mxu0 0.0
    %8917 = vmatpush1.msra.mxu0 0.0
    %8918 = vmatprep.subr.mxu0 0.0
    %8919 = vmatpush1.msra.mxu0 0.0
    %8920 = vmatprep.subr.mxu0 0.0
    %8921 = vmatpush1.msra.mxu0 0.0
    %8922 = vmatprep.subr.mxu0 0.0
    %8923 = vmatpush1.msra.mxu0 0.0
    %8924 = vmatprep.mubr.f32.mxu0 0.0
    %v8925 = vand.u32 %v8483, 4294901760
    %8926 = vmatmul.mubr.f32.gmra.mrb[0].mxu0 %v8925
    %v8927 = vpop.f32.mrb[0].mxu0
    %v8928 = vadd.f32 %v8856, %v8927
    %v8929 = vpop.f32.mrb[0].mxu0
    %8930 = vdwg.mxu0
    %v8932 = vsel %vm952, %v7578, 0
    %v8935 = vsel %vm952, %v8028, 0
    %v8938 = vsel %vm952, %v8478, 0
    %v8941 = vsel %vm952, %v8928, 0
    %8943 = vmatprep.subr.mxu0 0.0
    %v8944 = vand.u32 %v48, 4294901760
    %8945 = vmatpush1.msra.mxu0 %v8944
    %8946 = vmatprep.subr.mxu0 0.0
    %v8947 = vand.u32 %v49, 4294901760
    %8948 = vmatpush1.msra.mxu0 %v8947
    %8949 = vmatprep.subr.mxu0 0.0
    %v8950 = vand.u32 %v50, 4294901760
    %8951 = vmatpush1.msra.mxu0 %v8950
    %8952 = vmatprep.subr.mxu0 0.0
    %v8953 = vand.u32 %v51, 4294901760
    %8954 = vmatpush1.msra.mxu0 %v8953
    %8955 = vmatprep.subr.mxu0 0.0
    %8956 = vmatpush1.msra.mxu0 0.0
    %8957 = vmatprep.subr.mxu0 0.0
    %8958 = vmatpush1.msra.mxu0 0.0
    %8959 = vmatprep.subr.mxu0 0.0
    %8960 = vmatpush1.msra.mxu0 0.0
    %8961 = vmatprep.subr.mxu0 0.0
    %8962 = vmatpush1.msra.mxu0 0.0
    %8963 = vmatprep.subr.mxu0 0.0
    %8964 = vmatpush1.msra.mxu0 0.0
    %8965 = vmatprep.subr.mxu0 0.0
    %8966 = vmatpush1.msra.mxu0 0.0
    %8967 = vmatprep.subr.mxu0 0.0
    %8968 = vmatpush1.msra.mxu0 0.0
    %8969 = vmatprep.subr.mxu0 0.0
    %8970 = vmatpush1.msra.mxu0 0.0
    %8971 = vmatprep.subr.mxu0 0.0
    %8972 = vmatpush1.msra.mxu0 0.0
    %8973 = vmatprep.subr.mxu0 0.0
    %8974 = vmatpush1.msra.mxu0 0.0
    %8975 = vmatprep.subr.mxu0 0.0
    %8976 = vmatpush1.msra.mxu0 0.0
    %8977 = vmatprep.subr.mxu0 0.0
    %8978 = vmatpush1.msra.mxu0 0.0
    %8979 = vmatprep.subr.mxu0 0.0
    %8980 = vmatpush1.msra.mxu0 0.0
    %8981 = vmatprep.subr.mxu0 0.0
    %8982 = vmatpush1.msra.mxu0 0.0
    %8983 = vmatprep.subr.mxu0 0.0
    %8984 = vmatpush1.msra.mxu0 0.0
    %8985 = vmatprep.subr.mxu0 0.0
    %8986 = vmatpush1.msra.mxu0 0.0
    %8987 = vmatprep.subr.mxu0 0.0
    %8988 = vmatpush1.msra.mxu0 0.0
    %8989 = vmatprep.subr.mxu0 0.0
    %8990 = vmatpush1.msra.mxu0 0.0
    %8991 = vmatprep.subr.mxu0 0.0
    %8992 = vmatpush1.msra.mxu0 0.0
    %8993 = vmatprep.subr.mxu0 0.0
    %8994 = vmatpush1.msra.mxu0 0.0
    %8995 = vmatprep.subr.mxu0 0.0
    %8996 = vmatpush1.msra.mxu0 0.0
    %8997 = vmatprep.subr.mxu0 0.0
    %8998 = vmatpush1.msra.mxu0 0.0
    %8999 = vmatprep.subr.mxu0 0.0
    %9000 = vmatpush1.msra.mxu0 0.0
    %9001 = vmatprep.subr.mxu0 0.0
    %9002 = vmatpush1.msra.mxu0 0.0
    %9003 = vmatprep.subr.mxu0 0.0
    %9004 = vmatpush1.msra.mxu0 0.0
    %9005 = vmatprep.subr.mxu0 0.0
    %9006 = vmatpush1.msra.mxu0 0.0
    %9007 = vmatprep.subr.mxu0 0.0
    %9008 = vmatpush1.msra.mxu0 0.0
    %9009 = vmatprep.subr.mxu0 0.0
    %9010 = vmatpush1.msra.mxu0 0.0
    %9011 = vmatprep.mubr.f32.mxu0 0.0
    %v9012 = vand.u32 %v8932, 4294901760
    %v9013 = vsub.f32 %v8932, %v9012
    %v9014 = vand.u32 %v9013, 4294901760
    %v9015 = vsub.f32 %v9013, %v9014
    %v9016 = vand.u32 %v9015, 4294901760
    %9017 = vmatmul.mubr.f32.gmra.mrb[0].mxu0 %v9016
    %v9018 = vpop.f32.mrb[0].mxu0
    %v9019 = vadd.f32 0.0, %v9018
    %v9020 = vpop.f32.mrb[0].mxu0
    %9021 = vmatprep.mubr.f32.mxu0 0.0
    %v9022 = vand.u32 %v8935, 4294901760
    %v9023 = vsub.f32 %v8935, %v9022
    %v9024 = vand.u32 %v9023, 4294901760
    %v9025 = vsub.f32 %v9023, %v9024
    %v9026 = vand.u32 %v9025, 4294901760
    %9027 = vmatmul.mubr.f32.gmra.mrb[0].mxu0 %v9026
    %v9028 = vpop.f32.mrb[0].mxu0
    %v9029 = vadd.f32 0.0, %v9028
    %v9030 = vpop.f32.mrb[0].mxu0
    %9031 = vmatprep.mubr.f32.mxu0 0.0
    %v9032 = vand.u32 %v8938, 4294901760
    %v9033 = vsub.f32 %v8938, %v9032
    %v9034 = vand.u32 %v9033, 4294901760
    %v9035 = vsub.f32 %v9033, %v9034
    %v9036 = vand.u32 %v9035, 4294901760
    %9037 = vmatmul.mubr.f32.gmra.mrb[0].mxu0 %v9036
    %v9038 = vpop.f32.mrb[0].mxu0
    %v9039 = vadd.f32 0.0, %v9038
    %v9040 = vpop.f32.mrb[0].mxu0
    %9041 = vmatprep.mubr.f32.mxu0 0.0
    %v9042 = vand.u32 %v8941, 4294901760
    %v9043 = vsub.f32 %v8941, %v9042
    %v9044 = vand.u32 %v9043, 4294901760
    %v9045 = vsub.f32 %v9043, %v9044
    %v9046 = vand.u32 %v9045, 4294901760
    %9047 = vmatmul.mubr.f32.gmra.mrb[0].mxu0 %v9046
    %v9048 = vpop.f32.mrb[0].mxu0
    %v9049 = vadd.f32 0.0, %v9048
    %v9050 = vpop.f32.mrb[0].mxu0
    %9051 = vdwg.mxu0
    %9052 = vmatprep.subr.mxu0 0.0
    %v9053 = vand.u32 %v48, 4294901760
    %v9054 = vsub.f32 %v48, %v9053
    %v9055 = vand.u32 %v9054, 4294901760
    %v9056 = vsub.f32 %v9054, %v9055
    %v9057 = vand.u32 %v9056, 4294901760
    %9058 = vmatpush1.msra.mxu0 %v9057
    %9059 = vmatprep.subr.mxu0 0.0
    %v9060 = vand.u32 %v49, 4294901760
    %v9061 = vsub.f32 %v49, %v9060
    %v9062 = vand.u32 %v9061, 4294901760
    %v9063 = vsub.f32 %v9061, %v9062
    %v9064 = vand.u32 %v9063, 4294901760
    %9065 = vmatpush1.msra.mxu0 %v9064
    %9066 = vmatprep.subr.mxu0 0.0
    %v9067 = vand.u32 %v50, 4294901760
    %v9068 = vsub.f32 %v50, %v9067
    %v9069 = vand.u32 %v9068, 4294901760
    %v9070 = vsub.f32 %v9068, %v9069
    %v9071 = vand.u32 %v9070, 4294901760
    %9072 = vmatpush1.msra.mxu0 %v9071
    %9073 = vmatprep.subr.mxu0 0.0
    %v9074 = vand.u32 %v51, 4294901760
    %v9075 = vsub.f32 %v51, %v9074
    %v9076 = vand.u32 %v9075, 4294901760
    %v9077 = vsub.f32 %v9075, %v9076
    %v9078 = vand.u32 %v9077, 4294901760
    %9079 = vmatpush1.msra.mxu0 %v9078
    %9080 = vmatprep.subr.mxu0 0.0
    %9081 = vmatpush1.msra.mxu0 0.0
    %9082 = vmatprep.subr.mxu0 0.0
    %9083 = vmatpush1.msra.mxu0 0.0
    %9084 = vmatprep.subr.mxu0 0.0
    %9085 = vmatpush1.msra.mxu0 0.0
    %9086 = vmatprep.subr.mxu0 0.0
    %9087 = vmatpush1.msra.mxu0 0.0
    %9088 = vmatprep.subr.mxu0 0.0
    %9089 = vmatpush1.msra.mxu0 0.0
    %9090 = vmatprep.subr.mxu0 0.0
    %9091 = vmatpush1.msra.mxu0 0.0
    %9092 = vmatprep.subr.mxu0 0.0
    %9093 = vmatpush1.msra.mxu0 0.0
    %9094 = vmatprep.subr.mxu0 0.0
    %9095 = vmatpush1.msra.mxu0 0.0
    %9096 = vmatprep.subr.mxu0 0.0
    %9097 = vmatpush1.msra.mxu0 0.0
    %9098 = vmatprep.subr.mxu0 0.0
    %9099 = vmatpush1.msra.mxu0 0.0
    %9100 = vmatprep.subr.mxu0 0.0
    %9101 = vmatpush1.msra.mxu0 0.0
    %9102 = vmatprep.subr.mxu0 0.0
    %9103 = vmatpush1.msra.mxu0 0.0
    %9104 = vmatprep.subr.mxu0 0.0
    %9105 = vmatpush1.msra.mxu0 0.0
    %9106 = vmatprep.subr.mxu0 0.0
    %9107 = vmatpush1.msra.mxu0 0.0
    %9108 = vmatprep.subr.mxu0 0.0
    %9109 = vmatpush1.msra.mxu0 0.0
    %9110 = vmatprep.subr.mxu0 0.0
    %9111 = vmatpush1.msra.mxu0 0.0
    %9112 = vmatprep.subr.mxu0 0.0
    %9113 = vmatpush1.msra.mxu0 0.0
    %9114 = vmatprep.subr.mxu0 0.0
    %9115 = vmatpush1.msra.mxu0 0.0
    %9116 = vmatprep.subr.mxu0 0.0
    %9117 = vmatpush1.msra.mxu0 0.0
    %9118 = vmatprep.subr.mxu0 0.0
    %9119 = vmatpush1.msra.mxu0 0.0
    %9120 = vmatprep.subr.mxu0 0.0
    %9121 = vmatpush1.msra.mxu0 0.0
    %9122 = vmatprep.subr.mxu0 0.0
    %9123 = vmatpush1.msra.mxu0 0.0
    %9124 = vmatprep.subr.mxu0 0.0
    %9125 = vmatpush1.msra.mxu0 0.0
    %9126 = vmatprep.subr.mxu0 0.0
    %9127 = vmatpush1.msra.mxu0 0.0
    %9128 = vmatprep.subr.mxu0 0.0
    %9129 = vmatpush1.msra.mxu0 0.0
    %9130 = vmatprep.subr.mxu0 0.0
    %9131 = vmatpush1.msra.mxu0 0.0
    %9132 = vmatprep.subr.mxu0 0.0
    %9133 = vmatpush1.msra.mxu0 0.0
    %9134 = vmatprep.subr.mxu0 0.0
    %9135 = vmatpush1.msra.mxu0 0.0
    %9136 = vmatprep.mubr.f32.mxu0 0.0
    %v9137 = vand.u32 %v8932, 4294901760
    %9138 = vmatmul.mubr.f32.gmra.mrb[0].mxu0 %v9137
    %v9139 = vpop.f32.mrb[0].mxu0
    %v9140 = vadd.f32 %v9019, %v9139
    %v9141 = vpop.f32.mrb[0].mxu0
    %9142 = vmatprep.mubr.f32.mxu0 0.0
    %v9143 = vand.u32 %v8935, 4294901760
    %9144 = vmatmul.mubr.f32.gmra.mrb[0].mxu0 %v9143
    %v9145 = vpop.f32.mrb[0].mxu0
    %v9146 = vadd.f32 %v9029, %v9145
    %v9147 = vpop.f32.mrb[0].mxu0
    %9148 = vmatprep.mubr.f32.mxu0 0.0
    %v9149 = vand.u32 %v8938, 4294901760
    %9150 = vmatmul.mubr.f32.gmra.mrb[0].mxu0 %v9149
    %v9151 = vpop.f32.mrb[0].mxu0
    %v9152 = vadd.f32 %v9039, %v9151
    %v9153 = vpop.f32.mrb[0].mxu0
    %9154 = vmatprep.mubr.f32.mxu0 0.0
    %v9155 = vand.u32 %v8941, 4294901760
    %9156 = vmatmul.mubr.f32.gmra.mrb[0].mxu0 %v9155
    %v9157 = vpop.f32.mrb[0].mxu0
    %v9158 = vadd.f32 %v9049, %v9157
    %v9159 = vpop.f32.mrb[0].mxu0
    %9160 = vdwg.mxu0
    %9161 = vmatprep.subr.mxu0 0.0
    %v9162 = vand.u32 %v48, 4294901760
    %v9163 = vsub.f32 %v48, %v9162
    %9164 = vmatpush1.msra.mxu0 %v9163
    %9165 = vmatprep.subr.mxu0 0.0
    %v9166 = vand.u32 %v49, 4294901760
    %v9167 = vsub.f32 %v49, %v9166
    %9168 = vmatpush1.msra.mxu0 %v9167
    %9169 = vmatprep.subr.mxu0 0.0
    %v9170 = vand.u32 %v50, 4294901760
    %v9171 = vsub.f32 %v50, %v9170
    %9172 = vmatpush1.msra.mxu0 %v9171
    %9173 = vmatprep.subr.mxu0 0.0
    %v9174 = vand.u32 %v51, 4294901760
    %v9175 = vsub.f32 %v51, %v9174
    %9176 = vmatpush1.msra.mxu0 %v9175
    %9177 = vmatprep.subr.mxu0 0.0
    %9178 = vmatpush1.msra.mxu0 0.0
    %9179 = vmatprep.subr.mxu0 0.0
    %9180 = vmatpush1.msra.mxu0 0.0
    %9181 = vmatprep.subr.mxu0 0.0
    %9182 = vmatpush1.msra.mxu0 0.0
    %9183 = vmatprep.subr.mxu0 0.0
    %9184 = vmatpush1.msra.mxu0 0.0
    %9185 = vmatprep.subr.mxu0 0.0
    %9186 = vmatpush1.msra.mxu0 0.0
    %9187 = vmatprep.subr.mxu0 0.0
    %9188 = vmatpush1.msra.mxu0 0.0
    %9189 = vmatprep.subr.mxu0 0.0
    %9190 = vmatpush1.msra.mxu0 0.0
    %9191 = vmatprep.subr.mxu0 0.0
    %9192 = vmatpush1.msra.mxu0 0.0
    %9193 = vmatprep.subr.mxu0 0.0
    %9194 = vmatpush1.msra.mxu0 0.0
    %9195 = vmatprep.subr.mxu0 0.0
    %9196 = vmatpush1.msra.mxu0 0.0
    %9197 = vmatprep.subr.mxu0 0.0
    %9198 = vmatpush1.msra.mxu0 0.0
    %9199 = vmatprep.subr.mxu0 0.0
    %9200 = vmatpush1.msra.mxu0 0.0
    %9201 = vmatprep.subr.mxu0 0.0
    %9202 = vmatpush1.msra.mxu0 0.0
    %9203 = vmatprep.subr.mxu0 0.0
    %9204 = vmatpush1.msra.mxu0 0.0
    %9205 = vmatprep.subr.mxu0 0.0
    %9206 = vmatpush1.msra.mxu0 0.0
    %9207 = vmatprep.subr.mxu0 0.0
    %9208 = vmatpush1.msra.mxu0 0.0
    %9209 = vmatprep.subr.mxu0 0.0
    %9210 = vmatpush1.msra.mxu0 0.0
    %9211 = vmatprep.subr.mxu0 0.0
    %9212 = vmatpush1.msra.mxu0 0.0
    %9213 = vmatprep.subr.mxu0 0.0
    %9214 = vmatpush1.msra.mxu0 0.0
    %9215 = vmatprep.subr.mxu0 0.0
    %9216 = vmatpush1.msra.mxu0 0.0
    %9217 = vmatprep.subr.mxu0 0.0
    %9218 = vmatpush1.msra.mxu0 0.0
    %9219 = vmatprep.subr.mxu0 0.0
    %9220 = vmatpush1.msra.mxu0 0.0
    %9221 = vmatprep.subr.mxu0 0.0
    %9222 = vmatpush1.msra.mxu0 0.0
    %9223 = vmatprep.subr.mxu0 0.0
    %9224 = vmatpush1.msra.mxu0 0.0
    %9225 = vmatprep.subr.mxu0 0.0
    %9226 = vmatpush1.msra.mxu0 0.0
    %9227 = vmatprep.subr.mxu0 0.0
    %9228 = vmatpush1.msra.mxu0 0.0
    %9229 = vmatprep.subr.mxu0 0.0
    %9230 = vmatpush1.msra.mxu0 0.0
    %9231 = vmatprep.subr.mxu0 0.0
    %9232 = vmatpush1.msra.mxu0 0.0
    %9233 = vmatprep.mubr.f32.mxu0 0.0
    %v9234 = vand.u32 %v8932, 4294901760
    %v9235 = vsub.f32 %v8932, %v9234
    %9236 = vmatmul.mubr.f32.gmra.mrb[0].mxu0 %v9235
    %v9237 = vpop.f32.mrb[0].mxu0
    %v9238 = vadd.f32 %v9140, %v9237
    %v9239 = vpop.f32.mrb[0].mxu0
    %9240 = vmatprep.mubr.f32.mxu0 0.0
    %v9241 = vand.u32 %v8935, 4294901760
    %v9242 = vsub.f32 %v8935, %v9241
    %9243 = vmatmul.mubr.f32.gmra.mrb[0].mxu0 %v9242
    %v9244 = vpop.f32.mrb[0].mxu0
    %v9245 = vadd.f32 %v9146, %v9244
    %v9246 = vpop.f32.mrb[0].mxu0
    %9247 = vmatprep.mubr.f32.mxu0 0.0
    %v9248 = vand.u32 %v8938, 4294901760
    %v9249 = vsub.f32 %v8938, %v9248
    %9250 = vmatmul.mubr.f32.gmra.mrb[0].mxu0 %v9249
    %v9251 = vpop.f32.mrb[0].mxu0
    %v9252 = vadd.f32 %v9152, %v9251
    %v9253 = vpop.f32.mrb[0].mxu0
    %9254 = vmatprep.mubr.f32.mxu0 0.0
    %v9255 = vand.u32 %v8941, 4294901760
    %v9256 = vsub.f32 %v8941, %v9255
    %9257 = vmatmul.mubr.f32.gmra.mrb[0].mxu0 %v9256
    %v9258 = vpop.f32.mrb[0].mxu0
    %v9259 = vadd.f32 %v9158, %v9258
    %v9260 = vpop.f32.mrb[0].mxu0
    %9261 = vdwg.mxu0
    %9262 = vmatprep.subr.mxu0 0.0
    %v9263 = vand.u32 %v48, 4294901760
    %9264 = vmatpush1.msra.mxu0 %v9263
    %9265 = vmatprep.subr.mxu0 0.0
    %v9266 = vand.u32 %v49, 4294901760
    %9267 = vmatpush1.msra.mxu0 %v9266
    %9268 = vmatprep.subr.mxu0 0.0
    %v9269 = vand.u32 %v50, 4294901760
    %9270 = vmatpush1.msra.mxu0 %v9269
    %9271 = vmatprep.subr.mxu0 0.0
    %v9272 = vand.u32 %v51, 4294901760
    %9273 = vmatpush1.msra.mxu0 %v9272
    %9274 = vmatprep.subr.mxu0 0.0
    %9275 = vmatpush1.msra.mxu0 0.0
    %9276 = vmatprep.subr.mxu0 0.0
    %9277 = vmatpush1.msra.mxu0 0.0
    %9278 = vmatprep.subr.mxu0 0.0
    %9279 = vmatpush1.msra.mxu0 0.0
    %9280 = vmatprep.subr.mxu0 0.0
    %9281 = vmatpush1.msra.mxu0 0.0
    %9282 = vmatprep.subr.mxu0 0.0
    %9283 = vmatpush1.msra.mxu0 0.0
    %9284 = vmatprep.subr.mxu0 0.0
    %9285 = vmatpush1.msra.mxu0 0.0
    %9286 = vmatprep.subr.mxu0 0.0
    %9287 = vmatpush1.msra.mxu0 0.0
    %9288 = vmatprep.subr.mxu0 0.0
    %9289 = vmatpush1.msra.mxu0 0.0
    %9290 = vmatprep.subr.mxu0 0.0
    %9291 = vmatpush1.msra.mxu0 0.0
    %9292 = vmatprep.subr.mxu0 0.0
    %9293 = vmatpush1.msra.mxu0 0.0
    %9294 = vmatprep.subr.mxu0 0.0
    %9295 = vmatpush1.msra.mxu0 0.0
    %9296 = vmatprep.subr.mxu0 0.0
    %9297 = vmatpush1.msra.mxu0 0.0
    %9298 = vmatprep.subr.mxu0 0.0
    %9299 = vmatpush1.msra.mxu0 0.0
    %9300 = vmatprep.subr.mxu0 0.0
    %9301 = vmatpush1.msra.mxu0 0.0
    %9302 = vmatprep.subr.mxu0 0.0
    %9303 = vmatpush1.msra.mxu0 0.0
    %9304 = vmatprep.subr.mxu0 0.0
    %9305 = vmatpush1.msra.mxu0 0.0
    %9306 = vmatprep.subr.mxu0 0.0
    %9307 = vmatpush1.msra.mxu0 0.0
    %9308 = vmatprep.subr.mxu0 0.0
    %9309 = vmatpush1.msra.mxu0 0.0
    %9310 = vmatprep.subr.mxu0 0.0
    %9311 = vmatpush1.msra.mxu0 0.0
    %9312 = vmatprep.subr.mxu0 0.0
    %9313 = vmatpush1.msra.mxu0 0.0
    %9314 = vmatprep.subr.mxu0 0.0
    %9315 = vmatpush1.msra.mxu0 0.0
    %9316 = vmatprep.subr.mxu0 0.0
    %9317 = vmatpush1.msra.mxu0 0.0
    %9318 = vmatprep.subr.mxu0 0.0
    %9319 = vmatpush1.msra.mxu0 0.0
    %9320 = vmatprep.subr.mxu0 0.0
    %9321 = vmatpush1.msra.mxu0 0.0
    %9322 = vmatprep.subr.mxu0 0.0
    %9323 = vmatpush1.msra.mxu0 0.0
    %9324 = vmatprep.subr.mxu0 0.0
    %9325 = vmatpush1.msra.mxu0 0.0
    %9326 = vmatprep.subr.mxu0 0.0
    %9327 = vmatpush1.msra.mxu0 0.0
    %9328 = vmatprep.subr.mxu0 0.0
    %9329 = vmatpush1.msra.mxu0 0.0
    %9330 = vmatprep.mubr.f32.mxu0 0.0
    %v9331 = vand.u32 %v8932, 4294901760
    %v9332 = vsub.f32 %v8932, %v9331
    %v9333 = vand.u32 %v9332, 4294901760
    %9334 = vmatmul.mubr.f32.gmra.mrb[0].mxu0 %v9333
    %v9335 = vpop.f32.mrb[0].mxu0
    %v9336 = vadd.f32 %v9238, %v9335
    %v9337 = vpop.f32.mrb[0].mxu0
    %9338 = vmatprep.mubr.f32.mxu0 0.0
    %v9339 = vand.u32 %v8935, 4294901760
    %v9340 = vsub.f32 %v8935, %v9339
    %v9341 = vand.u32 %v9340, 4294901760
    %9342 = vmatmul.mubr.f32.gmra.mrb[0].mxu0 %v9341
    %v9343 = vpop.f32.mrb[0].mxu0
    %v9344 = vadd.f32 %v9245, %v9343
    %v9345 = vpop.f32.mrb[0].mxu0
    %9346 = vmatprep.mubr.f32.mxu0 0.0
    %v9347 = vand.u32 %v8938, 4294901760
    %v9348 = vsub.f32 %v8938, %v9347
    %v9349 = vand.u32 %v9348, 4294901760
    %9350 = vmatmul.mubr.f32.gmra.mrb[0].mxu0 %v9349
    %v9351 = vpop.f32.mrb[0].mxu0
    %v9352 = vadd.f32 %v9252, %v9351
    %v9353 = vpop.f32.mrb[0].mxu0
    %9354 = vmatprep.mubr.f32.mxu0 0.0
    %v9355 = vand.u32 %v8941, 4294901760
    %v9356 = vsub.f32 %v8941, %v9355
    %v9357 = vand.u32 %v9356, 4294901760
    %9358 = vmatmul.mubr.f32.gmra.mrb[0].mxu0 %v9357
    %v9359 = vpop.f32.mrb[0].mxu0
    %v9360 = vadd.f32 %v9259, %v9359
    %v9361 = vpop.f32.mrb[0].mxu0
    %9362 = vdwg.mxu0
    %9363 = vmatprep.subr.mxu0 0.0
    %v9364 = vand.u32 %v48, 4294901760
    %v9365 = vsub.f32 %v48, %v9364
    %v9366 = vand.u32 %v9365, 4294901760
    %9367 = vmatpush1.msra.mxu0 %v9366
    %9368 = vmatprep.subr.mxu0 0.0
    %v9369 = vand.u32 %v49, 4294901760
    %v9370 = vsub.f32 %v49, %v9369
    %v9371 = vand.u32 %v9370, 4294901760
    %9372 = vmatpush1.msra.mxu0 %v9371
    %9373 = vmatprep.subr.mxu0 0.0
    %v9374 = vand.u32 %v50, 4294901760
    %v9375 = vsub.f32 %v50, %v9374
    %v9376 = vand.u32 %v9375, 4294901760
    %9377 = vmatpush1.msra.mxu0 %v9376
    %9378 = vmatprep.subr.mxu0 0.0
    %v9379 = vand.u32 %v51, 4294901760
    %v9380 = vsub.f32 %v51, %v9379
    %v9381 = vand.u32 %v9380, 4294901760
    %9382 = vmatpush1.msra.mxu0 %v9381
    %9383 = vmatprep.subr.mxu0 0.0
    %9384 = vmatpush1.msra.mxu0 0.0
    %9385 = vmatprep.subr.mxu0 0.0
    %9386 = vmatpush1.msra.mxu0 0.0
    %9387 = vmatprep.subr.mxu0 0.0
    %9388 = vmatpush1.msra.mxu0 0.0
    %9389 = vmatprep.subr.mxu0 0.0
    %9390 = vmatpush1.msra.mxu0 0.0
    %9391 = vmatprep.subr.mxu0 0.0
    %9392 = vmatpush1.msra.mxu0 0.0
    %9393 = vmatprep.subr.mxu0 0.0
    %9394 = vmatpush1.msra.mxu0 0.0
    %9395 = vmatprep.subr.mxu0 0.0
    %9396 = vmatpush1.msra.mxu0 0.0
    %9397 = vmatprep.subr.mxu0 0.0
    %9398 = vmatpush1.msra.mxu0 0.0
    %9399 = vmatprep.subr.mxu0 0.0
    %9400 = vmatpush1.msra.mxu0 0.0
    %9401 = vmatprep.subr.mxu0 0.0
    %9402 = vmatpush1.msra.mxu0 0.0
    %9403 = vmatprep.subr.mxu0 0.0
    %9404 = vmatpush1.msra.mxu0 0.0
    %9405 = vmatprep.subr.mxu0 0.0
    %9406 = vmatpush1.msra.mxu0 0.0
    %9407 = vmatprep.subr.mxu0 0.0
    %9408 = vmatpush1.msra.mxu0 0.0
    %9409 = vmatprep.subr.mxu0 0.0
    %9410 = vmatpush1.msra.mxu0 0.0
    %9411 = vmatprep.subr.mxu0 0.0
    %9412 = vmatpush1.msra.mxu0 0.0
    %9413 = vmatprep.subr.mxu0 0.0
    %9414 = vmatpush1.msra.mxu0 0.0
    %9415 = vmatprep.subr.mxu0 0.0
    %9416 = vmatpush1.msra.mxu0 0.0
    %9417 = vmatprep.subr.mxu0 0.0
    %9418 = vmatpush1.msra.mxu0 0.0
    %9419 = vmatprep.subr.mxu0 0.0
    %9420 = vmatpush1.msra.mxu0 0.0
    %9421 = vmatprep.subr.mxu0 0.0
    %9422 = vmatpush1.msra.mxu0 0.0
    %9423 = vmatprep.subr.mxu0 0.0
    %9424 = vmatpush1.msra.mxu0 0.0
    %9425 = vmatprep.subr.mxu0 0.0
    %9426 = vmatpush1.msra.mxu0 0.0
    %9427 = vmatprep.subr.mxu0 0.0
    %9428 = vmatpush1.msra.mxu0 0.0
    %9429 = vmatprep.subr.mxu0 0.0
    %9430 = vmatpush1.msra.mxu0 0.0
    %9431 = vmatprep.subr.mxu0 0.0
    %9432 = vmatpush1.msra.mxu0 0.0
    %9433 = vmatprep.subr.mxu0 0.0
    %9434 = vmatpush1.msra.mxu0 0.0
    %9435 = vmatprep.subr.mxu0 0.0
    %9436 = vmatpush1.msra.mxu0 0.0
    %9437 = vmatprep.subr.mxu0 0.0
    %9438 = vmatpush1.msra.mxu0 0.0
    %9439 = vmatprep.mubr.f32.mxu0 0.0
    %v9440 = vand.u32 %v8932, 4294901760
    %9441 = vmatmul.mubr.f32.gmra.mrb[0].mxu0 %v9440
    %v9442 = vpop.f32.mrb[0].mxu0
    %v9443 = vadd.f32 %v9336, %v9442
    %v9444 = vpop.f32.mrb[0].mxu0
    %9445 = vmatprep.mubr.f32.mxu0 0.0
    %v9446 = vand.u32 %v8935, 4294901760
    %9447 = vmatmul.mubr.f32.gmra.mrb[0].mxu0 %v9446
    %v9448 = vpop.f32.mrb[0].mxu0
    %v9449 = vadd.f32 %v9344, %v9448
    %v9450 = vpop.f32.mrb[0].mxu0
    %9451 = vmatprep.mubr.f32.mxu0 0.0
    %v9452 = vand.u32 %v8938, 4294901760
    %9453 = vmatmul.mubr.f32.gmra.mrb[0].mxu0 %v9452
    %v9454 = vpop.f32.mrb[0].mxu0
    %v9455 = vadd.f32 %v9352, %v9454
    %v9456 = vpop.f32.mrb[0].mxu0
    %9457 = vmatprep.mubr.f32.mxu0 0.0
    %v9458 = vand.u32 %v8941, 4294901760
    %9459 = vmatmul.mubr.f32.gmra.mrb[0].mxu0 %v9458
    %v9460 = vpop.f32.mrb[0].mxu0
    %v9461 = vadd.f32 %v9360, %v9460
    %v9462 = vpop.f32.mrb[0].mxu0
    %9463 = vdwg.mxu0
    %9464 = vmatprep.subr.mxu0 0.0
    %v9465 = vand.u32 %v48, 4294901760
    %9466 = vmatpush1.msra.mxu0 %v9465
    %9467 = vmatprep.subr.mxu0 0.0
    %v9468 = vand.u32 %v49, 4294901760
    %9469 = vmatpush1.msra.mxu0 %v9468
    %9470 = vmatprep.subr.mxu0 0.0
    %v9471 = vand.u32 %v50, 4294901760
    %9472 = vmatpush1.msra.mxu0 %v9471
    %9473 = vmatprep.subr.mxu0 0.0
    %v9474 = vand.u32 %v51, 4294901760
    %9475 = vmatpush1.msra.mxu0 %v9474
    %9476 = vmatprep.subr.mxu0 0.0
    %9477 = vmatpush1.msra.mxu0 0.0
    %9478 = vmatprep.subr.mxu0 0.0
    %9479 = vmatpush1.msra.mxu0 0.0
    %9480 = vmatprep.subr.mxu0 0.0
    %9481 = vmatpush1.msra.mxu0 0.0
    %9482 = vmatprep.subr.mxu0 0.0
    %9483 = vmatpush1.msra.mxu0 0.0
    %9484 = vmatprep.subr.mxu0 0.0
    %9485 = vmatpush1.msra.mxu0 0.0
    %9486 = vmatprep.subr.mxu0 0.0
    %9487 = vmatpush1.msra.mxu0 0.0
    %9488 = vmatprep.subr.mxu0 0.0
    %9489 = vmatpush1.msra.mxu0 0.0
    %9490 = vmatprep.subr.mxu0 0.0
    %9491 = vmatpush1.msra.mxu0 0.0
    %9492 = vmatprep.subr.mxu0 0.0
    %9493 = vmatpush1.msra.mxu0 0.0
    %9494 = vmatprep.subr.mxu0 0.0
    %9495 = vmatpush1.msra.mxu0 0.0
    %9496 = vmatprep.subr.mxu0 0.0
    %9497 = vmatpush1.msra.mxu0 0.0
    %9498 = vmatprep.subr.mxu0 0.0
    %9499 = vmatpush1.msra.mxu0 0.0
    %9500 = vmatprep.subr.mxu0 0.0
    %9501 = vmatpush1.msra.mxu0 0.0
    %9502 = vmatprep.subr.mxu0 0.0
    %9503 = vmatpush1.msra.mxu0 0.0
    %9504 = vmatprep.subr.mxu0 0.0
    %9505 = vmatpush1.msra.mxu0 0.0
    %9506 = vmatprep.subr.mxu0 0.0
    %9507 = vmatpush1.msra.mxu0 0.0
    %9508 = vmatprep.subr.mxu0 0.0
    %9509 = vmatpush1.msra.mxu0 0.0
    %9510 = vmatprep.subr.mxu0 0.0
    %9511 = vmatpush1.msra.mxu0 0.0
    %9512 = vmatprep.subr.mxu0 0.0
    %9513 = vmatpush1.msra.mxu0 0.0
    %9514 = vmatprep.subr.mxu0 0.0
    %9515 = vmatpush1.msra.mxu0 0.0
    %9516 = vmatprep.subr.mxu0 0.0
    %9517 = vmatpush1.msra.mxu0 0.0
    %9518 = vmatprep.subr.mxu0 0.0
    %9519 = vmatpush1.msra.mxu0 0.0
    %9520 = vmatprep.subr.mxu0 0.0
    %9521 = vmatpush1.msra.mxu0 0.0
    %9522 = vmatprep.subr.mxu0 0.0
    %9523 = vmatpush1.msra.mxu0 0.0
    %9524 = vmatprep.subr.mxu0 0.0
    %9525 = vmatpush1.msra.mxu0 0.0
    %9526 = vmatprep.subr.mxu0 0.0
    %9527 = vmatpush1.msra.mxu0 0.0
    %9528 = vmatprep.subr.mxu0 0.0
    %9529 = vmatpush1.msra.mxu0 0.0
    %9530 = vmatprep.subr.mxu0 0.0
    %9531 = vmatpush1.msra.mxu0 0.0
    %9532 = vmatprep.mubr.f32.mxu0 0.0
    %v9533 = vand.u32 %v8932, 4294901760
    %9534 = vmatmul.mubr.f32.gmra.mrb[0].mxu0 %v9533
    %v9535 = vpop.f32.mrb[0].mxu0
    %v9536 = vadd.f32 %v9443, %v9535
    %v9537 = vpop.f32.mrb[0].mxu0
    %9538 = vmatprep.mubr.f32.mxu0 0.0
    %v9539 = vand.u32 %v8935, 4294901760
    %9540 = vmatmul.mubr.f32.gmra.mrb[0].mxu0 %v9539
    %v9541 = vpop.f32.mrb[0].mxu0
    %v9542 = vadd.f32 %v9449, %v9541
    %v9543 = vpop.f32.mrb[0].mxu0
    %9544 = vmatprep.mubr.f32.mxu0 0.0
    %v9545 = vand.u32 %v8938, 4294901760
    %9546 = vmatmul.mubr.f32.gmra.mrb[0].mxu0 %v9545
    %v9547 = vpop.f32.mrb[0].mxu0
    %v9548 = vadd.f32 %v9455, %v9547
    %v9549 = vpop.f32.mrb[0].mxu0
    %9550 = vmatprep.mubr.f32.mxu0 0.0
    %v9551 = vand.u32 %v8941, 4294901760
    %9552 = vmatmul.mubr.f32.gmra.mrb[0].mxu0 %v9551
    %v9553 = vpop.f32.mrb[0].mxu0
    %v9554 = vadd.f32 %v9461, %v9553
    %v9555 = vpop.f32.mrb[0].mxu0
    %9556 = vdwg.mxu0
    %9557 = vmatprep.subr.mxu0 0.0
    %v9558 = vand.u32 %v44, 4294901760
    %9559 = vmatpush1.msra.mxu0 %v9558
    %9560 = vmatprep.subr.mxu0 0.0
    %v9561 = vand.u32 %v45, 4294901760
    %9562 = vmatpush1.msra.mxu0 %v9561
    %9563 = vmatprep.subr.mxu0 0.0
    %v9564 = vand.u32 %v46, 4294901760
    %9565 = vmatpush1.msra.mxu0 %v9564
    %9566 = vmatprep.subr.mxu0 0.0
    %v9567 = vand.u32 %v47, 4294901760
    %9568 = vmatpush1.msra.mxu0 %v9567
    %9569 = vmatprep.subr.mxu0 0.0
    %9570 = vmatpush1.msra.mxu0 0.0
    %9571 = vmatprep.subr.mxu0 0.0
    %9572 = vmatpush1.msra.mxu0 0.0
    %9573 = vmatprep.subr.mxu0 0.0
    %9574 = vmatpush1.msra.mxu0 0.0
    %9575 = vmatprep.subr.mxu0 0.0
    %9576 = vmatpush1.msra.mxu0 0.0
    %9577 = vmatprep.subr.mxu0 0.0
    %9578 = vmatpush1.msra.mxu0 0.0
    %9579 = vmatprep.subr.mxu0 0.0
    %9580 = vmatpush1.msra.mxu0 0.0
    %9581 = vmatprep.subr.mxu0 0.0
    %9582 = vmatpush1.msra.mxu0 0.0
    %9583 = vmatprep.subr.mxu0 0.0
    %9584 = vmatpush1.msra.mxu0 0.0
    %9585 = vmatprep.subr.mxu0 0.0
    %9586 = vmatpush1.msra.mxu0 0.0
    %9587 = vmatprep.subr.mxu0 0.0
    %9588 = vmatpush1.msra.mxu0 0.0
    %9589 = vmatprep.subr.mxu0 0.0
    %9590 = vmatpush1.msra.mxu0 0.0
    %9591 = vmatprep.subr.mxu0 0.0
    %9592 = vmatpush1.msra.mxu0 0.0
    %9593 = vmatprep.subr.mxu0 0.0
    %9594 = vmatpush1.msra.mxu0 0.0
    %9595 = vmatprep.subr.mxu0 0.0
    %9596 = vmatpush1.msra.mxu0 0.0
    %9597 = vmatprep.subr.mxu0 0.0
    %9598 = vmatpush1.msra.mxu0 0.0
    %9599 = vmatprep.subr.mxu0 0.0
    %9600 = vmatpush1.msra.mxu0 0.0
    %9601 = vmatprep.subr.mxu0 0.0
    %9602 = vmatpush1.msra.mxu0 0.0
    %9603 = vmatprep.subr.mxu0 0.0
    %9604 = vmatpush1.msra.mxu0 0.0
    %9605 = vmatprep.subr.mxu0 0.0
    %9606 = vmatpush1.msra.mxu0 0.0
    %9607 = vmatprep.subr.mxu0 0.0
    %9608 = vmatpush1.msra.mxu0 0.0
    %9609 = vmatprep.subr.mxu0 0.0
    %9610 = vmatpush1.msra.mxu0 0.0
    %9611 = vmatprep.subr.mxu0 0.0
    %9612 = vmatpush1.msra.mxu0 0.0
    %9613 = vmatprep.subr.mxu0 0.0
    %9614 = vmatpush1.msra.mxu0 0.0
    %9615 = vmatprep.subr.mxu0 0.0
    %9616 = vmatpush1.msra.mxu0 0.0
    %9617 = vmatprep.subr.mxu0 0.0
    %9618 = vmatpush1.msra.mxu0 0.0
    %9619 = vmatprep.subr.mxu0 0.0
    %9620 = vmatpush1.msra.mxu0 0.0
    %9621 = vmatprep.subr.mxu0 0.0
    %9622 = vmatpush1.msra.mxu0 0.0
    %9623 = vmatprep.subr.mxu0 0.0
    %9624 = vmatpush1.msra.mxu0 0.0
    %9625 = vmatprep.mubr.f32.mxu0 0.0
    %v9626 = vand.u32 %v6116, 4294901760
    %v9627 = vsub.f32 %v6116, %v9626
    %v9628 = vand.u32 %v9627, 4294901760
    %v9629 = vsub.f32 %v9627, %v9628
    %v9630 = vand.u32 %v9629, 4294901760
    %9631 = vmatmul.mubr.f32.gmra.mrb[0].mxu0 %v9630
    %v9632 = vpop.f32.mrb[0].mxu0
    %v9633 = vadd.f32 %v9536, %v9632
    %v9634 = vpop.f32.mrb[0].mxu0
    %9635 = vmatprep.mubr.f32.mxu0 0.0
    %v9636 = vand.u32 %v6572, 4294901760
    %v9637 = vsub.f32 %v6572, %v9636
    %v9638 = vand.u32 %v9637, 4294901760
    %v9639 = vsub.f32 %v9637, %v9638
    %v9640 = vand.u32 %v9639, 4294901760
    %9641 = vmatmul.mubr.f32.gmra.mrb[0].mxu0 %v9640
    %v9642 = vpop.f32.mrb[0].mxu0
    %v9643 = vadd.f32 %v9542, %v9642
    %v9644 = vpop.f32.mrb[0].mxu0
    %9645 = vmatprep.mubr.f32.mxu0 0.0
    %v9646 = vand.u32 %v6118, 4294901760
    %v9647 = vsub.f32 %v6118, %v9646
    %v9648 = vand.u32 %v9647, 4294901760
    %v9649 = vsub.f32 %v9647, %v9648
    %v9650 = vand.u32 %v9649, 4294901760
    %9651 = vmatmul.mubr.f32.gmra.mrb[0].mxu0 %v9650
    %v9652 = vpop.f32.mrb[0].mxu0
    %v9653 = vadd.f32 %v9548, %v9652
    %v9654 = vpop.f32.mrb[0].mxu0
    %9655 = vmatprep.mubr.f32.mxu0 0.0
    %v9656 = vand.u32 %v6574, 4294901760
    %v9657 = vsub.f32 %v6574, %v9656
    %v9658 = vand.u32 %v9657, 4294901760
    %v9659 = vsub.f32 %v9657, %v9658
    %v9660 = vand.u32 %v9659, 4294901760
    %9661 = vmatmul.mubr.f32.gmra.mrb[0].mxu0 %v9660
    %v9662 = vpop.f32.mrb[0].mxu0
    %v9663 = vadd.f32 %v9554, %v9662
    %v9664 = vpop.f32.mrb[0].mxu0
    %9665 = vdwg.mxu0
    %9666 = vmatprep.subr.mxu0 0.0
    %v9667 = vand.u32 %v44, 4294901760
    %v9668 = vsub.f32 %v44, %v9667
    %v9669 = vand.u32 %v9668, 4294901760
    %v9670 = vsub.f32 %v9668, %v9669
    %v9671 = vand.u32 %v9670, 4294901760
    %9672 = vmatpush1.msra.mxu0 %v9671
    %9673 = vmatprep.subr.mxu0 0.0
    %v9674 = vand.u32 %v45, 4294901760
    %v9675 = vsub.f32 %v45, %v9674
    %v9676 = vand.u32 %v9675, 4294901760
    %v9677 = vsub.f32 %v9675, %v9676
    %v9678 = vand.u32 %v9677, 4294901760
    %9679 = vmatpush1.msra.mxu0 %v9678
    %9680 = vmatprep.subr.mxu0 0.0
    %v9681 = vand.u32 %v46, 4294901760
    %v9682 = vsub.f32 %v46, %v9681
    %v9683 = vand.u32 %v9682, 4294901760
    %v9684 = vsub.f32 %v9682, %v9683
    %v9685 = vand.u32 %v9684, 4294901760
    %9686 = vmatpush1.msra.mxu0 %v9685
    %9687 = vmatprep.subr.mxu0 0.0
    %v9688 = vand.u32 %v47, 4294901760
    %v9689 = vsub.f32 %v47, %v9688
    %v9690 = vand.u32 %v9689, 4294901760
    %v9691 = vsub.f32 %v9689, %v9690
    %v9692 = vand.u32 %v9691, 4294901760
    %9693 = vmatpush1.msra.mxu0 %v9692
    %9694 = vmatprep.subr.mxu0 0.0
    %9695 = vmatpush1.msra.mxu0 0.0
    %9696 = vmatprep.subr.mxu0 0.0
    %9697 = vmatpush1.msra.mxu0 0.0
    %9698 = vmatprep.subr.mxu0 0.0
    %9699 = vmatpush1.msra.mxu0 0.0
    %9700 = vmatprep.subr.mxu0 0.0
    %9701 = vmatpush1.msra.mxu0 0.0
    %9702 = vmatprep.subr.mxu0 0.0
    %9703 = vmatpush1.msra.mxu0 0.0
    %9704 = vmatprep.subr.mxu0 0.0
    %9705 = vmatpush1.msra.mxu0 0.0
    %9706 = vmatprep.subr.mxu0 0.0
    %9707 = vmatpush1.msra.mxu0 0.0
    %9708 = vmatprep.subr.mxu0 0.0
    %9709 = vmatpush1.msra.mxu0 0.0
    %9710 = vmatprep.subr.mxu0 0.0
    %9711 = vmatpush1.msra.mxu0 0.0
    %9712 = vmatprep.subr.mxu0 0.0
    %9713 = vmatpush1.msra.mxu0 0.0
    %9714 = vmatprep.subr.mxu0 0.0
    %9715 = vmatpush1.msra.mxu0 0.0
    %9716 = vmatprep.subr.mxu0 0.0
    %9717 = vmatpush1.msra.mxu0 0.0
    %9718 = vmatprep.subr.mxu0 0.0
    %9719 = vmatpush1.msra.mxu0 0.0
    %9720 = vmatprep.subr.mxu0 0.0
    %9721 = vmatpush1.msra.mxu0 0.0
    %9722 = vmatprep.subr.mxu0 0.0
    %9723 = vmatpush1.msra.mxu0 0.0
    %9724 = vmatprep.subr.mxu0 0.0
    %9725 = vmatpush1.msra.mxu0 0.0
    %9726 = vmatprep.subr.mxu0 0.0
    %9727 = vmatpush1.msra.mxu0 0.0
    %9728 = vmatprep.subr.mxu0 0.0
    %9729 = vmatpush1.msra.mxu0 0.0
    %9730 = vmatprep.subr.mxu0 0.0
    %9731 = vmatpush1.msra.mxu0 0.0
    %9732 = vmatprep.subr.mxu0 0.0
    %9733 = vmatpush1.msra.mxu0 0.0
    %9734 = vmatprep.subr.mxu0 0.0
    %9735 = vmatpush1.msra.mxu0 0.0
    %9736 = vmatprep.subr.mxu0 0.0
    %9737 = vmatpush1.msra.mxu0 0.0
    %9738 = vmatprep.subr.mxu0 0.0
    %9739 = vmatpush1.msra.mxu0 0.0
    %9740 = vmatprep.subr.mxu0 0.0
    %9741 = vmatpush1.msra.mxu0 0.0
    %9742 = vmatprep.subr.mxu0 0.0
    %9743 = vmatpush1.msra.mxu0 0.0
    %9744 = vmatprep.subr.mxu0 0.0
    %9745 = vmatpush1.msra.mxu0 0.0
    %9746 = vmatprep.subr.mxu0 0.0
    %9747 = vmatpush1.msra.mxu0 0.0
    %9748 = vmatprep.subr.mxu0 0.0
    %9749 = vmatpush1.msra.mxu0 0.0
    %9750 = vmatprep.mubr.f32.mxu0 0.0
    %v9751 = vand.u32 %v6116, 4294901760
    %9752 = vmatmul.mubr.f32.gmra.mrb[0].mxu0 %v9751
    %v9753 = vpop.f32.mrb[0].mxu0
    %v9754 = vadd.f32 %v9633, %v9753
    %v9755 = vpop.f32.mrb[0].mxu0
    %9756 = vmatprep.mubr.f32.mxu0 0.0
    %v9757 = vand.u32 %v6572, 4294901760
    %9758 = vmatmul.mubr.f32.gmra.mrb[0].mxu0 %v9757
    %v9759 = vpop.f32.mrb[0].mxu0
    %v9760 = vadd.f32 %v9643, %v9759
    %v9761 = vpop.f32.mrb[0].mxu0
    %9762 = vmatprep.mubr.f32.mxu0 0.0
    %v9763 = vand.u32 %v6118, 4294901760
    %9764 = vmatmul.mubr.f32.gmra.mrb[0].mxu0 %v9763
    %v9765 = vpop.f32.mrb[0].mxu0
    %v9766 = vadd.f32 %v9653, %v9765
    %v9767 = vpop.f32.mrb[0].mxu0
    %9768 = vmatprep.mubr.f32.mxu0 0.0
    %v9769 = vand.u32 %v6574, 4294901760
    %9770 = vmatmul.mubr.f32.gmra.mrb[0].mxu0 %v9769
    %v9771 = vpop.f32.mrb[0].mxu0
    %v9772 = vadd.f32 %v9663, %v9771
    %v9773 = vpop.f32.mrb[0].mxu0
    %9774 = vdwg.mxu0
    %9775 = vmatprep.subr.mxu0 0.0
    %v9776 = vand.u32 %v44, 4294901760
    %v9777 = vsub.f32 %v44, %v9776
    %9778 = vmatpush1.msra.mxu0 %v9777
    %9779 = vmatprep.subr.mxu0 0.0
    %v9780 = vand.u32 %v45, 4294901760
    %v9781 = vsub.f32 %v45, %v9780
    %9782 = vmatpush1.msra.mxu0 %v9781
    %9783 = vmatprep.subr.mxu0 0.0
    %v9784 = vand.u32 %v46, 4294901760
    %v9785 = vsub.f32 %v46, %v9784
    %9786 = vmatpush1.msra.mxu0 %v9785
    %9787 = vmatprep.subr.mxu0 0.0
    %v9788 = vand.u32 %v47, 4294901760
    %v9789 = vsub.f32 %v47, %v9788
    %9790 = vmatpush1.msra.mxu0 %v9789
    %9791 = vmatprep.subr.mxu0 0.0
    %9792 = vmatpush1.msra.mxu0 0.0
    %9793 = vmatprep.subr.mxu0 0.0
    %9794 = vmatpush1.msra.mxu0 0.0
    %9795 = vmatprep.subr.mxu0 0.0
    %9796 = vmatpush1.msra.mxu0 0.0
    %9797 = vmatprep.subr.mxu0 0.0
    %9798 = vmatpush1.msra.mxu0 0.0
    %9799 = vmatprep.subr.mxu0 0.0
    %9800 = vmatpush1.msra.mxu0 0.0
    %9801 = vmatprep.subr.mxu0 0.0
    %9802 = vmatpush1.msra.mxu0 0.0
    %9803 = vmatprep.subr.mxu0 0.0
    %9804 = vmatpush1.msra.mxu0 0.0
    %9805 = vmatprep.subr.mxu0 0.0
    %9806 = vmatpush1.msra.mxu0 0.0
    %9807 = vmatprep.subr.mxu0 0.0
    %9808 = vmatpush1.msra.mxu0 0.0
    %9809 = vmatprep.subr.mxu0 0.0
    %9810 = vmatpush1.msra.mxu0 0.0
    %9811 = vmatprep.subr.mxu0 0.0
    %9812 = vmatpush1.msra.mxu0 0.0
    %9813 = vmatprep.subr.mxu0 0.0
    %9814 = vmatpush1.msra.mxu0 0.0
    %9815 = vmatprep.subr.mxu0 0.0
    %9816 = vmatpush1.msra.mxu0 0.0
    %9817 = vmatprep.subr.mxu0 0.0
    %9818 = vmatpush1.msra.mxu0 0.0
    %9819 = vmatprep.subr.mxu0 0.0
    %9820 = vmatpush1.msra.mxu0 0.0
    %9821 = vmatprep.subr.mxu0 0.0
    %9822 = vmatpush1.msra.mxu0 0.0
    %9823 = vmatprep.subr.mxu0 0.0
    %9824 = vmatpush1.msra.mxu0 0.0
    %9825 = vmatprep.subr.mxu0 0.0
    %9826 = vmatpush1.msra.mxu0 0.0
    %9827 = vmatprep.subr.mxu0 0.0
    %9828 = vmatpush1.msra.mxu0 0.0
    %9829 = vmatprep.subr.mxu0 0.0
    %9830 = vmatpush1.msra.mxu0 0.0
    %9831 = vmatprep.subr.mxu0 0.0
    %9832 = vmatpush1.msra.mxu0 0.0
    %9833 = vmatprep.subr.mxu0 0.0
    %9834 = vmatpush1.msra.mxu0 0.0
    %9835 = vmatprep.subr.mxu0 0.0
    %9836 = vmatpush1.msra.mxu0 0.0
    %9837 = vmatprep.subr.mxu0 0.0
    %9838 = vmatpush1.msra.mxu0 0.0
    %9839 = vmatprep.subr.mxu0 0.0
    %9840 = vmatpush1.msra.mxu0 0.0
    %9841 = vmatprep.subr.mxu0 0.0
    %9842 = vmatpush1.msra.mxu0 0.0
    %9843 = vmatprep.subr.mxu0 0.0
    %9844 = vmatpush1.msra.mxu0 0.0
    %9845 = vmatprep.subr.mxu0 0.0
    %9846 = vmatpush1.msra.mxu0 0.0
    %9847 = vmatprep.mubr.f32.mxu0 0.0
    %v9848 = vand.u32 %v6116, 4294901760
    %v9849 = vsub.f32 %v6116, %v9848
    %9850 = vmatmul.mubr.f32.gmra.mrb[0].mxu0 %v9849
    %v9851 = vpop.f32.mrb[0].mxu0
    %v9852 = vadd.f32 %v9754, %v9851
    %v9853 = vpop.f32.mrb[0].mxu0
    %9854 = vmatprep.mubr.f32.mxu0 0.0
    %v9855 = vand.u32 %v6572, 4294901760
    %v9856 = vsub.f32 %v6572, %v9855
    %9857 = vmatmul.mubr.f32.gmra.mrb[0].mxu0 %v9856
    %v9858 = vpop.f32.mrb[0].mxu0
    %v9859 = vadd.f32 %v9760, %v9858
    %v9860 = vpop.f32.mrb[0].mxu0
    %9861 = vmatprep.mubr.f32.mxu0 0.0
    %v9862 = vand.u32 %v6118, 4294901760
    %v9863 = vsub.f32 %v6118, %v9862
    %9864 = vmatmul.mubr.f32.gmra.mrb[0].mxu0 %v9863
    %v9865 = vpop.f32.mrb[0].mxu0
    %v9866 = vadd.f32 %v9766, %v9865
    %v9867 = vpop.f32.mrb[0].mxu0
    %9868 = vmatprep.mubr.f32.mxu0 0.0
    %v9869 = vand.u32 %v6574, 4294901760
    %v9870 = vsub.f32 %v6574, %v9869
    %9871 = vmatmul.mubr.f32.gmra.mrb[0].mxu0 %v9870
    %v9872 = vpop.f32.mrb[0].mxu0
    %v9873 = vadd.f32 %v9772, %v9872
    %v9874 = vpop.f32.mrb[0].mxu0
    %9875 = vdwg.mxu0
    %9876 = vmatprep.subr.mxu0 0.0
    %v9877 = vand.u32 %v44, 4294901760
    %9878 = vmatpush1.msra.mxu0 %v9877
    %9879 = vmatprep.subr.mxu0 0.0
    %v9880 = vand.u32 %v45, 4294901760
    %9881 = vmatpush1.msra.mxu0 %v9880
    %9882 = vmatprep.subr.mxu0 0.0
    %v9883 = vand.u32 %v46, 4294901760
    %9884 = vmatpush1.msra.mxu0 %v9883
    %9885 = vmatprep.subr.mxu0 0.0
    %v9886 = vand.u32 %v47, 4294901760
    %9887 = vmatpush1.msra.mxu0 %v9886
    %9888 = vmatprep.subr.mxu0 0.0
    %9889 = vmatpush1.msra.mxu0 0.0
    %9890 = vmatprep.subr.mxu0 0.0
    %9891 = vmatpush1.msra.mxu0 0.0
    %9892 = vmatprep.subr.mxu0 0.0
    %9893 = vmatpush1.msra.mxu0 0.0
    %9894 = vmatprep.subr.mxu0 0.0
    %9895 = vmatpush1.msra.mxu0 0.0
    %9896 = vmatprep.subr.mxu0 0.0
    %9897 = vmatpush1.msra.mxu0 0.0
    %9898 = vmatprep.subr.mxu0 0.0
    %9899 = vmatpush1.msra.mxu0 0.0
    %9900 = vmatprep.subr.mxu0 0.0
    %9901 = vmatpush1.msra.mxu0 0.0
    %9902 = vmatprep.subr.mxu0 0.0
    %9903 = vmatpush1.msra.mxu0 0.0
    %9904 = vmatprep.subr.mxu0 0.0
    %9905 = vmatpush1.msra.mxu0 0.0
    %9906 = vmatprep.subr.mxu0 0.0
    %9907 = vmatpush1.msra.mxu0 0.0
    %9908 = vmatprep.subr.mxu0 0.0
    %9909 = vmatpush1.msra.mxu0 0.0
    %9910 = vmatprep.subr.mxu0 0.0
    %9911 = vmatpush1.msra.mxu0 0.0
    %9912 = vmatprep.subr.mxu0 0.0
    %9913 = vmatpush1.msra.mxu0 0.0
    %9914 = vmatprep.subr.mxu0 0.0
    %9915 = vmatpush1.msra.mxu0 0.0
    %9916 = vmatprep.subr.mxu0 0.0
    %9917 = vmatpush1.msra.mxu0 0.0
    %9918 = vmatprep.subr.mxu0 0.0
    %9919 = vmatpush1.msra.mxu0 0.0
    %9920 = vmatprep.subr.mxu0 0.0
    %9921 = vmatpush1.msra.mxu0 0.0
    %9922 = vmatprep.subr.mxu0 0.0
    %9923 = vmatpush1.msra.mxu0 0.0
    %9924 = vmatprep.subr.mxu0 0.0
    %9925 = vmatpush1.msra.mxu0 0.0
    %9926 = vmatprep.subr.mxu0 0.0
    %9927 = vmatpush1.msra.mxu0 0.0
    %9928 = vmatprep.subr.mxu0 0.0
    %9929 = vmatpush1.msra.mxu0 0.0
    %9930 = vmatprep.subr.mxu0 0.0
    %9931 = vmatpush1.msra.mxu0 0.0
    %9932 = vmatprep.subr.mxu0 0.0
    %9933 = vmatpush1.msra.mxu0 0.0
    %9934 = vmatprep.subr.mxu0 0.0
    %9935 = vmatpush1.msra.mxu0 0.0
    %9936 = vmatprep.subr.mxu0 0.0
    %9937 = vmatpush1.msra.mxu0 0.0
    %9938 = vmatprep.subr.mxu0 0.0
    %9939 = vmatpush1.msra.mxu0 0.0
    %9940 = vmatprep.subr.mxu0 0.0
    %9941 = vmatpush1.msra.mxu0 0.0
    %9942 = vmatprep.subr.mxu0 0.0
    %9943 = vmatpush1.msra.mxu0 0.0
    %9944 = vmatprep.mubr.f32.mxu0 0.0
    %v9945 = vand.u32 %v6116, 4294901760
    %v9946 = vsub.f32 %v6116, %v9945
    %v9947 = vand.u32 %v9946, 4294901760
    %9948 = vmatmul.mubr.f32.gmra.mrb[0].mxu0 %v9947
    %v9949 = vpop.f32.mrb[0].mxu0
    %v9950 = vadd.f32 %v9852, %v9949
    %v9951 = vpop.f32.mrb[0].mxu0
    %9952 = vmatprep.mubr.f32.mxu0 0.0
    %v9953 = vand.u32 %v6572, 4294901760
    %v9954 = vsub.f32 %v6572, %v9953
    %v9955 = vand.u32 %v9954, 4294901760
    %9956 = vmatmul.mubr.f32.gmra.mrb[0].mxu0 %v9955
    %v9957 = vpop.f32.mrb[0].mxu0
    %v9958 = vadd.f32 %v9859, %v9957
    %v9959 = vpop.f32.mrb[0].mxu0
    %9960 = vmatprep.mubr.f32.mxu0 0.0
    %v9961 = vand.u32 %v6118, 4294901760
    %v9962 = vsub.f32 %v6118, %v9961
    %v9963 = vand.u32 %v9962, 4294901760
    %9964 = vmatmul.mubr.f32.gmra.mrb[0].mxu0 %v9963
    %v9965 = vpop.f32.mrb[0].mxu0
    %v9966 = vadd.f32 %v9866, %v9965
    %v9967 = vpop.f32.mrb[0].mxu0
    %9968 = vmatprep.mubr.f32.mxu0 0.0
    %v9969 = vand.u32 %v6574, 4294901760
    %v9970 = vsub.f32 %v6574, %v9969
    %v9971 = vand.u32 %v9970, 4294901760
    %9972 = vmatmul.mubr.f32.gmra.mrb[0].mxu0 %v9971
    %v9973 = vpop.f32.mrb[0].mxu0
    %v9974 = vadd.f32 %v9873, %v9973
    %v9975 = vpop.f32.mrb[0].mxu0
    %9976 = vdwg.mxu0
    %9977 = vmatprep.subr.mxu0 0.0
    %v9978 = vand.u32 %v44, 4294901760
    %v9979 = vsub.f32 %v44, %v9978
    %v9980 = vand.u32 %v9979, 4294901760
    %9981 = vmatpush1.msra.mxu0 %v9980
    %9982 = vmatprep.subr.mxu0 0.0
    %v9983 = vand.u32 %v45, 4294901760
    %v9984 = vsub.f32 %v45, %v9983
    %v9985 = vand.u32 %v9984, 4294901760
    %9986 = vmatpush1.msra.mxu0 %v9985
    %9987 = vmatprep.subr.mxu0 0.0
    %v9988 = vand.u32 %v46, 4294901760
    %v9989 = vsub.f32 %v46, %v9988
    %v9990 = vand.u32 %v9989, 4294901760
    %9991 = vmatpush1.msra.mxu0 %v9990
    %9992 = vmatprep.subr.mxu0 0.0
    %v9993 = vand.u32 %v47, 4294901760
    %v9994 = vsub.f32 %v47, %v9993
    %v9995 = vand.u32 %v9994, 4294901760
    %9996 = vmatpush1.msra.mxu0 %v9995
    %9997 = vmatprep.subr.mxu0 0.0
    %9998 = vmatpush1.msra.mxu0 0.0
    %9999 = vmatprep.subr.mxu0 0.0
    %10000 = vmatpush1.msra.mxu0 0.0
    %10001 = vmatprep.subr.mxu0 0.0
    %10002 = vmatpush1.msra.mxu0 0.0
    %10003 = vmatprep.subr.mxu0 0.0
    %10004 = vmatpush1.msra.mxu0 0.0
    %10005 = vmatprep.subr.mxu0 0.0
    %10006 = vmatpush1.msra.mxu0 0.0
    %10007 = vmatprep.subr.mxu0 0.0
    %10008 = vmatpush1.msra.mxu0 0.0
    %10009 = vmatprep.subr.mxu0 0.0
    %10010 = vmatpush1.msra.mxu0 0.0
    %10011 = vmatprep.subr.mxu0 0.0
    %10012 = vmatpush1.msra.mxu0 0.0
    %10013 = vmatprep.subr.mxu0 0.0
    %10014 = vmatpush1.msra.mxu0 0.0
    %10015 = vmatprep.subr.mxu0 0.0
    %10016 = vmatpush1.msra.mxu0 0.0
    %10017 = vmatprep.subr.mxu0 0.0
    %10018 = vmatpush1.msra.mxu0 0.0
    %10019 = vmatprep.subr.mxu0 0.0
    %10020 = vmatpush1.msra.mxu0 0.0
    %10021 = vmatprep.subr.mxu0 0.0
    %10022 = vmatpush1.msra.mxu0 0.0
    %10023 = vmatprep.subr.mxu0 0.0
    %10024 = vmatpush1.msra.mxu0 0.0
    %10025 = vmatprep.subr.mxu0 0.0
    %10026 = vmatpush1.msra.mxu0 0.0
    %10027 = vmatprep.subr.mxu0 0.0
    %10028 = vmatpush1.msra.mxu0 0.0
    %10029 = vmatprep.subr.mxu0 0.0
    %10030 = vmatpush1.msra.mxu0 0.0
    %10031 = vmatprep.subr.mxu0 0.0
    %10032 = vmatpush1.msra.mxu0 0.0
    %10033 = vmatprep.subr.mxu0 0.0
    %10034 = vmatpush1.msra.mxu0 0.0
    %10035 = vmatprep.subr.mxu0 0.0
    %10036 = vmatpush1.msra.mxu0 0.0
    %10037 = vmatprep.subr.mxu0 0.0
    %10038 = vmatpush1.msra.mxu0 0.0
    %10039 = vmatprep.subr.mxu0 0.0
    %10040 = vmatpush1.msra.mxu0 0.0
    %10041 = vmatprep.subr.mxu0 0.0
    %10042 = vmatpush1.msra.mxu0 0.0
    %10043 = vmatprep.subr.mxu0 0.0
    %10044 = vmatpush1.msra.mxu0 0.0
    %10045 = vmatprep.subr.mxu0 0.0
    %10046 = vmatpush1.msra.mxu0 0.0
    %10047 = vmatprep.subr.mxu0 0.0
    %10048 = vmatpush1.msra.mxu0 0.0
    %10049 = vmatprep.subr.mxu0 0.0
    %10050 = vmatpush1.msra.mxu0 0.0
    %10051 = vmatprep.subr.mxu0 0.0
    %10052 = vmatpush1.msra.mxu0 0.0
    %10053 = vmatprep.mubr.f32.mxu0 0.0
    %v10054 = vand.u32 %v6116, 4294901760
    %10055 = vmatmul.mubr.f32.gmra.mrb[0].mxu0 %v10054
    %v10056 = vpop.f32.mrb[0].mxu0
    %v10057 = vadd.f32 %v9950, %v10056
    %v10058 = vpop.f32.mrb[0].mxu0
    %10059 = vmatprep.mubr.f32.mxu0 0.0
    %v10060 = vand.u32 %v6572, 4294901760
    %10061 = vmatmul.mubr.f32.gmra.mrb[0].mxu0 %v10060
    %v10062 = vpop.f32.mrb[0].mxu0
    %v10063 = vadd.f32 %v9958, %v10062
    %v10064 = vpop.f32.mrb[0].mxu0
    %10065 = vmatprep.mubr.f32.mxu0 0.0
    %v10066 = vand.u32 %v6118, 4294901760
    %10067 = vmatmul.mubr.f32.gmra.mrb[0].mxu0 %v10066
    %v10068 = vpop.f32.mrb[0].mxu0
    %v10069 = vadd.f32 %v9966, %v10068
    %v10070 = vpop.f32.mrb[0].mxu0
    %10071 = vmatprep.mubr.f32.mxu0 0.0
    %v10072 = vand.u32 %v6574, 4294901760
    %10073 = vmatmul.mubr.f32.gmra.mrb[0].mxu0 %v10072
    %v10074 = vpop.f32.mrb[0].mxu0
    %v10075 = vadd.f32 %v9974, %v10074
    %v10076 = vpop.f32.mrb[0].mxu0
    %10077 = vdwg.mxu0
    %10078 = vmatprep.subr.mxu0 0.0
    %v10079 = vand.u32 %v44, 4294901760
    %10080 = vmatpush1.msra.mxu0 %v10079
    %10081 = vmatprep.subr.mxu0 0.0
    %v10082 = vand.u32 %v45, 4294901760
    %10083 = vmatpush1.msra.mxu0 %v10082
    %10084 = vmatprep.subr.mxu0 0.0
    %v10085 = vand.u32 %v46, 4294901760
    %10086 = vmatpush1.msra.mxu0 %v10085
    %10087 = vmatprep.subr.mxu0 0.0
    %v10088 = vand.u32 %v47, 4294901760
    %10089 = vmatpush1.msra.mxu0 %v10088
    %10090 = vmatprep.subr.mxu0 0.0
    %10091 = vmatpush1.msra.mxu0 0.0
    %10092 = vmatprep.subr.mxu0 0.0
    %10093 = vmatpush1.msra.mxu0 0.0
    %10094 = vmatprep.subr.mxu0 0.0
    %10095 = vmatpush1.msra.mxu0 0.0
    %10096 = vmatprep.subr.mxu0 0.0
    %10097 = vmatpush1.msra.mxu0 0.0
    %10098 = vmatprep.subr.mxu0 0.0
    %10099 = vmatpush1.msra.mxu0 0.0
    %10100 = vmatprep.subr.mxu0 0.0
    %10101 = vmatpush1.msra.mxu0 0.0
    %10102 = vmatprep.subr.mxu0 0.0
    %10103 = vmatpush1.msra.mxu0 0.0
    %10104 = vmatprep.subr.mxu0 0.0
    %10105 = vmatpush1.msra.mxu0 0.0
    %10106 = vmatprep.subr.mxu0 0.0
    %10107 = vmatpush1.msra.mxu0 0.0
    %10108 = vmatprep.subr.mxu0 0.0
    %10109 = vmatpush1.msra.mxu0 0.0
    %10110 = vmatprep.subr.mxu0 0.0
    %10111 = vmatpush1.msra.mxu0 0.0
    %10112 = vmatprep.subr.mxu0 0.0
    %10113 = vmatpush1.msra.mxu0 0.0
    %10114 = vmatprep.subr.mxu0 0.0
    %10115 = vmatpush1.msra.mxu0 0.0
    %10116 = vmatprep.subr.mxu0 0.0
    %10117 = vmatpush1.msra.mxu0 0.0
    %10118 = vmatprep.subr.mxu0 0.0
    %10119 = vmatpush1.msra.mxu0 0.0
    %10120 = vmatprep.subr.mxu0 0.0
    %10121 = vmatpush1.msra.mxu0 0.0
    %10122 = vmatprep.subr.mxu0 0.0
    %10123 = vmatpush1.msra.mxu0 0.0
    %10124 = vmatprep.subr.mxu0 0.0
    %10125 = vmatpush1.msra.mxu0 0.0
    %10126 = vmatprep.subr.mxu0 0.0
    %10127 = vmatpush1.msra.mxu0 0.0
    %10128 = vmatprep.subr.mxu0 0.0
    %10129 = vmatpush1.msra.mxu0 0.0
    %10130 = vmatprep.subr.mxu0 0.0
    %10131 = vmatpush1.msra.mxu0 0.0
    %10132 = vmatprep.subr.mxu0 0.0
    %10133 = vmatpush1.msra.mxu0 0.0
    %10134 = vmatprep.subr.mxu0 0.0
    %10135 = vmatpush1.msra.mxu0 0.0
    %10136 = vmatprep.subr.mxu0 0.0
    %10137 = vmatpush1.msra.mxu0 0.0
    %10138 = vmatprep.subr.mxu0 0.0
    %10139 = vmatpush1.msra.mxu0 0.0
    %10140 = vmatprep.subr.mxu0 0.0
    %10141 = vmatpush1.msra.mxu0 0.0
    %10142 = vmatprep.subr.mxu0 0.0
    %10143 = vmatpush1.msra.mxu0 0.0
    %10144 = vmatprep.subr.mxu0 0.0
    %10145 = vmatpush1.msra.mxu0 0.0
    %10146 = vmatprep.mubr.f32.mxu0 0.0
    %v10147 = vand.u32 %v6116, 4294901760
    %10148 = vmatmul.mubr.f32.gmra.mrb[0].mxu0 %v10147
    %v10149 = vpop.f32.mrb[0].mxu0
    %v10150 = vadd.f32 %v10057, %v10149
    %v10151 = vpop.f32.mrb[0].mxu0
    %10152 = vmatprep.mubr.f32.mxu0 0.0
    %v10153 = vand.u32 %v6572, 4294901760
    %10154 = vmatmul.mubr.f32.gmra.mrb[0].mxu0 %v10153
    %v10155 = vpop.f32.mrb[0].mxu0
    %v10156 = vadd.f32 %v10063, %v10155
    %v10157 = vpop.f32.mrb[0].mxu0
    %10158 = vmatprep.mubr.f32.mxu0 0.0
    %v10159 = vand.u32 %v6118, 4294901760
    %10160 = vmatmul.mubr.f32.gmra.mrb[0].mxu0 %v10159
    %v10161 = vpop.f32.mrb[0].mxu0
    %v10162 = vadd.f32 %v10069, %v10161
    %v10163 = vpop.f32.mrb[0].mxu0
    %10164 = vmatprep.mubr.f32.mxu0 0.0
    %v10165 = vand.u32 %v6574, 4294901760
    %10166 = vmatmul.mubr.f32.gmra.mrb[0].mxu0 %v10165
    %v10167 = vpop.f32.mrb[0].mxu0
    %v10168 = vadd.f32 %v10075, %v10167
    %v10169 = vpop.f32.mrb[0].mxu0
    %10170 = vdwg.mxu0
    %v10171 = vlaneseq
    %v10172 = vshrl.u32 %v10171, 7
    %v10173 = vsub.s32 0, %v10172
    %v10174 = vrot.slane %v68, %v10173
    %v10175 = vadd.f32 %v10150, %v10174
    %v10176 = vadd.f32 %v10156, %v10174
    %v10177 = vadd.f32 %v10162, %v10174
    %v10178 = vadd.f32 %v10168, %v10174
    %v10179 = vmax.f32 %v10175, 0.0
    %v10180 = vmax.f32 %v10176, 0.0
    %v10181 = vmax.f32 %v10177, 0.0
    %v10182 = vmax.f32 %v10178, 0.0
    %v10183 = vsel %vm952, %v10179, 0.0
    %v10184 = vrot.slane %v10183, 4
    %v10185 = vadd.f32 %v10183, %v10184
    %v10186 = vrot.slane %v10185, 2
    %v10187 = vadd.f32 %v10185, %v10186
    %v10188 = vrot.slane %v10187, 1
    %v10189 = vadd.f32 %v10187, %v10188
    %v10190 = vsel %vm952, %v10180, 0.0
    %v10191 = vrot.slane %v10190, 4
    %v10192 = vadd.f32 %v10190, %v10191
    %v10193 = vrot.slane %v10192, 2
    %v10194 = vadd.f32 %v10192, %v10193
    %v10195 = vrot.slane %v10194, 1
    %v10196 = vadd.f32 %v10194, %v10195
    %v10197 = vmul.f32 %v10189, 0.125
    %v10198 = vmul.f32 %v10196, 0.125
    %v10199 = vsel %vm952, %v10179, -inf
    %v10200 = vrot.slane %v10199, 4
    %v10201 = vmax.f32 %v10199, %v10200
    %v10202 = vrot.slane %v10201, 2
    %v10203 = vmax.f32 %v10201, %v10202
    %v10204 = vrot.slane %v10203, 1
    %v10205 = vmax.f32 %v10203, %v10204
    %v10206 = vsel %vm952, %v10180, -inf
    %v10207 = vrot.slane %v10206, 4
    %v10208 = vmax.f32 %v10206, %v10207
    %v10209 = vrot.slane %v10208, 2
    %v10210 = vmax.f32 %v10208, %v10209
    %v10211 = vrot.slane %v10210, 1
    %v10212 = vmax.f32 %v10210, %v10211
    %v10213 = vsel %vm952, %v10181, 0.0
    %v10214 = vrot.slane %v10213, 4
    %v10215 = vadd.f32 %v10213, %v10214
    %v10216 = vrot.slane %v10215, 2
    %v10217 = vadd.f32 %v10215, %v10216
    %v10218 = vrot.slane %v10217, 1
    %v10219 = vadd.f32 %v10217, %v10218
    %v10220 = vsel %vm952, %v10182, 0.0
    %v10221 = vrot.slane %v10220, 4
    %v10222 = vadd.f32 %v10220, %v10221
    %v10223 = vrot.slane %v10222, 2
    %v10224 = vadd.f32 %v10222, %v10223
    %v10225 = vrot.slane %v10224, 1
    %v10226 = vadd.f32 %v10224, %v10225
    %v10227 = vmul.f32 %v10219, 0.125
    %v10228 = vmul.f32 %v10226, 0.125
    %v10229 = vsel %vm952, %v10181, -inf
    %v10230 = vrot.slane %v10229, 4
    %v10231 = vmax.f32 %v10229, %v10230
    %v10232 = vrot.slane %v10231, 2
    %v10233 = vmax.f32 %v10231, %v10232
    %v10234 = vrot.slane %v10233, 1
    %v10235 = vmax.f32 %v10233, %v10234
    %v10236 = vsel %vm952, %v10182, -inf
    %v10237 = vrot.slane %v10236, 4
    %v10238 = vmax.f32 %v10236, %v10237
    %v10239 = vrot.slane %v10238, 2
    %v10240 = vmax.f32 %v10238, %v10239
    %v10241 = vrot.slane %v10240, 1
    %v10242 = vmax.f32 %v10240, %v10241
    %v10243 = vsub.f32 %v10197, %v10227
    %v10244 = vsub.f32 %v10198, %v10228
    %v10245 = vand.u32 2147483647, %v10243
    %v10246 = vand.u32 2147483647, %v10244
    %v10247 = vsub.f32 %v10205, %v10235
    %v10248 = vsub.f32 %v10212, %v10242
    %v10249 = vand.u32 2147483647, %v10247
    %v10250 = vand.u32 2147483647, %v10248
    %v10251 = vmul.f32 %v10197, %v10227
    %v10252 = vmul.f32 %v10198, %v10228
    %v10253 = vmul.f32 %v10205, %v10235
    %v10254 = vmul.f32 %v10212, %v10242
    %vm10257 = vcmask 1041409
    %v10258 = vsel %vm10257, %v10246, %v10245
    %v10262 = vsel %vm10257, %v10250, %v10249
    %10263 = vrot.lane.b32.xlu0 %v10262, 32
    %v10264 = vpop.permute.xlu0 %10263
    %v10268 = vsel %vm10257, %v10252, %v10251
    %10269 = vrot.lane.b32.xlu0 %v10268, 64
    %v10270 = vpop.permute.xlu0 %10269
    %v10274 = vsel %vm10257, %v10254, %v10253
    %10275 = vrot.lane.b32.xlu0 %v10274, 96
    %v10276 = vpop.permute.xlu0 %10275
    %v10278 = vsel %vm952, %v10258, %v10264
    %v10279 = vsel %vm269, %v10278, %v10270
    %vm10280 = vcmask 785408
    %v10281 = vsel %vm10280, %v10279, %v10276
    %v10282 = vlaneseq
    %v10283 = vshrl.u32 %v10282, 7
    %v10284 = vsub.s32 0, %v10283
    %v10285 = vrot.slane %v69, %v10284
    %10286 = vmatprep.subr.mxu0 0.0
    %v10287 = vand.u32 %v52, 4294901760
    %10288 = vmatpush1.msra.mxu0 %v10287
    %10289 = vmatprep.subr.mxu0 0.0
    %v10290 = vand.u32 %v53, 4294901760
    %10291 = vmatpush1.msra.mxu0 %v10290
    %10292 = vmatprep.subr.mxu0 0.0
    %v10293 = vand.u32 %v54, 4294901760
    %10294 = vmatpush1.msra.mxu0 %v10293
    %10295 = vmatprep.subr.mxu0 0.0
    %v10296 = vand.u32 %v55, 4294901760
    %10297 = vmatpush1.msra.mxu0 %v10296
    %10298 = vmatprep.subr.mxu0 0.0
    %v10299 = vand.u32 %v56, 4294901760
    %10300 = vmatpush1.msra.mxu0 %v10299
    %10301 = vmatprep.subr.mxu0 0.0
    %v10302 = vand.u32 %v57, 4294901760
    %10303 = vmatpush1.msra.mxu0 %v10302
    %10304 = vmatprep.subr.mxu0 0.0
    %v10305 = vand.u32 %v58, 4294901760
    %10306 = vmatpush1.msra.mxu0 %v10305
    %10307 = vmatprep.subr.mxu0 0.0
    %v10308 = vand.u32 %v59, 4294901760
    %10309 = vmatpush1.msra.mxu0 %v10308
    %10310 = vmatprep.subr.mxu0 0.0
    %v10311 = vand.u32 %v60, 4294901760
    %10312 = vmatpush1.msra.mxu0 %v10311
    %10313 = vmatprep.subr.mxu0 0.0
    %v10314 = vand.u32 %v61, 4294901760
    %10315 = vmatpush1.msra.mxu0 %v10314
    %10316 = vmatprep.subr.mxu0 0.0
    %v10317 = vand.u32 %v62, 4294901760
    %10318 = vmatpush1.msra.mxu0 %v10317
    %10319 = vmatprep.subr.mxu0 0.0
    %v10320 = vand.u32 %v63, 4294901760
    %10321 = vmatpush1.msra.mxu0 %v10320
    %10322 = vmatprep.subr.mxu0 0.0
    %v10323 = vand.u32 %v64, 4294901760
    %10324 = vmatpush1.msra.mxu0 %v10323
    %10325 = vmatprep.subr.mxu0 0.0
    %v10326 = vand.u32 %v65, 4294901760
    %10327 = vmatpush1.msra.mxu0 %v10326
    %10328 = vmatprep.subr.mxu0 0.0
    %v10329 = vand.u32 %v66, 4294901760
    %10330 = vmatpush1.msra.mxu0 %v10329
    %10331 = vmatprep.subr.mxu0 0.0
    %v10332 = vand.u32 %v67, 4294901760
    %10333 = vmatpush1.msra.mxu0 %v10332
    %10334 = vmatprep.subr.mxu0 0.0
    %10335 = vmatpush1.msra.mxu0 0.0
    %10336 = vmatprep.subr.mxu0 0.0
    %10337 = vmatpush1.msra.mxu0 0.0
    %10338 = vmatprep.subr.mxu0 0.0
    %10339 = vmatpush1.msra.mxu0 0.0
    %10340 = vmatprep.subr.mxu0 0.0
    %10341 = vmatpush1.msra.mxu0 0.0
    %10342 = vmatprep.subr.mxu0 0.0
    %10343 = vmatpush1.msra.mxu0 0.0
    %10344 = vmatprep.subr.mxu0 0.0
    %10345 = vmatpush1.msra.mxu0 0.0
    %10346 = vmatprep.subr.mxu0 0.0
    %10347 = vmatpush1.msra.mxu0 0.0
    %10348 = vmatprep.subr.mxu0 0.0
    %10349 = vmatpush1.msra.mxu0 0.0
    %10350 = vmatprep.subr.mxu0 0.0
    %10351 = vmatpush1.msra.mxu0 0.0
    %10352 = vmatprep.subr.mxu0 0.0
    %10353 = vmatpush1.msra.mxu0 0.0
    %10354 = vmatprep.subr.mxu0 0.0
    %10355 = vmatpush1.msra.mxu0 0.0
    %10356 = vmatprep.subr.mxu0 0.0
    %10357 = vmatpush1.msra.mxu0 0.0
    %10358 = vmatprep.subr.mxu0 0.0
    %10359 = vmatpush1.msra.mxu0 0.0
    %10360 = vmatprep.subr.mxu0 0.0
    %10361 = vmatpush1.msra.mxu0 0.0
    %10362 = vmatprep.subr.mxu0 0.0
    %10363 = vmatpush1.msra.mxu0 0.0
    %10364 = vmatprep.subr.mxu0 0.0
    %10365 = vmatpush1.msra.mxu0 0.0
    %10366 = vmatprep.mubr.f32.mxu0 0.0
    %v10367 = vand.u32 %v10281, 4294901760
    %v10368 = vsub.f32 %v10281, %v10367
    %v10369 = vand.u32 %v10368, 4294901760
    %v10370 = vsub.f32 %v10368, %v10369
    %v10371 = vand.u32 %v10370, 4294901760
    %10372 = vmatmul.mubr.f32.gmra.mrb[0].mxu0 %v10371
    %v10373 = vpop.f32.mrb[0].mxu0
    %v10374 = vadd.f32 %v10285, %v10373
    %v10375 = vpop.f32.mrb[0].mxu0
    %10376 = vdwg.mxu0
    %10377 = vmatprep.subr.mxu0 0.0
    %v10378 = vand.u32 %v52, 4294901760
    %v10379 = vsub.f32 %v52, %v10378
    %v10380 = vand.u32 %v10379, 4294901760
    %v10381 = vsub.f32 %v10379, %v10380
    %v10382 = vand.u32 %v10381, 4294901760
    %10383 = vmatpush1.msra.mxu0 %v10382
    %10384 = vmatprep.subr.mxu0 0.0
    %v10385 = vand.u32 %v53, 4294901760
    %v10386 = vsub.f32 %v53, %v10385
    %v10387 = vand.u32 %v10386, 4294901760
    %v10388 = vsub.f32 %v10386, %v10387
    %v10389 = vand.u32 %v10388, 4294901760
    %10390 = vmatpush1.msra.mxu0 %v10389
    %10391 = vmatprep.subr.mxu0 0.0
    %v10392 = vand.u32 %v54, 4294901760
    %v10393 = vsub.f32 %v54, %v10392
    %v10394 = vand.u32 %v10393, 4294901760
    %v10395 = vsub.f32 %v10393, %v10394
    %v10396 = vand.u32 %v10395, 4294901760
    %10397 = vmatpush1.msra.mxu0 %v10396
    %10398 = vmatprep.subr.mxu0 0.0
    %v10399 = vand.u32 %v55, 4294901760
    %v10400 = vsub.f32 %v55, %v10399
    %v10401 = vand.u32 %v10400, 4294901760
    %v10402 = vsub.f32 %v10400, %v10401
    %v10403 = vand.u32 %v10402, 4294901760
    %10404 = vmatpush1.msra.mxu0 %v10403
    %10405 = vmatprep.subr.mxu0 0.0
    %v10406 = vand.u32 %v56, 4294901760
    %v10407 = vsub.f32 %v56, %v10406
    %v10408 = vand.u32 %v10407, 4294901760
    %v10409 = vsub.f32 %v10407, %v10408
    %v10410 = vand.u32 %v10409, 4294901760
    %10411 = vmatpush1.msra.mxu0 %v10410
    %10412 = vmatprep.subr.mxu0 0.0
    %v10413 = vand.u32 %v57, 4294901760
    %v10414 = vsub.f32 %v57, %v10413
    %v10415 = vand.u32 %v10414, 4294901760
    %v10416 = vsub.f32 %v10414, %v10415
    %v10417 = vand.u32 %v10416, 4294901760
    %10418 = vmatpush1.msra.mxu0 %v10417
    %10419 = vmatprep.subr.mxu0 0.0
    %v10420 = vand.u32 %v58, 4294901760
    %v10421 = vsub.f32 %v58, %v10420
    %v10422 = vand.u32 %v10421, 4294901760
    %v10423 = vsub.f32 %v10421, %v10422
    %v10424 = vand.u32 %v10423, 4294901760
    %10425 = vmatpush1.msra.mxu0 %v10424
    %10426 = vmatprep.subr.mxu0 0.0
    %v10427 = vand.u32 %v59, 4294901760
    %v10428 = vsub.f32 %v59, %v10427
    %v10429 = vand.u32 %v10428, 4294901760
    %v10430 = vsub.f32 %v10428, %v10429
    %v10431 = vand.u32 %v10430, 4294901760
    %10432 = vmatpush1.msra.mxu0 %v10431
    %10433 = vmatprep.subr.mxu0 0.0
    %v10434 = vand.u32 %v60, 4294901760
    %v10435 = vsub.f32 %v60, %v10434
    %v10436 = vand.u32 %v10435, 4294901760
    %v10437 = vsub.f32 %v10435, %v10436
    %v10438 = vand.u32 %v10437, 4294901760
    %10439 = vmatpush1.msra.mxu0 %v10438
    %10440 = vmatprep.subr.mxu0 0.0
    %v10441 = vand.u32 %v61, 4294901760
    %v10442 = vsub.f32 %v61, %v10441
    %v10443 = vand.u32 %v10442, 4294901760
    %v10444 = vsub.f32 %v10442, %v10443
    %v10445 = vand.u32 %v10444, 4294901760
    %10446 = vmatpush1.msra.mxu0 %v10445
    %10447 = vmatprep.subr.mxu0 0.0
    %v10448 = vand.u32 %v62, 4294901760
    %v10449 = vsub.f32 %v62, %v10448
    %v10450 = vand.u32 %v10449, 4294901760
    %v10451 = vsub.f32 %v10449, %v10450
    %v10452 = vand.u32 %v10451, 4294901760
    %10453 = vmatpush1.msra.mxu0 %v10452
    %10454 = vmatprep.subr.mxu0 0.0
    %v10455 = vand.u32 %v63, 4294901760
    %v10456 = vsub.f32 %v63, %v10455
    %v10457 = vand.u32 %v10456, 4294901760
    %v10458 = vsub.f32 %v10456, %v10457
    %v10459 = vand.u32 %v10458, 4294901760
    %10460 = vmatpush1.msra.mxu0 %v10459
    %10461 = vmatprep.subr.mxu0 0.0
    %v10462 = vand.u32 %v64, 4294901760
    %v10463 = vsub.f32 %v64, %v10462
    %v10464 = vand.u32 %v10463, 4294901760
    %v10465 = vsub.f32 %v10463, %v10464
    %v10466 = vand.u32 %v10465, 4294901760
    %10467 = vmatpush1.msra.mxu0 %v10466
    %10468 = vmatprep.subr.mxu0 0.0
    %v10469 = vand.u32 %v65, 4294901760
    %v10470 = vsub.f32 %v65, %v10469
    %v10471 = vand.u32 %v10470, 4294901760
    %v10472 = vsub.f32 %v10470, %v10471
    %v10473 = vand.u32 %v10472, 4294901760
    %10474 = vmatpush1.msra.mxu0 %v10473
    %10475 = vmatprep.subr.mxu0 0.0
    %v10476 = vand.u32 %v66, 4294901760
    %v10477 = vsub.f32 %v66, %v10476
    %v10478 = vand.u32 %v10477, 4294901760
    %v10479 = vsub.f32 %v10477, %v10478
    %v10480 = vand.u32 %v10479, 4294901760
    %10481 = vmatpush1.msra.mxu0 %v10480
    %10482 = vmatprep.subr.mxu0 0.0
    %v10483 = vand.u32 %v67, 4294901760
    %v10484 = vsub.f32 %v67, %v10483
    %v10485 = vand.u32 %v10484, 4294901760
    %v10486 = vsub.f32 %v10484, %v10485
    %v10487 = vand.u32 %v10486, 4294901760
    %10488 = vmatpush1.msra.mxu0 %v10487
    %10489 = vmatprep.subr.mxu0 0.0
    %10490 = vmatpush1.msra.mxu0 0.0
    %10491 = vmatprep.subr.mxu0 0.0
    %10492 = vmatpush1.msra.mxu0 0.0
    %10493 = vmatprep.subr.mxu0 0.0
    %10494 = vmatpush1.msra.mxu0 0.0
    %10495 = vmatprep.subr.mxu0 0.0
    %10496 = vmatpush1.msra.mxu0 0.0
    %10497 = vmatprep.subr.mxu0 0.0
    %10498 = vmatpush1.msra.mxu0 0.0
    %10499 = vmatprep.subr.mxu0 0.0
    %10500 = vmatpush1.msra.mxu0 0.0
    %10501 = vmatprep.subr.mxu0 0.0
    %10502 = vmatpush1.msra.mxu0 0.0
    %10503 = vmatprep.subr.mxu0 0.0
    %10504 = vmatpush1.msra.mxu0 0.0
    %10505 = vmatprep.subr.mxu0 0.0
    %10506 = vmatpush1.msra.mxu0 0.0
    %10507 = vmatprep.subr.mxu0 0.0
    %10508 = vmatpush1.msra.mxu0 0.0
    %10509 = vmatprep.subr.mxu0 0.0
    %10510 = vmatpush1.msra.mxu0 0.0
    %10511 = vmatprep.subr.mxu0 0.0
    %10512 = vmatpush1.msra.mxu0 0.0
    %10513 = vmatprep.subr.mxu0 0.0
    %10514 = vmatpush1.msra.mxu0 0.0
    %10515 = vmatprep.subr.mxu0 0.0
    %10516 = vmatpush1.msra.mxu0 0.0
    %10517 = vmatprep.subr.mxu0 0.0
    %10518 = vmatpush1.msra.mxu0 0.0
    %10519 = vmatprep.subr.mxu0 0.0
    %10520 = vmatpush1.msra.mxu0 0.0
    %10521 = vmatprep.mubr.f32.mxu0 0.0
    %v10522 = vand.u32 %v10281, 4294901760
    %10523 = vmatmul.mubr.f32.gmra.mrb[0].mxu0 %v10522
    %v10524 = vpop.f32.mrb[0].mxu0
    %v10525 = vadd.f32 %v10374, %v10524
    %v10526 = vpop.f32.mrb[0].mxu0
    %10527 = vdwg.mxu0
    %10528 = vmatprep.subr.mxu0 0.0
    %v10529 = vand.u32 %v52, 4294901760
    %v10530 = vsub.f32 %v52, %v10529
    %10531 = vmatpush1.msra.mxu0 %v10530
    %10532 = vmatprep.subr.mxu0 0.0
    %v10533 = vand.u32 %v53, 4294901760
    %v10534 = vsub.f32 %v53, %v10533
    %10535 = vmatpush1.msra.mxu0 %v10534
    %10536 = vmatprep.subr.mxu0 0.0
    %v10537 = vand.u32 %v54, 4294901760
    %v10538 = vsub.f32 %v54, %v10537
    %10539 = vmatpush1.msra.mxu0 %v10538
    %10540 = vmatprep.subr.mxu0 0.0
    %v10541 = vand.u32 %v55, 4294901760
    %v10542 = vsub.f32 %v55, %v10541
    %10543 = vmatpush1.msra.mxu0 %v10542
    %10544 = vmatprep.subr.mxu0 0.0
    %v10545 = vand.u32 %v56, 4294901760
    %v10546 = vsub.f32 %v56, %v10545
    %10547 = vmatpush1.msra.mxu0 %v10546
    %10548 = vmatprep.subr.mxu0 0.0
    %v10549 = vand.u32 %v57, 4294901760
    %v10550 = vsub.f32 %v57, %v10549
    %10551 = vmatpush1.msra.mxu0 %v10550
    %10552 = vmatprep.subr.mxu0 0.0
    %v10553 = vand.u32 %v58, 4294901760
    %v10554 = vsub.f32 %v58, %v10553
    %10555 = vmatpush1.msra.mxu0 %v10554
    %10556 = vmatprep.subr.mxu0 0.0
    %v10557 = vand.u32 %v59, 4294901760
    %v10558 = vsub.f32 %v59, %v10557
    %10559 = vmatpush1.msra.mxu0 %v10558
    %10560 = vmatprep.subr.mxu0 0.0
    %v10561 = vand.u32 %v60, 4294901760
    %v10562 = vsub.f32 %v60, %v10561
    %10563 = vmatpush1.msra.mxu0 %v10562
    %10564 = vmatprep.subr.mxu0 0.0
    %v10565 = vand.u32 %v61, 4294901760
    %v10566 = vsub.f32 %v61, %v10565
    %10567 = vmatpush1.msra.mxu0 %v10566
    %10568 = vmatprep.subr.mxu0 0.0
    %v10569 = vand.u32 %v62, 4294901760
    %v10570 = vsub.f32 %v62, %v10569
    %10571 = vmatpush1.msra.mxu0 %v10570
    %10572 = vmatprep.subr.mxu0 0.0
    %v10573 = vand.u32 %v63, 4294901760
    %v10574 = vsub.f32 %v63, %v10573
    %10575 = vmatpush1.msra.mxu0 %v10574
    %10576 = vmatprep.subr.mxu0 0.0
    %v10577 = vand.u32 %v64, 4294901760
    %v10578 = vsub.f32 %v64, %v10577
    %10579 = vmatpush1.msra.mxu0 %v10578
    %10580 = vmatprep.subr.mxu0 0.0
    %v10581 = vand.u32 %v65, 4294901760
    %v10582 = vsub.f32 %v65, %v10581
    %10583 = vmatpush1.msra.mxu0 %v10582
    %10584 = vmatprep.subr.mxu0 0.0
    %v10585 = vand.u32 %v66, 4294901760
    %v10586 = vsub.f32 %v66, %v10585
    %10587 = vmatpush1.msra.mxu0 %v10586
    %10588 = vmatprep.subr.mxu0 0.0
    %v10589 = vand.u32 %v67, 4294901760
    %v10590 = vsub.f32 %v67, %v10589
    %10591 = vmatpush1.msra.mxu0 %v10590
    %10592 = vmatprep.subr.mxu0 0.0
    %10593 = vmatpush1.msra.mxu0 0.0
    %10594 = vmatprep.subr.mxu0 0.0
    %10595 = vmatpush1.msra.mxu0 0.0
    %10596 = vmatprep.subr.mxu0 0.0
    %10597 = vmatpush1.msra.mxu0 0.0
    %10598 = vmatprep.subr.mxu0 0.0
    %10599 = vmatpush1.msra.mxu0 0.0
    %10600 = vmatprep.subr.mxu0 0.0
    %10601 = vmatpush1.msra.mxu0 0.0
    %10602 = vmatprep.subr.mxu0 0.0
    %10603 = vmatpush1.msra.mxu0 0.0
    %10604 = vmatprep.subr.mxu0 0.0
    %10605 = vmatpush1.msra.mxu0 0.0
    %10606 = vmatprep.subr.mxu0 0.0
    %10607 = vmatpush1.msra.mxu0 0.0
    %10608 = vmatprep.subr.mxu0 0.0
    %10609 = vmatpush1.msra.mxu0 0.0
    %10610 = vmatprep.subr.mxu0 0.0
    %10611 = vmatpush1.msra.mxu0 0.0
    %10612 = vmatprep.subr.mxu0 0.0
    %10613 = vmatpush1.msra.mxu0 0.0
    %10614 = vmatprep.subr.mxu0 0.0
    %10615 = vmatpush1.msra.mxu0 0.0
    %10616 = vmatprep.subr.mxu0 0.0
    %10617 = vmatpush1.msra.mxu0 0.0
    %10618 = vmatprep.subr.mxu0 0.0
    %10619 = vmatpush1.msra.mxu0 0.0
    %10620 = vmatprep.subr.mxu0 0.0
    %10621 = vmatpush1.msra.mxu0 0.0
    %10622 = vmatprep.subr.mxu0 0.0
    %10623 = vmatpush1.msra.mxu0 0.0
    %10624 = vmatprep.mubr.f32.mxu0 0.0
    %v10625 = vand.u32 %v10281, 4294901760
    %v10626 = vsub.f32 %v10281, %v10625
    %10627 = vmatmul.mubr.f32.gmra.mrb[0].mxu0 %v10626
    %v10628 = vpop.f32.mrb[0].mxu0
    %v10629 = vadd.f32 %v10525, %v10628
    %v10630 = vpop.f32.mrb[0].mxu0
    %10631 = vdwg.mxu0
    %10632 = vmatprep.subr.mxu0 0.0
    %v10633 = vand.u32 %v52, 4294901760
    %10634 = vmatpush1.msra.mxu0 %v10633
    %10635 = vmatprep.subr.mxu0 0.0
    %v10636 = vand.u32 %v53, 4294901760
    %10637 = vmatpush1.msra.mxu0 %v10636
    %10638 = vmatprep.subr.mxu0 0.0
    %v10639 = vand.u32 %v54, 4294901760
    %10640 = vmatpush1.msra.mxu0 %v10639
    %10641 = vmatprep.subr.mxu0 0.0
    %v10642 = vand.u32 %v55, 4294901760
    %10643 = vmatpush1.msra.mxu0 %v10642
    %10644 = vmatprep.subr.mxu0 0.0
    %v10645 = vand.u32 %v56, 4294901760
    %10646 = vmatpush1.msra.mxu0 %v10645
    %10647 = vmatprep.subr.mxu0 0.0
    %v10648 = vand.u32 %v57, 4294901760
    %10649 = vmatpush1.msra.mxu0 %v10648
    %10650 = vmatprep.subr.mxu0 0.0
    %v10651 = vand.u32 %v58, 4294901760
    %10652 = vmatpush1.msra.mxu0 %v10651
    %10653 = vmatprep.subr.mxu0 0.0
    %v10654 = vand.u32 %v59, 4294901760
    %10655 = vmatpush1.msra.mxu0 %v10654
    %10656 = vmatprep.subr.mxu0 0.0
    %v10657 = vand.u32 %v60, 4294901760
    %10658 = vmatpush1.msra.mxu0 %v10657
    %10659 = vmatprep.subr.mxu0 0.0
    %v10660 = vand.u32 %v61, 4294901760
    %10661 = vmatpush1.msra.mxu0 %v10660
    %10662 = vmatprep.subr.mxu0 0.0
    %v10663 = vand.u32 %v62, 4294901760
    %10664 = vmatpush1.msra.mxu0 %v10663
    %10665 = vmatprep.subr.mxu0 0.0
    %v10666 = vand.u32 %v63, 4294901760
    %10667 = vmatpush1.msra.mxu0 %v10666
    %10668 = vmatprep.subr.mxu0 0.0
    %v10669 = vand.u32 %v64, 4294901760
    %10670 = vmatpush1.msra.mxu0 %v10669
    %10671 = vmatprep.subr.mxu0 0.0
    %v10672 = vand.u32 %v65, 4294901760
    %10673 = vmatpush1.msra.mxu0 %v10672
    %10674 = vmatprep.subr.mxu0 0.0
    %v10675 = vand.u32 %v66, 4294901760
    %10676 = vmatpush1.msra.mxu0 %v10675
    %10677 = vmatprep.subr.mxu0 0.0
    %v10678 = vand.u32 %v67, 4294901760
    %10679 = vmatpush1.msra.mxu0 %v10678
    %10680 = vmatprep.subr.mxu0 0.0
    %10681 = vmatpush1.msra.mxu0 0.0
    %10682 = vmatprep.subr.mxu0 0.0
    %10683 = vmatpush1.msra.mxu0 0.0
    %10684 = vmatprep.subr.mxu0 0.0
    %10685 = vmatpush1.msra.mxu0 0.0
    %10686 = vmatprep.subr.mxu0 0.0
    %10687 = vmatpush1.msra.mxu0 0.0
    %10688 = vmatprep.subr.mxu0 0.0
    %10689 = vmatpush1.msra.mxu0 0.0
    %10690 = vmatprep.subr.mxu0 0.0
    %10691 = vmatpush1.msra.mxu0 0.0
    %10692 = vmatprep.subr.mxu0 0.0
    %10693 = vmatpush1.msra.mxu0 0.0
    %10694 = vmatprep.subr.mxu0 0.0
    %10695 = vmatpush1.msra.mxu0 0.0
    %10696 = vmatprep.subr.mxu0 0.0
    %10697 = vmatpush1.msra.mxu0 0.0
    %10698 = vmatprep.subr.mxu0 0.0
    %10699 = vmatpush1.msra.mxu0 0.0
    %10700 = vmatprep.subr.mxu0 0.0
    %10701 = vmatpush1.msra.mxu0 0.0
    %10702 = vmatprep.subr.mxu0 0.0
    %10703 = vmatpush1.msra.mxu0 0.0
    %10704 = vmatprep.subr.mxu0 0.0
    %10705 = vmatpush1.msra.mxu0 0.0
    %10706 = vmatprep.subr.mxu0 0.0
    %10707 = vmatpush1.msra.mxu0 0.0
    %10708 = vmatprep.subr.mxu0 0.0
    %10709 = vmatpush1.msra.mxu0 0.0
    %10710 = vmatprep.subr.mxu0 0.0
    %10711 = vmatpush1.msra.mxu0 0.0
    %10712 = vmatprep.mubr.f32.mxu0 0.0
    %v10713 = vand.u32 %v10281, 4294901760
    %v10714 = vsub.f32 %v10281, %v10713
    %v10715 = vand.u32 %v10714, 4294901760
    %10716 = vmatmul.mubr.f32.gmra.mrb[0].mxu0 %v10715
    %v10717 = vpop.f32.mrb[0].mxu0
    %v10718 = vadd.f32 %v10629, %v10717
    %v10719 = vpop.f32.mrb[0].mxu0
    %10720 = vdwg.mxu0
    %10721 = vmatprep.subr.mxu0 0.0
    %v10722 = vand.u32 %v52, 4294901760
    %v10723 = vsub.f32 %v52, %v10722
    %v10724 = vand.u32 %v10723, 4294901760
    %10725 = vmatpush1.msra.mxu0 %v10724
    %10726 = vmatprep.subr.mxu0 0.0
    %v10727 = vand.u32 %v53, 4294901760
    %v10728 = vsub.f32 %v53, %v10727
    %v10729 = vand.u32 %v10728, 4294901760
    %10730 = vmatpush1.msra.mxu0 %v10729
    %10731 = vmatprep.subr.mxu0 0.0
    %v10732 = vand.u32 %v54, 4294901760
    %v10733 = vsub.f32 %v54, %v10732
    %v10734 = vand.u32 %v10733, 4294901760
    %10735 = vmatpush1.msra.mxu0 %v10734
    %10736 = vmatprep.subr.mxu0 0.0
    %v10737 = vand.u32 %v55, 4294901760
    %v10738 = vsub.f32 %v55, %v10737
    %v10739 = vand.u32 %v10738, 4294901760
    %10740 = vmatpush1.msra.mxu0 %v10739
    %10741 = vmatprep.subr.mxu0 0.0
    %v10742 = vand.u32 %v56, 4294901760
    %v10743 = vsub.f32 %v56, %v10742
    %v10744 = vand.u32 %v10743, 4294901760
    %10745 = vmatpush1.msra.mxu0 %v10744
    %10746 = vmatprep.subr.mxu0 0.0
    %v10747 = vand.u32 %v57, 4294901760
    %v10748 = vsub.f32 %v57, %v10747
    %v10749 = vand.u32 %v10748, 4294901760
    %10750 = vmatpush1.msra.mxu0 %v10749
    %10751 = vmatprep.subr.mxu0 0.0
    %v10752 = vand.u32 %v58, 4294901760
    %v10753 = vsub.f32 %v58, %v10752
    %v10754 = vand.u32 %v10753, 4294901760
    %10755 = vmatpush1.msra.mxu0 %v10754
    %10756 = vmatprep.subr.mxu0 0.0
    %v10757 = vand.u32 %v59, 4294901760
    %v10758 = vsub.f32 %v59, %v10757
    %v10759 = vand.u32 %v10758, 4294901760
    %10760 = vmatpush1.msra.mxu0 %v10759
    %10761 = vmatprep.subr.mxu0 0.0
    %v10762 = vand.u32 %v60, 4294901760
    %v10763 = vsub.f32 %v60, %v10762
    %v10764 = vand.u32 %v10763, 4294901760
    %10765 = vmatpush1.msra.mxu0 %v10764
    %10766 = vmatprep.subr.mxu0 0.0
    %v10767 = vand.u32 %v61, 4294901760
    %v10768 = vsub.f32 %v61, %v10767
    %v10769 = vand.u32 %v10768, 4294901760
    %10770 = vmatpush1.msra.mxu0 %v10769
    %10771 = vmatprep.subr.mxu0 0.0
    %v10772 = vand.u32 %v62, 4294901760
    %v10773 = vsub.f32 %v62, %v10772
    %v10774 = vand.u32 %v10773, 4294901760
    %10775 = vmatpush1.msra.mxu0 %v10774
    %10776 = vmatprep.subr.mxu0 0.0
    %v10777 = vand.u32 %v63, 4294901760
    %v10778 = vsub.f32 %v63, %v10777
    %v10779 = vand.u32 %v10778, 4294901760
    %10780 = vmatpush1.msra.mxu0 %v10779
    %10781 = vmatprep.subr.mxu0 0.0
    %v10782 = vand.u32 %v64, 4294901760
    %v10783 = vsub.f32 %v64, %v10782
    %v10784 = vand.u32 %v10783, 4294901760
    %10785 = vmatpush1.msra.mxu0 %v10784
    %10786 = vmatprep.subr.mxu0 0.0
    %v10787 = vand.u32 %v65, 4294901760
    %v10788 = vsub.f32 %v65, %v10787
    %v10789 = vand.u32 %v10788, 4294901760
    %10790 = vmatpush1.msra.mxu0 %v10789
    %10791 = vmatprep.subr.mxu0 0.0
    %v10792 = vand.u32 %v66, 4294901760
    %v10793 = vsub.f32 %v66, %v10792
    %v10794 = vand.u32 %v10793, 4294901760
    %10795 = vmatpush1.msra.mxu0 %v10794
    %10796 = vmatprep.subr.mxu0 0.0
    %v10797 = vand.u32 %v67, 4294901760
    %v10798 = vsub.f32 %v67, %v10797
    %v10799 = vand.u32 %v10798, 4294901760
    %10800 = vmatpush1.msra.mxu0 %v10799
    %10801 = vmatprep.subr.mxu0 0.0
    %10802 = vmatpush1.msra.mxu0 0.0
    %10803 = vmatprep.subr.mxu0 0.0
    %10804 = vmatpush1.msra.mxu0 0.0
    %10805 = vmatprep.subr.mxu0 0.0
    %10806 = vmatpush1.msra.mxu0 0.0
    %10807 = vmatprep.subr.mxu0 0.0
    %10808 = vmatpush1.msra.mxu0 0.0
    %10809 = vmatprep.subr.mxu0 0.0
    %10810 = vmatpush1.msra.mxu0 0.0
    %10811 = vmatprep.subr.mxu0 0.0
    %10812 = vmatpush1.msra.mxu0 0.0
    %10813 = vmatprep.subr.mxu0 0.0
    %10814 = vmatpush1.msra.mxu0 0.0
    %10815 = vmatprep.subr.mxu0 0.0
    %10816 = vmatpush1.msra.mxu0 0.0
    %10817 = vmatprep.subr.mxu0 0.0
    %10818 = vmatpush1.msra.mxu0 0.0
    %10819 = vmatprep.subr.mxu0 0.0
    %10820 = vmatpush1.msra.mxu0 0.0
    %10821 = vmatprep.subr.mxu0 0.0
    %10822 = vmatpush1.msra.mxu0 0.0
    %10823 = vmatprep.subr.mxu0 0.0
    %10824 = vmatpush1.msra.mxu0 0.0
    %10825 = vmatprep.subr.mxu0 0.0
    %10826 = vmatpush1.msra.mxu0 0.0
    %10827 = vmatprep.subr.mxu0 0.0
    %10828 = vmatpush1.msra.mxu0 0.0
    %10829 = vmatprep.subr.mxu0 0.0
    %10830 = vmatpush1.msra.mxu0 0.0
    %10831 = vmatprep.subr.mxu0 0.0
    %10832 = vmatpush1.msra.mxu0 0.0
    %10833 = vmatprep.mubr.f32.mxu0 0.0
    %v10834 = vand.u32 %v10281, 4294901760
    %10835 = vmatmul.mubr.f32.gmra.mrb[0].mxu0 %v10834
    %v10836 = vpop.f32.mrb[0].mxu0
    %v10837 = vadd.f32 %v10718, %v10836
    %v10838 = vpop.f32.mrb[0].mxu0
    %10839 = vdwg.mxu0
    %10840 = vmatprep.subr.mxu0 0.0
    %v10841 = vand.u32 %v52, 4294901760
    %10842 = vmatpush1.msra.mxu0 %v10841
    %10843 = vmatprep.subr.mxu0 0.0
    %v10844 = vand.u32 %v53, 4294901760
    %10845 = vmatpush1.msra.mxu0 %v10844
    %10846 = vmatprep.subr.mxu0 0.0
    %v10847 = vand.u32 %v54, 4294901760
    %10848 = vmatpush1.msra.mxu0 %v10847
    %10849 = vmatprep.subr.mxu0 0.0
    %v10850 = vand.u32 %v55, 4294901760
    %10851 = vmatpush1.msra.mxu0 %v10850
    %10852 = vmatprep.subr.mxu0 0.0
    %v10853 = vand.u32 %v56, 4294901760
    %10854 = vmatpush1.msra.mxu0 %v10853
    %10855 = vmatprep.subr.mxu0 0.0
    %v10856 = vand.u32 %v57, 4294901760
    %10857 = vmatpush1.msra.mxu0 %v10856
    %10858 = vmatprep.subr.mxu0 0.0
    %v10859 = vand.u32 %v58, 4294901760
    %10860 = vmatpush1.msra.mxu0 %v10859
    %10861 = vmatprep.subr.mxu0 0.0
    %v10862 = vand.u32 %v59, 4294901760
    %10863 = vmatpush1.msra.mxu0 %v10862
    %10864 = vmatprep.subr.mxu0 0.0
    %v10865 = vand.u32 %v60, 4294901760
    %10866 = vmatpush1.msra.mxu0 %v10865
    %10867 = vmatprep.subr.mxu0 0.0
    %v10868 = vand.u32 %v61, 4294901760
    %10869 = vmatpush1.msra.mxu0 %v10868
    %10870 = vmatprep.subr.mxu0 0.0
    %v10871 = vand.u32 %v62, 4294901760
    %10872 = vmatpush1.msra.mxu0 %v10871
    %10873 = vmatprep.subr.mxu0 0.0
    %v10874 = vand.u32 %v63, 4294901760
    %10875 = vmatpush1.msra.mxu0 %v10874
    %10876 = vmatprep.subr.mxu0 0.0
    %v10877 = vand.u32 %v64, 4294901760
    %10878 = vmatpush1.msra.mxu0 %v10877
    %10879 = vmatprep.subr.mxu0 0.0
    %v10880 = vand.u32 %v65, 4294901760
    %10881 = vmatpush1.msra.mxu0 %v10880
    %10882 = vmatprep.subr.mxu0 0.0
    %v10883 = vand.u32 %v66, 4294901760
    %10884 = vmatpush1.msra.mxu0 %v10883
    %10885 = vmatprep.subr.mxu0 0.0
    %v10886 = vand.u32 %v67, 4294901760
    %10887 = vmatpush1.msra.mxu0 %v10886
    %10888 = vmatprep.subr.mxu0 0.0
    %10889 = vmatpush1.msra.mxu0 0.0
    %10890 = vmatprep.subr.mxu0 0.0
    %10891 = vmatpush1.msra.mxu0 0.0
    %10892 = vmatprep.subr.mxu0 0.0
    %10893 = vmatpush1.msra.mxu0 0.0
    %10894 = vmatprep.subr.mxu0 0.0
    %10895 = vmatpush1.msra.mxu0 0.0
    %10896 = vmatprep.subr.mxu0 0.0
    %10897 = vmatpush1.msra.mxu0 0.0
    %10898 = vmatprep.subr.mxu0 0.0
    %10899 = vmatpush1.msra.mxu0 0.0
    %10900 = vmatprep.subr.mxu0 0.0
    %10901 = vmatpush1.msra.mxu0 0.0
    %10902 = vmatprep.subr.mxu0 0.0
    %10903 = vmatpush1.msra.mxu0 0.0
    %10904 = vmatprep.subr.mxu0 0.0
    %10905 = vmatpush1.msra.mxu0 0.0
    %10906 = vmatprep.subr.mxu0 0.0
    %10907 = vmatpush1.msra.mxu0 0.0
    %10908 = vmatprep.subr.mxu0 0.0
    %10909 = vmatpush1.msra.mxu0 0.0
    %10910 = vmatprep.subr.mxu0 0.0
    %10911 = vmatpush1.msra.mxu0 0.0
    %10912 = vmatprep.subr.mxu0 0.0
    %10913 = vmatpush1.msra.mxu0 0.0
    %10914 = vmatprep.subr.mxu0 0.0
    %10915 = vmatpush1.msra.mxu0 0.0
    %10916 = vmatprep.subr.mxu0 0.0
    %10917 = vmatpush1.msra.mxu0 0.0
    %10918 = vmatprep.subr.mxu0 0.0
    %10919 = vmatpush1.msra.mxu0 0.0
    %10920 = vmatprep.mubr.f32.mxu0 0.0
    %v10921 = vand.u32 %v10281, 4294901760
    %10922 = vmatmul.mubr.f32.gmra.mrb[0].mxu0 %v10921
    %v10923 = vpop.f32.mrb[0].mxu0
    %v10924 = vadd.f32 %v10837, %v10923
    %v10925 = vpop.f32.mrb[0].mxu0
    %10926 = vdwg.mxu0
    %v10927 = vmax.f32 %v10924, 0.0
    %v10928 = vlaneseq
    %v10929 = vshrl.u32 %v10928, 7
    %v10930 = vsub.s32 0, %v10929
    %v10931 = vrot.slane %v70, %v10930
    %v10932 = vmul.f32 %v10927, %v10931
    %vm10933 = vcmask 254976
    %v10934 = vsel %vm10933, %v10932, 0.0
    %10935 = vadd.xlane.f32.xlu0 %v10934
    %v10936 = vpop.xlane.xlu0 %10935
    %v10937 = vlaneseq
    %v10938 = vshrl.u32 %v10937, 7
    %v10939 = vsub.s32 0, %v10938
    %v10940 = vrot.slane %v71, %v10939
    %v10941 = vadd.f32 %v10936, %v10940
    %v10942 = vxor.u32 %v10941, 2147483648
    %v10943 = vmul.f32 %v10942, 1.442695
    %v10944 = vpow.pop %v10943
    %v10945 = vadd.f32 %v10944, 1.0
    %v10946 = vrcp.pop %v10945
    %v10947 = vmul.f32 1.0, %v10946
    %vm10948 = vcmask 1024
    %10949 = vst.msk [vmem:[%s3] sm:$0x3] %vm10948, %v10947
    // Predicated region
    $region18: #{da_forward.1} parent=1 // pred_check
      _
    $region19: #{da_forward.1} parent=1 // pred_check_branch
      %10951 = sbr.rel (0) target = $region21
    $region20: #{da_forward.1} parent=1 // pred_region
      _
    $region21: #{da_forward.1} parent=1 // pred_fallthru
      _
    // Predicated region
    $region22: #{da_forward.1} parent=1 // pred_check
      _
    $region23: #{da_forward.1} parent=1 // pred_check_branch
      %10953 = sbr.rel (0) target = $region25
    $region24: #{da_forward.1} parent=1 // pred_region
      _
    $region25: #{da_forward.1} parent=1 // pred_fallthru
      _
    %10954 = vsyncpa [#allocation3], 1

</llo_original>
